<compile_context>
chip_gen: v6e
topology: v6e:2x2x1
jax: 0.10.0
libtpu: 0.0.40
codegen_flags: <defaults>
</compile_context>

<pallas_src>
import numpy as np
import jax
import jax.numpy as jnp
from jax.experimental import pallas as pl
from jax.experimental.pallas import tpu as pltpu

BN_EPS = 1e-5
BN_SCALE = float(1.0 / np.sqrt(1.0 + BN_EPS))   # eval-mode BN with fresh stats == scalar scale
LANE = 128
SUB = 16                                        # bf16 sublane tile


# ---------------------------------------------------------------------------
# hardware-derived VMEM limits / budgets
# ---------------------------------------------------------------------------
def _vmem_capacity():
    cap = 128 * 1024 * 1024
    try:
        info = pltpu.get_tpu_info()
        cap = int(getattr(info, "vmem_capacity_bytes", cap))
    except Exception:
        pass
    return cap


_VMEM_CAP = _vmem_capacity()
_VMEM_LIMIT = int(_VMEM_CAP * 0.85)     # headroom for Mosaic internal scratch (v7x: ~54 MiB)
_VMEM_BUDGET = int(_VMEM_CAP * 0.55)    # budget used when picking the batch tile


# ---------------------------------------------------------------------------
# helpers
# ---------------------------------------------------------------------------
_USE_BUFFERED1 = False


def _probe_buffered1():
    """Enable single-buffering of grid-invariant operands if this jax/Mosaic build supports
    pipeline_mode=pl.Buffered(1); otherwise fall back to default double-buffering."""
    global _USE_BUFFERED1
    try:
        def k(x_ref, o_ref):
            o_ref[...] = x_ref[...] + 1.0

        f = pl.pallas_call(
            k,
            out_shape=jax.ShapeDtypeStruct((8, 128), jnp.float32),
            grid=(1,),
            in_specs=[pl.BlockSpec((8, 128), lambda i: (0, 0),
                                   pipeline_mode=pl.Buffered(1))],
            out_specs=pl.BlockSpec((8, 128), lambda i: (0, 0)),
        )
        jax.block_until_ready(f(jnp.zeros((8, 128), jnp.float32)))
        _USE_BUFFERED1 = True
    except Exception:
        _USE_BUFFERED1 = False


def _const_spec(shape):
    """BlockSpec for a grid-invariant operand (constant index map, single-buffered if possible)."""
    nd = len(shape)
    imap = lambda *_: (0,) * nd
    if _USE_BUFFERED1:
        return pl.BlockSpec(shape, imap, pipeline_mode=pl.Buffered(1))
    return pl.BlockSpec(shape, imap)


def _pick_bt(batch, stream_bytes_per_b, const_bytes):
    """Largest divisor bt of `batch` such that constants (+single/double buffering) plus the
    double-buffered streamed blocks fit the VMEM budget; prefer grid length >= 2 (v7x 2 TCs)."""
    mult = 1 if _USE_BUFFERED1 else 2
    fits = [d for d in range(1, batch + 1)
            if batch % d == 0
            and const_bytes * mult + 2 * d * stream_bytes_per_b <= _VMEM_BUDGET]
    if not fits:
        return 1
    pref = [d for d in fits if batch // d >= 2]
    return max(pref) if pref else max(fits)


def _pad_up(n, m):
    return ((n + m - 1) // m) * m


def _pad_mat(w, rows, cols):
    return jnp.pad(w, ((0, rows - w.shape[0]), (0, cols - w.shape[1])))


def _to_element_major(x, p_pad, c_pad):
    """[B, P, C] f32 -> element-major bf16 [P_pad, B*C_pad] (one-time layout plumbing)."""
    B, P, C = x.shape
    x = jnp.pad(x, ((0, 0), (0, p_pad - P), (0, c_pad - C)))
    x = jnp.transpose(x, (1, 0, 2)).reshape(p_pad, B * c_pad)
    return x.astype(jnp.bfloat16)


# ---------------------------------------------------------------------------
# Fused stage of K=2 Hodge-Laguerre conv blocks (one pallas_call per stage):
#   for each block:  y = x @ W0 + (A @ x) @ W1 + b  -> ReLU (BN folded)
#                    [-> (1-a)*y + a*x0]
# Activation stays in VMEM between the blocks of a stage.
# ---------------------------------------------------------------------------
def hl_stage(x, blocks, A, *, x0=None, alpha=0.0):
    P, BC = x.shape
    cin0 = blocks[0]["W0"].shape[0]
    cout = blocks[0]["W0"].shape[1]
    B = BC // cin0
    use_res = x0 is not None
    nblk = len(blocks)

    stream = 2 * P * (cin0 + cout + (cout if use_res else 0))        # bf16 bytes / batch elem
    const = 2 * P * P
    for blk in blocks:
        const += 2 * (blk["W0"].size + blk["W1"].size) + 4 * blk["b"].size
    bt = _pick_bt(B, stream, const)

    inputs = [x, A]
    in_specs = [pl.BlockSpec((P, bt * cin0), lambda i: (0, i)),
                _const_spec((P, P))]
    if use_res:
        inputs.append(x0)
        in_specs.append(pl.BlockSpec((P, bt * cout), lambda i: (0, i)))
    for blk in blocks:
        inputs += [blk["W0"], blk["W1"], blk["b"]]
        in_specs += [_const_spec(blk["W0"].shape),
                     _const_spec(blk["W1"].shape),
                     _const_spec(blk["b"].shape)]

    def kernel(*refs):
        refs = list(refs)
        o_ref = refs.pop()
        x_ref, a_ref = refs[0], refs[1]
        idx = 2
        x0_ref = None
        if use_res:
            x0_ref = refs[2]
            idx = 3
        wrefs = refs[idx:]

        a_v = a_ref[...]                       # [P, P] bf16, loaded once per grid step
        cur = x_ref[...]                       # [P, bt*cin] bf16
        cin = cin0
        for bi in range(nblk):
            w0 = wrefs[3 * bi][...]
            w1 = wrefs[3 * bi + 1][...]
            bias = wrefs[3 * bi + 2][...]
            # batch folded into the MXU free dim: ONE [P,P] x [P, bt*cin] matmul
            ax = jnp.dot(a_v, cur, preferred_element_type=jnp.float32)
            outs = []
            for b in range(bt):
                xb = cur[:, b * cin:(b + 1) * cin]
                axb = ax[:, b * cin:(b + 1) * cin].astype(jnp.bfloat16)
                hb = (jnp.dot(xb, w0, preferred_element_type=jnp.float32)
                      + jnp.dot(axb, w1, preferred_element_type=jnp.float32)
                      + bias)
                hb = jnp.maximum(hb, 0.0)      # BN scale already folded into W/b
                if use_res:
                    x0b = x0_ref[:, b * cout:(b + 1) * cout].astype(jnp.float32)
                    hb = (1.0 - alpha) * hb + alpha * x0b
                outs.append(hb.astype(jnp.bfloat16))
            cur = outs[0] if bt == 1 else jnp.concatenate(outs, axis=1)
            cin = cout
        o_ref[...] = cur

    return pl.pallas_call(
        kernel,
        out_shape=jax.ShapeDtypeStruct((P, B * cout), jnp.bfloat16),
        grid=(B // bt,),
        in_specs=in_specs,
        out_specs=pl.BlockSpec((P, bt * cout), lambda i: (0, i)),
        compiler_params=pltpu.CompilerParams(
            dimension_semantics=("parallel",),
            vmem_limit_bytes=_VMEM_LIMIT),
    )(*inputs)


# ---------------------------------------------------------------------------
# K=1 conv (projection of the residual stream):  y = x @ W0 + b
# ---------------------------------------------------------------------------
def k1_block(x, W, bias):
    P, BC = x.shape
    cin, cout = W.shape
    B = BC // cin
    stream = 2 * P * (cin + cout)
    const = 2 * W.size + 4 * bias.size
    bt = _pick_bt(B, stream, const)

    def kernel(x_ref, w_ref, b_ref, o_ref):
        xv = x_ref[...]
        w = w_ref[...]
        bv = b_ref[...]
        for b in range(bt):
            hb = jnp.dot(xv[:, b * cin:(b + 1) * cin], w,
                         preferred_element_type=jnp.float32) + bv
            o_ref[:, b * cout:(b + 1) * cout] = hb.astype(o_ref.dtype)

    return pl.pallas_call(
        kernel,
        out_shape=jax.ShapeDtypeStruct((P, B * cout), jnp.bfloat16),
        grid=(B // bt,),
        in_specs=[pl.BlockSpec((P, bt * cin), lambda i: (0, i)),
                  _const_spec(W.shape),
                  _const_spec(bias.shape)],
        out_specs=pl.BlockSpec((P, bt * cout), lambda i: (0, i)),
        compiler_params=pltpu.CompilerParams(
            dimension_semantics=("parallel",),
            vmem_limit_bytes=_VMEM_LIMIT),
    )(x, W, bias)


# ---------------------------------------------------------------------------
# Fully fused cross-stream interaction:
#   t   = M @ x_other                          (M carries the 1/D or 1/2 row scaling)
#   h1  = ReLU(x_self @ Wtop + t @ Wbot + b1)  (concat-conv on [x_self, t], BN folded)
#   out = ReLU(h1 @ W2 + b2)                   (second K=1 conv, BN folded)
# ---------------------------------------------------------------------------
def cross_block(x_self, x_other, M, p_cross, p_conv2):
    P, BF = x_self.shape
    Q = x_other.shape[0]
    F = p_cross["Wtop"].shape[0]
    B = BF // F
    stream = 2 * (P * F + Q * F + P * F)
    const = 2 * (P * Q + 3 * F * F) + 4 * 2 * F
    bt = _pick_bt(B, stream, const)

    def kernel(xs_ref, xo_ref, m_ref, wt_ref, wb_ref, b1_ref, w2_ref, b2_ref, o_ref):
        # one [P,Q] x [Q, bt*F] MXU call for the incidence product (batch in free dim)
        t = jnp.dot(m_ref[...], xo_ref[...], preferred_element_type=jnp.float32)
        xs = xs_ref[...]
        wt, wb, w2 = wt_ref[...], wb_ref[...], w2_ref[...]
        b1, b2 = b1_ref[...], b2_ref[...]
        for b in range(bt):
            h1 = (jnp.dot(xs[:, b * F:(b + 1) * F], wt,
                          preferred_element_type=jnp.float32)
                  + jnp.dot(t[:, b * F:(b + 1) * F].astype(jnp.bfloat16), wb,
                            preferred_element_type=jnp.float32)
                  + b1)
            h1 = jnp.maximum(h1, 0.0).astype(jnp.bfloat16)
            h2 = jnp.dot(h1, w2, preferred_element_type=jnp.float32) + b2
            o_ref[:, b * F:(b + 1) * F] = jnp.maximum(h2, 0.0).astype(o_ref.dtype)

    return pl.pallas_call(
        kernel,
        out_shape=jax.ShapeDtypeStruct((P, B * F), jnp.bfloat16),
        grid=(B // bt,),
        in_specs=[pl.BlockSpec((P, bt * F), lambda i: (0, i)),
                  pl.BlockSpec((Q, bt * F), lambda i: (0, i)),
                  _const_spec((P, Q)),
                  _const_spec((F, F)),
                  _const_spec((F, F)),
                  _const_spec((1, F)),
                  _const_spec((F, F)),
                  _const_spec((1, F))],
        out_specs=pl.BlockSpec((P, bt * F), lambda i: (0, i)),
        compiler_params=pltpu.CompilerParams(
            dimension_semantics=("parallel",),
            vmem_limit_bytes=_VMEM_LIMIT),
    )(x_self, x_other, M, p_cross["Wtop"], p_cross["Wbot"], p_cross["b"],
      p_conv2["W0"], p_conv2["b"])


# ---------------------------------------------------------------------------
# Fused global-mean-pool + final Linear:
#   logits = mean_E(x_s) @ Ws + mean_N(x_t) @ Wt + b
# Padded graph-element rows are masked out of the mean via an iota mask.
# ---------------------------------------------------------------------------
def pool_head(x_s, x_t, Ws, Wt, bias, *, e_true, n_true, batch):
    E_p, _ = x_s.shape
    N_p, _ = x_t.shape
    Fs, C = Ws.shape
    Ft = Wt.shape[0]

    def kernel(xs_ref, xt_ref, ws_ref, wt_ref, b_ref, o_ref):
        xs = xs_ref[...].astype(jnp.float32)
        xt = xt_ref[...].astype(jnp.float32)
        es = jax.lax.broadcasted_iota(jnp.int32, xs.shape, 0)
        nt = jax.lax.broadcasted_iota(jnp.int32, xt.shape, 0)
        ms = jnp.sum(jnp.where(es < e_true, xs, 0.0), axis=0, keepdims=True) * (1.0 / e_true)
        mt = jnp.sum(jnp.where(nt < n_true, xt, 0.0), axis=0, keepdims=True) * (1.0 / n_true)
        rows = []
        for b in range(batch):
            msb = ms[:, b * Fs:(b + 1) * Fs].astype(jnp.bfloat16)
            mtb = mt[:, b * Ft:(b + 1) * Ft].astype(jnp.bfloat16)
            rows.append(jnp.dot(msb, ws_ref[...], preferred_element_type=jnp.float32)
                        + jnp.dot(mtb, wt_ref[...], preferred_element_type=jnp.float32)
                        + b_ref[...])
        o_ref[...] = rows[0] if batch == 1 else jnp.concatenate(rows, axis=0)

    return pl.pallas_call(
        kernel,
        out_shape=jax.ShapeDtypeStruct((batch, C), jnp.float32),
        grid=(1,),
        in_specs=[pl.BlockSpec(x_s.shape, lambda i: (0, 0)),
                  pl.BlockSpec(x_t.shape, lambda i: (0, 0)),
                  _const_spec((Fs, C)),
                  _const_spec((Ft, C)),
                  _const_spec((1, C))],
        out_specs=pl.BlockSpec((batch, C), lambda i: (0, 0)),
        compiler_params=pltpu.CompilerParams(
            dimension_semantics=("arbitrary",),
            vmem_limit_bytes=_VMEM_LIMIT),
    )(x_s, x_t, Ws, Wt, bias)


# ---------------------------------------------------------------------------
# Deterministic parameter init (shapes follow the PyTorch __init__, raw f32)
# ---------------------------------------------------------------------------
def _uniform(key, shape, scale):
    return jax.random.uniform(key, shape, jnp.float32, -scale, scale)


def conv_params(key, cin, cout, K):
    ks = jax.random.split(key, K + 1)
    scale = 1.0 / np.sqrt(cin)
    p = {"W0": _uniform(ks[0], (cin, cout), scale),
         "b": _uniform(ks[-1], (cout,), scale)}
    if K >= 2:
        p["W1"] = _uniform(ks[1], (cin, cout), scale)
    return p


def init_params(key, filters, channels, num_classes, node_in=5, edge_in=9):
    params = {}
    keys = iter(jax.random.split(key, 256))
    params["HL_EC"] = conv_params(next(keys), edge_in, filters[0], 2)
    params["HL_NC"] = conv_params(next(keys), node_in, filters[0], 2)
    for prefix in ("HL_EC", "HL_NC"):
        cin = filters[0]
        for i, cout in enumerate(filters):
            blocks = [conv_params(next(keys), cin, cout, 2)]
            for _ in range(channels[i] - 1):
                blocks.append(conv_params(next(keys), cout, cout, 2))
            params["%s%d" % (prefix, i)] = blocks
            cin = cout
    for i in range(len(filters) - 1):
        f = filters[i]
        params["n0_proj%d" % i] = conv_params(next(keys), f, filters[i + 1], 1)
        params["e0_proj%d" % i] = conv_params(next(keys), f, filters[i + 1], 1)
        params["int_e2n%d" % i] = [conv_params(next(keys), 2 * f, f, 1),
                                   conv_params(next(keys), f, f, 1)]
        params["int_n2e%d" % i] = [conv_params(next(keys), 2 * f, f, 1),
                                   conv_params(next(keys), f, f, 1)]
    params["out"] = conv_params(next(keys), 2 * filters[-1], num_classes, 1)
    return params


# ---------------------------------------------------------------------------
# Host-side prep: BN fold, lane padding (128), sublane padding (16), bf16 cast,
# weight splits, A = I - L, row-scaled incidence operators.
# ---------------------------------------------------------------------------
def _prep_conv(p, cin_p, cout_p, bn):
    s = BN_SCALE if bn else 1.0
    out = {"W0": _pad_mat(p["W0"] * s, cin_p, cout_p).astype(jnp.bfloat16),
           "b": jnp.pad(p["b"] * s, (0, cout_p - p["b"].shape[0]))
                   .reshape(1, cout_p).astype(jnp.float32)}
    if "W1" in p:
        out["W1"] = _pad_mat(p["W1"] * s, cin_p, cout_p).astype(jnp.bfloat16)
    return out


def _prep_cross(p, f, f_p):
    """Split the [2F, F] concat-conv weight into self / cross halves (BN folded, lane padded).
    Reference concatenates [x_self, M @ x_other] in that order -> W[:f] = self, W[f:] = cross."""
    W = p["W0"] * BN_SCALE
    return {"Wtop": _pad_mat(W[:f], f_p, f_p).astype(jnp.bfloat16),
            "Wbot": _pad_mat(W[f:], f_p, f_p).astype(jnp.bfloat16),
            "b": jnp.pad(p["b"] * BN_SCALE, (0, f_p - f)).reshape(1, f_p).astype(jnp.float32)}


def prepare_params(params, filters, num_classes, L_s, L_t, Babs, D, node_in=5, edge_in=9):
    fp = [_pad_up(f, LANE) for f in filters]
    cin_s_p = _pad_up(edge_in, LANE)
    cin_t_p = _pad_up(node_in, LANE)
    prep = {"fp": fp, "cin_s_p": cin_s_p, "cin_t_p": cin_t_p}
    prep["HL_EC"] = [_prep_conv(params["HL_EC"], cin_s_p, fp[0], bn=True)]
    prep["HL_NC"] = [_prep_conv(params["HL_NC"], cin_t_p, fp[0], bn=True)]
    for prefix in ("HL_EC", "HL_NC"):
        cin_p = fp[0]
        for i in range(len(filters)):
            raw = params["%s%d" % (prefix, i)]
            blocks = [_prep_conv(raw[0], cin_p, fp[i], bn=True)]
            for blk in raw[1:]:
                blocks.append(_prep_conv(blk, fp[i], fp[i], bn=True))
            prep["%s%d" % (prefix, i)] = blocks
            cin_p = fp[i]
    for i in range(len(filters) - 1):
        f, f_p = filters[i], fp[i]
        prep["n0_proj%d" % i] = _prep_conv(params["n0_proj%d" % i], f_p, fp[i + 1], bn=False)
        prep["e0_proj%d" % i] = _prep_conv(params["e0_proj%d" % i], f_p, fp[i + 1], bn=False)
        prep["int_e2n%d" % i] = [_prep_cross(params["int_e2n%d" % i][0], f, f_p),
                                 _prep_conv(params["int_e2n%d" % i][1], f_p, f_p, bn=True)]
        prep["int_n2e%d" % i] = [_prep_cross(params["int_n2e%d" % i][0], f, f_p),
                                 _prep_conv(params["int_n2e%d" % i][1], f_p, f_p, bn=True)]
    # head: split the [2F, ncls] Linear into edge-/node-stream halves, pad to lane width
    F, Fp = filters[-1], fp[-1]
    ncls_p = _pad_up(num_classes, LANE)
    Wout, bout = params["out"]["W0"], params["out"]["b"]
    prep["out"] = {"Ws": _pad_mat(Wout[:F], Fp, ncls_p).astype(jnp.bfloat16),
                   "Wt": _pad_mat(Wout[F:], Fp, ncls_p).astype(jnp.bfloat16),
                   "b": jnp.pad(bout, (0, ncls_p - num_classes))
                           .reshape(1, ncls_p).astype(jnp.float32)}
    # shared topology operators: A = I - L (Laguerre term) and row-scaled |incidence|,
    # padded with zeros to sublane-aligned element counts (padded rows never feed real rows)
    N, E = Babs.shape
    N_p, E_p = _pad_up(N, SUB), _pad_up(E, SUB)
    prep["A_t"] = _pad_mat(jnp.eye(N, dtype=jnp.float32) - L_t, N_p, N_p).astype(jnp.bfloat16)
    prep["A_s"] = _pad_mat(jnp.eye(E, dtype=jnp.float32) - L_s, E_p, E_p).astype(jnp.bfloat16)
    inv_D = jnp.where(D > 0, 1.0 / jnp.maximum(D, 1e-12), 0.0).reshape(-1, 1)
    prep["M_e2n"] = _pad_mat(inv_D * Babs, N_p, E_p).astype(jnp.bfloat16)   # (1/D)*|B1|  [N,E]
    prep["M_n2e"] = _pad_mat(0.5 * Babs.T, E_p, N_p).astype(jnp.bfloat16)   # |B1|^T/2    [E,N]
    prep["N"], prep["E"], prep["N_p"], prep["E_p"] = N, E, N_p, E_p
    return prep


# ---------------------------------------------------------------------------
# Full forward pass (mirrors HL_HGCNN.forward)
# ---------------------------------------------------------------------------
def build_forward(prep, channels, alpha, num_classes):
    A_s, A_t = prep["A_s"], prep["A_t"]
    M_e2n, M_n2e = prep["M_e2n"], prep["M_n2e"]
    E_p, N_p = prep["E_p"], prep["N_p"]
    E_true, N_true = prep["E"], prep["N"]
    cin_s_p, cin_t_p = prep["cin_s_p"], prep["cin_t_p"]

    def forward(x_s_raw, x_t_raw):
        batch = x_s_raw.shape[0]
        x_s = _to_element_major(x_s_raw, E_p, cin_s_p)     # [E_p, B*128] bf16
        x_t = _to_element_major(x_t_raw, N_p, cin_t_p)     # [N_p, B*128] bf16

        # stems: single-block "stages" (conv K=2 -> BN -> ReLU)
        x_s = hl_stage(x_s, prep["HL_EC"], A_s)
        x_t = hl_stage(x_t, prep["HL_NC"], A_t)
        x_s0, x_t0 = x_s, x_t

        for i in range(len(channels)):
            x_t = hl_stage(x_t, prep["HL_NC%d" % i], A_t, x0=x_t0, alpha=alpha)
            x_s = hl_stage(x_s, prep["HL_EC%d" % i], A_s, x0=x_s0, alpha=alpha)
            if i < len(channels) - 1:
                e2n, n2e = prep["int_e2n%d" % i], prep["int_n2e%d" % i]
                # fused: incidence product + concat-conv + BN + ReLU + conv + BN + ReLU
                new_xt = cross_block(x_t, x_s, M_e2n, e2n[0], e2n[1])
                new_xs = cross_block(x_s, x_t, M_n2e, n2e[0], n2e[1])
                x_t, x_s = new_xt, new_xs
                p = prep["n0_proj%d" % i]
                x_t0 = k1_block(x_t0, p["W0"], p["b"])
                p = prep["e0_proj%d" % i]
                x_s0 = k1_block(x_s0, p["W0"], p["b"])

        p = prep["out"]
        logits = pool_head(x_s, x_t, p["Ws"], p["Wt"], p["b"],
                           e_true=E_true, n_true=N_true, batch=batch)
        return logits[:, :num_classes]

    return forward


# ---------------------------------------------------------------------------
# Synthetic grid-graph topology (small stand-in for the 32x32 CIFAR grid)
# ---------------------------------------------------------------------------
def make_grid_incidence(rows, cols):
    N = rows * cols
    edges = []
    for r in range(rows):
        for c in range(cols):
            u = r * cols + c
            if c + 1 < cols:
                edges.append((u, u + 1))
            if r + 1 < rows:
                edges.append((u, u + cols))
    E = len(edges)
    B1 = np.zeros((N, E), np.float32)
    for e, (u, v) in enumerate(edges):
        B1[u, e] = -1.0
        B1[v, e] = 1.0
    return B1


if __name__ == "__main__":
    key = jax.random.PRNGKey(0)

    # small shapes consistent with the module (node features 5-d, edge features 9-d)
    rows, cols = 4, 4                 # N = 16 nodes, E = 24 edges (vs 1024 / 3906 in CIFAR)
    batch = 2
    filters = [16, 32, 64, 128]       # small stand-in for [64, 128, 256, 512]
    channels = [2, 2, 2, 2]
    alpha = 0.5
    num_classes = 10

    B1 = make_grid_incidence(rows, cols)
    N, E = B1.shape
    L_t = jnp.asarray(B1 @ B1.T / 4.0)          # node (down-)Hodge Laplacian, scaled
    L_s = jnp.asarray(B1.T @ B1 / 4.0)          # edge Hodge Laplacian (grid has no triangles)
    Babs = jnp.asarray(np.abs(B1))              # |par1|
    D = jnp.asarray(np.abs(B1).sum(axis=1))     # node degrees

    k_params, k_xs, k_xt = jax.random.split(key, 3)
    params = init_params(k_params, filters, channels, num_classes)
    prep = prepare_params(params, filters, num_classes, L_s, L_t, Babs, D)

    x_s = jax.random.normal(k_xs, (batch, E, 9), jnp.float32)   # data.x_s
    x_t = jax.random.normal(k_xt, (batch, N, 5), jnp.float32)   # data.x_t

    _probe_buffered1()   # decide whether single-buffered constant BlockSpecs are available

    fwd = jax.jit(build_forward(prep, channels, alpha, num_classes))
    logits = fwd(x_s, x_t)
    jax.block_until_ready(logits)
    assert logits.shape == (batch, num_classes)
    print("KERNEL_OK")
</pallas_src>

<mosaic_0001>
module attributes {stable_mosaic.version = 11 : i64} {
  func.func @k(%arg0: i32, %arg1: memref<8x128xf32, #tpu.memory_space<vmem>>, %arg2: memref<8x128xf32, #tpu.memory_space<vmem>>) attributes {dimension_semantics = [#tpu.dimension_semantics<arbitrary>], iteration_bounds = array<i64: 1>, scalar_prefetch = 0 : i64, scratch_operands = 0 : i64, tpu.core_type = #tpu.core_type<tc>, window_params = [{pipeline_mode = #tpu.pipeline_mode<synchronous>, transform_indices = @transform_0, window_bounds = array<i64: 8, 128>}, {pipeline_mode = #tpu.pipeline_mode<synchronous>, transform_indices = @transform_1, window_bounds = array<i64: 8, 128>}]} {
    %c0 = arith.constant 0 : index
    %c0_0 = arith.constant 0 : index
    %0 = vector.load %arg1[%c0, %c0_0] : memref<8x128xf32, #tpu.memory_space<vmem>>, vector<8x128xf32>
    %cst = arith.constant 1.000000e+00 : f32
    %1 = vector.broadcast %cst : f32 to vector<8x128xf32>
    %2 = arith.addf %0, %1 : vector<8x128xf32>
    %c0_1 = arith.constant 0 : index
    %c0_2 = arith.constant 0 : index
    %3 = vector.load %arg2[%c0_1, %c0_2] : memref<8x128xf32, #tpu.memory_space<vmem>>, vector<8x128xf32>
    tpu.vector_store %arg2[%c0_1, %c0_2], %2 {strides = array<i32>} : memref<8x128xf32, #tpu.memory_space<vmem>>, vector<8x128xf32>,
    return
  }
  func.func @transform_0(%arg0: i32) -> (i32, i32) {
    %c0_i32 = arith.constant 0 : i32
    %c0_i32_0 = arith.constant 0 : i32
    %c0_i32_1 = arith.constant 0 : i32
    return %c0_i32, %c0_i32_0 : i32, i32
  }
  func.func @transform_1(%arg0: i32) -> (i32, i32) {
    %c0_i32 = arith.constant 0 : i32
    %c0_i32_0 = arith.constant 0 : i32
    %c0_i32_1 = arith.constant 0 : i32
    return %c0_i32, %c0_i32_0 : i32, i32
  }
}

module attributes {stable_mosaic.version = 11 : i64} {
  func.func @kernel(%arg0: i32, %arg1: memref<32x128xbf16, #tpu.memory_space<vmem>>, %arg2: memref<32x32xbf16, #tpu.memory_space<vmem>>, %arg3: memref<128x128xbf16, #tpu.memory_space<vmem>>, %arg4: memref<128x128xbf16, #tpu.memory_space<vmem>>, %arg5: memref<1x128xf32, #tpu.memory_space<vmem>>, %arg6: memref<32x128xbf16, #tpu.memory_space<vmem>>) attributes {dimension_semantics = [#tpu.dimension_semantics<parallel>], iteration_bounds = array<i64: 2>, scalar_prefetch = 0 : i64, scratch_operands = 0 : i64, tpu.core_type = #tpu.core_type<tc>, window_params = [{transform_indices = @transform_0, window_bounds = array<i64: 32, 128>}, {pipeline_mode = #tpu.pipeline_mode<synchronous>, transform_indices = @transform_1, window_bounds = array<i64: 32, 32>}, {pipeline_mode = #tpu.pipeline_mode<synchronous>, transform_indices = @transform_2, window_bounds = array<i64: 128, 128>}, {pipeline_mode = #tpu.pipeline_mode<synchronous>, transform_indices = @transform_3, window_bounds = array<i64: 128, 128>}, {pipeline_mode = #tpu.pipeline_mode<synchronous>, transform_indices = @transform_4, window_bounds = array<i64: 1, 128>}, {transform_indices = @transform_5, window_bounds = array<i64: 32, 128>}]} {
    %c0 = arith.constant 0 : index
    %c0_0 = arith.constant 0 : index
    %0 = vector.load %arg2[%c0, %c0_0] : memref<32x32xbf16, #tpu.memory_space<vmem>>, vector<32x32xbf16>
    %c0_1 = arith.constant 0 : index
    %c0_2 = arith.constant 0 : index
    %1 = vector.load %arg1[%c0_1, %c0_2] : memref<32x128xbf16, #tpu.memory_space<vmem>>, vector<32x128xbf16>
    %c0_3 = arith.constant 0 : index
    %c0_4 = arith.constant 0 : index
    %2 = vector.load %arg3[%c0_3, %c0_4] : memref<128x128xbf16, #tpu.memory_space<vmem>>, vector<128x128xbf16>
    %c0_5 = arith.constant 0 : index
    %c0_6 = arith.constant 0 : index
    %3 = vector.load %arg4[%c0_5, %c0_6] : memref<128x128xbf16, #tpu.memory_space<vmem>>, vector<128x128xbf16>
    %c0_7 = arith.constant 0 : index
    %c0_8 = arith.constant 0 : index
    %4 = vector.load %arg5[%c0_7, %c0_8] : memref<1x128xf32, #tpu.memory_space<vmem>>, vector<1x128xf32>
    %cst = arith.constant dense<0.000000e+00> : vector<32x128xf32>
    %5 = tpu.matmul %0, %1, %cst {dimension_numbers = #tpu.dot_dimension_numbers<[1], [0], [0], [1], [0, 0, 1, 1], [], []>} : vector<32x32xbf16>, vector<32x128xbf16>, vector<32x128xf32> -> vector<32x128xf32>
    %6 = arith.truncf %5 : vector<32x128xf32> to vector<32x128xbf16>
    %cst_9 = arith.constant dense<0.000000e+00> : vector<32x128xf32>
    %7 = tpu.matmul %1, %2, %cst_9 {dimension_numbers = #tpu.dot_dimension_numbers<[1], [0], [0], [1], [0, 0, 1, 1], [], []>} : vector<32x128xbf16>, vector<128x128xbf16>, vector<32x128xf32> -> vector<32x128xf32>
    %cst_10 = arith.constant dense<0.000000e+00> : vector<32x128xf32>
    %8 = tpu.matmul %6, %3, %cst_10 {dimension_numbers = #tpu.dot_dimension_numbers<[1], [0], [0], [1], [0, 0, 1, 1], [], []>} : vector<32x128xbf16>, vector<128x128xbf16>, vector<32x128xf32> -> vector<32x128xf32>
    %9 = arith.addf %7, %8 : vector<32x128xf32>
    %10 = vector.broadcast %4 : vector<1x128xf32> to vector<32x128xf32>
    %11 = arith.addf %9, %10 : vector<32x128xf32>
    %cst_11 = arith.constant 0.000000e+00 : f32
    %12 = vector.broadcast %cst_11 : f32 to vector<32x128xf32>
    %13 = arith.maximumf %11, %12 : vector<32x128xf32>
    %14 = arith.truncf %13 : vector<32x128xf32> to vector<32x128xbf16>
    %c0_12 = arith.constant 0 : index
    %c0_13 = arith.constant 0 : index
    %15 = vector.load %arg6[%c0_12, %c0_13] : memref<32x128xbf16, #tpu.memory_space<vmem>>, vector<32x128xbf16>
    tpu.vector_store %arg6[%c0_12, %c0_13], %14 {strides = array<i32>} : memref<32x128xbf16, #tpu.memory_space<vmem>>, vector<32x128xbf16>,
    return
  }
  func.func @transform_0(%arg0: i32) -> (i32, i32) {
    %c0_i32 = arith.constant 0 : i32
    %c0_i32_0 = arith.constant 0 : i32
    return %c0_i32, %arg0 : i32, i32
  }
  func.func @transform_1(%arg0: i32) -> (i32, i32) {
    %c0_i32 = arith.constant 0 : i32
    %c0_i32_0 = arith.constant 0 : i32
    %c0_i32_1 = arith.constant 0 : i32
    return %c0_i32, %c0_i32_0 : i32, i32
  }
  func.func @transform_2(%arg0: i32) -> (i32, i32) {
    %c0_i32 = arith.constant 0 : i32
    %c0_i32_0 = arith.constant 0 : i32
    %c0_i32_1 = arith.constant 0 : i32
    return %c0_i32, %c0_i32_0 : i32, i32
  }
  func.func @transform_3(%arg0: i32) -> (i32, i32) {
    %c0_i32 = arith.constant 0 : i32
    %c0_i32_0 = arith.constant 0 : i32
    %c0_i32_1 = arith.constant 0 : i32
    return %c0_i32, %c0_i32_0 : i32, i32
  }
  func.func @transform_4(%arg0: i32) -> (i32, i32) {
    %c0_i32 = arith.constant 0 : i32
    %c0_i32_0 = arith.constant 0 : i32
    %c0_i32_1 = arith.constant 0 : i32
    return %c0_i32, %c0_i32_0 : i32, i32
  }
  func.func @transform_5(%arg0: i32) -> (i32, i32) {
    %c0_i32 = arith.constant 0 : i32
    %c0_i32_0 = arith.constant 0 : i32
    return %c0_i32, %arg0 : i32, i32
  }
}

module attributes {stable_mosaic.version = 11 : i64} {
  func.func @kernel(%arg0: i32, %arg1: memref<32x128xbf16, #tpu.memory_space<vmem>>, %arg2: memref<32x32xbf16, #tpu.memory_space<vmem>>, %arg3: memref<32x128xbf16, #tpu.memory_space<vmem>>, %arg4: memref<128x128xbf16, #tpu.memory_space<vmem>>, %arg5: memref<128x128xbf16, #tpu.memory_space<vmem>>, %arg6: memref<1x128xf32, #tpu.memory_space<vmem>>, %arg7: memref<128x128xbf16, #tpu.memory_space<vmem>>, %arg8: memref<128x128xbf16, #tpu.memory_space<vmem>>, %arg9: memref<1x128xf32, #tpu.memory_space<vmem>>, %arg10: memref<32x128xbf16, #tpu.memory_space<vmem>>) attributes {dimension_semantics = [#tpu.dimension_semantics<parallel>], iteration_bounds = array<i64: 2>, scalar_prefetch = 0 : i64, scratch_operands = 0 : i64, tpu.core_type = #tpu.core_type<tc>, window_params = [{transform_indices = @transform_0, window_bounds = array<i64: 32, 128>}, {pipeline_mode = #tpu.pipeline_mode<synchronous>, transform_indices = @transform_1, window_bounds = array<i64: 32, 32>}, {transform_indices = @transform_2, window_bounds = array<i64: 32, 128>}, {pipeline_mode = #tpu.pipeline_mode<synchronous>, transform_indices = @transform_3, window_bounds = array<i64: 128, 128>}, {pipeline_mode = #tpu.pipeline_mode<synchronous>, transform_indices = @transform_4, window_bounds = array<i64: 128, 128>}, {pipeline_mode = #tpu.pipeline_mode<synchronous>, transform_indices = @transform_5, window_bounds = array<i64: 1, 128>}, {pipeline_mode = #tpu.pipeline_mode<synchronous>, transform_indices = @transform_6, window_bounds = array<i64: 128, 128>}, {pipeline_mode = #tpu.pipeline_mode<synchronous>, transform_indices = @transform_7, window_bounds = array<i64: 128, 128>}, {pipeline_mode = #tpu.pipeline_mode<synchronous>, transform_indices = @transform_8, window_bounds = array<i64: 1, 128>}, {transform_indices = @transform_9, window_bounds = array<i64: 32, 128>}]} {
    %c0 = arith.constant 0 : index
    %c0_0 = arith.constant 0 : index
    %0 = vector.load %arg2[%c0, %c0_0] : memref<32x32xbf16, #tpu.memory_space<vmem>>, vector<32x32xbf16>
    %c0_1 = arith.constant 0 : index
    %c0_2 = arith.constant 0 : index
    %1 = vector.load %arg1[%c0_1, %c0_2] : memref<32x128xbf16, #tpu.memory_space<vmem>>, vector<32x128xbf16>
    %c0_3 = arith.constant 0 : index
    %c0_4 = arith.constant 0 : index
    %2 = vector.load %arg4[%c0_3, %c0_4] : memref<128x128xbf16, #tpu.memory_space<vmem>>, vector<128x128xbf16>
    %c0_5 = arith.constant 0 : index
    %c0_6 = arith.constant 0 : index
    %3 = vector.load %arg5[%c0_5, %c0_6] : memref<128x128xbf16, #tpu.memory_space<vmem>>, vector<128x128xbf16>
    %c0_7 = arith.constant 0 : index
    %c0_8 = arith.constant 0 : index
    %4 = vector.load %arg6[%c0_7, %c0_8] : memref<1x128xf32, #tpu.memory_space<vmem>>, vector<1x128xf32>
    %cst = arith.constant dense<0.000000e+00> : vector<32x128xf32>
    %5 = tpu.matmul %0, %1, %cst {dimension_numbers = #tpu.dot_dimension_numbers<[1], [0], [0], [1], [0, 0, 1, 1], [], []>} : vector<32x32xbf16>, vector<32x128xbf16>, vector<32x128xf32> -> vector<32x128xf32>
    %6 = arith.truncf %5 : vector<32x128xf32> to vector<32x128xbf16>
    %cst_9 = arith.constant dense<0.000000e+00> : vector<32x128xf32>
    %7 = tpu.matmul %1, %2, %cst_9 {dimension_numbers = #tpu.dot_dimension_numbers<[1], [0], [0], [1], [0, 0, 1, 1], [], []>} : vector<32x128xbf16>, vector<128x128xbf16>, vector<32x128xf32> -> vector<32x128xf32>
    %cst_10 = arith.constant dense<0.000000e+00> : vector<32x128xf32>
    %8 = tpu.matmul %6, %3, %cst_10 {dimension_numbers = #tpu.dot_dimension_numbers<[1], [0], [0], [1], [0, 0, 1, 1], [], []>} : vector<32x128xbf16>, vector<128x128xbf16>, vector<32x128xf32> -> vector<32x128xf32>
    %9 = arith.addf %7, %8 : vector<32x128xf32>
    %10 = vector.broadcast %4 : vector<1x128xf32> to vector<32x128xf32>
    %11 = arith.addf %9, %10 : vector<32x128xf32>
    %cst_11 = arith.constant 0.000000e+00 : f32
    %12 = vector.broadcast %cst_11 : f32 to vector<32x128xf32>
    %13 = arith.maximumf %11, %12 : vector<32x128xf32>
    %c0_12 = arith.constant 0 : index
    %c0_13 = arith.constant 0 : index
    %14 = vector.load %arg3[%c0_12, %c0_13] : memref<32x128xbf16, #tpu.memory_space<vmem>>, vector<32x128xbf16>
    %15 = arith.extf %14 : vector<32x128xbf16> to vector<32x128xf32>
    %cst_14 = arith.constant 5.000000e-01 : f32
    %16 = vector.broadcast %cst_14 : f32 to vector<32x128xf32>
    %17 = arith.mulf %16, %13 : vector<32x128xf32>
    %cst_15 = arith.constant 5.000000e-01 : f32
    %18 = vector.broadcast %cst_15 : f32 to vector<32x128xf32>
    %19 = arith.mulf %18, %15 : vector<32x128xf32>
    %20 = arith.addf %17, %19 : vector<32x128xf32>
    %21 = arith.truncf %20 : vector<32x128xf32> to vector<32x128xbf16>
    %c0_16 = arith.constant 0 : index
    %c0_17 = arith.constant 0 : index
    %22 = vector.load %arg7[%c0_16, %c0_17] : memref<128x128xbf16, #tpu.memory_space<vmem>>, vector<128x128xbf16>
    %c0_18 = arith.constant 0 : index
    %c0_19 = arith.constant 0 : index
    %23 = vector.load %arg8[%c0_18, %c0_19] : memref<128x128xbf16, #tpu.memory_space<vmem>>, vector<128x128xbf16>
    %c0_20 = arith.constant 0 : index
    %c0_21 = arith.constant 0 : index
    %24 = vector.load %arg9[%c0_20, %c0_21] : memref<1x128xf32, #tpu.memory_space<vmem>>, vector<1x128xf32>
    %cst_22 = arith.constant dense<0.000000e+00> : vector<32x128xf32>
    %25 = tpu.matmul %0, %21, %cst_22 {dimension_numbers = #tpu.dot_dimension_numbers<[1], [0], [0], [1], [0, 0, 1, 1], [], []>} : vector<32x32xbf16>, vector<32x128xbf16>, vector<32x128xf32> -> vector<32x128xf32>
    %26 = arith.truncf %25 : vector<32x128xf32> to vector<32x128xbf16>
    %cst_23 = arith.constant dense<0.000000e+00> : vector<32x128xf32>
    %27 = tpu.matmul %21, %22, %cst_23 {dimension_numbers = #tpu.dot_dimension_numbers<[1], [0], [0], [1], [0, 0, 1, 1], [], []>} : vector<32x128xbf16>, vector<128x128xbf16>, vector<32x128xf32> -> vector<32x128xf32>
    %cst_24 = arith.constant dense<0.000000e+00> : vector<32x128xf32>
    %28 = tpu.matmul %26, %23, %cst_24 {dimension_numbers = #tpu.dot_dimension_numbers<[1], [0], [0], [1], [0, 0, 1, 1], [], []>} : vector<32x128xbf16>, vector<128x128xbf16>, vector<32x128xf32> -> vector<32x128xf32>
    %29 = arith.addf %27, %28 : vector<32x128xf32>
    %30 = vector.broadcast %24 : vector<1x128xf32> to vector<32x128xf32>
    %31 = arith.addf %29, %30 : vector<32x128xf32>
    %cst_25 = arith.constant 0.000000e+00 : f32
    %32 = vector.broadcast %cst_25 : f32 to vector<32x128xf32>
    %33 = arith.maximumf %31, %32 : vector<32x128xf32>
    %c0_26 = arith.constant 0 : index
    %c0_27 = arith.constant 0 : index
    %34 = vector.load %arg3[%c0_26, %c0_27] : memref<32x128xbf16, #tpu.memory_space<vmem>>, vector<32x128xbf16>
    %35 = arith.extf %34 : vector<32x128xbf16> to vector<32x128xf32>
    %cst_28 = arith.constant 5.000000e-01 : f32
    %36 = vector.broadcast %cst_28 : f32 to vector<32x128xf32>
    %37 = arith.mulf %36, %33 : vector<32x128xf32>
    %cst_29 = arith.constant 5.000000e-01 : f32
    %38 = vector.broadcast %cst_29 : f32 to vector<32x128xf32>
    %39 = arith.mulf %38, %35 : vector<32x128xf32>
    %40 = arith.addf %37, %39 : vector<32x128xf32>
    %41 = arith.truncf %40 : vector<32x128xf32> to vector<32x128xbf16>
    %c0_30 = arith.constant 0 : index
    %c0_31 = arith.constant 0 : index
    %42 = vector.load %arg10[%c0_30, %c0_31] : memref<32x128xbf16, #tpu.memory_space<vmem>>, vector<32x128xbf16>
    tpu.vector_store %arg10[%c0_30, %c0_31], %41 {strides = array<i32>} : memref<32x128xbf16, #tpu.memory_space<vmem>>, vector<32x128xbf16>,
    return
  }
  func.func @transform_0(%arg0: i32) -> (i32, i32) {
    %c0_i32 = arith.constant 0 : i32
    %c0_i32_0 = arith.constant 0 : i32
    return %c0_i32, %arg0 : i32, i32
  }
  func.func @transform_1(%arg0: i32) -> (i32, i32) {
    %c0_i32 = arith.constant 0 : i32
    %c0_i32_0 = arith.constant 0 : i32
    %c0_i32_1 = arith.constant 0 : i32
    return %c0_i32, %c0_i32_0 : i32, i32
  }
  func.func @transform_2(%arg0: i32) -> (i32, i32) {
    %c0_i32 = arith.constant 0 : i32
    %c0_i32_0 = arith.constant 0 : i32
    return %c0_i32, %arg0 : i32, i32
  }
  func.func @transform_3(%arg0: i32) -> (i32, i32) {
    %c0_i32 = arith.constant 0 : i32
    %c0_i32_0 = arith.constant 0 : i32
    %c0_i32_1 = arith.constant 0 : i32
    return %c0_i32, %c0_i32_0 : i32, i32
  }
  func.func @transform_4(%arg0: i32) -> (i32, i32) {
    %c0_i32 = arith.constant 0 : i32
    %c0_i32_0 = arith.constant 0 : i32
    %c0_i32_1 = arith.constant 0 : i32
    return %c0_i32, %c0_i32_0 : i32, i32
  }
  func.func @transform_5(%arg0: i32) -> (i32, i32) {
    %c0_i32 = arith.constant 0 : i32
    %c0_i32_0 = arith.constant 0 : i32
    %c0_i32_1 = arith.constant 0 : i32
    return %c0_i32, %c0_i32_0 : i32, i32
  }
  func.func @transform_6(%arg0: i32) -> (i32, i32) {
    %c0_i32 = arith.constant 0 : i32
    %c0_i32_0 = arith.constant 0 : i32
    %c0_i32_1 = arith.constant 0 : i32
    return %c0_i32, %c0_i32_0 : i32, i32
  }
  func.func @transform_7(%arg0: i32) -> (i32, i32) {
    %c0_i32 = arith.constant 0 : i32
    %c0_i32_0 = arith.constant 0 : i32
    %c0_i32_1 = arith.constant 0 : i32
    return %c0_i32, %c0_i32_0 : i32, i32
  }
  func.func @transform_8(%arg0: i32) -> (i32, i32) {
    %c0_i32 = arith.constant 0 : i32
    %c0_i32_0 = arith.constant 0 : i32
    %c0_i32_1 = arith.constant 0 : i32
    return %c0_i32, %c0_i32_0 : i32, i32
  }
  func.func @transform_9(%arg0: i32) -> (i32, i32) {
    %c0_i32 = arith.constant 0 : i32
    %c0_i32_0 = arith.constant 0 : i32
    return %c0_i32, %arg0 : i32, i32
  }
}

module attributes {stable_mosaic.version = 11 : i64} {
  func.func @kernel(%arg0: i32, %arg1: memref<16x128xbf16, #tpu.memory_space<vmem>>, %arg2: memref<16x16xbf16, #tpu.memory_space<vmem>>, %arg3: memref<128x128xbf16, #tpu.memory_space<vmem>>, %arg4: memref<128x128xbf16, #tpu.memory_space<vmem>>, %arg5: memref<1x128xf32, #tpu.memory_space<vmem>>, %arg6: memref<16x128xbf16, #tpu.memory_space<vmem>>) attributes {dimension_semantics = [#tpu.dimension_semantics<parallel>], iteration_bounds = array<i64: 2>, scalar_prefetch = 0 : i64, scratch_operands = 0 : i64, tpu.core_type = #tpu.core_type<tc>, window_params = [{transform_indices = @transform_0, window_bounds = array<i64: 16, 128>}, {pipeline_mode = #tpu.pipeline_mode<synchronous>, transform_indices = @transform_1, window_bounds = array<i64: 16, 16>}, {pipeline_mode = #tpu.pipeline_mode<synchronous>, transform_indices = @transform_2, window_bounds = array<i64: 128, 128>}, {pipeline_mode = #tpu.pipeline_mode<synchronous>, transform_indices = @transform_3, window_bounds = array<i64: 128, 128>}, {pipeline_mode = #tpu.pipeline_mode<synchronous>, transform_indices = @transform_4, window_bounds = array<i64: 1, 128>}, {transform_indices = @transform_5, window_bounds = array<i64: 16, 128>}]} {
    %c0 = arith.constant 0 : index
    %c0_0 = arith.constant 0 : index
    %0 = vector.load %arg2[%c0, %c0_0] : memref<16x16xbf16, #tpu.memory_space<vmem>>, vector<16x16xbf16>
    %c0_1 = arith.constant 0 : index
    %c0_2 = arith.constant 0 : index
    %1 = vector.load %arg1[%c0_1, %c0_2] : memref<16x128xbf16, #tpu.memory_space<vmem>>, vector<16x128xbf16>
    %c0_3 = arith.constant 0 : index
    %c0_4 = arith.constant 0 : index
    %2 = vector.load %arg3[%c0_3, %c0_4] : memref<128x128xbf16, #tpu.memory_space<vmem>>, vector<128x128xbf16>
    %c0_5 = arith.constant 0 : index
    %c0_6 = arith.constant 0 : index
    %3 = vector.load %arg4[%c0_5, %c0_6] : memref<128x128xbf16, #tpu.memory_space<vmem>>, vector<128x128xbf16>
    %c0_7 = arith.constant 0 : index
    %c0_8 = arith.constant 0 : index
    %4 = vector.load %arg5[%c0_7, %c0_8] : memref<1x128xf32, #tpu.memory_space<vmem>>, vector<1x128xf32>
    %cst = arith.constant dense<0.000000e+00> : vector<16x128xf32>
    %5 = tpu.matmul %0, %1, %cst {dimension_numbers = #tpu.dot_dimension_numbers<[1], [0], [0], [1], [0, 0, 1, 1], [], []>} : vector<16x16xbf16>, vector<16x128xbf16>, vector<16x128xf32> -> vector<16x128xf32>
    %6 = arith.truncf %5 : vector<16x128xf32> to vector<16x128xbf16>
    %cst_9 = arith.constant dense<0.000000e+00> : vector<16x128xf32>
    %7 = tpu.matmul %1, %2, %cst_9 {dimension_numbers = #tpu.dot_dimension_numbers<[1], [0], [0], [1], [0, 0, 1, 1], [], []>} : vector<16x128xbf16>, vector<128x128xbf16>, vector<16x128xf32> -> vector<16x128xf32>
    %cst_10 = arith.constant dense<0.000000e+00> : vector<16x128xf32>
    %8 = tpu.matmul %6, %3, %cst_10 {dimension_numbers = #tpu.dot_dimension_numbers<[1], [0], [0], [1], [0, 0, 1, 1], [], []>} : vector<16x128xbf16>, vector<128x128xbf16>, vector<16x128xf32> -> vector<16x128xf32>
    %9 = arith.addf %7, %8 : vector<16x128xf32>
    %10 = vector.broadcast %4 : vector<1x128xf32> to vector<16x128xf32>
    %11 = arith.addf %9, %10 : vector<16x128xf32>
    %cst_11 = arith.constant 0.000000e+00 : f32
    %12 = vector.broadcast %cst_11 : f32 to vector<16x128xf32>
    %13 = arith.maximumf %11, %12 : vector<16x128xf32>
    %14 = arith.truncf %13 : vector<16x128xf32> to vector<16x128xbf16>
    %c0_12 = arith.constant 0 : index
    %c0_13 = arith.constant 0 : index
    %15 = vector.load %arg6[%c0_12, %c0_13] : memref<16x128xbf16, #tpu.memory_space<vmem>>, vector<16x128xbf16>
    tpu.vector_store %arg6[%c0_12, %c0_13], %14 {strides = array<i32>} : memref<16x128xbf16, #tpu.memory_space<vmem>>, vector<16x128xbf16>,
    return
  }
  func.func @transform_0(%arg0: i32) -> (i32, i32) {
    %c0_i32 = arith.constant 0 : i32
    %c0_i32_0 = arith.constant 0 : i32
    return %c0_i32, %arg0 : i32, i32
  }
  func.func @transform_1(%arg0: i32) -> (i32, i32) {
    %c0_i32 = arith.constant 0 : i32
    %c0_i32_0 = arith.constant 0 : i32
    %c0_i32_1 = arith.constant 0 : i32
    return %c0_i32, %c0_i32_0 : i32, i32
  }
  func.func @transform_2(%arg0: i32) -> (i32, i32) {
    %c0_i32 = arith.constant 0 : i32
    %c0_i32_0 = arith.constant 0 : i32
    %c0_i32_1 = arith.constant 0 : i32
    return %c0_i32, %c0_i32_0 : i32, i32
  }
  func.func @transform_3(%arg0: i32) -> (i32, i32) {
    %c0_i32 = arith.constant 0 : i32
    %c0_i32_0 = arith.constant 0 : i32
    %c0_i32_1 = arith.constant 0 : i32
    return %c0_i32, %c0_i32_0 : i32, i32
  }
  func.func @transform_4(%arg0: i32) -> (i32, i32) {
    %c0_i32 = arith.constant 0 : i32
    %c0_i32_0 = arith.constant 0 : i32
    %c0_i32_1 = arith.constant 0 : i32
    return %c0_i32, %c0_i32_0 : i32, i32
  }
  func.func @transform_5(%arg0: i32) -> (i32, i32) {
    %c0_i32 = arith.constant 0 : i32
    %c0_i32_0 = arith.constant 0 : i32
    return %c0_i32, %arg0 : i32, i32
  }
}

module attributes {stable_mosaic.version = 11 : i64} {
  func.func @kernel(%arg0: i32, %arg1: memref<16x128xbf16, #tpu.memory_space<vmem>>, %arg2: memref<16x16xbf16, #tpu.memory_space<vmem>>, %arg3: memref<16x128xbf16, #tpu.memory_space<vmem>>, %arg4: memref<128x128xbf16, #tpu.memory_space<vmem>>, %arg5: memref<128x128xbf16, #tpu.memory_space<vmem>>, %arg6: memref<1x128xf32, #tpu.memory_space<vmem>>, %arg7: memref<128x128xbf16, #tpu.memory_space<vmem>>, %arg8: memref<128x128xbf16, #tpu.memory_space<vmem>>, %arg9: memref<1x128xf32, #tpu.memory_space<vmem>>, %arg10: memref<16x128xbf16, #tpu.memory_space<vmem>>) attributes {dimension_semantics = [#tpu.dimension_semantics<parallel>], iteration_bounds = array<i64: 2>, scalar_prefetch = 0 : i64, scratch_operands = 0 : i64, tpu.core_type = #tpu.core_type<tc>, window_params = [{transform_indices = @transform_0, window_bounds = array<i64: 16, 128>}, {pipeline_mode = #tpu.pipeline_mode<synchronous>, transform_indices = @transform_1, window_bounds = array<i64: 16, 16>}, {transform_indices = @transform_2, window_bounds = array<i64: 16, 128>}, {pipeline_mode = #tpu.pipeline_mode<synchronous>, transform_indices = @transform_3, window_bounds = array<i64: 128, 128>}, {pipeline_mode = #tpu.pipeline_mode<synchronous>, transform_indices = @transform_4, window_bounds = array<i64: 128, 128>}, {pipeline_mode = #tpu.pipeline_mode<synchronous>, transform_indices = @transform_5, window_bounds = array<i64: 1, 128>}, {pipeline_mode = #tpu.pipeline_mode<synchronous>, transform_indices = @transform_6, window_bounds = array<i64: 128, 128>}, {pipeline_mode = #tpu.pipeline_mode<synchronous>, transform_indices = @transform_7, window_bounds = array<i64: 128, 128>}, {pipeline_mode = #tpu.pipeline_mode<synchronous>, transform_indices = @transform_8, window_bounds = array<i64: 1, 128>}, {transform_indices = @transform_9, window_bounds = array<i64: 16, 128>}]} {
    %c0 = arith.constant 0 : index
    %c0_0 = arith.constant 0 : index
    %0 = vector.load %arg2[%c0, %c0_0] : memref<16x16xbf16, #tpu.memory_space<vmem>>, vector<16x16xbf16>
    %c0_1 = arith.constant 0 : index
    %c0_2 = arith.constant 0 : index
    %1 = vector.load %arg1[%c0_1, %c0_2] : memref<16x128xbf16, #tpu.memory_space<vmem>>, vector<16x128xbf16>
    %c0_3 = arith.constant 0 : index
    %c0_4 = arith.constant 0 : index
    %2 = vector.load %arg4[%c0_3, %c0_4] : memref<128x128xbf16, #tpu.memory_space<vmem>>, vector<128x128xbf16>
    %c0_5 = arith.constant 0 : index
    %c0_6 = arith.constant 0 : index
    %3 = vector.load %arg5[%c0_5, %c0_6] : memref<128x128xbf16, #tpu.memory_space<vmem>>, vector<128x128xbf16>
    %c0_7 = arith.constant 0 : index
    %c0_8 = arith.constant 0 : index
    %4 = vector.load %arg6[%c0_7, %c0_8] : memref<1x128xf32, #tpu.memory_space<vmem>>, vector<1x128xf32>
    %cst = arith.constant dense<0.000000e+00> : vector<16x128xf32>
    %5 = tpu.matmul %0, %1, %cst {dimension_numbers = #tpu.dot_dimension_numbers<[1], [0], [0], [1], [0, 0, 1, 1], [], []>} : vector<16x16xbf16>, vector<16x128xbf16>, vector<16x128xf32> -> vector<16x128xf32>
    %6 = arith.truncf %5 : vector<16x128xf32> to vector<16x128xbf16>
    %cst_9 = arith.constant dense<0.000000e+00> : vector<16x128xf32>
    %7 = tpu.matmul %1, %2, %cst_9 {dimension_numbers = #tpu.dot_dimension_numbers<[1], [0], [0], [1], [0, 0, 1, 1], [], []>} : vector<16x128xbf16>, vector<128x128xbf16>, vector<16x128xf32> -> vector<16x128xf32>
    %cst_10 = arith.constant dense<0.000000e+00> : vector<16x128xf32>
    %8 = tpu.matmul %6, %3, %cst_10 {dimension_numbers = #tpu.dot_dimension_numbers<[1], [0], [0], [1], [0, 0, 1, 1], [], []>} : vector<16x128xbf16>, vector<128x128xbf16>, vector<16x128xf32> -> vector<16x128xf32>
    %9 = arith.addf %7, %8 : vector<16x128xf32>
    %10 = vector.broadcast %4 : vector<1x128xf32> to vector<16x128xf32>
    %11 = arith.addf %9, %10 : vector<16x128xf32>
    %cst_11 = arith.constant 0.000000e+00 : f32
    %12 = vector.broadcast %cst_11 : f32 to vector<16x128xf32>
    %13 = arith.maximumf %11, %12 : vector<16x128xf32>
    %c0_12 = arith.constant 0 : index
    %c0_13 = arith.constant 0 : index
    %14 = vector.load %arg3[%c0_12, %c0_13] : memref<16x128xbf16, #tpu.memory_space<vmem>>, vector<16x128xbf16>
    %15 = arith.extf %14 : vector<16x128xbf16> to vector<16x128xf32>
    %cst_14 = arith.constant 5.000000e-01 : f32
    %16 = vector.broadcast %cst_14 : f32 to vector<16x128xf32>
    %17 = arith.mulf %16, %13 : vector<16x128xf32>
    %cst_15 = arith.constant 5.000000e-01 : f32
    %18 = vector.broadcast %cst_15 : f32 to vector<16x128xf32>
    %19 = arith.mulf %18, %15 : vector<16x128xf32>
    %20 = arith.addf %17, %19 : vector<16x128xf32>
    %21 = arith.truncf %20 : vector<16x128xf32> to vector<16x128xbf16>
    %c0_16 = arith.constant 0 : index
    %c0_17 = arith.constant 0 : index
    %22 = vector.load %arg7[%c0_16, %c0_17] : memref<128x128xbf16, #tpu.memory_space<vmem>>, vector<128x128xbf16>
    %c0_18 = arith.constant 0 : index
    %c0_19 = arith.constant 0 : index
    %23 = vector.load %arg8[%c0_18, %c0_19] : memref<128x128xbf16, #tpu.memory_space<vmem>>, vector<128x128xbf16>
    %c0_20 = arith.constant 0 : index
    %c0_21 = arith.constant 0 : index
    %24 = vector.load %arg9[%c0_20, %c0_21] : memref<1x128xf32, #tpu.memory_space<vmem>>, vector<1x128xf32>
    %cst_22 = arith.constant dense<0.000000e+00> : vector<16x128xf32>
    %25 = tpu.matmul %0, %21, %cst_22 {dimension_numbers = #tpu.dot_dimension_numbers<[1], [0], [0], [1], [0, 0, 1, 1], [], []>} : vector<16x16xbf16>, vector<16x128xbf16>, vector<16x128xf32> -> vector<16x128xf32>
    %26 = arith.truncf %25 : vector<16x128xf32> to vector<16x128xbf16>
    %cst_23 = arith.constant dense<0.000000e+00> : vector<16x128xf32>
    %27 = tpu.matmul %21, %22, %cst_23 {dimension_numbers = #tpu.dot_dimension_numbers<[1], [0], [0], [1], [0, 0, 1, 1], [], []>} : vector<16x128xbf16>, vector<128x128xbf16>, vector<16x128xf32> -> vector<16x128xf32>
    %cst_24 = arith.constant dense<0.000000e+00> : vector<16x128xf32>
    %28 = tpu.matmul %26, %23, %cst_24 {dimension_numbers = #tpu.dot_dimension_numbers<[1], [0], [0], [1], [0, 0, 1, 1], [], []>} : vector<16x128xbf16>, vector<128x128xbf16>, vector<16x128xf32> -> vector<16x128xf32>
    %29 = arith.addf %27, %28 : vector<16x128xf32>
    %30 = vector.broadcast %24 : vector<1x128xf32> to vector<16x128xf32>
    %31 = arith.addf %29, %30 : vector<16x128xf32>
    %cst_25 = arith.constant 0.000000e+00 : f32
    %32 = vector.broadcast %cst_25 : f32 to vector<16x128xf32>
    %33 = arith.maximumf %31, %32 : vector<16x128xf32>
    %c0_26 = arith.constant 0 : index
    %c0_27 = arith.constant 0 : index
    %34 = vector.load %arg3[%c0_26, %c0_27] : memref<16x128xbf16, #tpu.memory_space<vmem>>, vector<16x128xbf16>
    %35 = arith.extf %34 : vector<16x128xbf16> to vector<16x128xf32>
    %cst_28 = arith.constant 5.000000e-01 : f32
    %36 = vector.broadcast %cst_28 : f32 to vector<16x128xf32>
    %37 = arith.mulf %36, %33 : vector<16x128xf32>
    %cst_29 = arith.constant 5.000000e-01 : f32
    %38 = vector.broadcast %cst_29 : f32 to vector<16x128xf32>
    %39 = arith.mulf %38, %35 : vector<16x128xf32>
    %40 = arith.addf %37, %39 : vector<16x128xf32>
    %41 = arith.truncf %40 : vector<16x128xf32> to vector<16x128xbf16>
    %c0_30 = arith.constant 0 : index
    %c0_31 = arith.constant 0 : index
    %42 = vector.load %arg10[%c0_30, %c0_31] : memref<16x128xbf16, #tpu.memory_space<vmem>>, vector<16x128xbf16>
    tpu.vector_store %arg10[%c0_30, %c0_31], %41 {strides = array<i32>} : memref<16x128xbf16, #tpu.memory_space<vmem>>, vector<16x128xbf16>,
    return
  }
  func.func @transform_0(%arg0: i32) -> (i32, i32) {
    %c0_i32 = arith.constant 0 : i32
    %c0_i32_0 = arith.constant 0 : i32
    return %c0_i32, %arg0 : i32, i32
  }
  func.func @transform_1(%arg0: i32) -> (i32, i32) {
    %c0_i32 = arith.constant 0 : i32
    %c0_i32_0 = arith.constant 0 : i32
    %c0_i32_1 = arith.constant 0 : i32
    return %c0_i32, %c0_i32_0 : i32, i32
  }
  func.func @transform_2(%arg0: i32) -> (i32, i32) {
    %c0_i32 = arith.constant 0 : i32
    %c0_i32_0 = arith.constant 0 : i32
    return %c0_i32, %arg0 : i32, i32
  }
  func.func @transform_3(%arg0: i32) -> (i32, i32) {
    %c0_i32 = arith.constant 0 : i32
    %c0_i32_0 = arith.constant 0 : i32
    %c0_i32_1 = arith.constant 0 : i32
    return %c0_i32, %c0_i32_0 : i32, i32
  }
  func.func @transform_4(%arg0: i32) -> (i32, i32) {
    %c0_i32 = arith.constant 0 : i32
    %c0_i32_0 = arith.constant 0 : i32
    %c0_i32_1 = arith.constant 0 : i32
    return %c0_i32, %c0_i32_0 : i32, i32
  }
  func.func @transform_5(%arg0: i32) -> (i32, i32) {
    %c0_i32 = arith.constant 0 : i32
    %c0_i32_0 = arith.constant 0 : i32
    %c0_i32_1 = arith.constant 0 : i32
    return %c0_i32, %c0_i32_0 : i32, i32
  }
  func.func @transform_6(%arg0: i32) -> (i32, i32) {
    %c0_i32 = arith.constant 0 : i32
    %c0_i32_0 = arith.constant 0 : i32
    %c0_i32_1 = arith.constant 0 : i32
    return %c0_i32, %c0_i32_0 : i32, i32
  }
  func.func @transform_7(%arg0: i32) -> (i32, i32) {
    %c0_i32 = arith.constant 0 : i32
    %c0_i32_0 = arith.constant 0 : i32
    %c0_i32_1 = arith.constant 0 : i32
    return %c0_i32, %c0_i32_0 : i32, i32
  }
  func.func @transform_8(%arg0: i32) -> (i32, i32) {
    %c0_i32 = arith.constant 0 : i32
    %c0_i32_0 = arith.constant 0 : i32
    %c0_i32_1 = arith.constant 0 : i32
    return %c0_i32, %c0_i32_0 : i32, i32
  }
  func.func @transform_9(%arg0: i32) -> (i32, i32) {
    %c0_i32 = arith.constant 0 : i32
    %c0_i32_0 = arith.constant 0 : i32
    return %c0_i32, %arg0 : i32, i32
  }
}

module attributes {stable_mosaic.version = 11 : i64} {
  func.func @kernel(%arg0: i32, %arg1: memref<16x128xbf16, #tpu.memory_space<vmem>>, %arg2: memref<32x128xbf16, #tpu.memory_space<vmem>>, %arg3: memref<16x32xbf16, #tpu.memory_space<vmem>>, %arg4: memref<128x128xbf16, #tpu.memory_space<vmem>>, %arg5: memref<128x128xbf16, #tpu.memory_space<vmem>>, %arg6: memref<1x128xf32, #tpu.memory_space<vmem>>, %arg7: memref<128x128xbf16, #tpu.memory_space<vmem>>, %arg8: memref<1x128xf32, #tpu.memory_space<vmem>>, %arg9: memref<16x128xbf16, #tpu.memory_space<vmem>>) attributes {dimension_semantics = [#tpu.dimension_semantics<parallel>], iteration_bounds = array<i64: 2>, scalar_prefetch = 0 : i64, scratch_operands = 0 : i64, tpu.core_type = #tpu.core_type<tc>, window_params = [{transform_indices = @transform_0, window_bounds = array<i64: 16, 128>}, {transform_indices = @transform_1, window_bounds = array<i64: 32, 128>}, {pipeline_mode = #tpu.pipeline_mode<synchronous>, transform_indices = @transform_2, window_bounds = array<i64: 16, 32>}, {pipeline_mode = #tpu.pipeline_mode<synchronous>, transform_indices = @transform_3, window_bounds = array<i64: 128, 128>}, {pipeline_mode = #tpu.pipeline_mode<synchronous>, transform_indices = @transform_4, window_bounds = array<i64: 128, 128>}, {pipeline_mode = #tpu.pipeline_mode<synchronous>, transform_indices = @transform_5, window_bounds = array<i64: 1, 128>}, {pipeline_mode = #tpu.pipeline_mode<synchronous>, transform_indices = @transform_6, window_bounds = array<i64: 128, 128>}, {pipeline_mode = #tpu.pipeline_mode<synchronous>, transform_indices = @transform_7, window_bounds = array<i64: 1, 128>}, {transform_indices = @transform_8, window_bounds = array<i64: 16, 128>}]} {
    %c0 = arith.constant 0 : index
    %c0_0 = arith.constant 0 : index
    %0 = vector.load %arg3[%c0, %c0_0] : memref<16x32xbf16, #tpu.memory_space<vmem>>, vector<16x32xbf16>
    %c0_1 = arith.constant 0 : index
    %c0_2 = arith.constant 0 : index
    %1 = vector.load %arg2[%c0_1, %c0_2] : memref<32x128xbf16, #tpu.memory_space<vmem>>, vector<32x128xbf16>
    %cst = arith.constant dense<0.000000e+00> : vector<16x128xf32>
    %2 = tpu.matmul %0, %1, %cst {dimension_numbers = #tpu.dot_dimension_numbers<[1], [0], [0], [1], [0, 0, 1, 1], [], []>} : vector<16x32xbf16>, vector<32x128xbf16>, vector<16x128xf32> -> vector<16x128xf32>
    %c0_3 = arith.constant 0 : index
    %c0_4 = arith.constant 0 : index
    %3 = vector.load %arg1[%c0_3, %c0_4] : memref<16x128xbf16, #tpu.memory_space<vmem>>, vector<16x128xbf16>
    %c0_5 = arith.constant 0 : index
    %c0_6 = arith.constant 0 : index
    %4 = vector.load %arg4[%c0_5, %c0_6] : memref<128x128xbf16, #tpu.memory_space<vmem>>, vector<128x128xbf16>
    %c0_7 = arith.constant 0 : index
    %c0_8 = arith.constant 0 : index
    %5 = vector.load %arg5[%c0_7, %c0_8] : memref<128x128xbf16, #tpu.memory_space<vmem>>, vector<128x128xbf16>
    %c0_9 = arith.constant 0 : index
    %c0_10 = arith.constant 0 : index
    %6 = vector.load %arg7[%c0_9, %c0_10] : memref<128x128xbf16, #tpu.memory_space<vmem>>, vector<128x128xbf16>
    %c0_11 = arith.constant 0 : index
    %c0_12 = arith.constant 0 : index
    %7 = vector.load %arg6[%c0_11, %c0_12] : memref<1x128xf32, #tpu.memory_space<vmem>>, vector<1x128xf32>
    %c0_13 = arith.constant 0 : index
    %c0_14 = arith.constant 0 : index
    %8 = vector.load %arg8[%c0_13, %c0_14] : memref<1x128xf32, #tpu.memory_space<vmem>>, vector<1x128xf32>
    %cst_15 = arith.constant dense<0.000000e+00> : vector<16x128xf32>
    %9 = tpu.matmul %3, %4, %cst_15 {dimension_numbers = #tpu.dot_dimension_numbers<[1], [0], [0], [1], [0, 0, 1, 1], [], []>} : vector<16x128xbf16>, vector<128x128xbf16>, vector<16x128xf32> -> vector<16x128xf32>
    %10 = arith.truncf %2 : vector<16x128xf32> to vector<16x128xbf16>
    %cst_16 = arith.constant dense<0.000000e+00> : vector<16x128xf32>
    %11 = tpu.matmul %10, %5, %cst_16 {dimension_numbers = #tpu.dot_dimension_numbers<[1], [0], [0], [1], [0, 0, 1, 1], [], []>} : vector<16x128xbf16>, vector<128x128xbf16>, vector<16x128xf32> -> vector<16x128xf32>
    %12 = arith.addf %9, %11 : vector<16x128xf32>
    %13 = vector.broadcast %7 : vector<1x128xf32> to vector<16x128xf32>
    %14 = arith.addf %12, %13 : vector<16x128xf32>
    %cst_17 = arith.constant 0.000000e+00 : f32
    %15 = vector.broadcast %cst_17 : f32 to vector<16x128xf32>
    %16 = arith.maximumf %14, %15 : vector<16x128xf32>
    %17 = arith.truncf %16 : vector<16x128xf32> to vector<16x128xbf16>
    %cst_18 = arith.constant dense<0.000000e+00> : vector<16x128xf32>
    %18 = tpu.matmul %17, %6, %cst_18 {dimension_numbers = #tpu.dot_dimension_numbers<[1], [0], [0], [1], [0, 0, 1, 1], [], []>} : vector<16x128xbf16>, vector<128x128xbf16>, vector<16x128xf32> -> vector<16x128xf32>
    %19 = vector.broadcast %8 : vector<1x128xf32> to vector<16x128xf32>
    %20 = arith.addf %18, %19 : vector<16x128xf32>
    %cst_19 = arith.constant 0.000000e+00 : f32
    %21 = vector.broadcast %cst_19 : f32 to vector<16x128xf32>
    %22 = arith.maximumf %20, %21 : vector<16x128xf32>
    %23 = arith.truncf %22 : vector<16x128xf32> to vector<16x128xbf16>
    %c0_20 = arith.constant 0 : index
    %c0_21 = arith.constant 0 : index
    %24 = vector.load %arg9[%c0_20, %c0_21] : memref<16x128xbf16, #tpu.memory_space<vmem>>, vector<16x128xbf16>
    tpu.vector_store %arg9[%c0_20, %c0_21], %23 {strides = array<i32>} : memref<16x128xbf16, #tpu.memory_space<vmem>>, vector<16x128xbf16>,
    return
  }
  func.func @transform_0(%arg0: i32) -> (i32, i32) {
    %c0_i32 = arith.constant 0 : i32
    %c0_i32_0 = arith.constant 0 : i32
    return %c0_i32, %arg0 : i32, i32
  }
  func.func @transform_1(%arg0: i32) -> (i32, i32) {
    %c0_i32 = arith.constant 0 : i32
    %c0_i32_0 = arith.constant 0 : i32
    return %c0_i32, %arg0 : i32, i32
  }
  func.func @transform_2(%arg0: i32) -> (i32, i32) {
    %c0_i32 = arith.constant 0 : i32
    %c0_i32_0 = arith.constant 0 : i32
    %c0_i32_1 = arith.constant 0 : i32
    return %c0_i32, %c0_i32_0 : i32, i32
  }
  func.func @transform_3(%arg0: i32) -> (i32, i32) {
    %c0_i32 = arith.constant 0 : i32
    %c0_i32_0 = arith.constant 0 : i32
    %c0_i32_1 = arith.constant 0 : i32
    return %c0_i32, %c0_i32_0 : i32, i32
  }
  func.func @transform_4(%arg0: i32) -> (i32, i32) {
    %c0_i32 = arith.constant 0 : i32
    %c0_i32_0 = arith.constant 0 : i32
    %c0_i32_1 = arith.constant 0 : i32
    return %c0_i32, %c0_i32_0 : i32, i32
  }
  func.func @transform_5(%arg0: i32) -> (i32, i32) {
    %c0_i32 = arith.constant 0 : i32
    %c0_i32_0 = arith.constant 0 : i32
    %c0_i32_1 = arith.constant 0 : i32
    return %c0_i32, %c0_i32_0 : i32, i32
  }
  func.func @transform_6(%arg0: i32) -> (i32, i32) {
    %c0_i32 = arith.constant 0 : i32
    %c0_i32_0 = arith.constant 0 : i32
    %c0_i32_1 = arith.constant 0 : i32
    return %c0_i32, %c0_i32_0 : i32, i32
  }
  func.func @transform_7(%arg0: i32) -> (i32, i32) {
    %c0_i32 = arith.constant 0 : i32
    %c0_i32_0 = arith.constant 0 : i32
    %c0_i32_1 = arith.constant 0 : i32
    return %c0_i32, %c0_i32_0 : i32, i32
  }
  func.func @transform_8(%arg0: i32) -> (i32, i32) {
    %c0_i32 = arith.constant 0 : i32
    %c0_i32_0 = arith.constant 0 : i32
    return %c0_i32, %arg0 : i32, i32
  }
}

module attributes {stable_mosaic.version = 11 : i64} {
  func.func @kernel(%arg0: i32, %arg1: memref<16x128xbf16, #tpu.memory_space<vmem>>, %arg2: memref<128x128xbf16, #tpu.memory_space<vmem>>, %arg3: memref<1x128xf32, #tpu.memory_space<vmem>>, %arg4: memref<16x128xbf16, #tpu.memory_space<vmem>>) attributes {dimension_semantics = [#tpu.dimension_semantics<parallel>], iteration_bounds = array<i64: 2>, scalar_prefetch = 0 : i64, scratch_operands = 0 : i64, tpu.core_type = #tpu.core_type<tc>, window_params = [{transform_indices = @transform_0, window_bounds = array<i64: 16, 128>}, {pipeline_mode = #tpu.pipeline_mode<synchronous>, transform_indices = @transform_1, window_bounds = array<i64: 128, 128>}, {pipeline_mode = #tpu.pipeline_mode<synchronous>, transform_indices = @transform_2, window_bounds = array<i64: 1, 128>}, {transform_indices = @transform_3, window_bounds = array<i64: 16, 128>}]} {
    %c0 = arith.constant 0 : index
    %c0_0 = arith.constant 0 : index
    %0 = vector.load %arg1[%c0, %c0_0] : memref<16x128xbf16, #tpu.memory_space<vmem>>, vector<16x128xbf16>
    %c0_1 = arith.constant 0 : index
    %c0_2 = arith.constant 0 : index
    %1 = vector.load %arg2[%c0_1, %c0_2] : memref<128x128xbf16, #tpu.memory_space<vmem>>, vector<128x128xbf16>
    %c0_3 = arith.constant 0 : index
    %c0_4 = arith.constant 0 : index
    %2 = vector.load %arg3[%c0_3, %c0_4] : memref<1x128xf32, #tpu.memory_space<vmem>>, vector<1x128xf32>
    %cst = arith.constant dense<0.000000e+00> : vector<16x128xf32>
    %3 = tpu.matmul %0, %1, %cst {dimension_numbers = #tpu.dot_dimension_numbers<[1], [0], [0], [1], [0, 0, 1, 1], [], []>} : vector<16x128xbf16>, vector<128x128xbf16>, vector<16x128xf32> -> vector<16x128xf32>
    %4 = vector.broadcast %2 : vector<1x128xf32> to vector<16x128xf32>
    %5 = arith.addf %3, %4 : vector<16x128xf32>
    %6 = arith.truncf %5 : vector<16x128xf32> to vector<16x128xbf16>
    %c0_5 = arith.constant 0 : index
    %c0_6 = arith.constant 0 : index
    %7 = vector.load %arg4[%c0_5, %c0_6] : memref<16x128xbf16, #tpu.memory_space<vmem>>, vector<16x128xbf16>
    tpu.vector_store %arg4[%c0_5, %c0_6], %6 {strides = array<i32>} : memref<16x128xbf16, #tpu.memory_space<vmem>>, vector<16x128xbf16>,
    return
  }
  func.func @transform_0(%arg0: i32) -> (i32, i32) {
    %c0_i32 = arith.constant 0 : i32
    %c0_i32_0 = arith.constant 0 : i32
    return %c0_i32, %arg0 : i32, i32
  }
  func.func @transform_1(%arg0: i32) -> (i32, i32) {
    %c0_i32 = arith.constant 0 : i32
    %c0_i32_0 = arith.constant 0 : i32
    %c0_i32_1 = arith.constant 0 : i32
    return %c0_i32, %c0_i32_0 : i32, i32
  }
  func.func @transform_2(%arg0: i32) -> (i32, i32) {
    %c0_i32 = arith.constant 0 : i32
    %c0_i32_0 = arith.constant 0 : i32
    %c0_i32_1 = arith.constant 0 : i32
    return %c0_i32, %c0_i32_0 : i32, i32
  }
  func.func @transform_3(%arg0: i32) -> (i32, i32) {
    %c0_i32 = arith.constant 0 : i32
    %c0_i32_0 = arith.constant 0 : i32
    return %c0_i32, %arg0 : i32, i32
  }
}

module attributes {stable_mosaic.version = 11 : i64} {
  func.func @kernel(%arg0: i32, %arg1: memref<32x128xbf16, #tpu.memory_space<vmem>>, %arg2: memref<128x128xbf16, #tpu.memory_space<vmem>>, %arg3: memref<1x128xf32, #tpu.memory_space<vmem>>, %arg4: memref<32x128xbf16, #tpu.memory_space<vmem>>) attributes {dimension_semantics = [#tpu.dimension_semantics<parallel>], iteration_bounds = array<i64: 2>, scalar_prefetch = 0 : i64, scratch_operands = 0 : i64, tpu.core_type = #tpu.core_type<tc>, window_params = [{transform_indices = @transform_0, window_bounds = array<i64: 32, 128>}, {pipeline_mode = #tpu.pipeline_mode<synchronous>, transform_indices = @transform_1, window_bounds = array<i64: 128, 128>}, {pipeline_mode = #tpu.pipeline_mode<synchronous>, transform_indices = @transform_2, window_bounds = array<i64: 1, 128>}, {transform_indices = @transform_3, window_bounds = array<i64: 32, 128>}]} {
    %c0 = arith.constant 0 : index
    %c0_0 = arith.constant 0 : index
    %0 = vector.load %arg1[%c0, %c0_0] : memref<32x128xbf16, #tpu.memory_space<vmem>>, vector<32x128xbf16>
    %c0_1 = arith.constant 0 : index
    %c0_2 = arith.constant 0 : index
    %1 = vector.load %arg2[%c0_1, %c0_2] : memref<128x128xbf16, #tpu.memory_space<vmem>>, vector<128x128xbf16>
    %c0_3 = arith.constant 0 : index
    %c0_4 = arith.constant 0 : index
    %2 = vector.load %arg3[%c0_3, %c0_4] : memref<1x128xf32, #tpu.memory_space<vmem>>, vector<1x128xf32>
    %cst = arith.constant dense<0.000000e+00> : vector<32x128xf32>
    %3 = tpu.matmul %0, %1, %cst {dimension_numbers = #tpu.dot_dimension_numbers<[1], [0], [0], [1], [0, 0, 1, 1], [], []>} : vector<32x128xbf16>, vector<128x128xbf16>, vector<32x128xf32> -> vector<32x128xf32>
    %4 = vector.broadcast %2 : vector<1x128xf32> to vector<32x128xf32>
    %5 = arith.addf %3, %4 : vector<32x128xf32>
    %6 = arith.truncf %5 : vector<32x128xf32> to vector<32x128xbf16>
    %c0_5 = arith.constant 0 : index
    %c0_6 = arith.constant 0 : index
    %7 = vector.load %arg4[%c0_5, %c0_6] : memref<32x128xbf16, #tpu.memory_space<vmem>>, vector<32x128xbf16>
    tpu.vector_store %arg4[%c0_5, %c0_6], %6 {strides = array<i32>} : memref<32x128xbf16, #tpu.memory_space<vmem>>, vector<32x128xbf16>,
    return
  }
  func.func @transform_0(%arg0: i32) -> (i32, i32) {
    %c0_i32 = arith.constant 0 : i32
    %c0_i32_0 = arith.constant 0 : i32
    return %c0_i32, %arg0 : i32, i32
  }
  func.func @transform_1(%arg0: i32) -> (i32, i32) {
    %c0_i32 = arith.constant 0 : i32
    %c0_i32_0 = arith.constant 0 : i32
    %c0_i32_1 = arith.constant 0 : i32
    return %c0_i32, %c0_i32_0 : i32, i32
  }
  func.func @transform_2(%arg0: i32) -> (i32, i32) {
    %c0_i32 = arith.constant 0 : i32
    %c0_i32_0 = arith.constant 0 : i32
    %c0_i32_1 = arith.constant 0 : i32
    return %c0_i32, %c0_i32_0 : i32, i32
  }
  func.func @transform_3(%arg0: i32) -> (i32, i32) {
    %c0_i32 = arith.constant 0 : i32
    %c0_i32_0 = arith.constant 0 : i32
    return %c0_i32, %arg0 : i32, i32
  }
}

module attributes {stable_mosaic.version = 11 : i64} {
  func.func @kernel(%arg0: i32, %arg1: memref<32x256xbf16, #tpu.memory_space<vmem>>, %arg2: memref<16x256xbf16, #tpu.memory_space<vmem>>, %arg3: memref<128x128xbf16, #tpu.memory_space<vmem>>, %arg4: memref<128x128xbf16, #tpu.memory_space<vmem>>, %arg5: memref<1x128xf32, #tpu.memory_space<vmem>>, %arg6: memref<2x128xf32, #tpu.memory_space<vmem>>) attributes {dimension_semantics = [#tpu.dimension_semantics<arbitrary>], iteration_bounds = array<i64: 1>, scalar_prefetch = 0 : i64, scratch_operands = 0 : i64, tpu.core_type = #tpu.core_type<tc>, window_params = [{pipeline_mode = #tpu.pipeline_mode<synchronous>, transform_indices = @transform_0, window_bounds = array<i64: 32, 256>}, {pipeline_mode = #tpu.pipeline_mode<synchronous>, transform_indices = @transform_1, window_bounds = array<i64: 16, 256>}, {pipeline_mode = #tpu.pipeline_mode<synchronous>, transform_indices = @transform_2, window_bounds = array<i64: 128, 128>}, {pipeline_mode = #tpu.pipeline_mode<synchronous>, transform_indices = @transform_3, window_bounds = array<i64: 128, 128>}, {pipeline_mode = #tpu.pipeline_mode<synchronous>, transform_indices = @transform_4, window_bounds = array<i64: 1, 128>}, {pipeline_mode = #tpu.pipeline_mode<synchronous>, transform_indices = @transform_5, window_bounds = array<i64: 2, 128>}]} {
    %c0 = arith.constant 0 : index
    %c0_0 = arith.constant 0 : index
    %0 = vector.load %arg1[%c0, %c0_0] : memref<32x256xbf16, #tpu.memory_space<vmem>>, vector<32x256xbf16>
    %1 = arith.extf %0 : vector<32x256xbf16> to vector<32x256xf32>
    %c0_1 = arith.constant 0 : index
    %c0_2 = arith.constant 0 : index
    %2 = vector.load %arg2[%c0_1, %c0_2] : memref<16x256xbf16, #tpu.memory_space<vmem>>, vector<16x256xbf16>
    %3 = arith.extf %2 : vector<16x256xbf16> to vector<16x256xf32>
    %4 = tpu.iota {dimensions = array<i32: 0>} : vector<32x256xi32>
    %5 = tpu.iota {dimensions = array<i32: 0>} : vector<16x256xi32>
    %c24_i32 = arith.constant 24 : i32
    %6 = vector.broadcast %c24_i32 : i32 to vector<32x256xi32>
    %7 = arith.cmpi slt, %4, %6 : vector<32x256xi32>
    %cst = arith.constant 0.000000e+00 : f32
    %8 = vector.broadcast %cst : f32 to vector<32x256xf32>
    %9 = arith.select %7, %1, %8 : vector<32x256xi1>, vector<32x256xf32>
    %cst_3 = arith.constant dense<0.000000e+00> : vector<256xf32>
    %10 = vector.multi_reduction <add>, %9, %cst_3 [0] : vector<32x256xf32> to vector<256xf32>
    %11 = vector.shape_cast %10 : vector<256xf32> to vector<1x256xf32>
    %cst_4 = arith.constant 0.0416666679 : f32
    %12 = vector.broadcast %cst_4 : f32 to vector<1x256xf32>
    %13 = arith.mulf %11, %12 : vector<1x256xf32>
    %c16_i32 = arith.constant 16 : i32
    %14 = vector.broadcast %c16_i32 : i32 to vector<16x256xi32>
    %15 = arith.cmpi slt, %5, %14 : vector<16x256xi32>
    %cst_5 = arith.constant 0.000000e+00 : f32
    %16 = vector.broadcast %cst_5 : f32 to vector<16x256xf32>
    %17 = arith.select %15, %3, %16 : vector<16x256xi1>, vector<16x256xf32>
    %cst_6 = arith.constant dense<0.000000e+00> : vector<256xf32>
    %18 = vector.multi_reduction <add>, %17, %cst_6 [0] : vector<16x256xf32> to vector<256xf32>
    %19 = vector.shape_cast %18 : vector<256xf32> to vector<1x256xf32>
    %cst_7 = arith.constant 6.250000e-02 : f32
    %20 = vector.broadcast %cst_7 : f32 to vector<1x256xf32>
    %21 = arith.mulf %19, %20 : vector<1x256xf32>
    %22 = vector.extract_strided_slice %13 {offsets = [0, 0], sizes = [1, 128], strides = [1, 1]} : vector<1x256xf32> to vector<1x128xf32>
    %23 = arith.truncf %22 : vector<1x128xf32> to vector<1x128xbf16>
    %24 = vector.extract_strided_slice %21 {offsets = [0, 0], sizes = [1, 128], strides = [1, 1]} : vector<1x256xf32> to vector<1x128xf32>
    %25 = arith.truncf %24 : vector<1x128xf32> to vector<1x128xbf16>
    %c0_8 = arith.constant 0 : index
    %c0_9 = arith.constant 0 : index
    %26 = vector.load %arg3[%c0_8, %c0_9] : memref<128x128xbf16, #tpu.memory_space<vmem>>, vector<128x128xbf16>
    %cst_10 = arith.constant dense<0.000000e+00> : vector<1x128xf32>
    %27 = tpu.matmul %23, %26, %cst_10 {dimension_numbers = #tpu.dot_dimension_numbers<[1], [0], [0], [1], [0, 0, 1, 1], [], []>} : vector<1x128xbf16>, vector<128x128xbf16>, vector<1x128xf32> -> vector<1x128xf32>
    %c0_11 = arith.constant 0 : index
    %c0_12 = arith.constant 0 : index
    %28 = vector.load %arg4[%c0_11, %c0_12] : memref<128x128xbf16, #tpu.memory_space<vmem>>, vector<128x128xbf16>
    %cst_13 = arith.constant dense<0.000000e+00> : vector<1x128xf32>
    %29 = tpu.matmul %25, %28, %cst_13 {dimension_numbers = #tpu.dot_dimension_numbers<[1], [0], [0], [1], [0, 0, 1, 1], [], []>} : vector<1x128xbf16>, vector<128x128xbf16>, vector<1x128xf32> -> vector<1x128xf32>
    %30 = arith.addf %27, %29 : vector<1x128xf32>
    %c0_14 = arith.constant 0 : index
    %c0_15 = arith.constant 0 : index
    %31 = vector.load %arg5[%c0_14, %c0_15] : memref<1x128xf32, #tpu.memory_space<vmem>>, vector<1x128xf32>
    %32 = arith.addf %30, %31 : vector<1x128xf32>
    %33 = vector.extract_strided_slice %13 {offsets = [0, 128], sizes = [1, 128], strides = [1, 1]} : vector<1x256xf32> to vector<1x128xf32>
    %34 = arith.truncf %33 : vector<1x128xf32> to vector<1x128xbf16>
    %35 = vector.extract_strided_slice %21 {offsets = [0, 128], sizes = [1, 128], strides = [1, 1]} : vector<1x256xf32> to vector<1x128xf32>
    %36 = arith.truncf %35 : vector<1x128xf32> to vector<1x128xbf16>
    %c0_16 = arith.constant 0 : index
    %c0_17 = arith.constant 0 : index
    %37 = vector.load %arg3[%c0_16, %c0_17] : memref<128x128xbf16, #tpu.memory_space<vmem>>, vector<128x128xbf16>
    %cst_18 = arith.constant dense<0.000000e+00> : vector<1x128xf32>
    %38 = tpu.matmul %34, %37, %cst_18 {dimension_numbers = #tpu.dot_dimension_numbers<[1], [0], [0], [1], [0, 0, 1, 1], [], []>} : vector<1x128xbf16>, vector<128x128xbf16>, vector<1x128xf32> -> vector<1x128xf32>
    %c0_19 = arith.constant 0 : index
    %c0_20 = arith.constant 0 : index
    %39 = vector.load %arg4[%c0_19, %c0_20] : memref<128x128xbf16, #tpu.memory_space<vmem>>, vector<128x128xbf16>
    %cst_21 = arith.constant dense<0.000000e+00> : vector<1x128xf32>
    %40 = tpu.matmul %36, %39, %cst_21 {dimension_numbers = #tpu.dot_dimension_numbers<[1], [0], [0], [1], [0, 0, 1, 1], [], []>} : vector<1x128xbf16>, vector<128x128xbf16>, vector<1x128xf32> -> vector<1x128xf32>
    %41 = arith.addf %38, %40 : vector<1x128xf32>
    %c0_22 = arith.constant 0 : index
    %c0_23 = arith.constant 0 : index
    %42 = vector.load %arg5[%c0_22, %c0_23] : memref<1x128xf32, #tpu.memory_space<vmem>>, vector<1x128xf32>
    %43 = arith.addf %41, %42 : vector<1x128xf32>
    %44 = tpu.concatenate %32, %43 in 0 : vector<1x128xf32>, vector<1x128xf32> -> vector<2x128xf32>
    %c0_24 = arith.constant 0 : index
    %c0_25 = arith.constant 0 : index
    %45 = vector.load %arg6[%c0_24, %c0_25] : memref<2x128xf32, #tpu.memory_space<vmem>>, vector<2x128xf32>
    tpu.vector_store %arg6[%c0_24, %c0_25], %44 {strides = array<i32>} : memref<2x128xf32, #tpu.memory_space<vmem>>, vector<2x128xf32>,
    return
  }
  func.func @transform_0(%arg0: i32) -> (i32, i32) {
    %c0_i32 = arith.constant 0 : i32
    %c0_i32_0 = arith.constant 0 : i32
    %c0_i32_1 = arith.constant 0 : i32
    return %c0_i32, %c0_i32_0 : i32, i32
  }
  func.func @transform_1(%arg0: i32) -> (i32, i32) {
    %c0_i32 = arith.constant 0 : i32
    %c0_i32_0 = arith.constant 0 : i32
    %c0_i32_1 = arith.constant 0 : i32
    return %c0_i32, %c0_i32_0 : i32, i32
  }
  func.func @transform_2(%arg0: i32) -> (i32, i32) {
    %c0_i32 = arith.constant 0 : i32
    %c0_i32_0 = arith.constant 0 : i32
    %c0_i32_1 = arith.constant 0 : i32
    return %c0_i32, %c0_i32_0 : i32, i32
  }
  func.func @transform_3(%arg0: i32) -> (i32, i32) {
    %c0_i32 = arith.constant 0 : i32
    %c0_i32_0 = arith.constant 0 : i32
    %c0_i32_1 = arith.constant 0 : i32
    return %c0_i32, %c0_i32_0 : i32, i32
  }
  func.func @transform_4(%arg0: i32) -> (i32, i32) {
    %c0_i32 = arith.constant 0 : i32
    %c0_i32_0 = arith.constant 0 : i32
    %c0_i32_1 = arith.constant 0 : i32
    return %c0_i32, %c0_i32_0 : i32, i32
  }
  func.func @transform_5(%arg0: i32) -> (i32, i32) {
    %c0_i32 = arith.constant 0 : i32
    %c0_i32_0 = arith.constant 0 : i32
    %c0_i32_1 = arith.constant 0 : i32
    return %c0_i32, %c0_i32_0 : i32, i32
  }
}

module attributes {stable_mosaic.version = 11 : i64} {
  func.func @kernel(%arg0: i32, %arg1: memref<32x128xbf16, #tpu.memory_space<vmem>>, %arg2: memref<16x128xbf16, #tpu.memory_space<vmem>>, %arg3: memref<32x16xbf16, #tpu.memory_space<vmem>>, %arg4: memref<128x128xbf16, #tpu.memory_space<vmem>>, %arg5: memref<128x128xbf16, #tpu.memory_space<vmem>>, %arg6: memref<1x128xf32, #tpu.memory_space<vmem>>, %arg7: memref<128x128xbf16, #tpu.memory_space<vmem>>, %arg8: memref<1x128xf32, #tpu.memory_space<vmem>>, %arg9: memref<32x128xbf16, #tpu.memory_space<vmem>>) attributes {dimension_semantics = [#tpu.dimension_semantics<parallel>], iteration_bounds = array<i64: 2>, scalar_prefetch = 0 : i64, scratch_operands = 0 : i64, tpu.core_type = #tpu.core_type<tc>, window_params = [{transform_indices = @transform_0, window_bounds = array<i64: 32, 128>}, {transform_indices = @transform_1, window_bounds = array<i64: 16, 128>}, {pipeline_mode = #tpu.pipeline_mode<synchronous>, transform_indices = @transform_2, window_bounds = array<i64: 32, 16>}, {pipeline_mode = #tpu.pipeline_mode<synchronous>, transform_indices = @transform_3, window_bounds = array<i64: 128, 128>}, {pipeline_mode = #tpu.pipeline_mode<synchronous>, transform_indices = @transform_4, window_bounds = array<i64: 128, 128>}, {pipeline_mode = #tpu.pipeline_mode<synchronous>, transform_indices = @transform_5, window_bounds = array<i64: 1, 128>}, {pipeline_mode = #tpu.pipeline_mode<synchronous>, transform_indices = @transform_6, window_bounds = array<i64: 128, 128>}, {pipeline_mode = #tpu.pipeline_mode<synchronous>, transform_indices = @transform_7, window_bounds = array<i64: 1, 128>}, {transform_indices = @transform_8, window_bounds = array<i64: 32, 128>}]} {
    %c0 = arith.constant 0 : index
    %c0_0 = arith.constant 0 : index
    %0 = vector.load %arg3[%c0, %c0_0] : memref<32x16xbf16, #tpu.memory_space<vmem>>, vector<32x16xbf16>
    %c0_1 = arith.constant 0 : index
    %c0_2 = arith.constant 0 : index
    %1 = vector.load %arg2[%c0_1, %c0_2] : memref<16x128xbf16, #tpu.memory_space<vmem>>, vector<16x128xbf16>
    %cst = arith.constant dense<0.000000e+00> : vector<32x128xf32>
    %2 = tpu.matmul %0, %1, %cst {dimension_numbers = #tpu.dot_dimension_numbers<[1], [0], [0], [1], [0, 0, 1, 1], [], []>} : vector<32x16xbf16>, vector<16x128xbf16>, vector<32x128xf32> -> vector<32x128xf32>
    %c0_3 = arith.constant 0 : index
    %c0_4 = arith.constant 0 : index
    %3 = vector.load %arg1[%c0_3, %c0_4] : memref<32x128xbf16, #tpu.memory_space<vmem>>, vector<32x128xbf16>
    %c0_5 = arith.constant 0 : index
    %c0_6 = arith.constant 0 : index
    %4 = vector.load %arg4[%c0_5, %c0_6] : memref<128x128xbf16, #tpu.memory_space<vmem>>, vector<128x128xbf16>
    %c0_7 = arith.constant 0 : index
    %c0_8 = arith.constant 0 : index
    %5 = vector.load %arg5[%c0_7, %c0_8] : memref<128x128xbf16, #tpu.memory_space<vmem>>, vector<128x128xbf16>
    %c0_9 = arith.constant 0 : index
    %c0_10 = arith.constant 0 : index
    %6 = vector.load %arg7[%c0_9, %c0_10] : memref<128x128xbf16, #tpu.memory_space<vmem>>, vector<128x128xbf16>
    %c0_11 = arith.constant 0 : index
    %c0_12 = arith.constant 0 : index
    %7 = vector.load %arg6[%c0_11, %c0_12] : memref<1x128xf32, #tpu.memory_space<vmem>>, vector<1x128xf32>
    %c0_13 = arith.constant 0 : index
    %c0_14 = arith.constant 0 : index
    %8 = vector.load %arg8[%c0_13, %c0_14] : memref<1x128xf32, #tpu.memory_space<vmem>>, vector<1x128xf32>
    %cst_15 = arith.constant dense<0.000000e+00> : vector<32x128xf32>
    %9 = tpu.matmul %3, %4, %cst_15 {dimension_numbers = #tpu.dot_dimension_numbers<[1], [0], [0], [1], [0, 0, 1, 1], [], []>} : vector<32x128xbf16>, vector<128x128xbf16>, vector<32x128xf32> -> vector<32x128xf32>
    %10 = arith.truncf %2 : vector<32x128xf32> to vector<32x128xbf16>
    %cst_16 = arith.constant dense<0.000000e+00> : vector<32x128xf32>
    %11 = tpu.matmul %10, %5, %cst_16 {dimension_numbers = #tpu.dot_dimension_numbers<[1], [0], [0], [1], [0, 0, 1, 1], [], []>} : vector<32x128xbf16>, vector<128x128xbf16>, vector<32x128xf32> -> vector<32x128xf32>
    %12 = arith.addf %9, %11 : vector<32x128xf32>
    %13 = vector.broadcast %7 : vector<1x128xf32> to vector<32x128xf32>
    %14 = arith.addf %12, %13 : vector<32x128xf32>
    %cst_17 = arith.constant 0.000000e+00 : f32
    %15 = vector.broadcast %cst_17 : f32 to vector<32x128xf32>
    %16 = arith.maximumf %14, %15 : vector<32x128xf32>
    %17 = arith.truncf %16 : vector<32x128xf32> to vector<32x128xbf16>
    %cst_18 = arith.constant dense<0.000000e+00> : vector<32x128xf32>
    %18 = tpu.matmul %17, %6, %cst_18 {dimension_numbers = #tpu.dot_dimension_numbers<[1], [0], [0], [1], [0, 0, 1, 1], [], []>} : vector<32x128xbf16>, vector<128x128xbf16>, vector<32x128xf32> -> vector<32x128xf32>
    %19 = vector.broadcast %8 : vector<1x128xf32> to vector<32x128xf32>
    %20 = arith.addf %18, %19 : vector<32x128xf32>
    %cst_19 = arith.constant 0.000000e+00 : f32
    %21 = vector.broadcast %cst_19 : f32 to vector<32x128xf32>
    %22 = arith.maximumf %20, %21 : vector<32x128xf32>
    %23 = arith.truncf %22 : vector<32x128xf32> to vector<32x128xbf16>
    %c0_20 = arith.constant 0 : index
    %c0_21 = arith.constant 0 : index
    %24 = vector.load %arg9[%c0_20, %c0_21] : memref<32x128xbf16, #tpu.memory_space<vmem>>, vector<32x128xbf16>
    tpu.vector_store %arg9[%c0_20, %c0_21], %23 {strides = array<i32>} : memref<32x128xbf16, #tpu.memory_space<vmem>>, vector<32x128xbf16>,
    return
  }
  func.func @transform_0(%arg0: i32) -> (i32, i32) {
    %c0_i32 = arith.constant 0 : i32
    %c0_i32_0 = arith.constant 0 : i32
    return %c0_i32, %arg0 : i32, i32
  }
  func.func @transform_1(%arg0: i32) -> (i32, i32) {
    %c0_i32 = arith.constant 0 : i32
    %c0_i32_0 = arith.constant 0 : i32
    return %c0_i32, %arg0 : i32, i32
  }
  func.func @transform_2(%arg0: i32) -> (i32, i32) {
    %c0_i32 = arith.constant 0 : i32
    %c0_i32_0 = arith.constant 0 : i32
    %c0_i32_1 = arith.constant 0 : i32
    return %c0_i32, %c0_i32_0 : i32, i32
  }
  func.func @transform_3(%arg0: i32) -> (i32, i32) {
    %c0_i32 = arith.constant 0 : i32
    %c0_i32_0 = arith.constant 0 : i32
    %c0_i32_1 = arith.constant 0 : i32
    return %c0_i32, %c0_i32_0 : i32, i32
  }
  func.func @transform_4(%arg0: i32) -> (i32, i32) {
    %c0_i32 = arith.constant 0 : i32
    %c0_i32_0 = arith.constant 0 : i32
    %c0_i32_1 = arith.constant 0 : i32
    return %c0_i32, %c0_i32_0 : i32, i32
  }
  func.func @transform_5(%arg0: i32) -> (i32, i32) {
    %c0_i32 = arith.constant 0 : i32
    %c0_i32_0 = arith.constant 0 : i32
    %c0_i32_1 = arith.constant 0 : i32
    return %c0_i32, %c0_i32_0 : i32, i32
  }
  func.func @transform_6(%arg0: i32) -> (i32, i32) {
    %c0_i32 = arith.constant 0 : i32
    %c0_i32_0 = arith.constant 0 : i32
    %c0_i32_1 = arith.constant 0 : i32
    return %c0_i32, %c0_i32_0 : i32, i32
  }
  func.func @transform_7(%arg0: i32) -> (i32, i32) {
    %c0_i32 = arith.constant 0 : i32
    %c0_i32_0 = arith.constant 0 : i32
    %c0_i32_1 = arith.constant 0 : i32
    return %c0_i32, %c0_i32_0 : i32, i32
  }
  func.func @transform_8(%arg0: i32) -> (i32, i32) {
    %c0_i32 = arith.constant 0 : i32
    %c0_i32_0 = arith.constant 0 : i32
    return %c0_i32, %arg0 : i32, i32
  }
}

</mosaic_0001>

<llo_original>
// kernel: tpu_custom_call.1
$region0: #{tpu_custom_call.1}
  #allocation0 [shape = 'u32[]', space=smem, size = 0x4, offset = 0x4, fixed_abs, tag = 'smem constant byte address 0x4 - core index']
  #allocation1 [shape = 'u32[144,128]{1,0:T(1,128)}', space=vmem, size = 0x12000, scoped, tag = 'internal scratch']
  %s0 = inlined_call_operand.hbm [shape: f32[8,128], index: 0, kind: input, shape index: {}]
  %s1 = inlined_call_operand.hbm [shape: f32[8,128], index: 1, kind: output, shape index: {}]
  %s2 = sld [smem:[#allocation0]]
  $region18: #{tpu_custom_call.1} parent=0
    _
  %s4 = ssub.s32 1, %s2
  %s5 = scalar_select 0, %s4, %s2
  $region1: #{tpu_custom_call.1} parent=0
    #allocation2 [shape = 'u8[4096]{0}', space=vmem, size = 0x1000, scoped, tag = 'input window, operand 0, single buffered']
    #allocation3 [shape = 's32[1]{0}', space=sflag, size = 0x4, scoped, tag = 'scoped memory for tpu_custom_call.1']
    #allocation4 [shape = 's32[1]{0}', space=sflag, size = 0x4, scoped, tag = 'scoped memory for tpu_custom_call.1']
    #allocation5 [shape = 'u8[4096]{0}', space=vmem, size = 0x1000, scoped, tag = 'output window, operand 0, single buffered']
    %6 = vsyncpa [#allocation3], 0
    %7 = vsyncpa [#allocation4], 0
    // Predicated region
    $region2: #{tpu_custom_call.1} parent=1 // pred_check
      _
    $region3: #{tpu_custom_call.1} parent=1 // pred_check_branch
      %9 = sbr.rel (0) target = $region5
    $region4: #{tpu_custom_call.1} parent=1 // pred_region
      %s11 = ssub.s32 128, 128
      %12 = vsyncadd [#allocation3], %s11
      %s14 = sshll.u32 [#allocation2], 4
      %s15 = int_to_ptr.vmem [resolvable:$true] %s14
      %17 = dma.hbm_to_vmem [thread:$0]  %s0, 128, %s15, [#allocation3]
    $region5: #{tpu_custom_call.1} parent=1 // pred_fallthru
      _
    // Predicated region
    $region6: #{tpu_custom_call.1} parent=1 // pred_check
      _
    $region7: #{tpu_custom_call.1} parent=1 // pred_check_branch
      %19 = sbr.rel (0) target = $region9
    $region8: #{tpu_custom_call.1} parent=1 // pred_region
      %20 = dma.done [#allocation3], 128
    $region9: #{tpu_custom_call.1} parent=1 // pred_fallthru
      _
    %v21 = vld [vmem:[#allocation2] sm:$0xff]
    %v22 = vadd.f32 %v21, 1.0
    %23 = vst [vmem:[#allocation5] sm:$0xff] %v22
    // Predicated region
    $region10: #{tpu_custom_call.1} parent=1 // pred_check
      _
    $region11: #{tpu_custom_call.1} parent=1 // pred_check_branch
      %25 = sbr.rel (0) target = $region13
    $region12: #{tpu_custom_call.1} parent=1 // pred_region
      %s27 = ssub.s32 128, 128
      %28 = vsyncadd [#allocation4], %s27
      %s30 = sshll.u32 [#allocation5], 4
      %s31 = int_to_ptr.vmem [resolvable:$true] %s30
      %33 = dma.vmem_to_hbm [thread:$0]  %s31, 128, %s1, [#allocation4]
    $region13: #{tpu_custom_call.1} parent=1 // pred_fallthru
      _
    // Predicated region
    $region14: #{tpu_custom_call.1} parent=1 // pred_check
      _
    $region15: #{tpu_custom_call.1} parent=1 // pred_check_branch
      %35 = sbr.rel (0) target = $region17
    $region16: #{tpu_custom_call.1} parent=1 // pred_region
      %36 = dma.done [#allocation4], 128
    $region17: #{tpu_custom_call.1} parent=1 // pred_fallthru
      _
    %37 = vsyncpa [#allocation3], 1
    %38 = vsyncpa [#allocation4], 1

// kernel: forward.23
$region0: #{forward.23}
  #allocation0 [shape = 'u32[]', space=smem, size = 0x4, offset = 0x4, fixed_abs, tag = 'smem constant byte address 0x4 - core index']
  #allocation1 [shape = 'u32[144,128]{1,0:T(1,128)}', space=vmem, size = 0x12000, scoped, tag = 'internal scratch']
  %s0 = inlined_call_operand.vmem [shape: bf16[32,256], index: 0, kind: input, shape index: {}]
  %s1 = inlined_call_operand.vmem [shape: bf16[32,32], index: 1, kind: input, shape index: {}]
  %s2 = inlined_call_operand.vmem [shape: bf16[128,128], index: 2, kind: input, shape index: {}]
  %s3 = inlined_call_operand.vmem [shape: bf16[128,128], index: 3, kind: input, shape index: {}]
  %s4 = inlined_call_operand.vmem [shape: f32[1,128], index: 4, kind: input, shape index: {}]
  %s5 = inlined_call_operand.vmem [shape: bf16[32,256], index: 5, kind: output, shape index: {}]
  %s6 = sld [smem:[#allocation0]]
  $region131: #{forward.23} parent=0
    _
  %s8 = ssub.s32 1, %s6
  %s9 = scalar_select 0, %s8, %s6
  $region1: #{forward.23} parent=0
    #allocation2 [shape = 'u8[16384]{0}', space=vmem, size = 0x4000, scoped, tag = 'input window, operand 0']
    #allocation3 [shape = 'u8[16384]{0}', space=vmem, size = 0x4000, scoped, tag = 'output window, operand 0']
    loop: start=0, step=1, limit=4
    $region2: #{forward.23} parent=1 // loop_pre_header
      _
    $region3: #{forward.23} parent=1 // loop_header
      %s11 = sphi 0, %s15
      %p12 = scmp.ge.s32.totalorder %s11, 4
      %s21 = sphi 0, %s23
      %s24 = sphi 0, %s21
      %s25 = sphi 0, %s24
      %s41 = sphi 0, %s25
      %s45 = sphi 0, %s45
      %s47 = sphi 0, %s45
      %s48 = sphi 0, %s47
      %s62 = sphi 0, %s48
      %s66 = sphi 0, %s66
      %s68 = sphi 0, %s66
      %s69 = sphi 0, %s68
      %s83 = sphi 0, %s69
      %s87 = sphi 0, %s87
      %s89 = sphi 0, %s87
      %s90 = sphi 0, %s89
      %s104 = sphi 0, %s90
      %s108 = sphi 0, %s108
      %s110 = sphi 0, %s108
      %s111 = sphi 0, %s110
      %s125 = sphi 0, %s111
      %s131 = sphi 0, %s133
      %s134 = sphi 0, %s131
      %s135 = sphi 0, %s134
      %s151 = sphi 0, %s135
    $region4: #{forward.23} parent=1 // loop_header_branch
      %14 = sbr.rel (%p12) target = $region8
    $region5: #{forward.23} parent=1 // loop_body
      %s16 = ssub.s32 %s11, 1
      %s17 = ssub.s32 %s11, 2
      %s18 = sadd.s32 %s11, 1
      %s19 = ssub.s32 %s11, %s18
      %p20 = scmp.eq.s32.totalorder %s19, 0
      %s22 = sadd.s32 %s21, 1
      %s23 = scalar_select %p20, %s21, %s22
      %p26 = pneg %p20
      %p27 = scmp.eq.s32.totalorder %s11, 1
      %p28 = por %p26, %p27
      %p29 = scmp.ne.s32.totalorder %s21, %s24
      %p30 = scmp.eq.s32.totalorder %s11, 0
      %p31 = por %p29, %p30
      %p32 = scmp.ne.s32.totalorder %s21, %s24
      %p33 = scmp.eq.s32.totalorder %s16, 1
      %p34 = por %p32, %p33
      %p35 = scmp.ne.s32.totalorder %s24, %s25
      %p36 = scmp.eq.s32.totalorder %s16, 0
      %p37 = por %p35, %p36
      %p38 = scmp.ne.s32.totalorder %s24, %s25
      %p39 = scmp.eq.s32.totalorder %s17, 1
      %p40 = por %p38, %p39
      %p42 = scmp.ne.s32.totalorder %s25, %s41
      %p43 = scmp.eq.s32.totalorder %s17, 0
      %p44 = por %p42, %p43
      %s46 = sadd.s32 %s45, 1
      %p49 = scmp.eq.s32.totalorder %s11, 1
      %p50 = scmp.ne.s32.totalorder %s45, %s47
      %p51 = scmp.eq.s32.totalorder %s11, 0
      %p52 = por %p50, %p51
      %p53 = scmp.ne.s32.totalorder %s45, %s47
      %p54 = scmp.eq.s32.totalorder %s16, 1
      %p55 = por %p53, %p54
      %p56 = scmp.ne.s32.totalorder %s47, %s48
      %p57 = scmp.eq.s32.totalorder %s16, 0
      %p58 = por %p56, %p57
      %p59 = scmp.ne.s32.totalorder %s47, %s48
      %p60 = scmp.eq.s32.totalorder %s17, 1
      %p61 = por %p59, %p60
      %p63 = scmp.ne.s32.totalorder %s48, %s62
      %p64 = scmp.eq.s32.totalorder %s17, 0
      %p65 = por %p63, %p64
      %s67 = sadd.s32 %s66, 1
      %p70 = scmp.eq.s32.totalorder %s11, 1
      %p71 = scmp.ne.s32.totalorder %s66, %s68
      %p72 = scmp.eq.s32.totalorder %s11, 0
      %p73 = por %p71, %p72
      %p74 = scmp.ne.s32.totalorder %s66, %s68
      %p75 = scmp.eq.s32.totalorder %s16, 1
      %p76 = por %p74, %p75
      %p77 = scmp.ne.s32.totalorder %s68, %s69
      %p78 = scmp.eq.s32.totalorder %s16, 0
      %p79 = por %p77, %p78
      %p80 = scmp.ne.s32.totalorder %s68, %s69
      %p81 = scmp.eq.s32.totalorder %s17, 1
      %p82 = por %p80, %p81
      %p84 = scmp.ne.s32.totalorder %s69, %s83
      %p85 = scmp.eq.s32.totalorder %s17, 0
      %p86 = por %p84, %p85
      %s88 = sadd.s32 %s87, 1
      %p91 = scmp.eq.s32.totalorder %s11, 1
      %p92 = scmp.ne.s32.totalorder %s87, %s89
      %p93 = scmp.eq.s32.totalorder %s11, 0
      %p94 = por %p92, %p93
      %p95 = scmp.ne.s32.totalorder %s87, %s89
      %p96 = scmp.eq.s32.totalorder %s16, 1
      %p97 = por %p95, %p96
      %p98 = scmp.ne.s32.totalorder %s89, %s90
      %p99 = scmp.eq.s32.totalorder %s16, 0
      %p100 = por %p98, %p99
      %p101 = scmp.ne.s32.totalorder %s89, %s90
      %p102 = scmp.eq.s32.totalorder %s17, 1
      %p103 = por %p101, %p102
      %p105 = scmp.ne.s32.totalorder %s90, %s104
      %p106 = scmp.eq.s32.totalorder %s17, 0
      %p107 = por %p105, %p106
      %s109 = sadd.s32 %s108, 1
      %p112 = scmp.eq.s32.totalorder %s11, 1
      %p113 = scmp.ne.s32.totalorder %s108, %s110
      %p114 = scmp.eq.s32.totalorder %s11, 0
      %p115 = por %p113, %p114
      %p116 = scmp.ne.s32.totalorder %s108, %s110
      %p117 = scmp.eq.s32.totalorder %s16, 1
      %p118 = por %p116, %p117
      %p119 = scmp.ne.s32.totalorder %s110, %s111
      %p120 = scmp.eq.s32.totalorder %s16, 0
      %p121 = por %p119, %p120
      %p122 = scmp.ne.s32.totalorder %s110, %s111
      %p123 = scmp.eq.s32.totalorder %s17, 1
      %p124 = por %p122, %p123
      %p126 = scmp.ne.s32.totalorder %s111, %s125
      %p127 = scmp.eq.s32.totalorder %s17, 0
      %p128 = por %p126, %p127
      %s129 = ssub.s32 %s11, %s18
      %p130 = scmp.eq.s32.totalorder %s129, 0
      %s132 = sadd.s32 %s131, 1
      %s133 = scalar_select %p130, %s131, %s132
      %p136 = pneg %p130
      %p137 = scmp.eq.s32.totalorder %s11, 1
      %p138 = por %p136, %p137
      %p139 = scmp.ne.s32.totalorder %s131, %s134
      %p140 = scmp.eq.s32.totalorder %s11, 0
      %p141 = por %p139, %p140
      %p142 = scmp.ne.s32.totalorder %s131, %s134
      %p143 = scmp.eq.s32.totalorder %s16, 1
      %p144 = por %p142, %p143
      %p145 = scmp.ne.s32.totalorder %s134, %s135
      %p146 = scmp.eq.s32.totalorder %s16, 0
      %p147 = por %p145, %p146
      %p148 = scmp.ne.s32.totalorder %s134, %s135
      %p149 = scmp.eq.s32.totalorder %s17, 1
      %p150 = por %p148, %p149
      %p152 = scmp.ne.s32.totalorder %s135, %s151
      %p153 = scmp.eq.s32.totalorder %s17, 0
      %p154 = por %p152, %p153
      %p155 = scmp.le.s32.totalorder 1, %s11
      %p156 = scmp.lt.s32.totalorder %s11, 3
      %p157 = pnand %p155, %p156
      %p158 = pneg %p157
      // Predicated region
      $region9: #{forward.23} parent=5 // pred_check
        _
      $region10: #{forward.23} parent=5 // pred_check_branch
        %160 = sbr.rel (%p157) target = $region12
      $region11: #{forward.23} parent=5 // pred_region
        %s161 = ssub.s32 %s11, 1
        // Predicated region
        $region13: #{forward.23} parent=11 // pred_check
          %p162 = pneg %p58
        $region14: #{forward.23} parent=11 // pred_check_branch
          %164 = sbr.rel (%p162) target = $region16
        $region15: #{forward.23} parent=11 // pred_region
          _
        $region16: #{forward.23} parent=11 // pred_fallthru
          _
        // Predicated region
        $region17: #{forward.23} parent=11 // pred_check
          %p165 = pneg %p79
        $region18: #{forward.23} parent=11 // pred_check_branch
          %167 = sbr.rel (%p165) target = $region20
        $region19: #{forward.23} parent=11 // pred_region
          _
        $region20: #{forward.23} parent=11 // pred_fallthru
          _
        // Predicated region
        $region21: #{forward.23} parent=11 // pred_check
          %p168 = pneg %p100
        $region22: #{forward.23} parent=11 // pred_check_branch
          %170 = sbr.rel (%p168) target = $region24
        $region23: #{forward.23} parent=11 // pred_region
          _
        $region24: #{forward.23} parent=11 // pred_fallthru
          _
        // Predicated region
        $region25: #{forward.23} parent=11 // pred_check
          %p171 = pneg %p121
        $region26: #{forward.23} parent=11 // pred_check_branch
          %173 = sbr.rel (%p171) target = $region28
        $region27: #{forward.23} parent=11 // pred_region
          _
        $region28: #{forward.23} parent=11 // pred_fallthru
          _
      $region12: #{forward.23} parent=5 // pred_fallthru
        _
      %p174 = scmp.lt.s32.totalorder %s11, 2
      // Predicated region
      $region29: #{forward.23} parent=5 // pred_check
        %p175 = pneg %p174
      $region30: #{forward.23} parent=5 // pred_check_branch
        %177 = sbr.rel (%p175) target = $region32
      $region31: #{forward.23} parent=5 // pred_region
        // Predicated region
        $region33: #{forward.23} parent=31 // pred_check
          %p178 = pneg %p31
        $region34: #{forward.23} parent=31 // pred_check_branch
          %180 = sbr.rel (%p178) target = $region36
        $region35: #{forward.23} parent=31 // pred_region
          %s181 = sand.u32 %s21, 1
          %s182 = sand.u32 %s21, 1
          %s183 = smul.addr %s182, 16
          %s184 = scalar_lea.vmem [#allocation2], %s183
          %s185 = smul.addr %s11, 4
          %s186 = scalar_lea.vmem %s0, %s185
          // Predicated region
          $region37: #{forward.23} parent=35 // pred_check
            _
          $region38: #{forward.23} parent=35 // pred_check_branch
            %188 = sbr.rel (0) target = $region40
          $region39: #{forward.23} parent=35 // pred_region
            // Predicated region
            $region41: #{forward.23} parent=39 // pred_check
              _
            $region42: #{forward.23} parent=39 // pred_check_branch
              %190 = sbr.rel target = $region44
            $region43: #{forward.23} parent=39 // pred_region
              // Predicated region
              $region56: #{forward.23} parent=43 // pred_check
                _
              $region57: #{forward.23} parent=43 // pred_check_branch
                %212 = sbr.rel (0) target = $region59
              $region58: #{forward.23} parent=43 // pred_region
                loop: start=0, step=1, limit=1
                $region60: #{forward.23} parent=58 // loop_pre_header
                  _
                $region61: #{forward.23} parent=58 // loop_header
                  %s214 = sphi 0, %s218
                  %p215 = scmp.ge.s32.totalorder %s214, 1
                  %s219 = sphi %s186, %s186
                  %s220 = sphi %s184, %s184
                $region62: #{forward.23} parent=58 // loop_header_branch
                  %217 = sbr.rel (%p215) target = $region66
                $region63: #{forward.23} parent=58 // loop_body
                  _
                $region64: #{forward.23} parent=58 // loop_footer
                  %s218 = sadd.s32 1, %s214
                $region65: #{forward.23} parent=58 // loop_footer_branch
                  %213 = sbr.rel target = $region61
                $region66: #{forward.23} parent=58 // loop_exit
                  _
                %s222 = ssub.s32 16, 1
                loop: start=0, step=1, limit=1
                $region67: #{forward.23} parent=58 // loop_pre_header
                  _
                $region68: #{forward.23} parent=58 // loop_header
                  %s224 = sphi 0, %s228
                  %p225 = scmp.ge.s32.totalorder %s224, 1
                  %s229 = sphi %s186, %s186
                  %s230 = sphi %s184, %s184
                $region69: #{forward.23} parent=58 // loop_header_branch
                  %227 = sbr.rel (%p225) target = $region73
                $region70: #{forward.23} parent=58 // loop_body
                  %v231 = vld [vmem:[%s229] sm:%s222]
                  %232 = vst [vmem:[%s230] sm:%s222] %v231
                  %v233 = vld [vmem:[%s229 + $0x8] sm:%s222]
                  %234 = vst [vmem:[%s230 + $0x4] sm:%s222] %v233
                  %v235 = vld [vmem:[%s229 + $0x10] sm:%s222]
                  %236 = vst [vmem:[%s230 + $0x8] sm:%s222] %v235
                  %v237 = vld [vmem:[%s229 + $0x18] sm:%s222]
                  %238 = vst [vmem:[%s230 + $0xc] sm:%s222] %v237
                $region71: #{forward.23} parent=58 // loop_footer
                  %s228 = sadd.s32 1, %s224
                $region72: #{forward.23} parent=58 // loop_footer_branch
                  %223 = sbr.rel target = $region68
                $region73: #{forward.23} parent=58 // loop_exit
                  _
              $region59: #{forward.23} parent=43 // pred_fallthru
                _
            $region44: #{forward.23} parent=39 // pred_fallthru
              _
            // Predicated region
            $region45: #{forward.23} parent=39 // pred_check
              _
            $region46: #{forward.23} parent=39 // pred_check_branch
              %192 = sbr.rel (0) target = $region48
            $region47: #{forward.23} parent=39 // pred_region
              %s194 = ssub.s32 16, 1
              loop: start=0, step=1, limit=1
              $region49: #{forward.23} parent=47 // loop_pre_header
                _
              $region50: #{forward.23} parent=47 // loop_header
                %s196 = sphi 0, %s200
                %p197 = scmp.ge.s32.totalorder %s196, 1
                %s201 = sphi %s186, %s186
                %s202 = sphi %s184, %s184
              $region51: #{forward.23} parent=47 // loop_header_branch
                %199 = sbr.rel (%p197) target = $region55
              $region52: #{forward.23} parent=47 // loop_body
                %v203 = vld [vmem:[%s201] sm:%s194]
                %204 = vst [vmem:[%s202] sm:%s194] %v203
                %v205 = vld [vmem:[%s201 + $0x8] sm:%s194]
                %206 = vst [vmem:[%s202 + $0x4] sm:%s194] %v205
                %v207 = vld [vmem:[%s201 + $0x10] sm:%s194]
                %208 = vst [vmem:[%s202 + $0x8] sm:%s194] %v207
                %v209 = vld [vmem:[%s201 + $0x18] sm:%s194]
                %210 = vst [vmem:[%s202 + $0xc] sm:%s194] %v209
              $region53: #{forward.23} parent=47 // loop_footer
                %s200 = sadd.s32 1, %s196
              $region54: #{forward.23} parent=47 // loop_footer_branch
                %195 = sbr.rel target = $region50
              $region55: #{forward.23} parent=47 // loop_exit
                _
            $region48: #{forward.23} parent=39 // pred_fallthru
              _
          $region40: #{forward.23} parent=35 // pred_fallthru
            _
          %239 = vnop
        $region36: #{forward.23} parent=31 // pred_fallthru
          _
      $region32: #{forward.23} parent=5 // pred_fallthru
        _
      %p240 = scmp.le.s32.totalorder 1, %s11
      %p241 = scmp.lt.s32.totalorder %s11, 3
      %p242 = pnand %p240, %p241
      %p243 = pneg %p242
      // Predicated region
      $region74: #{forward.23} parent=5 // pred_check
        _
      $region75: #{forward.23} parent=5 // pred_check_branch
        %245 = sbr.rel (%p242) target = $region77
      $region76: #{forward.23} parent=5 // pred_region
        %s246 = ssub.s32 %s11, 1
        %s247 = sand.u32 %s24, 1
        %s248 = sand.u32 %s24, 1
        %s249 = smul.addr %s248, 16
        %s250 = scalar_lea.vmem [#allocation2], %s249
        // Predicated region
        $region78: #{forward.23} parent=76 // pred_check
          %p251 = pneg %p37
        $region79: #{forward.23} parent=76 // pred_check_branch
          %253 = sbr.rel (%p251) target = $region81
        $region80: #{forward.23} parent=76 // pred_region
          _
        $region81: #{forward.23} parent=76 // pred_fallthru
          _
        %s254 = sand.u32 %s24, 1
        %s255 = sand.u32 %s24, 1
        %s256 = smul.addr %s255, 16
        %s257 = scalar_lea.vmem [#allocation2], %s256
        %p258 = pneg %p37
        %p259 = pneg %p34
        %p260 = pneg %p58
        %p261 = pneg %p55
        %p262 = pneg %p79
        %p263 = pneg %p76
        %p264 = pneg %p100
        %p265 = pneg %p97
        %p266 = pneg %p121
        %p267 = pneg %p118
        %p268 = pneg %p147
        %p269 = pneg %p144
        %s270 = sand.u32 %s134, 1
        %s271 = sand.u32 %s134, 1
        %s272 = smul.addr %s271, 16
        %s273 = scalar_lea.vmem [#allocation3], %s272
        %v275 = vld [vmem:[%s1] sm:$0xf]
        %v276 = vld [vmem:[%s1 + $0x4] sm:$0xf]
        %v277 = vld [vmem:[%s1 + $0x8] sm:$0xf]
        %v278 = vld [vmem:[%s1 + $0xc] sm:$0xf]
        %v279 = vld [vmem:[%s250] sm:$0xf]
        %v280 = vld [vmem:[%s250 + $0x4] sm:$0xf]
        %v281 = vld [vmem:[%s250 + $0x8] sm:$0xf]
        %v282 = vld [vmem:[%s250 + $0xc] sm:$0xf]
        %v283 = vld [vmem:[%s2] sm:$0xf]
        %v284 = vld [vmem:[%s2 + $0x4] sm:$0xf]
        %v285 = vld [vmem:[%s2 + $0x8] sm:$0xf]
        %v286 = vld [vmem:[%s2 + $0xc] sm:$0xf]
        %v287 = vld [vmem:[%s2 + $0x10] sm:$0xf]
        %v288 = vld [vmem:[%s2 + $0x14] sm:$0xf]
        %v289 = vld [vmem:[%s2 + $0x18] sm:$0xf]
        %v290 = vld [vmem:[%s2 + $0x1c] sm:$0xf]
        %v291 = vld [vmem:[%s2 + $0x20] sm:$0xf]
        %v292 = vld [vmem:[%s2 + $0x24] sm:$0xf]
        %v293 = vld [vmem:[%s2 + $0x28] sm:$0xf]
        %v294 = vld [vmem:[%s2 + $0x2c] sm:$0xf]
        %v295 = vld [vmem:[%s2 + $0x30] sm:$0xf]
        %v296 = vld [vmem:[%s2 + $0x34] sm:$0xf]
        %v297 = vld [vmem:[%s2 + $0x38] sm:$0xf]
        %v298 = vld [vmem:[%s2 + $0x3c] sm:$0xf]
        %v299 = vld [vmem:[%s3] sm:$0xf]
        %v300 = vld [vmem:[%s3 + $0x4] sm:$0xf]
        %v301 = vld [vmem:[%s3 + $0x8] sm:$0xf]
        %v302 = vld [vmem:[%s3 + $0xc] sm:$0xf]
        %v303 = vld [vmem:[%s3 + $0x10] sm:$0xf]
        %v304 = vld [vmem:[%s3 + $0x14] sm:$0xf]
        %v305 = vld [vmem:[%s3 + $0x18] sm:$0xf]
        %v306 = vld [vmem:[%s3 + $0x1c] sm:$0xf]
        %v307 = vld [vmem:[%s3 + $0x20] sm:$0xf]
        %v308 = vld [vmem:[%s3 + $0x24] sm:$0xf]
        %v309 = vld [vmem:[%s3 + $0x28] sm:$0xf]
        %v310 = vld [vmem:[%s3 + $0x2c] sm:$0xf]
        %v311 = vld [vmem:[%s3 + $0x30] sm:$0xf]
        %v312 = vld [vmem:[%s3 + $0x34] sm:$0xf]
        %v313 = vld [vmem:[%s3 + $0x38] sm:$0xf]
        %v314 = vld [vmem:[%s3 + $0x3c] sm:$0xf]
        %v315 = vld [vmem:[%s4] sm:$0x1]
        %v320 = vunpack.c.l.b16 %v275
        %v321 = vunpack.c.l.b16 %v276
        %v322 = vunpack.c.l.b16 %v277
        %v323 = vunpack.c.l.b16 %v278
        %v324 = vpack.c.b16 %v321, %v320
        %v325 = vpack.c.b16 %v323, %v322
        %v330 = vunpack.c.l.b16 %v279
        %v331 = vunpack.c.l.b16 %v280
        %v332 = vunpack.c.l.b16 %v281
        %v333 = vunpack.c.l.b16 %v282
        %v334 = vpack.c.b16 %v331, %v330
        %v335 = vpack.c.b16 %v333, %v332
        %vm338 = vcmask 261120
        %v340 = vsel %vm338, %v324, 0
        %v343 = vsel %vm338, %v325, 0
        %345 = vmatprep.subr.bf16.mxu0 0
        %346 = vmatpush1.bf16.msra.mxu0 0
        %347 = vmatprep.subr.bf16.mxu0 0
        %348 = vmatpush1.bf16.msra.mxu0 0
        %349 = vmatprep.subr.bf16.mxu0 0
        %350 = vmatpush1.bf16.msra.mxu0 0
        %351 = vmatprep.subr.bf16.mxu0 0
        %352 = vmatpush1.bf16.msra.mxu0 0
        %353 = vmatprep.subr.bf16.mxu0 0
        %354 = vmatpush1.bf16.msra.mxu0 0
        %355 = vmatprep.subr.bf16.mxu0 0
        %356 = vmatpush1.bf16.msra.mxu0 0
        %357 = vmatprep.subr.bf16.mxu0 0
        %358 = vmatpush1.bf16.msra.mxu0 %v335
        %359 = vmatprep.subr.bf16.mxu0 0
        %360 = vmatpush1.bf16.msra.mxu0 %v334
        %361 = vmatprep.subr.bf16.mxu0 0
        %362 = vmatpush2.bf16.msra.mxu0 0
        %363 = vmatprep.subr.bf16.mxu0 0
        %364 = vmatpush2.bf16.msra.mxu0 0
        %365 = vmatprep.subr.bf16.mxu0 0
        %366 = vmatpush2.bf16.msra.mxu0 0
        %367 = vmatprep.subr.bf16.mxu0 0
        %368 = vmatpush2.bf16.msra.mxu0 0
        %369 = vmatprep.subr.bf16.mxu0 0
        %370 = vmatpush2.bf16.msra.mxu0 0
        %371 = vmatprep.subr.bf16.mxu0 0
        %372 = vmatpush2.bf16.msra.mxu0 0
        %373 = vmatprep.subr.bf16.mxu0 0
        %374 = vmatpush2.bf16.msra.mxu0 0
        %375 = vmatprep.subr.bf16.mxu0 0
        %376 = vmatpush2.bf16.msra.mxu0 0
        %377 = vmatprep.mubr.bf16.mxu0 0
        %378 = vmatmul.mubr.bf16.gmra.mxu0 %v340
        %v379 = vpop.f32.mrf.mxu0
        %v380 = vadd.f32 0.0, %v379
        %v381 = vpop.f32.mrf.mxu0
        %v382 = vpop.f32.mrf.mxu0
        %v383 = vadd.f32 0.0, %v382
        %v384 = vpop.f32.mrf.mxu0
        %385 = vmatprep.mubr.bf16.mxu0 0
        %386 = vmatmul.mubr.bf16.gmra.mxu0 %v343
        %v387 = vpop.f32.mrf.mxu0
        %v388 = vadd.f32 0.0, %v387
        %v389 = vpop.f32.mrf.mxu0
        %v390 = vpop.f32.mrf.mxu0
        %v391 = vadd.f32 0.0, %v390
        %v392 = vpop.f32.mrf.mxu0
        %393 = vdwg.mxu0
        %v394 = vpack.c.bf16 %v383, %v380
        %v395 = vpack.c.bf16 %v391, %v388
        %v412 = vunpack.c.l.b16 %v299
        %v413 = vunpack.c.l.b16 %v300
        %v414 = vunpack.c.l.b16 %v301
        %v415 = vunpack.c.l.b16 %v302
        %v416 = vunpack.c.l.b16 %v303
        %v417 = vunpack.c.l.b16 %v304
        %v418 = vunpack.c.l.b16 %v305
        %v419 = vunpack.c.l.b16 %v306
        %v420 = vunpack.c.l.b16 %v307
        %v421 = vunpack.c.l.b16 %v308
        %v422 = vunpack.c.l.b16 %v309
        %v423 = vunpack.c.l.b16 %v310
        %v424 = vunpack.c.l.b16 %v311
        %v425 = vunpack.c.l.b16 %v312
        %v426 = vunpack.c.l.b16 %v313
        %v427 = vunpack.c.l.b16 %v314
        %v428 = vpack.c.b16 %v413, %v412
        %v429 = vpack.c.b16 %v415, %v414
        %v430 = vpack.c.b16 %v417, %v416
        %v431 = vpack.c.b16 %v419, %v418
        %v432 = vpack.c.b16 %v421, %v420
        %v433 = vpack.c.b16 %v423, %v422
        %v434 = vpack.c.b16 %v425, %v424
        %v435 = vpack.c.b16 %v427, %v426
        %444 = vmatprep.subr.bf16.mxu0 0
        %445 = vmatpush1.bf16.msra.mxu0 %v435
        %446 = vmatprep.subr.bf16.mxu0 0
        %447 = vmatpush1.bf16.msra.mxu0 %v434
        %448 = vmatprep.subr.bf16.mxu0 0
        %449 = vmatpush1.bf16.msra.mxu0 %v433
        %450 = vmatprep.subr.bf16.mxu0 0
        %451 = vmatpush1.bf16.msra.mxu0 %v432
        %452 = vmatprep.subr.bf16.mxu0 0
        %453 = vmatpush1.bf16.msra.mxu0 %v431
        %454 = vmatprep.subr.bf16.mxu0 0
        %455 = vmatpush1.bf16.msra.mxu0 %v430
        %456 = vmatprep.subr.bf16.mxu0 0
        %457 = vmatpush1.bf16.msra.mxu0 %v429
        %458 = vmatprep.subr.bf16.mxu0 0
        %459 = vmatpush1.bf16.msra.mxu0 %v428
        %460 = vmatprep.subr.bf16.mxu0 0
        %461 = vmatpush2.bf16.msra.mxu0 0
        %462 = vmatprep.subr.bf16.mxu0 0
        %463 = vmatpush2.bf16.msra.mxu0 0
        %464 = vmatprep.subr.bf16.mxu0 0
        %465 = vmatpush2.bf16.msra.mxu0 0
        %466 = vmatprep.subr.bf16.mxu0 0
        %467 = vmatpush2.bf16.msra.mxu0 0
        %468 = vmatprep.subr.bf16.mxu0 0
        %469 = vmatpush2.bf16.msra.mxu0 0
        %470 = vmatprep.subr.bf16.mxu0 0
        %471 = vmatpush2.bf16.msra.mxu0 0
        %472 = vmatprep.subr.bf16.mxu0 0
        %473 = vmatpush2.bf16.msra.mxu0 0
        %474 = vmatprep.subr.bf16.mxu0 0
        %475 = vmatpush2.bf16.msra.mxu0 0
        %476 = vmatprep.mubr.bf16.mxu0 0
        %477 = vmatmul.mubr.bf16.gmra.mxu0 %v394
        %v478 = vpop.f32.mrf.mxu0
        %v479 = vadd.f32 0.0, %v478
        %v480 = vpop.f32.mrf.mxu0
        %v481 = vpop.f32.mrf.mxu0
        %v482 = vadd.f32 0.0, %v481
        %v483 = vpop.f32.mrf.mxu0
        %484 = vmatprep.mubr.bf16.mxu0 0
        %485 = vmatmul.mubr.bf16.gmra.mxu0 %v395
        %v486 = vpop.f32.mrf.mxu0
        %v487 = vadd.f32 0.0, %v486
        %v488 = vpop.f32.mrf.mxu0
        %v489 = vpop.f32.mrf.mxu0
        %v490 = vadd.f32 0.0, %v489
        %v491 = vpop.f32.mrf.mxu0
        %492 = vdwg.mxu0
        %v509 = vunpack.c.l.b16 %v283
        %v510 = vunpack.c.l.b16 %v284
        %v511 = vunpack.c.l.b16 %v285
        %v512 = vunpack.c.l.b16 %v286
        %v513 = vunpack.c.l.b16 %v287
        %v514 = vunpack.c.l.b16 %v288
        %v515 = vunpack.c.l.b16 %v289
        %v516 = vunpack.c.l.b16 %v290
        %v517 = vunpack.c.l.b16 %v291
        %v518 = vunpack.c.l.b16 %v292
        %v519 = vunpack.c.l.b16 %v293
        %v520 = vunpack.c.l.b16 %v294
        %v521 = vunpack.c.l.b16 %v295
        %v522 = vunpack.c.l.b16 %v296
        %v523 = vunpack.c.l.b16 %v297
        %v524 = vunpack.c.l.b16 %v298
        %v525 = vpack.c.b16 %v510, %v509
        %v526 = vpack.c.b16 %v512, %v511
        %v527 = vpack.c.b16 %v514, %v513
        %v528 = vpack.c.b16 %v516, %v515
        %v529 = vpack.c.b16 %v518, %v517
        %v530 = vpack.c.b16 %v520, %v519
        %v531 = vpack.c.b16 %v522, %v521
        %v532 = vpack.c.b16 %v524, %v523
        %541 = vmatprep.subr.bf16.mxu0 0
        %542 = vmatpush1.bf16.msra.mxu0 %v532
        %543 = vmatprep.subr.bf16.mxu0 0
        %544 = vmatpush1.bf16.msra.mxu0 %v531
        %545 = vmatprep.subr.bf16.mxu0 0
        %546 = vmatpush1.bf16.msra.mxu0 %v530
        %547 = vmatprep.subr.bf16.mxu0 0
        %548 = vmatpush1.bf16.msra.mxu0 %v529
        %549 = vmatprep.subr.bf16.mxu0 0
        %550 = vmatpush1.bf16.msra.mxu0 %v528
        %551 = vmatprep.subr.bf16.mxu0 0
        %552 = vmatpush1.bf16.msra.mxu0 %v527
        %553 = vmatprep.subr.bf16.mxu0 0
        %554 = vmatpush1.bf16.msra.mxu0 %v526
        %555 = vmatprep.subr.bf16.mxu0 0
        %556 = vmatpush1.bf16.msra.mxu0 %v525
        %557 = vmatprep.subr.bf16.mxu0 0
        %558 = vmatpush2.bf16.msra.mxu0 0
        %559 = vmatprep.subr.bf16.mxu0 0
        %560 = vmatpush2.bf16.msra.mxu0 0
        %561 = vmatprep.subr.bf16.mxu0 0
        %562 = vmatpush2.bf16.msra.mxu0 0
        %563 = vmatprep.subr.bf16.mxu0 0
        %564 = vmatpush2.bf16.msra.mxu0 0
        %565 = vmatprep.subr.bf16.mxu0 0
        %566 = vmatpush2.bf16.msra.mxu0 0
        %567 = vmatprep.subr.bf16.mxu0 0
        %568 = vmatpush2.bf16.msra.mxu0 0
        %569 = vmatprep.subr.bf16.mxu0 0
        %570 = vmatpush2.bf16.msra.mxu0 0
        %571 = vmatprep.subr.bf16.mxu0 0
        %572 = vmatpush2.bf16.msra.mxu0 0
        %573 = vmatprep.mubr.bf16.mxu0 0
        %574 = vmatmul.mubr.bf16.gmra.mxu0 %v334
        %v575 = vpop.f32.mrf.mxu0
        %v576 = vadd.f32 %v479, %v575
        %v577 = vpop.f32.mrf.mxu0
        %v578 = vpop.f32.mrf.mxu0
        %v579 = vadd.f32 %v482, %v578
        %v580 = vpop.f32.mrf.mxu0
        %581 = vmatprep.mubr.bf16.mxu0 0
        %582 = vmatmul.mubr.bf16.gmra.mxu0 %v335
        %v583 = vpop.f32.mrf.mxu0
        %v584 = vadd.f32 %v487, %v583
        %v585 = vpop.f32.mrf.mxu0
        %v586 = vpop.f32.mrf.mxu0
        %v587 = vadd.f32 %v490, %v586
        %v588 = vpop.f32.mrf.mxu0
        %589 = vdwg.mxu0
        %v591 = vlaneseq
        %v592 = vshrl.u32 %v591, 7
        %v593 = vsub.s32 0, %v592
        %v594 = vrot.slane %v315, %v593
        %v596 = vadd.f32 %v576, %v594
        %v597 = vadd.f32 %v579, %v594
        %v598 = vadd.f32 %v584, %v594
        %v599 = vadd.f32 %v587, %v594
        %v600 = vmax.f32 %v596, 0.0
        %v601 = vmax.f32 %v597, 0.0
        %v602 = vmax.f32 %v598, 0.0
        %v603 = vmax.f32 %v599, 0.0
        %v604 = vpack.c.bf16 %v601, %v600
        %v605 = vpack.c.bf16 %v603, %v602
        %v608 = vunpack.c.l.b16 %v604
        %v609 = vunpack.c.h.b16 %v604
        %v610 = vunpack.c.l.b16 %v605
        %v611 = vunpack.c.h.b16 %v605
        %v612 = vpack.c.b16 %v608, %v608
        %v613 = vpack.c.b16 %v609, %v609
        %v614 = vpack.c.b16 %v610, %v610
        %v615 = vpack.c.b16 %v611, %v611
        %620 = vst [vmem:[%s273] sm:$0xf] %v612
        %621 = vst [vmem:[%s273 + $0x4] sm:$0xf] %v613
        %622 = vst [vmem:[%s273 + $0x8] sm:$0xf] %v614
        %623 = vst [vmem:[%s273 + $0xc] sm:$0xf] %v615
        %s624 = sand.u32 %s134, 1
        %s625 = sand.u32 %s134, 1
        %s626 = smul.addr %s625, 16
        %s627 = scalar_lea.vmem [#allocation3], %s626
        // Predicated region
        $region82: #{forward.23} parent=76 // pred_check
          %p628 = pneg %p144
        $region83: #{forward.23} parent=76 // pred_check_branch
          %630 = sbr.rel (%p628) target = $region85
        $region84: #{forward.23} parent=76 // pred_region
          %s631 = smul.addr %s16, 4
          %s632 = scalar_lea.vmem %s5, %s631
          // Predicated region
          $region86: #{forward.23} parent=84 // pred_check
            _
          $region87: #{forward.23} parent=84 // pred_check_branch
            %634 = sbr.rel (0) target = $region89
          $region88: #{forward.23} parent=84 // pred_region
            // Predicated region
            $region90: #{forward.23} parent=88 // pred_check
              _
            $region91: #{forward.23} parent=88 // pred_check_branch
              %636 = sbr.rel target = $region93
            $region92: #{forward.23} parent=88 // pred_region
              // Predicated region
              $region105: #{forward.23} parent=92 // pred_check
                _
              $region106: #{forward.23} parent=92 // pred_check_branch
                %658 = sbr.rel (0) target = $region108
              $region107: #{forward.23} parent=92 // pred_region
                loop: start=0, step=1, limit=1
                $region109: #{forward.23} parent=107 // loop_pre_header
                  _
                $region110: #{forward.23} parent=107 // loop_header
                  %s660 = sphi 0, %s664
                  %p661 = scmp.ge.s32.totalorder %s660, 1
                  %s665 = sphi %s627, %s627
                  %s666 = sphi %s632, %s632
                $region111: #{forward.23} parent=107 // loop_header_branch
                  %663 = sbr.rel (%p661) target = $region115
                $region112: #{forward.23} parent=107 // loop_body
                  _
                $region113: #{forward.23} parent=107 // loop_footer
                  %s664 = sadd.s32 1, %s660
                $region114: #{forward.23} parent=107 // loop_footer_branch
                  %659 = sbr.rel target = $region110
                $region115: #{forward.23} parent=107 // loop_exit
                  _
                %s668 = ssub.s32 16, 1
                loop: start=0, step=1, limit=1
                $region116: #{forward.23} parent=107 // loop_pre_header
                  _
                $region117: #{forward.23} parent=107 // loop_header
                  %s670 = sphi 0, %s674
                  %p671 = scmp.ge.s32.totalorder %s670, 1
                  %s675 = sphi %s627, %s627
                  %s676 = sphi %s632, %s632
                $region118: #{forward.23} parent=107 // loop_header_branch
                  %673 = sbr.rel (%p671) target = $region122
                $region119: #{forward.23} parent=107 // loop_body
                  %v677 = vld [vmem:[%s675] sm:%s668]
                  %678 = vst [vmem:[%s676] sm:%s668] %v677
                  %v679 = vld [vmem:[%s675 + $0x4] sm:%s668]
                  %680 = vst [vmem:[%s676 + $0x8] sm:%s668] %v679
                  %v681 = vld [vmem:[%s675 + $0x8] sm:%s668]
                  %682 = vst [vmem:[%s676 + $0x10] sm:%s668] %v681
                  %v683 = vld [vmem:[%s675 + $0xc] sm:%s668]
                  %684 = vst [vmem:[%s676 + $0x18] sm:%s668] %v683
                $region120: #{forward.23} parent=107 // loop_footer
                  %s674 = sadd.s32 1, %s670
                $region121: #{forward.23} parent=107 // loop_footer_branch
                  %669 = sbr.rel target = $region117
                $region122: #{forward.23} parent=107 // loop_exit
                  _
              $region108: #{forward.23} parent=92 // pred_fallthru
                _
            $region93: #{forward.23} parent=88 // pred_fallthru
              _
            // Predicated region
            $region94: #{forward.23} parent=88 // pred_check
              _
            $region95: #{forward.23} parent=88 // pred_check_branch
              %638 = sbr.rel (0) target = $region97
            $region96: #{forward.23} parent=88 // pred_region
              %s640 = ssub.s32 16, 1
              loop: start=0, step=1, limit=1
              $region98: #{forward.23} parent=96 // loop_pre_header
                _
              $region99: #{forward.23} parent=96 // loop_header
                %s642 = sphi 0, %s646
                %p643 = scmp.ge.s32.totalorder %s642, 1
                %s647 = sphi %s627, %s627
                %s648 = sphi %s632, %s632
              $region100: #{forward.23} parent=96 // loop_header_branch
                %645 = sbr.rel (%p643) target = $region104
              $region101: #{forward.23} parent=96 // loop_body
                %v649 = vld [vmem:[%s647] sm:%s640]
                %650 = vst [vmem:[%s648] sm:%s640] %v649
                %v651 = vld [vmem:[%s647 + $0x4] sm:%s640]
                %652 = vst [vmem:[%s648 + $0x8] sm:%s640] %v651
                %v653 = vld [vmem:[%s647 + $0x8] sm:%s640]
                %654 = vst [vmem:[%s648 + $0x10] sm:%s640] %v653
                %v655 = vld [vmem:[%s647 + $0xc] sm:%s640]
                %656 = vst [vmem:[%s648 + $0x18] sm:%s640] %v655
              $region102: #{forward.23} parent=96 // loop_footer
                %s646 = sadd.s32 1, %s642
              $region103: #{forward.23} parent=96 // loop_footer_branch
                %641 = sbr.rel target = $region99
              $region104: #{forward.23} parent=96 // loop_exit
                _
            $region97: #{forward.23} parent=88 // pred_fallthru
              _
          $region89: #{forward.23} parent=84 // pred_fallthru
            _
          %685 = vnop
        $region85: #{forward.23} parent=76 // pred_fallthru
          _
      $region77: #{forward.23} parent=5 // pred_fallthru
        _
      %p686 = scmp.le.s32.totalorder 2, %s11
      // Predicated region
      $region123: #{forward.23} parent=5 // pred_check
        %p687 = pneg %p686
      $region124: #{forward.23} parent=5 // pred_check_branch
        %689 = sbr.rel (%p687) target = $region126
      $region125: #{forward.23} parent=5 // pred_region
        %s690 = ssub.s32 %s11, 2
        // Predicated region
        $region127: #{forward.23} parent=125 // pred_check
          %p691 = pneg %p150
        $region128: #{forward.23} parent=125 // pred_check_branch
          %693 = sbr.rel (%p691) target = $region130
        $region129: #{forward.23} parent=125 // pred_region
          %s694 = sand.u32 %s135, 1
          %s695 = sand.u32 %s135, 1
          %s696 = smul.addr %s695, 16
          %s697 = scalar_lea.vmem [#allocation3], %s696
        $region130: #{forward.23} parent=125 // pred_fallthru
          _
      $region126: #{forward.23} parent=5 // pred_fallthru
        _
    $region6: #{forward.23} parent=1 // loop_footer
      %s15 = sadd.s32 1, %s11
    $region7: #{forward.23} parent=1 // loop_footer_branch
      %10 = sbr.rel target = $region3
    $region8: #{forward.23} parent=1 // loop_exit
      _

// kernel: forward.26
$region0: #{forward.26}
  #allocation0 [shape = 'u32[]', space=smem, size = 0x4, offset = 0x4, fixed_abs, tag = 'smem constant byte address 0x4 - core index']
  #allocation1 [shape = 'u32[144,128]{1,0:T(1,128)}', space=vmem, size = 0x12000, scoped, tag = 'internal scratch']
  %s0 = inlined_call_operand.vmem [shape: bf16[32,256], index: 0, kind: input, shape index: {}, may-alias: {0,2}]
  %s1 = inlined_call_operand.vmem [shape: bf16[32,32], index: 1, kind: input, shape index: {}]
  %s2 = inlined_call_operand.vmem [shape: bf16[32,256], index: 2, kind: input, shape index: {}, may-alias: {0,2}]
  %s3 = inlined_call_operand.vmem [shape: bf16[128,128], index: 3, kind: input, shape index: {}]
  %s4 = inlined_call_operand.vmem [shape: bf16[128,128], index: 4, kind: input, shape index: {}]
  %s5 = inlined_call_operand.vmem [shape: f32[1,128], index: 5, kind: input, shape index: {}]
  %s6 = inlined_call_operand.vmem [shape: bf16[128,128], index: 6, kind: input, shape index: {}]
  %s7 = inlined_call_operand.vmem [shape: bf16[128,128], index: 7, kind: input, shape index: {}]
  %s8 = inlined_call_operand.vmem [shape: f32[1,128], index: 8, kind: input, shape index: {}]
  %s9 = inlined_call_operand.vmem [shape: bf16[32,256], index: 9, kind: output, shape index: {}]
  %s10 = sld [smem:[#allocation0]]
  $region188: #{forward.26} parent=0
    _
  %s12 = ssub.s32 1, %s10
  %s13 = scalar_select 0, %s12, %s10
  $region1: #{forward.26} parent=0
    #allocation2 [shape = 'u8[16384]{0}', space=vmem, size = 0x4000, scoped, tag = 'input window, operand 0']
    #allocation3 [shape = 'u8[16384]{0}', space=vmem, size = 0x4000, scoped, tag = 'input window, operand 2']
    #allocation4 [shape = 'u8[16384]{0}', space=vmem, size = 0x4000, scoped, tag = 'output window, operand 0']
    loop: start=0, step=1, limit=4
    $region2: #{forward.26} parent=1 // loop_pre_header
      _
    $region3: #{forward.26} parent=1 // loop_header
      %s15 = sphi 0, %s19
      %p16 = scmp.ge.s32.totalorder %s15, 4
      %s25 = sphi 0, %s27
      %s28 = sphi 0, %s25
      %s29 = sphi 0, %s28
      %s45 = sphi 0, %s29
      %s49 = sphi 0, %s49
      %s51 = sphi 0, %s49
      %s52 = sphi 0, %s51
      %s66 = sphi 0, %s52
      %s72 = sphi 0, %s74
      %s75 = sphi 0, %s72
      %s76 = sphi 0, %s75
      %s92 = sphi 0, %s76
      %s96 = sphi 0, %s96
      %s98 = sphi 0, %s96
      %s99 = sphi 0, %s98
      %s113 = sphi 0, %s99
      %s117 = sphi 0, %s117
      %s119 = sphi 0, %s117
      %s120 = sphi 0, %s119
      %s134 = sphi 0, %s120
      %s138 = sphi 0, %s138
      %s140 = sphi 0, %s138
      %s141 = sphi 0, %s140
      %s155 = sphi 0, %s141
      %s159 = sphi 0, %s159
      %s161 = sphi 0, %s159
      %s162 = sphi 0, %s161
      %s176 = sphi 0, %s162
      %s180 = sphi 0, %s180
      %s182 = sphi 0, %s180
      %s183 = sphi 0, %s182
      %s197 = sphi 0, %s183
      %s201 = sphi 0, %s201
      %s203 = sphi 0, %s201
      %s204 = sphi 0, %s203
      %s218 = sphi 0, %s204
      %s224 = sphi 0, %s226
      %s227 = sphi 0, %s224
      %s228 = sphi 0, %s227
      %s244 = sphi 0, %s228
    $region4: #{forward.26} parent=1 // loop_header_branch
      %18 = sbr.rel (%p16) target = $region8
    $region5: #{forward.26} parent=1 // loop_body
      %s20 = ssub.s32 %s15, 1
      %s21 = ssub.s32 %s15, 2
      %s22 = sadd.s32 %s15, 1
      %s23 = ssub.s32 %s15, %s22
      %p24 = scmp.eq.s32.totalorder %s23, 0
      %s26 = sadd.s32 %s25, 1
      %s27 = scalar_select %p24, %s25, %s26
      %p30 = pneg %p24
      %p31 = scmp.eq.s32.totalorder %s15, 1
      %p32 = por %p30, %p31
      %p33 = scmp.ne.s32.totalorder %s25, %s28
      %p34 = scmp.eq.s32.totalorder %s15, 0
      %p35 = por %p33, %p34
      %p36 = scmp.ne.s32.totalorder %s25, %s28
      %p37 = scmp.eq.s32.totalorder %s20, 1
      %p38 = por %p36, %p37
      %p39 = scmp.ne.s32.totalorder %s28, %s29
      %p40 = scmp.eq.s32.totalorder %s20, 0
      %p41 = por %p39, %p40
      %p42 = scmp.ne.s32.totalorder %s28, %s29
      %p43 = scmp.eq.s32.totalorder %s21, 1
      %p44 = por %p42, %p43
      %p46 = scmp.ne.s32.totalorder %s29, %s45
      %p47 = scmp.eq.s32.totalorder %s21, 0
      %p48 = por %p46, %p47
      %s50 = sadd.s32 %s49, 1
      %p53 = scmp.eq.s32.totalorder %s15, 1
      %p54 = scmp.ne.s32.totalorder %s49, %s51
      %p55 = scmp.eq.s32.totalorder %s15, 0
      %p56 = por %p54, %p55
      %p57 = scmp.ne.s32.totalorder %s49, %s51
      %p58 = scmp.eq.s32.totalorder %s20, 1
      %p59 = por %p57, %p58
      %p60 = scmp.ne.s32.totalorder %s51, %s52
      %p61 = scmp.eq.s32.totalorder %s20, 0
      %p62 = por %p60, %p61
      %p63 = scmp.ne.s32.totalorder %s51, %s52
      %p64 = scmp.eq.s32.totalorder %s21, 1
      %p65 = por %p63, %p64
      %p67 = scmp.ne.s32.totalorder %s52, %s66
      %p68 = scmp.eq.s32.totalorder %s21, 0
      %p69 = por %p67, %p68
      %s70 = ssub.s32 %s15, %s22
      %p71 = scmp.eq.s32.totalorder %s70, 0
      %s73 = sadd.s32 %s72, 1
      %s74 = scalar_select %p71, %s72, %s73
      %p77 = pneg %p71
      %p78 = scmp.eq.s32.totalorder %s15, 1
      %p79 = por %p77, %p78
      %p80 = scmp.ne.s32.totalorder %s72, %s75
      %p81 = scmp.eq.s32.totalorder %s15, 0
      %p82 = por %p80, %p81
      %p83 = scmp.ne.s32.totalorder %s72, %s75
      %p84 = scmp.eq.s32.totalorder %s20, 1
      %p85 = por %p83, %p84
      %p86 = scmp.ne.s32.totalorder %s75, %s76
      %p87 = scmp.eq.s32.totalorder %s20, 0
      %p88 = por %p86, %p87
      %p89 = scmp.ne.s32.totalorder %s75, %s76
      %p90 = scmp.eq.s32.totalorder %s21, 1
      %p91 = por %p89, %p90
      %p93 = scmp.ne.s32.totalorder %s76, %s92
      %p94 = scmp.eq.s32.totalorder %s21, 0
      %p95 = por %p93, %p94
      %s97 = sadd.s32 %s96, 1
      %p100 = scmp.eq.s32.totalorder %s15, 1
      %p101 = scmp.ne.s32.totalorder %s96, %s98
      %p102 = scmp.eq.s32.totalorder %s15, 0
      %p103 = por %p101, %p102
      %p104 = scmp.ne.s32.totalorder %s96, %s98
      %p105 = scmp.eq.s32.totalorder %s20, 1
      %p106 = por %p104, %p105
      %p107 = scmp.ne.s32.totalorder %s98, %s99
      %p108 = scmp.eq.s32.totalorder %s20, 0
      %p109 = por %p107, %p108
      %p110 = scmp.ne.s32.totalorder %s98, %s99
      %p111 = scmp.eq.s32.totalorder %s21, 1
      %p112 = por %p110, %p111
      %p114 = scmp.ne.s32.totalorder %s99, %s113
      %p115 = scmp.eq.s32.totalorder %s21, 0
      %p116 = por %p114, %p115
      %s118 = sadd.s32 %s117, 1
      %p121 = scmp.eq.s32.totalorder %s15, 1
      %p122 = scmp.ne.s32.totalorder %s117, %s119
      %p123 = scmp.eq.s32.totalorder %s15, 0
      %p124 = por %p122, %p123
      %p125 = scmp.ne.s32.totalorder %s117, %s119
      %p126 = scmp.eq.s32.totalorder %s20, 1
      %p127 = por %p125, %p126
      %p128 = scmp.ne.s32.totalorder %s119, %s120
      %p129 = scmp.eq.s32.totalorder %s20, 0
      %p130 = por %p128, %p129
      %p131 = scmp.ne.s32.totalorder %s119, %s120
      %p132 = scmp.eq.s32.totalorder %s21, 1
      %p133 = por %p131, %p132
      %p135 = scmp.ne.s32.totalorder %s120, %s134
      %p136 = scmp.eq.s32.totalorder %s21, 0
      %p137 = por %p135, %p136
      %s139 = sadd.s32 %s138, 1
      %p142 = scmp.eq.s32.totalorder %s15, 1
      %p143 = scmp.ne.s32.totalorder %s138, %s140
      %p144 = scmp.eq.s32.totalorder %s15, 0
      %p145 = por %p143, %p144
      %p146 = scmp.ne.s32.totalorder %s138, %s140
      %p147 = scmp.eq.s32.totalorder %s20, 1
      %p148 = por %p146, %p147
      %p149 = scmp.ne.s32.totalorder %s140, %s141
      %p150 = scmp.eq.s32.totalorder %s20, 0
      %p151 = por %p149, %p150
      %p152 = scmp.ne.s32.totalorder %s140, %s141
      %p153 = scmp.eq.s32.totalorder %s21, 1
      %p154 = por %p152, %p153
      %p156 = scmp.ne.s32.totalorder %s141, %s155
      %p157 = scmp.eq.s32.totalorder %s21, 0
      %p158 = por %p156, %p157
      %s160 = sadd.s32 %s159, 1
      %p163 = scmp.eq.s32.totalorder %s15, 1
      %p164 = scmp.ne.s32.totalorder %s159, %s161
      %p165 = scmp.eq.s32.totalorder %s15, 0
      %p166 = por %p164, %p165
      %p167 = scmp.ne.s32.totalorder %s159, %s161
      %p168 = scmp.eq.s32.totalorder %s20, 1
      %p169 = por %p167, %p168
      %p170 = scmp.ne.s32.totalorder %s161, %s162
      %p171 = scmp.eq.s32.totalorder %s20, 0
      %p172 = por %p170, %p171
      %p173 = scmp.ne.s32.totalorder %s161, %s162
      %p174 = scmp.eq.s32.totalorder %s21, 1
      %p175 = por %p173, %p174
      %p177 = scmp.ne.s32.totalorder %s162, %s176
      %p178 = scmp.eq.s32.totalorder %s21, 0
      %p179 = por %p177, %p178
      %s181 = sadd.s32 %s180, 1
      %p184 = scmp.eq.s32.totalorder %s15, 1
      %p185 = scmp.ne.s32.totalorder %s180, %s182
      %p186 = scmp.eq.s32.totalorder %s15, 0
      %p187 = por %p185, %p186
      %p188 = scmp.ne.s32.totalorder %s180, %s182
      %p189 = scmp.eq.s32.totalorder %s20, 1
      %p190 = por %p188, %p189
      %p191 = scmp.ne.s32.totalorder %s182, %s183
      %p192 = scmp.eq.s32.totalorder %s20, 0
      %p193 = por %p191, %p192
      %p194 = scmp.ne.s32.totalorder %s182, %s183
      %p195 = scmp.eq.s32.totalorder %s21, 1
      %p196 = por %p194, %p195
      %p198 = scmp.ne.s32.totalorder %s183, %s197
      %p199 = scmp.eq.s32.totalorder %s21, 0
      %p200 = por %p198, %p199
      %s202 = sadd.s32 %s201, 1
      %p205 = scmp.eq.s32.totalorder %s15, 1
      %p206 = scmp.ne.s32.totalorder %s201, %s203
      %p207 = scmp.eq.s32.totalorder %s15, 0
      %p208 = por %p206, %p207
      %p209 = scmp.ne.s32.totalorder %s201, %s203
      %p210 = scmp.eq.s32.totalorder %s20, 1
      %p211 = por %p209, %p210
      %p212 = scmp.ne.s32.totalorder %s203, %s204
      %p213 = scmp.eq.s32.totalorder %s20, 0
      %p214 = por %p212, %p213
      %p215 = scmp.ne.s32.totalorder %s203, %s204
      %p216 = scmp.eq.s32.totalorder %s21, 1
      %p217 = por %p215, %p216
      %p219 = scmp.ne.s32.totalorder %s204, %s218
      %p220 = scmp.eq.s32.totalorder %s21, 0
      %p221 = por %p219, %p220
      %s222 = ssub.s32 %s15, %s22
      %p223 = scmp.eq.s32.totalorder %s222, 0
      %s225 = sadd.s32 %s224, 1
      %s226 = scalar_select %p223, %s224, %s225
      %p229 = pneg %p223
      %p230 = scmp.eq.s32.totalorder %s15, 1
      %p231 = por %p229, %p230
      %p232 = scmp.ne.s32.totalorder %s224, %s227
      %p233 = scmp.eq.s32.totalorder %s15, 0
      %p234 = por %p232, %p233
      %p235 = scmp.ne.s32.totalorder %s224, %s227
      %p236 = scmp.eq.s32.totalorder %s20, 1
      %p237 = por %p235, %p236
      %p238 = scmp.ne.s32.totalorder %s227, %s228
      %p239 = scmp.eq.s32.totalorder %s20, 0
      %p240 = por %p238, %p239
      %p241 = scmp.ne.s32.totalorder %s227, %s228
      %p242 = scmp.eq.s32.totalorder %s21, 1
      %p243 = por %p241, %p242
      %p245 = scmp.ne.s32.totalorder %s228, %s244
      %p246 = scmp.eq.s32.totalorder %s21, 0
      %p247 = por %p245, %p246
      %p248 = scmp.le.s32.totalorder 1, %s15
      %p249 = scmp.lt.s32.totalorder %s15, 3
      %p250 = pnand %p248, %p249
      %p251 = pneg %p250
      // Predicated region
      $region9: #{forward.26} parent=5 // pred_check
        _
      $region10: #{forward.26} parent=5 // pred_check_branch
        %253 = sbr.rel (%p250) target = $region12
      $region11: #{forward.26} parent=5 // pred_region
        %s254 = ssub.s32 %s15, 1
        // Predicated region
        $region13: #{forward.26} parent=11 // pred_check
          %p255 = pneg %p62
        $region14: #{forward.26} parent=11 // pred_check_branch
          %257 = sbr.rel (%p255) target = $region16
        $region15: #{forward.26} parent=11 // pred_region
          _
        $region16: #{forward.26} parent=11 // pred_fallthru
          _
        // Predicated region
        $region17: #{forward.26} parent=11 // pred_check
          %p258 = pneg %p109
        $region18: #{forward.26} parent=11 // pred_check_branch
          %260 = sbr.rel (%p258) target = $region20
        $region19: #{forward.26} parent=11 // pred_region
          _
        $region20: #{forward.26} parent=11 // pred_fallthru
          _
        // Predicated region
        $region21: #{forward.26} parent=11 // pred_check
          %p261 = pneg %p130
        $region22: #{forward.26} parent=11 // pred_check_branch
          %263 = sbr.rel (%p261) target = $region24
        $region23: #{forward.26} parent=11 // pred_region
          _
        $region24: #{forward.26} parent=11 // pred_fallthru
          _
        // Predicated region
        $region25: #{forward.26} parent=11 // pred_check
          %p264 = pneg %p151
        $region26: #{forward.26} parent=11 // pred_check_branch
          %266 = sbr.rel (%p264) target = $region28
        $region27: #{forward.26} parent=11 // pred_region
          _
        $region28: #{forward.26} parent=11 // pred_fallthru
          _
        // Predicated region
        $region29: #{forward.26} parent=11 // pred_check
          %p267 = pneg %p172
        $region30: #{forward.26} parent=11 // pred_check_branch
          %269 = sbr.rel (%p267) target = $region32
        $region31: #{forward.26} parent=11 // pred_region
          _
        $region32: #{forward.26} parent=11 // pred_fallthru
          _
        // Predicated region
        $region33: #{forward.26} parent=11 // pred_check
          %p270 = pneg %p193
        $region34: #{forward.26} parent=11 // pred_check_branch
          %272 = sbr.rel (%p270) target = $region36
        $region35: #{forward.26} parent=11 // pred_region
          _
        $region36: #{forward.26} parent=11 // pred_fallthru
          _
        // Predicated region
        $region37: #{forward.26} parent=11 // pred_check
          %p273 = pneg %p214
        $region38: #{forward.26} parent=11 // pred_check_branch
          %275 = sbr.rel (%p273) target = $region40
        $region39: #{forward.26} parent=11 // pred_region
          _
        $region40: #{forward.26} parent=11 // pred_fallthru
          _
      $region12: #{forward.26} parent=5 // pred_fallthru
        _
      %p276 = scmp.lt.s32.totalorder %s15, 2
      // Predicated region
      $region41: #{forward.26} parent=5 // pred_check
        %p277 = pneg %p276
      $region42: #{forward.26} parent=5 // pred_check_branch
        %279 = sbr.rel (%p277) target = $region44
      $region43: #{forward.26} parent=5 // pred_region
        // Predicated region
        $region45: #{forward.26} parent=43 // pred_check
          %p280 = pneg %p35
        $region46: #{forward.26} parent=43 // pred_check_branch
          %282 = sbr.rel (%p280) target = $region48
        $region47: #{forward.26} parent=43 // pred_region
          %s283 = sand.u32 %s25, 1
          %s284 = sand.u32 %s25, 1
          %s285 = smul.addr %s284, 16
          %s286 = scalar_lea.vmem [#allocation2], %s285
          %s287 = smul.addr %s15, 4
          %s288 = scalar_lea.vmem %s0, %s287
          // Predicated region
          $region49: #{forward.26} parent=47 // pred_check
            _
          $region50: #{forward.26} parent=47 // pred_check_branch
            %290 = sbr.rel (0) target = $region52
          $region51: #{forward.26} parent=47 // pred_region
            // Predicated region
            $region53: #{forward.26} parent=51 // pred_check
              _
            $region54: #{forward.26} parent=51 // pred_check_branch
              %292 = sbr.rel target = $region56
            $region55: #{forward.26} parent=51 // pred_region
              // Predicated region
              $region68: #{forward.26} parent=55 // pred_check
                _
              $region69: #{forward.26} parent=55 // pred_check_branch
                %314 = sbr.rel (0) target = $region71
              $region70: #{forward.26} parent=55 // pred_region
                loop: start=0, step=1, limit=1
                $region72: #{forward.26} parent=70 // loop_pre_header
                  _
                $region73: #{forward.26} parent=70 // loop_header
                  %s316 = sphi 0, %s320
                  %p317 = scmp.ge.s32.totalorder %s316, 1
                  %s321 = sphi %s288, %s288
                  %s322 = sphi %s286, %s286
                $region74: #{forward.26} parent=70 // loop_header_branch
                  %319 = sbr.rel (%p317) target = $region78
                $region75: #{forward.26} parent=70 // loop_body
                  _
                $region76: #{forward.26} parent=70 // loop_footer
                  %s320 = sadd.s32 1, %s316
                $region77: #{forward.26} parent=70 // loop_footer_branch
                  %315 = sbr.rel target = $region73
                $region78: #{forward.26} parent=70 // loop_exit
                  _
                %s324 = ssub.s32 16, 1
                loop: start=0, step=1, limit=1
                $region79: #{forward.26} parent=70 // loop_pre_header
                  _
                $region80: #{forward.26} parent=70 // loop_header
                  %s326 = sphi 0, %s330
                  %p327 = scmp.ge.s32.totalorder %s326, 1
                  %s331 = sphi %s288, %s288
                  %s332 = sphi %s286, %s286
                $region81: #{forward.26} parent=70 // loop_header_branch
                  %329 = sbr.rel (%p327) target = $region85
                $region82: #{forward.26} parent=70 // loop_body
                  %v333 = vld [vmem:[%s331] sm:%s324]
                  %334 = vst [vmem:[%s332] sm:%s324] %v333
                  %v335 = vld [vmem:[%s331 + $0x8] sm:%s324]
                  %336 = vst [vmem:[%s332 + $0x4] sm:%s324] %v335
                  %v337 = vld [vmem:[%s331 + $0x10] sm:%s324]
                  %338 = vst [vmem:[%s332 + $0x8] sm:%s324] %v337
                  %v339 = vld [vmem:[%s331 + $0x18] sm:%s324]
                  %340 = vst [vmem:[%s332 + $0xc] sm:%s324] %v339
                $region83: #{forward.26} parent=70 // loop_footer
                  %s330 = sadd.s32 1, %s326
                $region84: #{forward.26} parent=70 // loop_footer_branch
                  %325 = sbr.rel target = $region80
                $region85: #{forward.26} parent=70 // loop_exit
                  _
              $region71: #{forward.26} parent=55 // pred_fallthru
                _
            $region56: #{forward.26} parent=51 // pred_fallthru
              _
            // Predicated region
            $region57: #{forward.26} parent=51 // pred_check
              _
            $region58: #{forward.26} parent=51 // pred_check_branch
              %294 = sbr.rel (0) target = $region60
            $region59: #{forward.26} parent=51 // pred_region
              %s296 = ssub.s32 16, 1
              loop: start=0, step=1, limit=1
              $region61: #{forward.26} parent=59 // loop_pre_header
                _
              $region62: #{forward.26} parent=59 // loop_header
                %s298 = sphi 0, %s302
                %p299 = scmp.ge.s32.totalorder %s298, 1
                %s303 = sphi %s288, %s288
                %s304 = sphi %s286, %s286
              $region63: #{forward.26} parent=59 // loop_header_branch
                %301 = sbr.rel (%p299) target = $region67
              $region64: #{forward.26} parent=59 // loop_body
                %v305 = vld [vmem:[%s303] sm:%s296]
                %306 = vst [vmem:[%s304] sm:%s296] %v305
                %v307 = vld [vmem:[%s303 + $0x8] sm:%s296]
                %308 = vst [vmem:[%s304 + $0x4] sm:%s296] %v307
                %v309 = vld [vmem:[%s303 + $0x10] sm:%s296]
                %310 = vst [vmem:[%s304 + $0x8] sm:%s296] %v309
                %v311 = vld [vmem:[%s303 + $0x18] sm:%s296]
                %312 = vst [vmem:[%s304 + $0xc] sm:%s296] %v311
              $region65: #{forward.26} parent=59 // loop_footer
                %s302 = sadd.s32 1, %s298
              $region66: #{forward.26} parent=59 // loop_footer_branch
                %297 = sbr.rel target = $region62
              $region67: #{forward.26} parent=59 // loop_exit
                _
            $region60: #{forward.26} parent=51 // pred_fallthru
              _
          $region52: #{forward.26} parent=47 // pred_fallthru
            _
          %341 = vnop
        $region48: #{forward.26} parent=43 // pred_fallthru
          _
        // Predicated region
        $region86: #{forward.26} parent=43 // pred_check
          %p342 = pneg %p82
        $region87: #{forward.26} parent=43 // pred_check_branch
          %344 = sbr.rel (%p342) target = $region89
        $region88: #{forward.26} parent=43 // pred_region
          %s345 = sand.u32 %s72, 1
          %s346 = sand.u32 %s72, 1
          %s347 = smul.addr %s346, 16
          %s348 = scalar_lea.vmem [#allocation3], %s347
          %s349 = smul.addr %s15, 4
          %s350 = scalar_lea.vmem %s2, %s349
          // Predicated region
          $region90: #{forward.26} parent=88 // pred_check
            _
          $region91: #{forward.26} parent=88 // pred_check_branch
            %352 = sbr.rel (0) target = $region93
          $region92: #{forward.26} parent=88 // pred_region
            // Predicated region
            $region94: #{forward.26} parent=92 // pred_check
              _
            $region95: #{forward.26} parent=92 // pred_check_branch
              %354 = sbr.rel target = $region97
            $region96: #{forward.26} parent=92 // pred_region
              // Predicated region
              $region109: #{forward.26} parent=96 // pred_check
                _
              $region110: #{forward.26} parent=96 // pred_check_branch
                %376 = sbr.rel (0) target = $region112
              $region111: #{forward.26} parent=96 // pred_region
                loop: start=0, step=1, limit=1
                $region113: #{forward.26} parent=111 // loop_pre_header
                  _
                $region114: #{forward.26} parent=111 // loop_header
                  %s378 = sphi 0, %s382
                  %p379 = scmp.ge.s32.totalorder %s378, 1
                  %s383 = sphi %s350, %s350
                  %s384 = sphi %s348, %s348
                $region115: #{forward.26} parent=111 // loop_header_branch
                  %381 = sbr.rel (%p379) target = $region119
                $region116: #{forward.26} parent=111 // loop_body
                  _
                $region117: #{forward.26} parent=111 // loop_footer
                  %s382 = sadd.s32 1, %s378
                $region118: #{forward.26} parent=111 // loop_footer_branch
                  %377 = sbr.rel target = $region114
                $region119: #{forward.26} parent=111 // loop_exit
                  _
                %s386 = ssub.s32 16, 1
                loop: start=0, step=1, limit=1
                $region120: #{forward.26} parent=111 // loop_pre_header
                  _
                $region121: #{forward.26} parent=111 // loop_header
                  %s388 = sphi 0, %s392
                  %p389 = scmp.ge.s32.totalorder %s388, 1
                  %s393 = sphi %s350, %s350
                  %s394 = sphi %s348, %s348
                $region122: #{forward.26} parent=111 // loop_header_branch
                  %391 = sbr.rel (%p389) target = $region126
                $region123: #{forward.26} parent=111 // loop_body
                  %v395 = vld [vmem:[%s393] sm:%s386]
                  %396 = vst [vmem:[%s394] sm:%s386] %v395
                  %v397 = vld [vmem:[%s393 + $0x8] sm:%s386]
                  %398 = vst [vmem:[%s394 + $0x4] sm:%s386] %v397
                  %v399 = vld [vmem:[%s393 + $0x10] sm:%s386]
                  %400 = vst [vmem:[%s394 + $0x8] sm:%s386] %v399
                  %v401 = vld [vmem:[%s393 + $0x18] sm:%s386]
                  %402 = vst [vmem:[%s394 + $0xc] sm:%s386] %v401
                $region124: #{forward.26} parent=111 // loop_footer
                  %s392 = sadd.s32 1, %s388
                $region125: #{forward.26} parent=111 // loop_footer_branch
                  %387 = sbr.rel target = $region121
                $region126: #{forward.26} parent=111 // loop_exit
                  _
              $region112: #{forward.26} parent=96 // pred_fallthru
                _
            $region97: #{forward.26} parent=92 // pred_fallthru
              _
            // Predicated region
            $region98: #{forward.26} parent=92 // pred_check
              _
            $region99: #{forward.26} parent=92 // pred_check_branch
              %356 = sbr.rel (0) target = $region101
            $region100: #{forward.26} parent=92 // pred_region
              %s358 = ssub.s32 16, 1
              loop: start=0, step=1, limit=1
              $region102: #{forward.26} parent=100 // loop_pre_header
                _
              $region103: #{forward.26} parent=100 // loop_header
                %s360 = sphi 0, %s364
                %p361 = scmp.ge.s32.totalorder %s360, 1
                %s365 = sphi %s350, %s350
                %s366 = sphi %s348, %s348
              $region104: #{forward.26} parent=100 // loop_header_branch
                %363 = sbr.rel (%p361) target = $region108
              $region105: #{forward.26} parent=100 // loop_body
                %v367 = vld [vmem:[%s365] sm:%s358]
                %368 = vst [vmem:[%s366] sm:%s358] %v367
                %v369 = vld [vmem:[%s365 + $0x8] sm:%s358]
                %370 = vst [vmem:[%s366 + $0x4] sm:%s358] %v369
                %v371 = vld [vmem:[%s365 + $0x10] sm:%s358]
                %372 = vst [vmem:[%s366 + $0x8] sm:%s358] %v371
                %v373 = vld [vmem:[%s365 + $0x18] sm:%s358]
                %374 = vst [vmem:[%s366 + $0xc] sm:%s358] %v373
              $region106: #{forward.26} parent=100 // loop_footer
                %s364 = sadd.s32 1, %s360
              $region107: #{forward.26} parent=100 // loop_footer_branch
                %359 = sbr.rel target = $region103
              $region108: #{forward.26} parent=100 // loop_exit
                _
            $region101: #{forward.26} parent=92 // pred_fallthru
              _
          $region93: #{forward.26} parent=88 // pred_fallthru
            _
          %403 = vnop
        $region89: #{forward.26} parent=43 // pred_fallthru
          _
      $region44: #{forward.26} parent=5 // pred_fallthru
        _
      %p404 = scmp.le.s32.totalorder 1, %s15
      %p405 = scmp.lt.s32.totalorder %s15, 3
      %p406 = pnand %p404, %p405
      %p407 = pneg %p406
      // Predicated region
      $region127: #{forward.26} parent=5 // pred_check
        _
      $region128: #{forward.26} parent=5 // pred_check_branch
        %409 = sbr.rel (%p406) target = $region130
      $region129: #{forward.26} parent=5 // pred_region
        %s410 = ssub.s32 %s15, 1
        %s411 = sand.u32 %s28, 1
        %s412 = sand.u32 %s28, 1
        %s413 = smul.addr %s412, 16
        %s414 = scalar_lea.vmem [#allocation2], %s413
        // Predicated region
        $region131: #{forward.26} parent=129 // pred_check
          %p415 = pneg %p41
        $region132: #{forward.26} parent=129 // pred_check_branch
          %417 = sbr.rel (%p415) target = $region134
        $region133: #{forward.26} parent=129 // pred_region
          _
        $region134: #{forward.26} parent=129 // pred_fallthru
          _
        %s418 = sand.u32 %s75, 1
        %s419 = sand.u32 %s75, 1
        %s420 = smul.addr %s419, 16
        %s421 = scalar_lea.vmem [#allocation3], %s420
        // Predicated region
        $region135: #{forward.26} parent=129 // pred_check
          %p422 = pneg %p88
        $region136: #{forward.26} parent=129 // pred_check_branch
          %424 = sbr.rel (%p422) target = $region138
        $region137: #{forward.26} parent=129 // pred_region
          _
        $region138: #{forward.26} parent=129 // pred_fallthru
          _
        %s425 = sand.u32 %s28, 1
        %s426 = sand.u32 %s28, 1
        %s427 = smul.addr %s426, 16
        %s428 = scalar_lea.vmem [#allocation2], %s427
        %p429 = pneg %p41
        %p430 = pneg %p38
        %p431 = pneg %p62
        %p432 = pneg %p59
        %s433 = sand.u32 %s75, 1
        %s434 = sand.u32 %s75, 1
        %s435 = smul.addr %s434, 16
        %s436 = scalar_lea.vmem [#allocation3], %s435
        %p437 = pneg %p88
        %p438 = pneg %p85
        %p439 = pneg %p109
        %p440 = pneg %p106
        %p441 = pneg %p130
        %p442 = pneg %p127
        %p443 = pneg %p151
        %p444 = pneg %p148
        %p445 = pneg %p172
        %p446 = pneg %p169
        %p447 = pneg %p193
        %p448 = pneg %p190
        %p449 = pneg %p214
        %p450 = pneg %p211
        %p451 = pneg %p240
        %p452 = pneg %p237
        %s453 = sand.u32 %s227, 1
        %s454 = sand.u32 %s227, 1
        %s455 = smul.addr %s454, 16
        %s456 = scalar_lea.vmem [#allocation4], %s455
        %v458 = vld [vmem:[%s1] sm:$0xf]
        %v459 = vld [vmem:[%s1 + $0x4] sm:$0xf]
        %v460 = vld [vmem:[%s1 + $0x8] sm:$0xf]
        %v461 = vld [vmem:[%s1 + $0xc] sm:$0xf]
        %v462 = vld [vmem:[%s414] sm:$0xf]
        %v463 = vld [vmem:[%s414 + $0x4] sm:$0xf]
        %v464 = vld [vmem:[%s414 + $0x8] sm:$0xf]
        %v465 = vld [vmem:[%s414 + $0xc] sm:$0xf]
        %v466 = vld [vmem:[%s3] sm:$0xf]
        %v467 = vld [vmem:[%s3 + $0x4] sm:$0xf]
        %v468 = vld [vmem:[%s3 + $0x8] sm:$0xf]
        %v469 = vld [vmem:[%s3 + $0xc] sm:$0xf]
        %v470 = vld [vmem:[%s3 + $0x10] sm:$0xf]
        %v471 = vld [vmem:[%s3 + $0x14] sm:$0xf]
        %v472 = vld [vmem:[%s3 + $0x18] sm:$0xf]
        %v473 = vld [vmem:[%s3 + $0x1c] sm:$0xf]
        %v474 = vld [vmem:[%s3 + $0x20] sm:$0xf]
        %v475 = vld [vmem:[%s3 + $0x24] sm:$0xf]
        %v476 = vld [vmem:[%s3 + $0x28] sm:$0xf]
        %v477 = vld [vmem:[%s3 + $0x2c] sm:$0xf]
        %v478 = vld [vmem:[%s3 + $0x30] sm:$0xf]
        %v479 = vld [vmem:[%s3 + $0x34] sm:$0xf]
        %v480 = vld [vmem:[%s3 + $0x38] sm:$0xf]
        %v481 = vld [vmem:[%s3 + $0x3c] sm:$0xf]
        %v482 = vld [vmem:[%s4] sm:$0xf]
        %v483 = vld [vmem:[%s4 + $0x4] sm:$0xf]
        %v484 = vld [vmem:[%s4 + $0x8] sm:$0xf]
        %v485 = vld [vmem:[%s4 + $0xc] sm:$0xf]
        %v486 = vld [vmem:[%s4 + $0x10] sm:$0xf]
        %v487 = vld [vmem:[%s4 + $0x14] sm:$0xf]
        %v488 = vld [vmem:[%s4 + $0x18] sm:$0xf]
        %v489 = vld [vmem:[%s4 + $0x1c] sm:$0xf]
        %v490 = vld [vmem:[%s4 + $0x20] sm:$0xf]
        %v491 = vld [vmem:[%s4 + $0x24] sm:$0xf]
        %v492 = vld [vmem:[%s4 + $0x28] sm:$0xf]
        %v493 = vld [vmem:[%s4 + $0x2c] sm:$0xf]
        %v494 = vld [vmem:[%s4 + $0x30] sm:$0xf]
        %v495 = vld [vmem:[%s4 + $0x34] sm:$0xf]
        %v496 = vld [vmem:[%s4 + $0x38] sm:$0xf]
        %v497 = vld [vmem:[%s4 + $0x3c] sm:$0xf]
        %v498 = vld [vmem:[%s5] sm:$0x1]
        %v503 = vunpack.c.l.b16 %v458
        %v504 = vunpack.c.l.b16 %v459
        %v505 = vunpack.c.l.b16 %v460
        %v506 = vunpack.c.l.b16 %v461
        %v507 = vpack.c.b16 %v504, %v503
        %v508 = vpack.c.b16 %v506, %v505
        %v513 = vunpack.c.l.b16 %v462
        %v514 = vunpack.c.l.b16 %v463
        %v515 = vunpack.c.l.b16 %v464
        %v516 = vunpack.c.l.b16 %v465
        %v517 = vpack.c.b16 %v514, %v513
        %v518 = vpack.c.b16 %v516, %v515
        %vm521 = vcmask 261120
        %v523 = vsel %vm521, %v507, 0
        %v526 = vsel %vm521, %v508, 0
        %528 = vmatprep.subr.bf16.mxu0 0
        %529 = vmatpush1.bf16.msra.mxu0 0
        %530 = vmatprep.subr.bf16.mxu0 0
        %531 = vmatpush1.bf16.msra.mxu0 0
        %532 = vmatprep.subr.bf16.mxu0 0
        %533 = vmatpush1.bf16.msra.mxu0 0
        %534 = vmatprep.subr.bf16.mxu0 0
        %535 = vmatpush1.bf16.msra.mxu0 0
        %536 = vmatprep.subr.bf16.mxu0 0
        %537 = vmatpush1.bf16.msra.mxu0 0
        %538 = vmatprep.subr.bf16.mxu0 0
        %539 = vmatpush1.bf16.msra.mxu0 0
        %540 = vmatprep.subr.bf16.mxu0 0
        %541 = vmatpush1.bf16.msra.mxu0 %v518
        %542 = vmatprep.subr.bf16.mxu0 0
        %543 = vmatpush1.bf16.msra.mxu0 %v517
        %544 = vmatprep.subr.bf16.mxu0 0
        %545 = vmatpush2.bf16.msra.mxu0 0
        %546 = vmatprep.subr.bf16.mxu0 0
        %547 = vmatpush2.bf16.msra.mxu0 0
        %548 = vmatprep.subr.bf16.mxu0 0
        %549 = vmatpush2.bf16.msra.mxu0 0
        %550 = vmatprep.subr.bf16.mxu0 0
        %551 = vmatpush2.bf16.msra.mxu0 0
        %552 = vmatprep.subr.bf16.mxu0 0
        %553 = vmatpush2.bf16.msra.mxu0 0
        %554 = vmatprep.subr.bf16.mxu0 0
        %555 = vmatpush2.bf16.msra.mxu0 0
        %556 = vmatprep.subr.bf16.mxu0 0
        %557 = vmatpush2.bf16.msra.mxu0 0
        %558 = vmatprep.subr.bf16.mxu0 0
        %559 = vmatpush2.bf16.msra.mxu0 0
        %560 = vmatprep.mubr.bf16.mxu0 0
        %561 = vmatmul.mubr.bf16.gmra.mxu0 %v523
        %v562 = vpop.f32.mrf.mxu0
        %v563 = vadd.f32 0.0, %v562
        %v564 = vpop.f32.mrf.mxu0
        %v565 = vpop.f32.mrf.mxu0
        %v566 = vadd.f32 0.0, %v565
        %v567 = vpop.f32.mrf.mxu0
        %568 = vmatprep.mubr.bf16.mxu0 0
        %569 = vmatmul.mubr.bf16.gmra.mxu0 %v526
        %v570 = vpop.f32.mrf.mxu0
        %v571 = vadd.f32 0.0, %v570
        %v572 = vpop.f32.mrf.mxu0
        %v573 = vpop.f32.mrf.mxu0
        %v574 = vadd.f32 0.0, %v573
        %v575 = vpop.f32.mrf.mxu0
        %576 = vdwg.mxu0
        %v577 = vpack.c.bf16 %v566, %v563
        %v578 = vpack.c.bf16 %v574, %v571
        %v595 = vunpack.c.l.b16 %v482
        %v596 = vunpack.c.l.b16 %v483
        %v597 = vunpack.c.l.b16 %v484
        %v598 = vunpack.c.l.b16 %v485
        %v599 = vunpack.c.l.b16 %v486
        %v600 = vunpack.c.l.b16 %v487
        %v601 = vunpack.c.l.b16 %v488
        %v602 = vunpack.c.l.b16 %v489
        %v603 = vunpack.c.l.b16 %v490
        %v604 = vunpack.c.l.b16 %v491
        %v605 = vunpack.c.l.b16 %v492
        %v606 = vunpack.c.l.b16 %v493
        %v607 = vunpack.c.l.b16 %v494
        %v608 = vunpack.c.l.b16 %v495
        %v609 = vunpack.c.l.b16 %v496
        %v610 = vunpack.c.l.b16 %v497
        %v611 = vpack.c.b16 %v596, %v595
        %v612 = vpack.c.b16 %v598, %v597
        %v613 = vpack.c.b16 %v600, %v599
        %v614 = vpack.c.b16 %v602, %v601
        %v615 = vpack.c.b16 %v604, %v603
        %v616 = vpack.c.b16 %v606, %v605
        %v617 = vpack.c.b16 %v608, %v607
        %v618 = vpack.c.b16 %v610, %v609
        %627 = vmatprep.subr.bf16.mxu0 0
        %628 = vmatpush1.bf16.msra.mxu0 %v618
        %629 = vmatprep.subr.bf16.mxu0 0
        %630 = vmatpush1.bf16.msra.mxu0 %v617
        %631 = vmatprep.subr.bf16.mxu0 0
        %632 = vmatpush1.bf16.msra.mxu0 %v616
        %633 = vmatprep.subr.bf16.mxu0 0
        %634 = vmatpush1.bf16.msra.mxu0 %v615
        %635 = vmatprep.subr.bf16.mxu0 0
        %636 = vmatpush1.bf16.msra.mxu0 %v614
        %637 = vmatprep.subr.bf16.mxu0 0
        %638 = vmatpush1.bf16.msra.mxu0 %v613
        %639 = vmatprep.subr.bf16.mxu0 0
        %640 = vmatpush1.bf16.msra.mxu0 %v612
        %641 = vmatprep.subr.bf16.mxu0 0
        %642 = vmatpush1.bf16.msra.mxu0 %v611
        %643 = vmatprep.subr.bf16.mxu0 0
        %644 = vmatpush2.bf16.msra.mxu0 0
        %645 = vmatprep.subr.bf16.mxu0 0
        %646 = vmatpush2.bf16.msra.mxu0 0
        %647 = vmatprep.subr.bf16.mxu0 0
        %648 = vmatpush2.bf16.msra.mxu0 0
        %649 = vmatprep.subr.bf16.mxu0 0
        %650 = vmatpush2.bf16.msra.mxu0 0
        %651 = vmatprep.subr.bf16.mxu0 0
        %652 = vmatpush2.bf16.msra.mxu0 0
        %653 = vmatprep.subr.bf16.mxu0 0
        %654 = vmatpush2.bf16.msra.mxu0 0
        %655 = vmatprep.subr.bf16.mxu0 0
        %656 = vmatpush2.bf16.msra.mxu0 0
        %657 = vmatprep.subr.bf16.mxu0 0
        %658 = vmatpush2.bf16.msra.mxu0 0
        %659 = vmatprep.mubr.bf16.mxu0 0
        %660 = vmatmul.mubr.bf16.gmra.mxu0 %v577
        %v661 = vpop.f32.mrf.mxu0
        %v662 = vadd.f32 0.0, %v661
        %v663 = vpop.f32.mrf.mxu0
        %v664 = vpop.f32.mrf.mxu0
        %v665 = vadd.f32 0.0, %v664
        %v666 = vpop.f32.mrf.mxu0
        %667 = vmatprep.mubr.bf16.mxu0 0
        %668 = vmatmul.mubr.bf16.gmra.mxu0 %v578
        %v669 = vpop.f32.mrf.mxu0
        %v670 = vadd.f32 0.0, %v669
        %v671 = vpop.f32.mrf.mxu0
        %v672 = vpop.f32.mrf.mxu0
        %v673 = vadd.f32 0.0, %v672
        %v674 = vpop.f32.mrf.mxu0
        %675 = vdwg.mxu0
        %v692 = vunpack.c.l.b16 %v466
        %v693 = vunpack.c.l.b16 %v467
        %v694 = vunpack.c.l.b16 %v468
        %v695 = vunpack.c.l.b16 %v469
        %v696 = vunpack.c.l.b16 %v470
        %v697 = vunpack.c.l.b16 %v471
        %v698 = vunpack.c.l.b16 %v472
        %v699 = vunpack.c.l.b16 %v473
        %v700 = vunpack.c.l.b16 %v474
        %v701 = vunpack.c.l.b16 %v475
        %v702 = vunpack.c.l.b16 %v476
        %v703 = vunpack.c.l.b16 %v477
        %v704 = vunpack.c.l.b16 %v478
        %v705 = vunpack.c.l.b16 %v479
        %v706 = vunpack.c.l.b16 %v480
        %v707 = vunpack.c.l.b16 %v481
        %v708 = vpack.c.b16 %v693, %v692
        %v709 = vpack.c.b16 %v695, %v694
        %v710 = vpack.c.b16 %v697, %v696
        %v711 = vpack.c.b16 %v699, %v698
        %v712 = vpack.c.b16 %v701, %v700
        %v713 = vpack.c.b16 %v703, %v702
        %v714 = vpack.c.b16 %v705, %v704
        %v715 = vpack.c.b16 %v707, %v706
        %724 = vmatprep.subr.bf16.mxu0 0
        %725 = vmatpush1.bf16.msra.mxu0 %v715
        %726 = vmatprep.subr.bf16.mxu0 0
        %727 = vmatpush1.bf16.msra.mxu0 %v714
        %728 = vmatprep.subr.bf16.mxu0 0
        %729 = vmatpush1.bf16.msra.mxu0 %v713
        %730 = vmatprep.subr.bf16.mxu0 0
        %731 = vmatpush1.bf16.msra.mxu0 %v712
        %732 = vmatprep.subr.bf16.mxu0 0
        %733 = vmatpush1.bf16.msra.mxu0 %v711
        %734 = vmatprep.subr.bf16.mxu0 0
        %735 = vmatpush1.bf16.msra.mxu0 %v710
        %736 = vmatprep.subr.bf16.mxu0 0
        %737 = vmatpush1.bf16.msra.mxu0 %v709
        %738 = vmatprep.subr.bf16.mxu0 0
        %739 = vmatpush1.bf16.msra.mxu0 %v708
        %740 = vmatprep.subr.bf16.mxu0 0
        %741 = vmatpush2.bf16.msra.mxu0 0
        %742 = vmatprep.subr.bf16.mxu0 0
        %743 = vmatpush2.bf16.msra.mxu0 0
        %744 = vmatprep.subr.bf16.mxu0 0
        %745 = vmatpush2.bf16.msra.mxu0 0
        %746 = vmatprep.subr.bf16.mxu0 0
        %747 = vmatpush2.bf16.msra.mxu0 0
        %748 = vmatprep.subr.bf16.mxu0 0
        %749 = vmatpush2.bf16.msra.mxu0 0
        %750 = vmatprep.subr.bf16.mxu0 0
        %751 = vmatpush2.bf16.msra.mxu0 0
        %752 = vmatprep.subr.bf16.mxu0 0
        %753 = vmatpush2.bf16.msra.mxu0 0
        %754 = vmatprep.subr.bf16.mxu0 0
        %755 = vmatpush2.bf16.msra.mxu0 0
        %756 = vmatprep.mubr.bf16.mxu0 0
        %757 = vmatmul.mubr.bf16.gmra.mxu0 %v517
        %v758 = vpop.f32.mrf.mxu0
        %v759 = vadd.f32 %v662, %v758
        %v760 = vpop.f32.mrf.mxu0
        %v761 = vpop.f32.mrf.mxu0
        %v762 = vadd.f32 %v665, %v761
        %v763 = vpop.f32.mrf.mxu0
        %764 = vmatprep.mubr.bf16.mxu0 0
        %765 = vmatmul.mubr.bf16.gmra.mxu0 %v518
        %v766 = vpop.f32.mrf.mxu0
        %v767 = vadd.f32 %v670, %v766
        %v768 = vpop.f32.mrf.mxu0
        %v769 = vpop.f32.mrf.mxu0
        %v770 = vadd.f32 %v673, %v769
        %v771 = vpop.f32.mrf.mxu0
        %772 = vdwg.mxu0
        %v774 = vlaneseq
        %v775 = vshrl.u32 %v774, 7
        %v776 = vsub.s32 0, %v775
        %v777 = vrot.slane %v498, %v776
        %v779 = vadd.f32 %v759, %v777
        %v780 = vadd.f32 %v762, %v777
        %v781 = vadd.f32 %v767, %v777
        %v782 = vadd.f32 %v770, %v777
        %v783 = vmax.f32 %v779, 0.0
        %v784 = vmax.f32 %v780, 0.0
        %v785 = vmax.f32 %v781, 0.0
        %v786 = vmax.f32 %v782, 0.0
        %v787 = vld [vmem:[%s421] sm:$0xf]
        %v788 = vld [vmem:[%s421 + $0x4] sm:$0xf]
        %v789 = vld [vmem:[%s421 + $0x8] sm:$0xf]
        %v790 = vld [vmem:[%s421 + $0xc] sm:$0xf]
        %v791 = vunpack.c.l.bf16 %v787
        %v792 = vunpack.c.l.bf16 %v788
        %v793 = vunpack.c.l.bf16 %v789
        %v794 = vunpack.c.l.bf16 %v790
        %v795 = vmul.f32 %v783, 0.5
        %v796 = vmul.f32 %v784, 0.5
        %v797 = vmul.f32 %v785, 0.5
        %v798 = vmul.f32 %v786, 0.5
        %v799 = vmul.f32 %v791, 0.5
        %v800 = vmul.f32 %v792, 0.5
        %v801 = vmul.f32 %v793, 0.5
        %v802 = vmul.f32 %v794, 0.5
        %v803 = vadd.f32 %v795, %v799
        %v804 = vadd.f32 %v796, %v800
        %v805 = vadd.f32 %v797, %v801
        %v806 = vadd.f32 %v798, %v802
        %v807 = vpack.c.bf16 %v804, %v803
        %v808 = vpack.c.bf16 %v806, %v805
        %v809 = vld [vmem:[%s6] sm:$0xf]
        %v810 = vld [vmem:[%s6 + $0x4] sm:$0xf]
        %v811 = vld [vmem:[%s6 + $0x8] sm:$0xf]
        %v812 = vld [vmem:[%s6 + $0xc] sm:$0xf]
        %v813 = vld [vmem:[%s6 + $0x10] sm:$0xf]
        %v814 = vld [vmem:[%s6 + $0x14] sm:$0xf]
        %v815 = vld [vmem:[%s6 + $0x18] sm:$0xf]
        %v816 = vld [vmem:[%s6 + $0x1c] sm:$0xf]
        %v817 = vld [vmem:[%s6 + $0x20] sm:$0xf]
        %v818 = vld [vmem:[%s6 + $0x24] sm:$0xf]
        %v819 = vld [vmem:[%s6 + $0x28] sm:$0xf]
        %v820 = vld [vmem:[%s6 + $0x2c] sm:$0xf]
        %v821 = vld [vmem:[%s6 + $0x30] sm:$0xf]
        %v822 = vld [vmem:[%s6 + $0x34] sm:$0xf]
        %v823 = vld [vmem:[%s6 + $0x38] sm:$0xf]
        %v824 = vld [vmem:[%s6 + $0x3c] sm:$0xf]
        %v825 = vld [vmem:[%s7] sm:$0xf]
        %v826 = vld [vmem:[%s7 + $0x4] sm:$0xf]
        %v827 = vld [vmem:[%s7 + $0x8] sm:$0xf]
        %v828 = vld [vmem:[%s7 + $0xc] sm:$0xf]
        %v829 = vld [vmem:[%s7 + $0x10] sm:$0xf]
        %v830 = vld [vmem:[%s7 + $0x14] sm:$0xf]
        %v831 = vld [vmem:[%s7 + $0x18] sm:$0xf]
        %v832 = vld [vmem:[%s7 + $0x1c] sm:$0xf]
        %v833 = vld [vmem:[%s7 + $0x20] sm:$0xf]
        %v834 = vld [vmem:[%s7 + $0x24] sm:$0xf]
        %v835 = vld [vmem:[%s7 + $0x28] sm:$0xf]
        %v836 = vld [vmem:[%s7 + $0x2c] sm:$0xf]
        %v837 = vld [vmem:[%s7 + $0x30] sm:$0xf]
        %v838 = vld [vmem:[%s7 + $0x34] sm:$0xf]
        %v839 = vld [vmem:[%s7 + $0x38] sm:$0xf]
        %v840 = vld [vmem:[%s7 + $0x3c] sm:$0xf]
        %v841 = vld [vmem:[%s8] sm:$0x1]
        %842 = vmatprep.subr.bf16.mxu0 0
        %843 = vmatpush1.bf16.msra.mxu0 0
        %844 = vmatprep.subr.bf16.mxu0 0
        %845 = vmatpush1.bf16.msra.mxu0 0
        %846 = vmatprep.subr.bf16.mxu0 0
        %847 = vmatpush1.bf16.msra.mxu0 0
        %848 = vmatprep.subr.bf16.mxu0 0
        %849 = vmatpush1.bf16.msra.mxu0 0
        %850 = vmatprep.subr.bf16.mxu0 0
        %851 = vmatpush1.bf16.msra.mxu0 0
        %852 = vmatprep.subr.bf16.mxu0 0
        %853 = vmatpush1.bf16.msra.mxu0 0
        %854 = vmatprep.subr.bf16.mxu0 0
        %855 = vmatpush1.bf16.msra.mxu0 %v808
        %856 = vmatprep.subr.bf16.mxu0 0
        %857 = vmatpush1.bf16.msra.mxu0 %v807
        %858 = vmatprep.subr.bf16.mxu0 0
        %859 = vmatpush2.bf16.msra.mxu0 0
        %860 = vmatprep.subr.bf16.mxu0 0
        %861 = vmatpush2.bf16.msra.mxu0 0
        %862 = vmatprep.subr.bf16.mxu0 0
        %863 = vmatpush2.bf16.msra.mxu0 0
        %864 = vmatprep.subr.bf16.mxu0 0
        %865 = vmatpush2.bf16.msra.mxu0 0
        %866 = vmatprep.subr.bf16.mxu0 0
        %867 = vmatpush2.bf16.msra.mxu0 0
        %868 = vmatprep.subr.bf16.mxu0 0
        %869 = vmatpush2.bf16.msra.mxu0 0
        %870 = vmatprep.subr.bf16.mxu0 0
        %871 = vmatpush2.bf16.msra.mxu0 0
        %872 = vmatprep.subr.bf16.mxu0 0
        %873 = vmatpush2.bf16.msra.mxu0 0
        %874 = vmatprep.mubr.bf16.mxu0 0
        %875 = vmatmul.mubr.bf16.gmra.mxu0 %v523
        %v876 = vpop.f32.mrf.mxu0
        %v877 = vadd.f32 0.0, %v876
        %v878 = vpop.f32.mrf.mxu0
        %v879 = vpop.f32.mrf.mxu0
        %v880 = vadd.f32 0.0, %v879
        %v881 = vpop.f32.mrf.mxu0
        %882 = vmatprep.mubr.bf16.mxu0 0
        %883 = vmatmul.mubr.bf16.gmra.mxu0 %v526
        %v884 = vpop.f32.mrf.mxu0
        %v885 = vadd.f32 0.0, %v884
        %v886 = vpop.f32.mrf.mxu0
        %v887 = vpop.f32.mrf.mxu0
        %v888 = vadd.f32 0.0, %v887
        %v889 = vpop.f32.mrf.mxu0
        %890 = vdwg.mxu0
        %v891 = vpack.c.bf16 %v880, %v877
        %v892 = vpack.c.bf16 %v888, %v885
        %v909 = vunpack.c.l.b16 %v825
        %v910 = vunpack.c.l.b16 %v826
        %v911 = vunpack.c.l.b16 %v827
        %v912 = vunpack.c.l.b16 %v828
        %v913 = vunpack.c.l.b16 %v829
        %v914 = vunpack.c.l.b16 %v830
        %v915 = vunpack.c.l.b16 %v831
        %v916 = vunpack.c.l.b16 %v832
        %v917 = vunpack.c.l.b16 %v833
        %v918 = vunpack.c.l.b16 %v834
        %v919 = vunpack.c.l.b16 %v835
        %v920 = vunpack.c.l.b16 %v836
        %v921 = vunpack.c.l.b16 %v837
        %v922 = vunpack.c.l.b16 %v838
        %v923 = vunpack.c.l.b16 %v839
        %v924 = vunpack.c.l.b16 %v840
        %v925 = vpack.c.b16 %v910, %v909
        %v926 = vpack.c.b16 %v912, %v911
        %v927 = vpack.c.b16 %v914, %v913
        %v928 = vpack.c.b16 %v916, %v915
        %v929 = vpack.c.b16 %v918, %v917
        %v930 = vpack.c.b16 %v920, %v919
        %v931 = vpack.c.b16 %v922, %v921
        %v932 = vpack.c.b16 %v924, %v923
        %941 = vmatprep.subr.bf16.mxu0 0
        %942 = vmatpush1.bf16.msra.mxu0 %v932
        %943 = vmatprep.subr.bf16.mxu0 0
        %944 = vmatpush1.bf16.msra.mxu0 %v931
        %945 = vmatprep.subr.bf16.mxu0 0
        %946 = vmatpush1.bf16.msra.mxu0 %v930
        %947 = vmatprep.subr.bf16.mxu0 0
        %948 = vmatpush1.bf16.msra.mxu0 %v929
        %949 = vmatprep.subr.bf16.mxu0 0
        %950 = vmatpush1.bf16.msra.mxu0 %v928
        %951 = vmatprep.subr.bf16.mxu0 0
        %952 = vmatpush1.bf16.msra.mxu0 %v927
        %953 = vmatprep.subr.bf16.mxu0 0
        %954 = vmatpush1.bf16.msra.mxu0 %v926
        %955 = vmatprep.subr.bf16.mxu0 0
        %956 = vmatpush1.bf16.msra.mxu0 %v925
        %957 = vmatprep.subr.bf16.mxu0 0
        %958 = vmatpush2.bf16.msra.mxu0 0
        %959 = vmatprep.subr.bf16.mxu0 0
        %960 = vmatpush2.bf16.msra.mxu0 0
        %961 = vmatprep.subr.bf16.mxu0 0
        %962 = vmatpush2.bf16.msra.mxu0 0
        %963 = vmatprep.subr.bf16.mxu0 0
        %964 = vmatpush2.bf16.msra.mxu0 0
        %965 = vmatprep.subr.bf16.mxu0 0
        %966 = vmatpush2.bf16.msra.mxu0 0
        %967 = vmatprep.subr.bf16.mxu0 0
        %968 = vmatpush2.bf16.msra.mxu0 0
        %969 = vmatprep.subr.bf16.mxu0 0
        %970 = vmatpush2.bf16.msra.mxu0 0
        %971 = vmatprep.subr.bf16.mxu0 0
        %972 = vmatpush2.bf16.msra.mxu0 0
        %973 = vmatprep.mubr.bf16.mxu0 0
        %974 = vmatmul.mubr.bf16.gmra.mxu0 %v891
        %v975 = vpop.f32.mrf.mxu0
        %v976 = vadd.f32 0.0, %v975
        %v977 = vpop.f32.mrf.mxu0
        %v978 = vpop.f32.mrf.mxu0
        %v979 = vadd.f32 0.0, %v978
        %v980 = vpop.f32.mrf.mxu0
        %981 = vmatprep.mubr.bf16.mxu0 0
        %982 = vmatmul.mubr.bf16.gmra.mxu0 %v892
        %v983 = vpop.f32.mrf.mxu0
        %v984 = vadd.f32 0.0, %v983
        %v985 = vpop.f32.mrf.mxu0
        %v986 = vpop.f32.mrf.mxu0
        %v987 = vadd.f32 0.0, %v986
        %v988 = vpop.f32.mrf.mxu0
        %989 = vdwg.mxu0
        %v1006 = vunpack.c.l.b16 %v809
        %v1007 = vunpack.c.l.b16 %v810
        %v1008 = vunpack.c.l.b16 %v811
        %v1009 = vunpack.c.l.b16 %v812
        %v1010 = vunpack.c.l.b16 %v813
        %v1011 = vunpack.c.l.b16 %v814
        %v1012 = vunpack.c.l.b16 %v815
        %v1013 = vunpack.c.l.b16 %v816
        %v1014 = vunpack.c.l.b16 %v817
        %v1015 = vunpack.c.l.b16 %v818
        %v1016 = vunpack.c.l.b16 %v819
        %v1017 = vunpack.c.l.b16 %v820
        %v1018 = vunpack.c.l.b16 %v821
        %v1019 = vunpack.c.l.b16 %v822
        %v1020 = vunpack.c.l.b16 %v823
        %v1021 = vunpack.c.l.b16 %v824
        %v1022 = vpack.c.b16 %v1007, %v1006
        %v1023 = vpack.c.b16 %v1009, %v1008
        %v1024 = vpack.c.b16 %v1011, %v1010
        %v1025 = vpack.c.b16 %v1013, %v1012
        %v1026 = vpack.c.b16 %v1015, %v1014
        %v1027 = vpack.c.b16 %v1017, %v1016
        %v1028 = vpack.c.b16 %v1019, %v1018
        %v1029 = vpack.c.b16 %v1021, %v1020
        %1038 = vmatprep.subr.bf16.mxu0 0
        %1039 = vmatpush1.bf16.msra.mxu0 %v1029
        %1040 = vmatprep.subr.bf16.mxu0 0
        %1041 = vmatpush1.bf16.msra.mxu0 %v1028
        %1042 = vmatprep.subr.bf16.mxu0 0
        %1043 = vmatpush1.bf16.msra.mxu0 %v1027
        %1044 = vmatprep.subr.bf16.mxu0 0
        %1045 = vmatpush1.bf16.msra.mxu0 %v1026
        %1046 = vmatprep.subr.bf16.mxu0 0
        %1047 = vmatpush1.bf16.msra.mxu0 %v1025
        %1048 = vmatprep.subr.bf16.mxu0 0
        %1049 = vmatpush1.bf16.msra.mxu0 %v1024
        %1050 = vmatprep.subr.bf16.mxu0 0
        %1051 = vmatpush1.bf16.msra.mxu0 %v1023
        %1052 = vmatprep.subr.bf16.mxu0 0
        %1053 = vmatpush1.bf16.msra.mxu0 %v1022
        %1054 = vmatprep.subr.bf16.mxu0 0
        %1055 = vmatpush2.bf16.msra.mxu0 0
        %1056 = vmatprep.subr.bf16.mxu0 0
        %1057 = vmatpush2.bf16.msra.mxu0 0
        %1058 = vmatprep.subr.bf16.mxu0 0
        %1059 = vmatpush2.bf16.msra.mxu0 0
        %1060 = vmatprep.subr.bf16.mxu0 0
        %1061 = vmatpush2.bf16.msra.mxu0 0
        %1062 = vmatprep.subr.bf16.mxu0 0
        %1063 = vmatpush2.bf16.msra.mxu0 0
        %1064 = vmatprep.subr.bf16.mxu0 0
        %1065 = vmatpush2.bf16.msra.mxu0 0
        %1066 = vmatprep.subr.bf16.mxu0 0
        %1067 = vmatpush2.bf16.msra.mxu0 0
        %1068 = vmatprep.subr.bf16.mxu0 0
        %1069 = vmatpush2.bf16.msra.mxu0 0
        %1070 = vmatprep.mubr.bf16.mxu0 0
        %1071 = vmatmul.mubr.bf16.gmra.mxu0 %v807
        %v1072 = vpop.f32.mrf.mxu0
        %v1073 = vadd.f32 %v976, %v1072
        %v1074 = vpop.f32.mrf.mxu0
        %v1075 = vpop.f32.mrf.mxu0
        %v1076 = vadd.f32 %v979, %v1075
        %v1077 = vpop.f32.mrf.mxu0
        %1078 = vmatprep.mubr.bf16.mxu0 0
        %1079 = vmatmul.mubr.bf16.gmra.mxu0 %v808
        %v1080 = vpop.f32.mrf.mxu0
        %v1081 = vadd.f32 %v984, %v1080
        %v1082 = vpop.f32.mrf.mxu0
        %v1083 = vpop.f32.mrf.mxu0
        %v1084 = vadd.f32 %v987, %v1083
        %v1085 = vpop.f32.mrf.mxu0
        %1086 = vdwg.mxu0
        %v1088 = vlaneseq
        %v1089 = vshrl.u32 %v1088, 7
        %v1090 = vsub.s32 0, %v1089
        %v1091 = vrot.slane %v841, %v1090
        %v1093 = vadd.f32 %v1073, %v1091
        %v1094 = vadd.f32 %v1076, %v1091
        %v1095 = vadd.f32 %v1081, %v1091
        %v1096 = vadd.f32 %v1084, %v1091
        %v1097 = vmax.f32 %v1093, 0.0
        %v1098 = vmax.f32 %v1094, 0.0
        %v1099 = vmax.f32 %v1095, 0.0
        %v1100 = vmax.f32 %v1096, 0.0
        %v1101 = vmul.f32 %v1097, 0.5
        %v1102 = vmul.f32 %v1098, 0.5
        %v1103 = vmul.f32 %v1099, 0.5
        %v1104 = vmul.f32 %v1100, 0.5
        %v1105 = vadd.f32 %v1101, %v799
        %v1106 = vadd.f32 %v1102, %v800
        %v1107 = vadd.f32 %v1103, %v801
        %v1108 = vadd.f32 %v1104, %v802
        %v1109 = vpack.c.bf16 %v1106, %v1105
        %v1110 = vpack.c.bf16 %v1108, %v1107
        %v1113 = vunpack.c.l.b16 %v1109
        %v1114 = vunpack.c.h.b16 %v1109
        %v1115 = vunpack.c.l.b16 %v1110
        %v1116 = vunpack.c.h.b16 %v1110
        %v1117 = vpack.c.b16 %v1113, %v1113
        %v1118 = vpack.c.b16 %v1114, %v1114
        %v1119 = vpack.c.b16 %v1115, %v1115
        %v1120 = vpack.c.b16 %v1116, %v1116
        %1125 = vst [vmem:[%s456] sm:$0xf] %v1117
        %1126 = vst [vmem:[%s456 + $0x4] sm:$0xf] %v1118
        %1127 = vst [vmem:[%s456 + $0x8] sm:$0xf] %v1119
        %1128 = vst [vmem:[%s456 + $0xc] sm:$0xf] %v1120
        %s1129 = sand.u32 %s227, 1
        %s1130 = sand.u32 %s227, 1
        %s1131 = smul.addr %s1130, 16
        %s1132 = scalar_lea.vmem [#allocation4], %s1131
        // Predicated region
        $region139: #{forward.26} parent=129 // pred_check
          %p1133 = pneg %p237
        $region140: #{forward.26} parent=129 // pred_check_branch
          %1135 = sbr.rel (%p1133) target = $region142
        $region141: #{forward.26} parent=129 // pred_region
          %s1136 = smul.addr %s20, 4
          %s1137 = scalar_lea.vmem %s9, %s1136
          // Predicated region
          $region143: #{forward.26} parent=141 // pred_check
            _
          $region144: #{forward.26} parent=141 // pred_check_branch
            %1139 = sbr.rel (0) target = $region146
          $region145: #{forward.26} parent=141 // pred_region
            // Predicated region
            $region147: #{forward.26} parent=145 // pred_check
              _
            $region148: #{forward.26} parent=145 // pred_check_branch
              %1141 = sbr.rel target = $region150
            $region149: #{forward.26} parent=145 // pred_region
              // Predicated region
              $region162: #{forward.26} parent=149 // pred_check
                _
              $region163: #{forward.26} parent=149 // pred_check_branch
                %1163 = sbr.rel (0) target = $region165
              $region164: #{forward.26} parent=149 // pred_region
                loop: start=0, step=1, limit=1
                $region166: #{forward.26} parent=164 // loop_pre_header
                  _
                $region167: #{forward.26} parent=164 // loop_header
                  %s1165 = sphi 0, %s1169
                  %p1166 = scmp.ge.s32.totalorder %s1165, 1
                  %s1170 = sphi %s1132, %s1132
                  %s1171 = sphi %s1137, %s1137
                $region168: #{forward.26} parent=164 // loop_header_branch
                  %1168 = sbr.rel (%p1166) target = $region172
                $region169: #{forward.26} parent=164 // loop_body
                  _
                $region170: #{forward.26} parent=164 // loop_footer
                  %s1169 = sadd.s32 1, %s1165
                $region171: #{forward.26} parent=164 // loop_footer_branch
                  %1164 = sbr.rel target = $region167
                $region172: #{forward.26} parent=164 // loop_exit
                  _
                %s1173 = ssub.s32 16, 1
                loop: start=0, step=1, limit=1
                $region173: #{forward.26} parent=164 // loop_pre_header
                  _
                $region174: #{forward.26} parent=164 // loop_header
                  %s1175 = sphi 0, %s1179
                  %p1176 = scmp.ge.s32.totalorder %s1175, 1
                  %s1180 = sphi %s1132, %s1132
                  %s1181 = sphi %s1137, %s1137
                $region175: #{forward.26} parent=164 // loop_header_branch
                  %1178 = sbr.rel (%p1176) target = $region179
                $region176: #{forward.26} parent=164 // loop_body
                  %v1182 = vld [vmem:[%s1180] sm:%s1173]
                  %1183 = vst [vmem:[%s1181] sm:%s1173] %v1182
                  %v1184 = vld [vmem:[%s1180 + $0x4] sm:%s1173]
                  %1185 = vst [vmem:[%s1181 + $0x8] sm:%s1173] %v1184
                  %v1186 = vld [vmem:[%s1180 + $0x8] sm:%s1173]
                  %1187 = vst [vmem:[%s1181 + $0x10] sm:%s1173] %v1186
                  %v1188 = vld [vmem:[%s1180 + $0xc] sm:%s1173]
                  %1189 = vst [vmem:[%s1181 + $0x18] sm:%s1173] %v1188
                $region177: #{forward.26} parent=164 // loop_footer
                  %s1179 = sadd.s32 1, %s1175
                $region178: #{forward.26} parent=164 // loop_footer_branch
                  %1174 = sbr.rel target = $region174
                $region179: #{forward.26} parent=164 // loop_exit
                  _
              $region165: #{forward.26} parent=149 // pred_fallthru
                _
            $region150: #{forward.26} parent=145 // pred_fallthru
              _
            // Predicated region
            $region151: #{forward.26} parent=145 // pred_check
              _
            $region152: #{forward.26} parent=145 // pred_check_branch
              %1143 = sbr.rel (0) target = $region154
            $region153: #{forward.26} parent=145 // pred_region
              %s1145 = ssub.s32 16, 1
              loop: start=0, step=1, limit=1
              $region155: #{forward.26} parent=153 // loop_pre_header
                _
              $region156: #{forward.26} parent=153 // loop_header
                %s1147 = sphi 0, %s1151
                %p1148 = scmp.ge.s32.totalorder %s1147, 1
                %s1152 = sphi %s1132, %s1132
                %s1153 = sphi %s1137, %s1137
              $region157: #{forward.26} parent=153 // loop_header_branch
                %1150 = sbr.rel (%p1148) target = $region161
              $region158: #{forward.26} parent=153 // loop_body
                %v1154 = vld [vmem:[%s1152] sm:%s1145]
                %1155 = vst [vmem:[%s1153] sm:%s1145] %v1154
                %v1156 = vld [vmem:[%s1152 + $0x4] sm:%s1145]
                %1157 = vst [vmem:[%s1153 + $0x8] sm:%s1145] %v1156
                %v1158 = vld [vmem:[%s1152 + $0x8] sm:%s1145]
                %1159 = vst [vmem:[%s1153 + $0x10] sm:%s1145] %v1158
                %v1160 = vld [vmem:[%s1152 + $0xc] sm:%s1145]
                %1161 = vst [vmem:[%s1153 + $0x18] sm:%s1145] %v1160
              $region159: #{forward.26} parent=153 // loop_footer
                %s1151 = sadd.s32 1, %s1147
              $region160: #{forward.26} parent=153 // loop_footer_branch
                %1146 = sbr.rel target = $region156
              $region161: #{forward.26} parent=153 // loop_exit
                _
            $region154: #{forward.26} parent=145 // pred_fallthru
              _
          $region146: #{forward.26} parent=141 // pred_fallthru
            _
          %1190 = vnop
        $region142: #{forward.26} parent=129 // pred_fallthru
          _
      $region130: #{forward.26} parent=5 // pred_fallthru
        _
      %p1191 = scmp.le.s32.totalorder 2, %s15
      // Predicated region
      $region180: #{forward.26} parent=5 // pred_check
        %p1192 = pneg %p1191
      $region181: #{forward.26} parent=5 // pred_check_branch
        %1194 = sbr.rel (%p1192) target = $region183
      $region182: #{forward.26} parent=5 // pred_region
        %s1195 = ssub.s32 %s15, 2
        // Predicated region
        $region184: #{forward.26} parent=182 // pred_check
          %p1196 = pneg %p243
        $region185: #{forward.26} parent=182 // pred_check_branch
          %1198 = sbr.rel (%p1196) target = $region187
        $region186: #{forward.26} parent=182 // pred_region
          %s1199 = sand.u32 %s228, 1
          %s1200 = sand.u32 %s228, 1
          %s1201 = smul.addr %s1200, 16
          %s1202 = scalar_lea.vmem [#allocation4], %s1201
        $region187: #{forward.26} parent=182 // pred_fallthru
          _
      $region183: #{forward.26} parent=5 // pred_fallthru
        _
    $region6: #{forward.26} parent=1 // loop_footer
      %s19 = sadd.s32 1, %s15
    $region7: #{forward.26} parent=1 // loop_footer_branch
      %14 = sbr.rel target = $region3
    $region8: #{forward.26} parent=1 // loop_exit
      _

// kernel: forward.24
$region0: #{forward.24}
  #allocation0 [shape = 'u32[]', space=smem, size = 0x4, offset = 0x4, fixed_abs, tag = 'smem constant byte address 0x4 - core index']
  #allocation1 [shape = 'u32[144,128]{1,0:T(1,128)}', space=vmem, size = 0x12000, scoped, tag = 'internal scratch']
  %s0 = inlined_call_operand.vmem [shape: bf16[16,256], index: 0, kind: input, shape index: {}]
  %s1 = inlined_call_operand.vmem [shape: bf16[16,16], index: 1, kind: input, shape index: {}]
  %s2 = inlined_call_operand.vmem [shape: bf16[128,128], index: 2, kind: input, shape index: {}]
  %s3 = inlined_call_operand.vmem [shape: bf16[128,128], index: 3, kind: input, shape index: {}]
  %s4 = inlined_call_operand.vmem [shape: f32[1,128], index: 4, kind: input, shape index: {}]
  %s5 = inlined_call_operand.vmem [shape: bf16[16,256], index: 5, kind: output, shape index: {}]
  %s6 = sld [smem:[#allocation0]]
  $region131: #{forward.24} parent=0
    _
  %s8 = ssub.s32 1, %s6
  %s9 = scalar_select 0, %s8, %s6
  $region1: #{forward.24} parent=0
    #allocation2 [shape = 'u8[8192]{0}', space=vmem, size = 0x2000, scoped, tag = 'input window, operand 0']
    #allocation3 [shape = 'u8[8192]{0}', space=vmem, size = 0x2000, scoped, tag = 'output window, operand 0']
    loop: start=0, step=1, limit=4
    $region2: #{forward.24} parent=1 // loop_pre_header
      _
    $region3: #{forward.24} parent=1 // loop_header
      %s11 = sphi 0, %s15
      %p12 = scmp.ge.s32.totalorder %s11, 4
      %s21 = sphi 0, %s23
      %s24 = sphi 0, %s21
      %s25 = sphi 0, %s24
      %s41 = sphi 0, %s25
      %s45 = sphi 0, %s45
      %s47 = sphi 0, %s45
      %s48 = sphi 0, %s47
      %s62 = sphi 0, %s48
      %s66 = sphi 0, %s66
      %s68 = sphi 0, %s66
      %s69 = sphi 0, %s68
      %s83 = sphi 0, %s69
      %s87 = sphi 0, %s87
      %s89 = sphi 0, %s87
      %s90 = sphi 0, %s89
      %s104 = sphi 0, %s90
      %s108 = sphi 0, %s108
      %s110 = sphi 0, %s108
      %s111 = sphi 0, %s110
      %s125 = sphi 0, %s111
      %s131 = sphi 0, %s133
      %s134 = sphi 0, %s131
      %s135 = sphi 0, %s134
      %s151 = sphi 0, %s135
    $region4: #{forward.24} parent=1 // loop_header_branch
      %14 = sbr.rel (%p12) target = $region8
    $region5: #{forward.24} parent=1 // loop_body
      %s16 = ssub.s32 %s11, 1
      %s17 = ssub.s32 %s11, 2
      %s18 = sadd.s32 %s11, 1
      %s19 = ssub.s32 %s11, %s18
      %p20 = scmp.eq.s32.totalorder %s19, 0
      %s22 = sadd.s32 %s21, 1
      %s23 = scalar_select %p20, %s21, %s22
      %p26 = pneg %p20
      %p27 = scmp.eq.s32.totalorder %s11, 1
      %p28 = por %p26, %p27
      %p29 = scmp.ne.s32.totalorder %s21, %s24
      %p30 = scmp.eq.s32.totalorder %s11, 0
      %p31 = por %p29, %p30
      %p32 = scmp.ne.s32.totalorder %s21, %s24
      %p33 = scmp.eq.s32.totalorder %s16, 1
      %p34 = por %p32, %p33
      %p35 = scmp.ne.s32.totalorder %s24, %s25
      %p36 = scmp.eq.s32.totalorder %s16, 0
      %p37 = por %p35, %p36
      %p38 = scmp.ne.s32.totalorder %s24, %s25
      %p39 = scmp.eq.s32.totalorder %s17, 1
      %p40 = por %p38, %p39
      %p42 = scmp.ne.s32.totalorder %s25, %s41
      %p43 = scmp.eq.s32.totalorder %s17, 0
      %p44 = por %p42, %p43
      %s46 = sadd.s32 %s45, 1
      %p49 = scmp.eq.s32.totalorder %s11, 1
      %p50 = scmp.ne.s32.totalorder %s45, %s47
      %p51 = scmp.eq.s32.totalorder %s11, 0
      %p52 = por %p50, %p51
      %p53 = scmp.ne.s32.totalorder %s45, %s47
      %p54 = scmp.eq.s32.totalorder %s16, 1
      %p55 = por %p53, %p54
      %p56 = scmp.ne.s32.totalorder %s47, %s48
      %p57 = scmp.eq.s32.totalorder %s16, 0
      %p58 = por %p56, %p57
      %p59 = scmp.ne.s32.totalorder %s47, %s48
      %p60 = scmp.eq.s32.totalorder %s17, 1
      %p61 = por %p59, %p60
      %p63 = scmp.ne.s32.totalorder %s48, %s62
      %p64 = scmp.eq.s32.totalorder %s17, 0
      %p65 = por %p63, %p64
      %s67 = sadd.s32 %s66, 1
      %p70 = scmp.eq.s32.totalorder %s11, 1
      %p71 = scmp.ne.s32.totalorder %s66, %s68
      %p72 = scmp.eq.s32.totalorder %s11, 0
      %p73 = por %p71, %p72
      %p74 = scmp.ne.s32.totalorder %s66, %s68
      %p75 = scmp.eq.s32.totalorder %s16, 1
      %p76 = por %p74, %p75
      %p77 = scmp.ne.s32.totalorder %s68, %s69
      %p78 = scmp.eq.s32.totalorder %s16, 0
      %p79 = por %p77, %p78
      %p80 = scmp.ne.s32.totalorder %s68, %s69
      %p81 = scmp.eq.s32.totalorder %s17, 1
      %p82 = por %p80, %p81
      %p84 = scmp.ne.s32.totalorder %s69, %s83
      %p85 = scmp.eq.s32.totalorder %s17, 0
      %p86 = por %p84, %p85
      %s88 = sadd.s32 %s87, 1
      %p91 = scmp.eq.s32.totalorder %s11, 1
      %p92 = scmp.ne.s32.totalorder %s87, %s89
      %p93 = scmp.eq.s32.totalorder %s11, 0
      %p94 = por %p92, %p93
      %p95 = scmp.ne.s32.totalorder %s87, %s89
      %p96 = scmp.eq.s32.totalorder %s16, 1
      %p97 = por %p95, %p96
      %p98 = scmp.ne.s32.totalorder %s89, %s90
      %p99 = scmp.eq.s32.totalorder %s16, 0
      %p100 = por %p98, %p99
      %p101 = scmp.ne.s32.totalorder %s89, %s90
      %p102 = scmp.eq.s32.totalorder %s17, 1
      %p103 = por %p101, %p102
      %p105 = scmp.ne.s32.totalorder %s90, %s104
      %p106 = scmp.eq.s32.totalorder %s17, 0
      %p107 = por %p105, %p106
      %s109 = sadd.s32 %s108, 1
      %p112 = scmp.eq.s32.totalorder %s11, 1
      %p113 = scmp.ne.s32.totalorder %s108, %s110
      %p114 = scmp.eq.s32.totalorder %s11, 0
      %p115 = por %p113, %p114
      %p116 = scmp.ne.s32.totalorder %s108, %s110
      %p117 = scmp.eq.s32.totalorder %s16, 1
      %p118 = por %p116, %p117
      %p119 = scmp.ne.s32.totalorder %s110, %s111
      %p120 = scmp.eq.s32.totalorder %s16, 0
      %p121 = por %p119, %p120
      %p122 = scmp.ne.s32.totalorder %s110, %s111
      %p123 = scmp.eq.s32.totalorder %s17, 1
      %p124 = por %p122, %p123
      %p126 = scmp.ne.s32.totalorder %s111, %s125
      %p127 = scmp.eq.s32.totalorder %s17, 0
      %p128 = por %p126, %p127
      %s129 = ssub.s32 %s11, %s18
      %p130 = scmp.eq.s32.totalorder %s129, 0
      %s132 = sadd.s32 %s131, 1
      %s133 = scalar_select %p130, %s131, %s132
      %p136 = pneg %p130
      %p137 = scmp.eq.s32.totalorder %s11, 1
      %p138 = por %p136, %p137
      %p139 = scmp.ne.s32.totalorder %s131, %s134
      %p140 = scmp.eq.s32.totalorder %s11, 0
      %p141 = por %p139, %p140
      %p142 = scmp.ne.s32.totalorder %s131, %s134
      %p143 = scmp.eq.s32.totalorder %s16, 1
      %p144 = por %p142, %p143
      %p145 = scmp.ne.s32.totalorder %s134, %s135
      %p146 = scmp.eq.s32.totalorder %s16, 0
      %p147 = por %p145, %p146
      %p148 = scmp.ne.s32.totalorder %s134, %s135
      %p149 = scmp.eq.s32.totalorder %s17, 1
      %p150 = por %p148, %p149
      %p152 = scmp.ne.s32.totalorder %s135, %s151
      %p153 = scmp.eq.s32.totalorder %s17, 0
      %p154 = por %p152, %p153
      %p155 = scmp.le.s32.totalorder 1, %s11
      %p156 = scmp.lt.s32.totalorder %s11, 3
      %p157 = pnand %p155, %p156
      %p158 = pneg %p157
      // Predicated region
      $region9: #{forward.24} parent=5 // pred_check
        _
      $region10: #{forward.24} parent=5 // pred_check_branch
        %160 = sbr.rel (%p157) target = $region12
      $region11: #{forward.24} parent=5 // pred_region
        %s161 = ssub.s32 %s11, 1
        // Predicated region
        $region13: #{forward.24} parent=11 // pred_check
          %p162 = pneg %p58
        $region14: #{forward.24} parent=11 // pred_check_branch
          %164 = sbr.rel (%p162) target = $region16
        $region15: #{forward.24} parent=11 // pred_region
          _
        $region16: #{forward.24} parent=11 // pred_fallthru
          _
        // Predicated region
        $region17: #{forward.24} parent=11 // pred_check
          %p165 = pneg %p79
        $region18: #{forward.24} parent=11 // pred_check_branch
          %167 = sbr.rel (%p165) target = $region20
        $region19: #{forward.24} parent=11 // pred_region
          _
        $region20: #{forward.24} parent=11 // pred_fallthru
          _
        // Predicated region
        $region21: #{forward.24} parent=11 // pred_check
          %p168 = pneg %p100
        $region22: #{forward.24} parent=11 // pred_check_branch
          %170 = sbr.rel (%p168) target = $region24
        $region23: #{forward.24} parent=11 // pred_region
          _
        $region24: #{forward.24} parent=11 // pred_fallthru
          _
        // Predicated region
        $region25: #{forward.24} parent=11 // pred_check
          %p171 = pneg %p121
        $region26: #{forward.24} parent=11 // pred_check_branch
          %173 = sbr.rel (%p171) target = $region28
        $region27: #{forward.24} parent=11 // pred_region
          _
        $region28: #{forward.24} parent=11 // pred_fallthru
          _
      $region12: #{forward.24} parent=5 // pred_fallthru
        _
      %p174 = scmp.lt.s32.totalorder %s11, 2
      // Predicated region
      $region29: #{forward.24} parent=5 // pred_check
        %p175 = pneg %p174
      $region30: #{forward.24} parent=5 // pred_check_branch
        %177 = sbr.rel (%p175) target = $region32
      $region31: #{forward.24} parent=5 // pred_region
        // Predicated region
        $region33: #{forward.24} parent=31 // pred_check
          %p178 = pneg %p31
        $region34: #{forward.24} parent=31 // pred_check_branch
          %180 = sbr.rel (%p178) target = $region36
        $region35: #{forward.24} parent=31 // pred_region
          %s181 = sand.u32 %s21, 1
          %s182 = sand.u32 %s21, 1
          %s183 = smul.addr %s182, 8
          %s184 = scalar_lea.vmem [#allocation2], %s183
          %s185 = smul.addr %s11, 4
          %s186 = scalar_lea.vmem %s0, %s185
          // Predicated region
          $region37: #{forward.24} parent=35 // pred_check
            _
          $region38: #{forward.24} parent=35 // pred_check_branch
            %188 = sbr.rel (0) target = $region40
          $region39: #{forward.24} parent=35 // pred_region
            // Predicated region
            $region41: #{forward.24} parent=39 // pred_check
              _
            $region42: #{forward.24} parent=39 // pred_check_branch
              %190 = sbr.rel target = $region44
            $region43: #{forward.24} parent=39 // pred_region
              // Predicated region
              $region56: #{forward.24} parent=43 // pred_check
                _
              $region57: #{forward.24} parent=43 // pred_check_branch
                %208 = sbr.rel (0) target = $region59
              $region58: #{forward.24} parent=43 // pred_region
                loop: start=0, step=1, limit=1
                $region60: #{forward.24} parent=58 // loop_pre_header
                  _
                $region61: #{forward.24} parent=58 // loop_header
                  %s210 = sphi 0, %s214
                  %p211 = scmp.ge.s32.totalorder %s210, 1
                  %s215 = sphi %s186, %s186
                  %s216 = sphi %s184, %s184
                $region62: #{forward.24} parent=58 // loop_header_branch
                  %213 = sbr.rel (%p211) target = $region66
                $region63: #{forward.24} parent=58 // loop_body
                  _
                $region64: #{forward.24} parent=58 // loop_footer
                  %s214 = sadd.s32 1, %s210
                $region65: #{forward.24} parent=58 // loop_footer_branch
                  %209 = sbr.rel target = $region61
                $region66: #{forward.24} parent=58 // loop_exit
                  _
                %s218 = ssub.s32 16, 1
                loop: start=0, step=1, limit=1
                $region67: #{forward.24} parent=58 // loop_pre_header
                  _
                $region68: #{forward.24} parent=58 // loop_header
                  %s220 = sphi 0, %s224
                  %p221 = scmp.ge.s32.totalorder %s220, 1
                  %s225 = sphi %s186, %s186
                  %s226 = sphi %s184, %s184
                $region69: #{forward.24} parent=58 // loop_header_branch
                  %223 = sbr.rel (%p221) target = $region73
                $region70: #{forward.24} parent=58 // loop_body
                  %v227 = vld [vmem:[%s225] sm:%s218]
                  %228 = vst [vmem:[%s226] sm:%s218] %v227
                  %v229 = vld [vmem:[%s225 + $0x8] sm:%s218]
                  %230 = vst [vmem:[%s226 + $0x4] sm:%s218] %v229
                $region71: #{forward.24} parent=58 // loop_footer
                  %s224 = sadd.s32 1, %s220
                $region72: #{forward.24} parent=58 // loop_footer_branch
                  %219 = sbr.rel target = $region68
                $region73: #{forward.24} parent=58 // loop_exit
                  _
              $region59: #{forward.24} parent=43 // pred_fallthru
                _
            $region44: #{forward.24} parent=39 // pred_fallthru
              _
            // Predicated region
            $region45: #{forward.24} parent=39 // pred_check
              _
            $region46: #{forward.24} parent=39 // pred_check_branch
              %192 = sbr.rel (0) target = $region48
            $region47: #{forward.24} parent=39 // pred_region
              %s194 = ssub.s32 16, 1
              loop: start=0, step=1, limit=1
              $region49: #{forward.24} parent=47 // loop_pre_header
                _
              $region50: #{forward.24} parent=47 // loop_header
                %s196 = sphi 0, %s200
                %p197 = scmp.ge.s32.totalorder %s196, 1
                %s201 = sphi %s186, %s186
                %s202 = sphi %s184, %s184
              $region51: #{forward.24} parent=47 // loop_header_branch
                %199 = sbr.rel (%p197) target = $region55
              $region52: #{forward.24} parent=47 // loop_body
                %v203 = vld [vmem:[%s201] sm:%s194]
                %204 = vst [vmem:[%s202] sm:%s194] %v203
                %v205 = vld [vmem:[%s201 + $0x8] sm:%s194]
                %206 = vst [vmem:[%s202 + $0x4] sm:%s194] %v205
              $region53: #{forward.24} parent=47 // loop_footer
                %s200 = sadd.s32 1, %s196
              $region54: #{forward.24} parent=47 // loop_footer_branch
                %195 = sbr.rel target = $region50
              $region55: #{forward.24} parent=47 // loop_exit
                _
            $region48: #{forward.24} parent=39 // pred_fallthru
              _
          $region40: #{forward.24} parent=35 // pred_fallthru
            _
          %231 = vnop
        $region36: #{forward.24} parent=31 // pred_fallthru
          _
      $region32: #{forward.24} parent=5 // pred_fallthru
        _
      %p232 = scmp.le.s32.totalorder 1, %s11
      %p233 = scmp.lt.s32.totalorder %s11, 3
      %p234 = pnand %p232, %p233
      %p235 = pneg %p234
      // Predicated region
      $region74: #{forward.24} parent=5 // pred_check
        _
      $region75: #{forward.24} parent=5 // pred_check_branch
        %237 = sbr.rel (%p234) target = $region77
      $region76: #{forward.24} parent=5 // pred_region
        %s238 = ssub.s32 %s11, 1
        %s239 = sand.u32 %s24, 1
        %s240 = sand.u32 %s24, 1
        %s241 = smul.addr %s240, 8
        %s242 = scalar_lea.vmem [#allocation2], %s241
        // Predicated region
        $region78: #{forward.24} parent=76 // pred_check
          %p243 = pneg %p37
        $region79: #{forward.24} parent=76 // pred_check_branch
          %245 = sbr.rel (%p243) target = $region81
        $region80: #{forward.24} parent=76 // pred_region
          _
        $region81: #{forward.24} parent=76 // pred_fallthru
          _
        %s246 = sand.u32 %s24, 1
        %s247 = sand.u32 %s24, 1
        %s248 = smul.addr %s247, 8
        %s249 = scalar_lea.vmem [#allocation2], %s248
        %p250 = pneg %p37
        %p251 = pneg %p34
        %p252 = pneg %p58
        %p253 = pneg %p55
        %p254 = pneg %p79
        %p255 = pneg %p76
        %p256 = pneg %p100
        %p257 = pneg %p97
        %p258 = pneg %p121
        %p259 = pneg %p118
        %p260 = pneg %p147
        %p261 = pneg %p144
        %s262 = sand.u32 %s134, 1
        %s263 = sand.u32 %s134, 1
        %s264 = smul.addr %s263, 8
        %s265 = scalar_lea.vmem [#allocation3], %s264
        %v267 = vld [vmem:[%s1] sm:$0xf]
        %v268 = vld [vmem:[%s1 + $0x4] sm:$0xf]
        %v269 = vld [vmem:[%s242] sm:$0xf]
        %v270 = vld [vmem:[%s242 + $0x4] sm:$0xf]
        %v271 = vld [vmem:[%s2] sm:$0xf]
        %v272 = vld [vmem:[%s2 + $0x4] sm:$0xf]
        %v273 = vld [vmem:[%s2 + $0x8] sm:$0xf]
        %v274 = vld [vmem:[%s2 + $0xc] sm:$0xf]
        %v275 = vld [vmem:[%s2 + $0x10] sm:$0xf]
        %v276 = vld [vmem:[%s2 + $0x14] sm:$0xf]
        %v277 = vld [vmem:[%s2 + $0x18] sm:$0xf]
        %v278 = vld [vmem:[%s2 + $0x1c] sm:$0xf]
        %v279 = vld [vmem:[%s2 + $0x20] sm:$0xf]
        %v280 = vld [vmem:[%s2 + $0x24] sm:$0xf]
        %v281 = vld [vmem:[%s2 + $0x28] sm:$0xf]
        %v282 = vld [vmem:[%s2 + $0x2c] sm:$0xf]
        %v283 = vld [vmem:[%s2 + $0x30] sm:$0xf]
        %v284 = vld [vmem:[%s2 + $0x34] sm:$0xf]
        %v285 = vld [vmem:[%s2 + $0x38] sm:$0xf]
        %v286 = vld [vmem:[%s2 + $0x3c] sm:$0xf]
        %v287 = vld [vmem:[%s3] sm:$0xf]
        %v288 = vld [vmem:[%s3 + $0x4] sm:$0xf]
        %v289 = vld [vmem:[%s3 + $0x8] sm:$0xf]
        %v290 = vld [vmem:[%s3 + $0xc] sm:$0xf]
        %v291 = vld [vmem:[%s3 + $0x10] sm:$0xf]
        %v292 = vld [vmem:[%s3 + $0x14] sm:$0xf]
        %v293 = vld [vmem:[%s3 + $0x18] sm:$0xf]
        %v294 = vld [vmem:[%s3 + $0x1c] sm:$0xf]
        %v295 = vld [vmem:[%s3 + $0x20] sm:$0xf]
        %v296 = vld [vmem:[%s3 + $0x24] sm:$0xf]
        %v297 = vld [vmem:[%s3 + $0x28] sm:$0xf]
        %v298 = vld [vmem:[%s3 + $0x2c] sm:$0xf]
        %v299 = vld [vmem:[%s3 + $0x30] sm:$0xf]
        %v300 = vld [vmem:[%s3 + $0x34] sm:$0xf]
        %v301 = vld [vmem:[%s3 + $0x38] sm:$0xf]
        %v302 = vld [vmem:[%s3 + $0x3c] sm:$0xf]
        %v303 = vld [vmem:[%s4] sm:$0x1]
        %v306 = vunpack.c.l.b16 %v267
        %v307 = vunpack.c.l.b16 %v268
        %v308 = vpack.c.b16 %v307, %v306
        %v311 = vunpack.c.l.b16 %v269
        %v312 = vunpack.c.l.b16 %v270
        %v313 = vpack.c.b16 %v312, %v311
        %vm315 = vcmask 130048
        %v317 = vsel %vm315, %v308, 0
        %319 = vmatprep.subr.bf16.mxu0 0
        %320 = vmatpush1.bf16.msra.mxu0 0
        %321 = vmatprep.subr.bf16.mxu0 0
        %322 = vmatpush1.bf16.msra.mxu0 0
        %323 = vmatprep.subr.bf16.mxu0 0
        %324 = vmatpush1.bf16.msra.mxu0 0
        %325 = vmatprep.subr.bf16.mxu0 0
        %326 = vmatpush1.bf16.msra.mxu0 0
        %327 = vmatprep.subr.bf16.mxu0 0
        %328 = vmatpush1.bf16.msra.mxu0 0
        %329 = vmatprep.subr.bf16.mxu0 0
        %330 = vmatpush1.bf16.msra.mxu0 0
        %331 = vmatprep.subr.bf16.mxu0 0
        %332 = vmatpush1.bf16.msra.mxu0 0
        %333 = vmatprep.subr.bf16.mxu0 0
        %334 = vmatpush1.bf16.msra.mxu0 %v313
        %335 = vmatprep.subr.bf16.mxu0 0
        %336 = vmatpush2.bf16.msra.mxu0 0
        %337 = vmatprep.subr.bf16.mxu0 0
        %338 = vmatpush2.bf16.msra.mxu0 0
        %339 = vmatprep.subr.bf16.mxu0 0
        %340 = vmatpush2.bf16.msra.mxu0 0
        %341 = vmatprep.subr.bf16.mxu0 0
        %342 = vmatpush2.bf16.msra.mxu0 0
        %343 = vmatprep.subr.bf16.mxu0 0
        %344 = vmatpush2.bf16.msra.mxu0 0
        %345 = vmatprep.subr.bf16.mxu0 0
        %346 = vmatpush2.bf16.msra.mxu0 0
        %347 = vmatprep.subr.bf16.mxu0 0
        %348 = vmatpush2.bf16.msra.mxu0 0
        %349 = vmatprep.subr.bf16.mxu0 0
        %350 = vmatpush2.bf16.msra.mxu0 0
        %351 = vmatprep.mubr.bf16.mxu0 0
        %352 = vmatmul.mubr.bf16.gmra.mxu0 %v317
        %v353 = vpop.f32.mrf.mxu0
        %v354 = vadd.f32 0.0, %v353
        %v355 = vpop.f32.mrf.mxu0
        %v356 = vpop.f32.mrf.mxu0
        %v357 = vadd.f32 0.0, %v356
        %v358 = vpop.f32.mrf.mxu0
        %359 = vdwg.mxu0
        %v360 = vpack.c.bf16 %v357, %v354
        %v377 = vunpack.c.l.b16 %v287
        %v378 = vunpack.c.l.b16 %v288
        %v379 = vunpack.c.l.b16 %v289
        %v380 = vunpack.c.l.b16 %v290
        %v381 = vunpack.c.l.b16 %v291
        %v382 = vunpack.c.l.b16 %v292
        %v383 = vunpack.c.l.b16 %v293
        %v384 = vunpack.c.l.b16 %v294
        %v385 = vunpack.c.l.b16 %v295
        %v386 = vunpack.c.l.b16 %v296
        %v387 = vunpack.c.l.b16 %v297
        %v388 = vunpack.c.l.b16 %v298
        %v389 = vunpack.c.l.b16 %v299
        %v390 = vunpack.c.l.b16 %v300
        %v391 = vunpack.c.l.b16 %v301
        %v392 = vunpack.c.l.b16 %v302
        %v393 = vpack.c.b16 %v378, %v377
        %v394 = vpack.c.b16 %v380, %v379
        %v395 = vpack.c.b16 %v382, %v381
        %v396 = vpack.c.b16 %v384, %v383
        %v397 = vpack.c.b16 %v386, %v385
        %v398 = vpack.c.b16 %v388, %v387
        %v399 = vpack.c.b16 %v390, %v389
        %v400 = vpack.c.b16 %v392, %v391
        %409 = vmatprep.subr.bf16.mxu0 0
        %410 = vmatpush1.bf16.msra.mxu0 %v400
        %411 = vmatprep.subr.bf16.mxu0 0
        %412 = vmatpush1.bf16.msra.mxu0 %v399
        %413 = vmatprep.subr.bf16.mxu0 0
        %414 = vmatpush1.bf16.msra.mxu0 %v398
        %415 = vmatprep.subr.bf16.mxu0 0
        %416 = vmatpush1.bf16.msra.mxu0 %v397
        %417 = vmatprep.subr.bf16.mxu0 0
        %418 = vmatpush1.bf16.msra.mxu0 %v396
        %419 = vmatprep.subr.bf16.mxu0 0
        %420 = vmatpush1.bf16.msra.mxu0 %v395
        %421 = vmatprep.subr.bf16.mxu0 0
        %422 = vmatpush1.bf16.msra.mxu0 %v394
        %423 = vmatprep.subr.bf16.mxu0 0
        %424 = vmatpush1.bf16.msra.mxu0 %v393
        %425 = vmatprep.subr.bf16.mxu0 0
        %426 = vmatpush2.bf16.msra.mxu0 0
        %427 = vmatprep.subr.bf16.mxu0 0
        %428 = vmatpush2.bf16.msra.mxu0 0
        %429 = vmatprep.subr.bf16.mxu0 0
        %430 = vmatpush2.bf16.msra.mxu0 0
        %431 = vmatprep.subr.bf16.mxu0 0
        %432 = vmatpush2.bf16.msra.mxu0 0
        %433 = vmatprep.subr.bf16.mxu0 0
        %434 = vmatpush2.bf16.msra.mxu0 0
        %435 = vmatprep.subr.bf16.mxu0 0
        %436 = vmatpush2.bf16.msra.mxu0 0
        %437 = vmatprep.subr.bf16.mxu0 0
        %438 = vmatpush2.bf16.msra.mxu0 0
        %439 = vmatprep.subr.bf16.mxu0 0
        %440 = vmatpush2.bf16.msra.mxu0 0
        %441 = vmatprep.mubr.bf16.mxu0 0
        %442 = vmatmul.mubr.bf16.gmra.mxu0 %v360
        %v443 = vpop.f32.mrf.mxu0
        %v444 = vadd.f32 0.0, %v443
        %v445 = vpop.f32.mrf.mxu0
        %v446 = vpop.f32.mrf.mxu0
        %v447 = vadd.f32 0.0, %v446
        %v448 = vpop.f32.mrf.mxu0
        %449 = vdwg.mxu0
        %v466 = vunpack.c.l.b16 %v271
        %v467 = vunpack.c.l.b16 %v272
        %v468 = vunpack.c.l.b16 %v273
        %v469 = vunpack.c.l.b16 %v274
        %v470 = vunpack.c.l.b16 %v275
        %v471 = vunpack.c.l.b16 %v276
        %v472 = vunpack.c.l.b16 %v277
        %v473 = vunpack.c.l.b16 %v278
        %v474 = vunpack.c.l.b16 %v279
        %v475 = vunpack.c.l.b16 %v280
        %v476 = vunpack.c.l.b16 %v281
        %v477 = vunpack.c.l.b16 %v282
        %v478 = vunpack.c.l.b16 %v283
        %v479 = vunpack.c.l.b16 %v284
        %v480 = vunpack.c.l.b16 %v285
        %v481 = vunpack.c.l.b16 %v286
        %v482 = vpack.c.b16 %v467, %v466
        %v483 = vpack.c.b16 %v469, %v468
        %v484 = vpack.c.b16 %v471, %v470
        %v485 = vpack.c.b16 %v473, %v472
        %v486 = vpack.c.b16 %v475, %v474
        %v487 = vpack.c.b16 %v477, %v476
        %v488 = vpack.c.b16 %v479, %v478
        %v489 = vpack.c.b16 %v481, %v480
        %498 = vmatprep.subr.bf16.mxu0 0
        %499 = vmatpush1.bf16.msra.mxu0 %v489
        %500 = vmatprep.subr.bf16.mxu0 0
        %501 = vmatpush1.bf16.msra.mxu0 %v488
        %502 = vmatprep.subr.bf16.mxu0 0
        %503 = vmatpush1.bf16.msra.mxu0 %v487
        %504 = vmatprep.subr.bf16.mxu0 0
        %505 = vmatpush1.bf16.msra.mxu0 %v486
        %506 = vmatprep.subr.bf16.mxu0 0
        %507 = vmatpush1.bf16.msra.mxu0 %v485
        %508 = vmatprep.subr.bf16.mxu0 0
        %509 = vmatpush1.bf16.msra.mxu0 %v484
        %510 = vmatprep.subr.bf16.mxu0 0
        %511 = vmatpush1.bf16.msra.mxu0 %v483
        %512 = vmatprep.subr.bf16.mxu0 0
        %513 = vmatpush1.bf16.msra.mxu0 %v482
        %514 = vmatprep.subr.bf16.mxu0 0
        %515 = vmatpush2.bf16.msra.mxu0 0
        %516 = vmatprep.subr.bf16.mxu0 0
        %517 = vmatpush2.bf16.msra.mxu0 0
        %518 = vmatprep.subr.bf16.mxu0 0
        %519 = vmatpush2.bf16.msra.mxu0 0
        %520 = vmatprep.subr.bf16.mxu0 0
        %521 = vmatpush2.bf16.msra.mxu0 0
        %522 = vmatprep.subr.bf16.mxu0 0
        %523 = vmatpush2.bf16.msra.mxu0 0
        %524 = vmatprep.subr.bf16.mxu0 0
        %525 = vmatpush2.bf16.msra.mxu0 0
        %526 = vmatprep.subr.bf16.mxu0 0
        %527 = vmatpush2.bf16.msra.mxu0 0
        %528 = vmatprep.subr.bf16.mxu0 0
        %529 = vmatpush2.bf16.msra.mxu0 0
        %530 = vmatprep.mubr.bf16.mxu0 0
        %531 = vmatmul.mubr.bf16.gmra.mxu0 %v313
        %v532 = vpop.f32.mrf.mxu0
        %v533 = vadd.f32 %v444, %v532
        %v534 = vpop.f32.mrf.mxu0
        %v535 = vpop.f32.mrf.mxu0
        %v536 = vadd.f32 %v447, %v535
        %v537 = vpop.f32.mrf.mxu0
        %538 = vdwg.mxu0
        %v540 = vlaneseq
        %v541 = vshrl.u32 %v540, 7
        %v542 = vsub.s32 0, %v541
        %v543 = vrot.slane %v303, %v542
        %v545 = vadd.f32 %v533, %v543
        %v546 = vadd.f32 %v536, %v543
        %v547 = vmax.f32 %v545, 0.0
        %v548 = vmax.f32 %v546, 0.0
        %v549 = vpack.c.bf16 %v548, %v547
        %v551 = vunpack.c.l.b16 %v549
        %v552 = vunpack.c.h.b16 %v549
        %v553 = vpack.c.b16 %v551, %v551
        %v554 = vpack.c.b16 %v552, %v552
        %557 = vst [vmem:[%s265] sm:$0xf] %v553
        %558 = vst [vmem:[%s265 + $0x4] sm:$0xf] %v554
        %s559 = sand.u32 %s134, 1
        %s560 = sand.u32 %s134, 1
        %s561 = smul.addr %s560, 8
        %s562 = scalar_lea.vmem [#allocation3], %s561
        // Predicated region
        $region82: #{forward.24} parent=76 // pred_check
          %p563 = pneg %p144
        $region83: #{forward.24} parent=76 // pred_check_branch
          %565 = sbr.rel (%p563) target = $region85
        $region84: #{forward.24} parent=76 // pred_region
          %s566 = smul.addr %s16, 4
          %s567 = scalar_lea.vmem %s5, %s566
          // Predicated region
          $region86: #{forward.24} parent=84 // pred_check
            _
          $region87: #{forward.24} parent=84 // pred_check_branch
            %569 = sbr.rel (0) target = $region89
          $region88: #{forward.24} parent=84 // pred_region
            // Predicated region
            $region90: #{forward.24} parent=88 // pred_check
              _
            $region91: #{forward.24} parent=88 // pred_check_branch
              %571 = sbr.rel target = $region93
            $region92: #{forward.24} parent=88 // pred_region
              // Predicated region
              $region105: #{forward.24} parent=92 // pred_check
                _
              $region106: #{forward.24} parent=92 // pred_check_branch
                %589 = sbr.rel (0) target = $region108
              $region107: #{forward.24} parent=92 // pred_region
                loop: start=0, step=1, limit=1
                $region109: #{forward.24} parent=107 // loop_pre_header
                  _
                $region110: #{forward.24} parent=107 // loop_header
                  %s591 = sphi 0, %s595
                  %p592 = scmp.ge.s32.totalorder %s591, 1
                  %s596 = sphi %s562, %s562
                  %s597 = sphi %s567, %s567
                $region111: #{forward.24} parent=107 // loop_header_branch
                  %594 = sbr.rel (%p592) target = $region115
                $region112: #{forward.24} parent=107 // loop_body
                  _
                $region113: #{forward.24} parent=107 // loop_footer
                  %s595 = sadd.s32 1, %s591
                $region114: #{forward.24} parent=107 // loop_footer_branch
                  %590 = sbr.rel target = $region110
                $region115: #{forward.24} parent=107 // loop_exit
                  _
                %s599 = ssub.s32 16, 1
                loop: start=0, step=1, limit=1
                $region116: #{forward.24} parent=107 // loop_pre_header
                  _
                $region117: #{forward.24} parent=107 // loop_header
                  %s601 = sphi 0, %s605
                  %p602 = scmp.ge.s32.totalorder %s601, 1
                  %s606 = sphi %s562, %s562
                  %s607 = sphi %s567, %s567
                $region118: #{forward.24} parent=107 // loop_header_branch
                  %604 = sbr.rel (%p602) target = $region122
                $region119: #{forward.24} parent=107 // loop_body
                  %v608 = vld [vmem:[%s606] sm:%s599]
                  %609 = vst [vmem:[%s607] sm:%s599] %v608
                  %v610 = vld [vmem:[%s606 + $0x4] sm:%s599]
                  %611 = vst [vmem:[%s607 + $0x8] sm:%s599] %v610
                $region120: #{forward.24} parent=107 // loop_footer
                  %s605 = sadd.s32 1, %s601
                $region121: #{forward.24} parent=107 // loop_footer_branch
                  %600 = sbr.rel target = $region117
                $region122: #{forward.24} parent=107 // loop_exit
                  _
              $region108: #{forward.24} parent=92 // pred_fallthru
                _
            $region93: #{forward.24} parent=88 // pred_fallthru
              _
            // Predicated region
            $region94: #{forward.24} parent=88 // pred_check
              _
            $region95: #{forward.24} parent=88 // pred_check_branch
              %573 = sbr.rel (0) target = $region97
            $region96: #{forward.24} parent=88 // pred_region
              %s575 = ssub.s32 16, 1
              loop: start=0, step=1, limit=1
              $region98: #{forward.24} parent=96 // loop_pre_header
                _
              $region99: #{forward.24} parent=96 // loop_header
                %s577 = sphi 0, %s581
                %p578 = scmp.ge.s32.totalorder %s577, 1
                %s582 = sphi %s562, %s562
                %s583 = sphi %s567, %s567
              $region100: #{forward.24} parent=96 // loop_header_branch
                %580 = sbr.rel (%p578) target = $region104
              $region101: #{forward.24} parent=96 // loop_body
                %v584 = vld [vmem:[%s582] sm:%s575]
                %585 = vst [vmem:[%s583] sm:%s575] %v584
                %v586 = vld [vmem:[%s582 + $0x4] sm:%s575]
                %587 = vst [vmem:[%s583 + $0x8] sm:%s575] %v586
              $region102: #{forward.24} parent=96 // loop_footer
                %s581 = sadd.s32 1, %s577
              $region103: #{forward.24} parent=96 // loop_footer_branch
                %576 = sbr.rel target = $region99
              $region104: #{forward.24} parent=96 // loop_exit
                _
            $region97: #{forward.24} parent=88 // pred_fallthru
              _
          $region89: #{forward.24} parent=84 // pred_fallthru
            _
          %612 = vnop
        $region85: #{forward.24} parent=76 // pred_fallthru
          _
      $region77: #{forward.24} parent=5 // pred_fallthru
        _
      %p613 = scmp.le.s32.totalorder 2, %s11
      // Predicated region
      $region123: #{forward.24} parent=5 // pred_check
        %p614 = pneg %p613
      $region124: #{forward.24} parent=5 // pred_check_branch
        %616 = sbr.rel (%p614) target = $region126
      $region125: #{forward.24} parent=5 // pred_region
        %s617 = ssub.s32 %s11, 2
        // Predicated region
        $region127: #{forward.24} parent=125 // pred_check
          %p618 = pneg %p150
        $region128: #{forward.24} parent=125 // pred_check_branch
          %620 = sbr.rel (%p618) target = $region130
        $region129: #{forward.24} parent=125 // pred_region
          %s621 = sand.u32 %s135, 1
          %s622 = sand.u32 %s135, 1
          %s623 = smul.addr %s622, 8
          %s624 = scalar_lea.vmem [#allocation3], %s623
        $region130: #{forward.24} parent=125 // pred_fallthru
          _
      $region126: #{forward.24} parent=5 // pred_fallthru
        _
    $region6: #{forward.24} parent=1 // loop_footer
      %s15 = sadd.s32 1, %s11
    $region7: #{forward.24} parent=1 // loop_footer_branch
      %10 = sbr.rel target = $region3
    $region8: #{forward.24} parent=1 // loop_exit
      _

// kernel: forward.27
$region0: #{forward.27}
  #allocation0 [shape = 'u32[]', space=smem, size = 0x4, offset = 0x4, fixed_abs, tag = 'smem constant byte address 0x4 - core index']
  #allocation1 [shape = 'u32[144,128]{1,0:T(1,128)}', space=vmem, size = 0x12000, scoped, tag = 'internal scratch']
  %s0 = inlined_call_operand.vmem [shape: bf16[16,256], index: 0, kind: input, shape index: {}]
  %s1 = inlined_call_operand.vmem [shape: bf16[32,256], index: 1, kind: input, shape index: {}]
  %s2 = inlined_call_operand.vmem [shape: bf16[16,32], index: 2, kind: input, shape index: {}]
  %s3 = inlined_call_operand.vmem [shape: bf16[128,128], index: 3, kind: input, shape index: {}]
  %s4 = inlined_call_operand.vmem [shape: bf16[128,128], index: 4, kind: input, shape index: {}]
  %s5 = inlined_call_operand.vmem [shape: f32[1,128], index: 5, kind: input, shape index: {}]
  %s6 = inlined_call_operand.vmem [shape: bf16[128,128], index: 6, kind: input, shape index: {}]
  %s7 = inlined_call_operand.vmem [shape: f32[1,128], index: 7, kind: input, shape index: {}]
  %s8 = inlined_call_operand.vmem [shape: bf16[16,256], index: 8, kind: output, shape index: {}]
  %s9 = sld [smem:[#allocation0]]
  $region184: #{forward.27} parent=0
    _
  %s11 = ssub.s32 1, %s9
  %s12 = scalar_select 0, %s11, %s9
  $region1: #{forward.27} parent=0
    #allocation2 [shape = 'u8[8192]{0}', space=vmem, size = 0x2000, scoped, tag = 'input window, operand 0']
    #allocation3 [shape = 'u8[16384]{0}', space=vmem, size = 0x4000, scoped, tag = 'input window, operand 1']
    #allocation4 [shape = 'u8[8192]{0}', space=vmem, size = 0x2000, scoped, tag = 'output window, operand 0']
    loop: start=0, step=1, limit=4
    $region2: #{forward.27} parent=1 // loop_pre_header
      _
    $region3: #{forward.27} parent=1 // loop_header
      %s14 = sphi 0, %s18
      %p15 = scmp.ge.s32.totalorder %s14, 4
      %s24 = sphi 0, %s26
      %s27 = sphi 0, %s24
      %s28 = sphi 0, %s27
      %s44 = sphi 0, %s28
      %s50 = sphi 0, %s52
      %s53 = sphi 0, %s50
      %s54 = sphi 0, %s53
      %s70 = sphi 0, %s54
      %s74 = sphi 0, %s74
      %s76 = sphi 0, %s74
      %s77 = sphi 0, %s76
      %s91 = sphi 0, %s77
      %s95 = sphi 0, %s95
      %s97 = sphi 0, %s95
      %s98 = sphi 0, %s97
      %s112 = sphi 0, %s98
      %s116 = sphi 0, %s116
      %s118 = sphi 0, %s116
      %s119 = sphi 0, %s118
      %s133 = sphi 0, %s119
      %s137 = sphi 0, %s137
      %s139 = sphi 0, %s137
      %s140 = sphi 0, %s139
      %s154 = sphi 0, %s140
      %s158 = sphi 0, %s158
      %s160 = sphi 0, %s158
      %s161 = sphi 0, %s160
      %s175 = sphi 0, %s161
      %s179 = sphi 0, %s179
      %s181 = sphi 0, %s179
      %s182 = sphi 0, %s181
      %s196 = sphi 0, %s182
      %s202 = sphi 0, %s204
      %s205 = sphi 0, %s202
      %s206 = sphi 0, %s205
      %s222 = sphi 0, %s206
    $region4: #{forward.27} parent=1 // loop_header_branch
      %17 = sbr.rel (%p15) target = $region8
    $region5: #{forward.27} parent=1 // loop_body
      %s19 = ssub.s32 %s14, 1
      %s20 = ssub.s32 %s14, 2
      %s21 = sadd.s32 %s14, 1
      %s22 = ssub.s32 %s14, %s21
      %p23 = scmp.eq.s32.totalorder %s22, 0
      %s25 = sadd.s32 %s24, 1
      %s26 = scalar_select %p23, %s24, %s25
      %p29 = pneg %p23
      %p30 = scmp.eq.s32.totalorder %s14, 1
      %p31 = por %p29, %p30
      %p32 = scmp.ne.s32.totalorder %s24, %s27
      %p33 = scmp.eq.s32.totalorder %s14, 0
      %p34 = por %p32, %p33
      %p35 = scmp.ne.s32.totalorder %s24, %s27
      %p36 = scmp.eq.s32.totalorder %s19, 1
      %p37 = por %p35, %p36
      %p38 = scmp.ne.s32.totalorder %s27, %s28
      %p39 = scmp.eq.s32.totalorder %s19, 0
      %p40 = por %p38, %p39
      %p41 = scmp.ne.s32.totalorder %s27, %s28
      %p42 = scmp.eq.s32.totalorder %s20, 1
      %p43 = por %p41, %p42
      %p45 = scmp.ne.s32.totalorder %s28, %s44
      %p46 = scmp.eq.s32.totalorder %s20, 0
      %p47 = por %p45, %p46
      %s48 = ssub.s32 %s14, %s21
      %p49 = scmp.eq.s32.totalorder %s48, 0
      %s51 = sadd.s32 %s50, 1
      %s52 = scalar_select %p49, %s50, %s51
      %p55 = pneg %p49
      %p56 = scmp.eq.s32.totalorder %s14, 1
      %p57 = por %p55, %p56
      %p58 = scmp.ne.s32.totalorder %s50, %s53
      %p59 = scmp.eq.s32.totalorder %s14, 0
      %p60 = por %p58, %p59
      %p61 = scmp.ne.s32.totalorder %s50, %s53
      %p62 = scmp.eq.s32.totalorder %s19, 1
      %p63 = por %p61, %p62
      %p64 = scmp.ne.s32.totalorder %s53, %s54
      %p65 = scmp.eq.s32.totalorder %s19, 0
      %p66 = por %p64, %p65
      %p67 = scmp.ne.s32.totalorder %s53, %s54
      %p68 = scmp.eq.s32.totalorder %s20, 1
      %p69 = por %p67, %p68
      %p71 = scmp.ne.s32.totalorder %s54, %s70
      %p72 = scmp.eq.s32.totalorder %s20, 0
      %p73 = por %p71, %p72
      %s75 = sadd.s32 %s74, 1
      %p78 = scmp.eq.s32.totalorder %s14, 1
      %p79 = scmp.ne.s32.totalorder %s74, %s76
      %p80 = scmp.eq.s32.totalorder %s14, 0
      %p81 = por %p79, %p80
      %p82 = scmp.ne.s32.totalorder %s74, %s76
      %p83 = scmp.eq.s32.totalorder %s19, 1
      %p84 = por %p82, %p83
      %p85 = scmp.ne.s32.totalorder %s76, %s77
      %p86 = scmp.eq.s32.totalorder %s19, 0
      %p87 = por %p85, %p86
      %p88 = scmp.ne.s32.totalorder %s76, %s77
      %p89 = scmp.eq.s32.totalorder %s20, 1
      %p90 = por %p88, %p89
      %p92 = scmp.ne.s32.totalorder %s77, %s91
      %p93 = scmp.eq.s32.totalorder %s20, 0
      %p94 = por %p92, %p93
      %s96 = sadd.s32 %s95, 1
      %p99 = scmp.eq.s32.totalorder %s14, 1
      %p100 = scmp.ne.s32.totalorder %s95, %s97
      %p101 = scmp.eq.s32.totalorder %s14, 0
      %p102 = por %p100, %p101
      %p103 = scmp.ne.s32.totalorder %s95, %s97
      %p104 = scmp.eq.s32.totalorder %s19, 1
      %p105 = por %p103, %p104
      %p106 = scmp.ne.s32.totalorder %s97, %s98
      %p107 = scmp.eq.s32.totalorder %s19, 0
      %p108 = por %p106, %p107
      %p109 = scmp.ne.s32.totalorder %s97, %s98
      %p110 = scmp.eq.s32.totalorder %s20, 1
      %p111 = por %p109, %p110
      %p113 = scmp.ne.s32.totalorder %s98, %s112
      %p114 = scmp.eq.s32.totalorder %s20, 0
      %p115 = por %p113, %p114
      %s117 = sadd.s32 %s116, 1
      %p120 = scmp.eq.s32.totalorder %s14, 1
      %p121 = scmp.ne.s32.totalorder %s116, %s118
      %p122 = scmp.eq.s32.totalorder %s14, 0
      %p123 = por %p121, %p122
      %p124 = scmp.ne.s32.totalorder %s116, %s118
      %p125 = scmp.eq.s32.totalorder %s19, 1
      %p126 = por %p124, %p125
      %p127 = scmp.ne.s32.totalorder %s118, %s119
      %p128 = scmp.eq.s32.totalorder %s19, 0
      %p129 = por %p127, %p128
      %p130 = scmp.ne.s32.totalorder %s118, %s119
      %p131 = scmp.eq.s32.totalorder %s20, 1
      %p132 = por %p130, %p131
      %p134 = scmp.ne.s32.totalorder %s119, %s133
      %p135 = scmp.eq.s32.totalorder %s20, 0
      %p136 = por %p134, %p135
      %s138 = sadd.s32 %s137, 1
      %p141 = scmp.eq.s32.totalorder %s14, 1
      %p142 = scmp.ne.s32.totalorder %s137, %s139
      %p143 = scmp.eq.s32.totalorder %s14, 0
      %p144 = por %p142, %p143
      %p145 = scmp.ne.s32.totalorder %s137, %s139
      %p146 = scmp.eq.s32.totalorder %s19, 1
      %p147 = por %p145, %p146
      %p148 = scmp.ne.s32.totalorder %s139, %s140
      %p149 = scmp.eq.s32.totalorder %s19, 0
      %p150 = por %p148, %p149
      %p151 = scmp.ne.s32.totalorder %s139, %s140
      %p152 = scmp.eq.s32.totalorder %s20, 1
      %p153 = por %p151, %p152
      %p155 = scmp.ne.s32.totalorder %s140, %s154
      %p156 = scmp.eq.s32.totalorder %s20, 0
      %p157 = por %p155, %p156
      %s159 = sadd.s32 %s158, 1
      %p162 = scmp.eq.s32.totalorder %s14, 1
      %p163 = scmp.ne.s32.totalorder %s158, %s160
      %p164 = scmp.eq.s32.totalorder %s14, 0
      %p165 = por %p163, %p164
      %p166 = scmp.ne.s32.totalorder %s158, %s160
      %p167 = scmp.eq.s32.totalorder %s19, 1
      %p168 = por %p166, %p167
      %p169 = scmp.ne.s32.totalorder %s160, %s161
      %p170 = scmp.eq.s32.totalorder %s19, 0
      %p171 = por %p169, %p170
      %p172 = scmp.ne.s32.totalorder %s160, %s161
      %p173 = scmp.eq.s32.totalorder %s20, 1
      %p174 = por %p172, %p173
      %p176 = scmp.ne.s32.totalorder %s161, %s175
      %p177 = scmp.eq.s32.totalorder %s20, 0
      %p178 = por %p176, %p177
      %s180 = sadd.s32 %s179, 1
      %p183 = scmp.eq.s32.totalorder %s14, 1
      %p184 = scmp.ne.s32.totalorder %s179, %s181
      %p185 = scmp.eq.s32.totalorder %s14, 0
      %p186 = por %p184, %p185
      %p187 = scmp.ne.s32.totalorder %s179, %s181
      %p188 = scmp.eq.s32.totalorder %s19, 1
      %p189 = por %p187, %p188
      %p190 = scmp.ne.s32.totalorder %s181, %s182
      %p191 = scmp.eq.s32.totalorder %s19, 0
      %p192 = por %p190, %p191
      %p193 = scmp.ne.s32.totalorder %s181, %s182
      %p194 = scmp.eq.s32.totalorder %s20, 1
      %p195 = por %p193, %p194
      %p197 = scmp.ne.s32.totalorder %s182, %s196
      %p198 = scmp.eq.s32.totalorder %s20, 0
      %p199 = por %p197, %p198
      %s200 = ssub.s32 %s14, %s21
      %p201 = scmp.eq.s32.totalorder %s200, 0
      %s203 = sadd.s32 %s202, 1
      %s204 = scalar_select %p201, %s202, %s203
      %p207 = pneg %p201
      %p208 = scmp.eq.s32.totalorder %s14, 1
      %p209 = por %p207, %p208
      %p210 = scmp.ne.s32.totalorder %s202, %s205
      %p211 = scmp.eq.s32.totalorder %s14, 0
      %p212 = por %p210, %p211
      %p213 = scmp.ne.s32.totalorder %s202, %s205
      %p214 = scmp.eq.s32.totalorder %s19, 1
      %p215 = por %p213, %p214
      %p216 = scmp.ne.s32.totalorder %s205, %s206
      %p217 = scmp.eq.s32.totalorder %s19, 0
      %p218 = por %p216, %p217
      %p219 = scmp.ne.s32.totalorder %s205, %s206
      %p220 = scmp.eq.s32.totalorder %s20, 1
      %p221 = por %p219, %p220
      %p223 = scmp.ne.s32.totalorder %s206, %s222
      %p224 = scmp.eq.s32.totalorder %s20, 0
      %p225 = por %p223, %p224
      %p226 = scmp.le.s32.totalorder 1, %s14
      %p227 = scmp.lt.s32.totalorder %s14, 3
      %p228 = pnand %p226, %p227
      %p229 = pneg %p228
      // Predicated region
      $region9: #{forward.27} parent=5 // pred_check
        _
      $region10: #{forward.27} parent=5 // pred_check_branch
        %231 = sbr.rel (%p228) target = $region12
      $region11: #{forward.27} parent=5 // pred_region
        %s232 = ssub.s32 %s14, 1
        // Predicated region
        $region13: #{forward.27} parent=11 // pred_check
          %p233 = pneg %p87
        $region14: #{forward.27} parent=11 // pred_check_branch
          %235 = sbr.rel (%p233) target = $region16
        $region15: #{forward.27} parent=11 // pred_region
          _
        $region16: #{forward.27} parent=11 // pred_fallthru
          _
        // Predicated region
        $region17: #{forward.27} parent=11 // pred_check
          %p236 = pneg %p108
        $region18: #{forward.27} parent=11 // pred_check_branch
          %238 = sbr.rel (%p236) target = $region20
        $region19: #{forward.27} parent=11 // pred_region
          _
        $region20: #{forward.27} parent=11 // pred_fallthru
          _
        // Predicated region
        $region21: #{forward.27} parent=11 // pred_check
          %p239 = pneg %p129
        $region22: #{forward.27} parent=11 // pred_check_branch
          %241 = sbr.rel (%p239) target = $region24
        $region23: #{forward.27} parent=11 // pred_region
          _
        $region24: #{forward.27} parent=11 // pred_fallthru
          _
        // Predicated region
        $region25: #{forward.27} parent=11 // pred_check
          %p242 = pneg %p150
        $region26: #{forward.27} parent=11 // pred_check_branch
          %244 = sbr.rel (%p242) target = $region28
        $region27: #{forward.27} parent=11 // pred_region
          _
        $region28: #{forward.27} parent=11 // pred_fallthru
          _
        // Predicated region
        $region29: #{forward.27} parent=11 // pred_check
          %p245 = pneg %p171
        $region30: #{forward.27} parent=11 // pred_check_branch
          %247 = sbr.rel (%p245) target = $region32
        $region31: #{forward.27} parent=11 // pred_region
          _
        $region32: #{forward.27} parent=11 // pred_fallthru
          _
        // Predicated region
        $region33: #{forward.27} parent=11 // pred_check
          %p248 = pneg %p192
        $region34: #{forward.27} parent=11 // pred_check_branch
          %250 = sbr.rel (%p248) target = $region36
        $region35: #{forward.27} parent=11 // pred_region
          _
        $region36: #{forward.27} parent=11 // pred_fallthru
          _
      $region12: #{forward.27} parent=5 // pred_fallthru
        _
      %p251 = scmp.lt.s32.totalorder %s14, 2
      // Predicated region
      $region37: #{forward.27} parent=5 // pred_check
        %p252 = pneg %p251
      $region38: #{forward.27} parent=5 // pred_check_branch
        %254 = sbr.rel (%p252) target = $region40
      $region39: #{forward.27} parent=5 // pred_region
        // Predicated region
        $region41: #{forward.27} parent=39 // pred_check
          %p255 = pneg %p34
        $region42: #{forward.27} parent=39 // pred_check_branch
          %257 = sbr.rel (%p255) target = $region44
        $region43: #{forward.27} parent=39 // pred_region
          %s258 = sand.u32 %s24, 1
          %s259 = sand.u32 %s24, 1
          %s260 = smul.addr %s259, 8
          %s261 = scalar_lea.vmem [#allocation2], %s260
          %s262 = smul.addr %s14, 4
          %s263 = scalar_lea.vmem %s0, %s262
          // Predicated region
          $region45: #{forward.27} parent=43 // pred_check
            _
          $region46: #{forward.27} parent=43 // pred_check_branch
            %265 = sbr.rel (0) target = $region48
          $region47: #{forward.27} parent=43 // pred_region
            // Predicated region
            $region49: #{forward.27} parent=47 // pred_check
              _
            $region50: #{forward.27} parent=47 // pred_check_branch
              %267 = sbr.rel target = $region52
            $region51: #{forward.27} parent=47 // pred_region
              // Predicated region
              $region64: #{forward.27} parent=51 // pred_check
                _
              $region65: #{forward.27} parent=51 // pred_check_branch
                %285 = sbr.rel (0) target = $region67
              $region66: #{forward.27} parent=51 // pred_region
                loop: start=0, step=1, limit=1
                $region68: #{forward.27} parent=66 // loop_pre_header
                  _
                $region69: #{forward.27} parent=66 // loop_header
                  %s287 = sphi 0, %s291
                  %p288 = scmp.ge.s32.totalorder %s287, 1
                  %s292 = sphi %s263, %s263
                  %s293 = sphi %s261, %s261
                $region70: #{forward.27} parent=66 // loop_header_branch
                  %290 = sbr.rel (%p288) target = $region74
                $region71: #{forward.27} parent=66 // loop_body
                  _
                $region72: #{forward.27} parent=66 // loop_footer
                  %s291 = sadd.s32 1, %s287
                $region73: #{forward.27} parent=66 // loop_footer_branch
                  %286 = sbr.rel target = $region69
                $region74: #{forward.27} parent=66 // loop_exit
                  _
                %s295 = ssub.s32 16, 1
                loop: start=0, step=1, limit=1
                $region75: #{forward.27} parent=66 // loop_pre_header
                  _
                $region76: #{forward.27} parent=66 // loop_header
                  %s297 = sphi 0, %s301
                  %p298 = scmp.ge.s32.totalorder %s297, 1
                  %s302 = sphi %s263, %s263
                  %s303 = sphi %s261, %s261
                $region77: #{forward.27} parent=66 // loop_header_branch
                  %300 = sbr.rel (%p298) target = $region81
                $region78: #{forward.27} parent=66 // loop_body
                  %v304 = vld [vmem:[%s302] sm:%s295]
                  %305 = vst [vmem:[%s303] sm:%s295] %v304
                  %v306 = vld [vmem:[%s302 + $0x8] sm:%s295]
                  %307 = vst [vmem:[%s303 + $0x4] sm:%s295] %v306
                $region79: #{forward.27} parent=66 // loop_footer
                  %s301 = sadd.s32 1, %s297
                $region80: #{forward.27} parent=66 // loop_footer_branch
                  %296 = sbr.rel target = $region76
                $region81: #{forward.27} parent=66 // loop_exit
                  _
              $region67: #{forward.27} parent=51 // pred_fallthru
                _
            $region52: #{forward.27} parent=47 // pred_fallthru
              _
            // Predicated region
            $region53: #{forward.27} parent=47 // pred_check
              _
            $region54: #{forward.27} parent=47 // pred_check_branch
              %269 = sbr.rel (0) target = $region56
            $region55: #{forward.27} parent=47 // pred_region
              %s271 = ssub.s32 16, 1
              loop: start=0, step=1, limit=1
              $region57: #{forward.27} parent=55 // loop_pre_header
                _
              $region58: #{forward.27} parent=55 // loop_header
                %s273 = sphi 0, %s277
                %p274 = scmp.ge.s32.totalorder %s273, 1
                %s278 = sphi %s263, %s263
                %s279 = sphi %s261, %s261
              $region59: #{forward.27} parent=55 // loop_header_branch
                %276 = sbr.rel (%p274) target = $region63
              $region60: #{forward.27} parent=55 // loop_body
                %v280 = vld [vmem:[%s278] sm:%s271]
                %281 = vst [vmem:[%s279] sm:%s271] %v280
                %v282 = vld [vmem:[%s278 + $0x8] sm:%s271]
                %283 = vst [vmem:[%s279 + $0x4] sm:%s271] %v282
              $region61: #{forward.27} parent=55 // loop_footer
                %s277 = sadd.s32 1, %s273
              $region62: #{forward.27} parent=55 // loop_footer_branch
                %272 = sbr.rel target = $region58
              $region63: #{forward.27} parent=55 // loop_exit
                _
            $region56: #{forward.27} parent=47 // pred_fallthru
              _
          $region48: #{forward.27} parent=43 // pred_fallthru
            _
          %308 = vnop
        $region44: #{forward.27} parent=39 // pred_fallthru
          _
        // Predicated region
        $region82: #{forward.27} parent=39 // pred_check
          %p309 = pneg %p60
        $region83: #{forward.27} parent=39 // pred_check_branch
          %311 = sbr.rel (%p309) target = $region85
        $region84: #{forward.27} parent=39 // pred_region
          %s312 = sand.u32 %s50, 1
          %s313 = sand.u32 %s50, 1
          %s314 = smul.addr %s313, 16
          %s315 = scalar_lea.vmem [#allocation3], %s314
          %s316 = smul.addr %s14, 4
          %s317 = scalar_lea.vmem %s1, %s316
          // Predicated region
          $region86: #{forward.27} parent=84 // pred_check
            _
          $region87: #{forward.27} parent=84 // pred_check_branch
            %319 = sbr.rel (0) target = $region89
          $region88: #{forward.27} parent=84 // pred_region
            // Predicated region
            $region90: #{forward.27} parent=88 // pred_check
              _
            $region91: #{forward.27} parent=88 // pred_check_branch
              %321 = sbr.rel target = $region93
            $region92: #{forward.27} parent=88 // pred_region
              // Predicated region
              $region105: #{forward.27} parent=92 // pred_check
                _
              $region106: #{forward.27} parent=92 // pred_check_branch
                %343 = sbr.rel (0) target = $region108
              $region107: #{forward.27} parent=92 // pred_region
                loop: start=0, step=1, limit=1
                $region109: #{forward.27} parent=107 // loop_pre_header
                  _
                $region110: #{forward.27} parent=107 // loop_header
                  %s345 = sphi 0, %s349
                  %p346 = scmp.ge.s32.totalorder %s345, 1
                  %s350 = sphi %s317, %s317
                  %s351 = sphi %s315, %s315
                $region111: #{forward.27} parent=107 // loop_header_branch
                  %348 = sbr.rel (%p346) target = $region115
                $region112: #{forward.27} parent=107 // loop_body
                  _
                $region113: #{forward.27} parent=107 // loop_footer
                  %s349 = sadd.s32 1, %s345
                $region114: #{forward.27} parent=107 // loop_footer_branch
                  %344 = sbr.rel target = $region110
                $region115: #{forward.27} parent=107 // loop_exit
                  _
                %s353 = ssub.s32 16, 1
                loop: start=0, step=1, limit=1
                $region116: #{forward.27} parent=107 // loop_pre_header
                  _
                $region117: #{forward.27} parent=107 // loop_header
                  %s355 = sphi 0, %s359
                  %p356 = scmp.ge.s32.totalorder %s355, 1
                  %s360 = sphi %s317, %s317
                  %s361 = sphi %s315, %s315
                $region118: #{forward.27} parent=107 // loop_header_branch
                  %358 = sbr.rel (%p356) target = $region122
                $region119: #{forward.27} parent=107 // loop_body
                  %v362 = vld [vmem:[%s360] sm:%s353]
                  %363 = vst [vmem:[%s361] sm:%s353] %v362
                  %v364 = vld [vmem:[%s360 + $0x8] sm:%s353]
                  %365 = vst [vmem:[%s361 + $0x4] sm:%s353] %v364
                  %v366 = vld [vmem:[%s360 + $0x10] sm:%s353]
                  %367 = vst [vmem:[%s361 + $0x8] sm:%s353] %v366
                  %v368 = vld [vmem:[%s360 + $0x18] sm:%s353]
                  %369 = vst [vmem:[%s361 + $0xc] sm:%s353] %v368
                $region120: #{forward.27} parent=107 // loop_footer
                  %s359 = sadd.s32 1, %s355
                $region121: #{forward.27} parent=107 // loop_footer_branch
                  %354 = sbr.rel target = $region117
                $region122: #{forward.27} parent=107 // loop_exit
                  _
              $region108: #{forward.27} parent=92 // pred_fallthru
                _
            $region93: #{forward.27} parent=88 // pred_fallthru
              _
            // Predicated region
            $region94: #{forward.27} parent=88 // pred_check
              _
            $region95: #{forward.27} parent=88 // pred_check_branch
              %323 = sbr.rel (0) target = $region97
            $region96: #{forward.27} parent=88 // pred_region
              %s325 = ssub.s32 16, 1
              loop: start=0, step=1, limit=1
              $region98: #{forward.27} parent=96 // loop_pre_header
                _
              $region99: #{forward.27} parent=96 // loop_header
                %s327 = sphi 0, %s331
                %p328 = scmp.ge.s32.totalorder %s327, 1
                %s332 = sphi %s317, %s317
                %s333 = sphi %s315, %s315
              $region100: #{forward.27} parent=96 // loop_header_branch
                %330 = sbr.rel (%p328) target = $region104
              $region101: #{forward.27} parent=96 // loop_body
                %v334 = vld [vmem:[%s332] sm:%s325]
                %335 = vst [vmem:[%s333] sm:%s325] %v334
                %v336 = vld [vmem:[%s332 + $0x8] sm:%s325]
                %337 = vst [vmem:[%s333 + $0x4] sm:%s325] %v336
                %v338 = vld [vmem:[%s332 + $0x10] sm:%s325]
                %339 = vst [vmem:[%s333 + $0x8] sm:%s325] %v338
                %v340 = vld [vmem:[%s332 + $0x18] sm:%s325]
                %341 = vst [vmem:[%s333 + $0xc] sm:%s325] %v340
              $region102: #{forward.27} parent=96 // loop_footer
                %s331 = sadd.s32 1, %s327
              $region103: #{forward.27} parent=96 // loop_footer_branch
                %326 = sbr.rel target = $region99
              $region104: #{forward.27} parent=96 // loop_exit
                _
            $region97: #{forward.27} parent=88 // pred_fallthru
              _
          $region89: #{forward.27} parent=84 // pred_fallthru
            _
          %370 = vnop
        $region85: #{forward.27} parent=39 // pred_fallthru
          _
      $region40: #{forward.27} parent=5 // pred_fallthru
        _
      %p371 = scmp.le.s32.totalorder 1, %s14
      %p372 = scmp.lt.s32.totalorder %s14, 3
      %p373 = pnand %p371, %p372
      %p374 = pneg %p373
      // Predicated region
      $region123: #{forward.27} parent=5 // pred_check
        _
      $region124: #{forward.27} parent=5 // pred_check_branch
        %376 = sbr.rel (%p373) target = $region126
      $region125: #{forward.27} parent=5 // pred_region
        %s377 = ssub.s32 %s14, 1
        %s378 = sand.u32 %s27, 1
        %s379 = sand.u32 %s27, 1
        %s380 = smul.addr %s379, 8
        %s381 = scalar_lea.vmem [#allocation2], %s380
        // Predicated region
        $region127: #{forward.27} parent=125 // pred_check
          %p382 = pneg %p40
        $region128: #{forward.27} parent=125 // pred_check_branch
          %384 = sbr.rel (%p382) target = $region130
        $region129: #{forward.27} parent=125 // pred_region
          _
        $region130: #{forward.27} parent=125 // pred_fallthru
          _
        %s385 = sand.u32 %s53, 1
        %s386 = sand.u32 %s53, 1
        %s387 = smul.addr %s386, 16
        %s388 = scalar_lea.vmem [#allocation3], %s387
        // Predicated region
        $region131: #{forward.27} parent=125 // pred_check
          %p389 = pneg %p66
        $region132: #{forward.27} parent=125 // pred_check_branch
          %391 = sbr.rel (%p389) target = $region134
        $region133: #{forward.27} parent=125 // pred_region
          _
        $region134: #{forward.27} parent=125 // pred_fallthru
          _
        %s392 = sand.u32 %s27, 1
        %s393 = sand.u32 %s27, 1
        %s394 = smul.addr %s393, 8
        %s395 = scalar_lea.vmem [#allocation2], %s394
        %p396 = pneg %p40
        %p397 = pneg %p37
        %s398 = sand.u32 %s53, 1
        %s399 = sand.u32 %s53, 1
        %s400 = smul.addr %s399, 16
        %s401 = scalar_lea.vmem [#allocation3], %s400
        %p402 = pneg %p66
        %p403 = pneg %p63
        %p404 = pneg %p87
        %p405 = pneg %p84
        %p406 = pneg %p108
        %p407 = pneg %p105
        %p408 = pneg %p129
        %p409 = pneg %p126
        %p410 = pneg %p150
        %p411 = pneg %p147
        %p412 = pneg %p171
        %p413 = pneg %p168
        %p414 = pneg %p192
        %p415 = pneg %p189
        %p416 = pneg %p218
        %p417 = pneg %p215
        %s418 = sand.u32 %s205, 1
        %s419 = sand.u32 %s205, 1
        %s420 = smul.addr %s419, 8
        %s421 = scalar_lea.vmem [#allocation4], %s420
        %v423 = vld [vmem:[%s2] sm:$0xf]
        %v424 = vld [vmem:[%s2 + $0x4] sm:$0xf]
        %v425 = vld [vmem:[%s388] sm:$0xf]
        %v426 = vld [vmem:[%s388 + $0x4] sm:$0xf]
        %v427 = vld [vmem:[%s388 + $0x8] sm:$0xf]
        %v428 = vld [vmem:[%s388 + $0xc] sm:$0xf]
        %v431 = vunpack.c.l.b16 %v423
        %v432 = vunpack.c.l.b16 %v424
        %v433 = vpack.c.b16 %v432, %v431
        %v438 = vunpack.c.l.b16 %v425
        %v439 = vunpack.c.l.b16 %v426
        %v440 = vunpack.c.l.b16 %v427
        %v441 = vunpack.c.l.b16 %v428
        %v442 = vpack.c.b16 %v439, %v438
        %v443 = vpack.c.b16 %v441, %v440
        %vm446 = vcmask 261120
        %v448 = vsel %vm446, %v433, 0
        %450 = vmatprep.subr.bf16.mxu0 0
        %451 = vmatpush1.bf16.msra.mxu0 0
        %452 = vmatprep.subr.bf16.mxu0 0
        %453 = vmatpush1.bf16.msra.mxu0 0
        %454 = vmatprep.subr.bf16.mxu0 0
        %455 = vmatpush1.bf16.msra.mxu0 0
        %456 = vmatprep.subr.bf16.mxu0 0
        %457 = vmatpush1.bf16.msra.mxu0 0
        %458 = vmatprep.subr.bf16.mxu0 0
        %459 = vmatpush1.bf16.msra.mxu0 0
        %460 = vmatprep.subr.bf16.mxu0 0
        %461 = vmatpush1.bf16.msra.mxu0 0
        %462 = vmatprep.subr.bf16.mxu0 0
        %463 = vmatpush1.bf16.msra.mxu0 %v443
        %464 = vmatprep.subr.bf16.mxu0 0
        %465 = vmatpush1.bf16.msra.mxu0 %v442
        %466 = vmatprep.subr.bf16.mxu0 0
        %467 = vmatpush2.bf16.msra.mxu0 0
        %468 = vmatprep.subr.bf16.mxu0 0
        %469 = vmatpush2.bf16.msra.mxu0 0
        %470 = vmatprep.subr.bf16.mxu0 0
        %471 = vmatpush2.bf16.msra.mxu0 0
        %472 = vmatprep.subr.bf16.mxu0 0
        %473 = vmatpush2.bf16.msra.mxu0 0
        %474 = vmatprep.subr.bf16.mxu0 0
        %475 = vmatpush2.bf16.msra.mxu0 0
        %476 = vmatprep.subr.bf16.mxu0 0
        %477 = vmatpush2.bf16.msra.mxu0 0
        %478 = vmatprep.subr.bf16.mxu0 0
        %479 = vmatpush2.bf16.msra.mxu0 0
        %480 = vmatprep.subr.bf16.mxu0 0
        %481 = vmatpush2.bf16.msra.mxu0 0
        %482 = vmatprep.mubr.bf16.mxu0 0
        %483 = vmatmul.mubr.bf16.gmra.mxu0 %v448
        %v484 = vpop.f32.mrf.mxu0
        %v485 = vadd.f32 0.0, %v484
        %v486 = vpop.f32.mrf.mxu0
        %v487 = vpop.f32.mrf.mxu0
        %v488 = vadd.f32 0.0, %v487
        %v489 = vpop.f32.mrf.mxu0
        %490 = vdwg.mxu0
        %v491 = vld [vmem:[%s381] sm:$0xf]
        %v492 = vld [vmem:[%s381 + $0x4] sm:$0xf]
        %v493 = vld [vmem:[%s3] sm:$0xf]
        %v494 = vld [vmem:[%s3 + $0x4] sm:$0xf]
        %v495 = vld [vmem:[%s3 + $0x8] sm:$0xf]
        %v496 = vld [vmem:[%s3 + $0xc] sm:$0xf]
        %v497 = vld [vmem:[%s3 + $0x10] sm:$0xf]
        %v498 = vld [vmem:[%s3 + $0x14] sm:$0xf]
        %v499 = vld [vmem:[%s3 + $0x18] sm:$0xf]
        %v500 = vld [vmem:[%s3 + $0x1c] sm:$0xf]
        %v501 = vld [vmem:[%s3 + $0x20] sm:$0xf]
        %v502 = vld [vmem:[%s3 + $0x24] sm:$0xf]
        %v503 = vld [vmem:[%s3 + $0x28] sm:$0xf]
        %v504 = vld [vmem:[%s3 + $0x2c] sm:$0xf]
        %v505 = vld [vmem:[%s3 + $0x30] sm:$0xf]
        %v506 = vld [vmem:[%s3 + $0x34] sm:$0xf]
        %v507 = vld [vmem:[%s3 + $0x38] sm:$0xf]
        %v508 = vld [vmem:[%s3 + $0x3c] sm:$0xf]
        %v509 = vld [vmem:[%s4] sm:$0xf]
        %v510 = vld [vmem:[%s4 + $0x4] sm:$0xf]
        %v511 = vld [vmem:[%s4 + $0x8] sm:$0xf]
        %v512 = vld [vmem:[%s4 + $0xc] sm:$0xf]
        %v513 = vld [vmem:[%s4 + $0x10] sm:$0xf]
        %v514 = vld [vmem:[%s4 + $0x14] sm:$0xf]
        %v515 = vld [vmem:[%s4 + $0x18] sm:$0xf]
        %v516 = vld [vmem:[%s4 + $0x1c] sm:$0xf]
        %v517 = vld [vmem:[%s4 + $0x20] sm:$0xf]
        %v518 = vld [vmem:[%s4 + $0x24] sm:$0xf]
        %v519 = vld [vmem:[%s4 + $0x28] sm:$0xf]
        %v520 = vld [vmem:[%s4 + $0x2c] sm:$0xf]
        %v521 = vld [vmem:[%s4 + $0x30] sm:$0xf]
        %v522 = vld [vmem:[%s4 + $0x34] sm:$0xf]
        %v523 = vld [vmem:[%s4 + $0x38] sm:$0xf]
        %v524 = vld [vmem:[%s4 + $0x3c] sm:$0xf]
        %v525 = vld [vmem:[%s6] sm:$0xf]
        %v526 = vld [vmem:[%s6 + $0x4] sm:$0xf]
        %v527 = vld [vmem:[%s6 + $0x8] sm:$0xf]
        %v528 = vld [vmem:[%s6 + $0xc] sm:$0xf]
        %v529 = vld [vmem:[%s6 + $0x10] sm:$0xf]
        %v530 = vld [vmem:[%s6 + $0x14] sm:$0xf]
        %v531 = vld [vmem:[%s6 + $0x18] sm:$0xf]
        %v532 = vld [vmem:[%s6 + $0x1c] sm:$0xf]
        %v533 = vld [vmem:[%s6 + $0x20] sm:$0xf]
        %v534 = vld [vmem:[%s6 + $0x24] sm:$0xf]
        %v535 = vld [vmem:[%s6 + $0x28] sm:$0xf]
        %v536 = vld [vmem:[%s6 + $0x2c] sm:$0xf]
        %v537 = vld [vmem:[%s6 + $0x30] sm:$0xf]
        %v538 = vld [vmem:[%s6 + $0x34] sm:$0xf]
        %v539 = vld [vmem:[%s6 + $0x38] sm:$0xf]
        %v540 = vld [vmem:[%s6 + $0x3c] sm:$0xf]
        %v541 = vld [vmem:[%s5] sm:$0x1]
        %v542 = vld [vmem:[%s7] sm:$0x1]
        %v543 = vpack.c.bf16 %v488, %v485
        %v560 = vunpack.c.l.b16 %v509
        %v561 = vunpack.c.l.b16 %v510
        %v562 = vunpack.c.l.b16 %v511
        %v563 = vunpack.c.l.b16 %v512
        %v564 = vunpack.c.l.b16 %v513
        %v565 = vunpack.c.l.b16 %v514
        %v566 = vunpack.c.l.b16 %v515
        %v567 = vunpack.c.l.b16 %v516
        %v568 = vunpack.c.l.b16 %v517
        %v569 = vunpack.c.l.b16 %v518
        %v570 = vunpack.c.l.b16 %v519
        %v571 = vunpack.c.l.b16 %v520
        %v572 = vunpack.c.l.b16 %v521
        %v573 = vunpack.c.l.b16 %v522
        %v574 = vunpack.c.l.b16 %v523
        %v575 = vunpack.c.l.b16 %v524
        %v576 = vpack.c.b16 %v561, %v560
        %v577 = vpack.c.b16 %v563, %v562
        %v578 = vpack.c.b16 %v565, %v564
        %v579 = vpack.c.b16 %v567, %v566
        %v580 = vpack.c.b16 %v569, %v568
        %v581 = vpack.c.b16 %v571, %v570
        %v582 = vpack.c.b16 %v573, %v572
        %v583 = vpack.c.b16 %v575, %v574
        %592 = vmatprep.subr.bf16.mxu0 0
        %593 = vmatpush1.bf16.msra.mxu0 %v583
        %594 = vmatprep.subr.bf16.mxu0 0
        %595 = vmatpush1.bf16.msra.mxu0 %v582
        %596 = vmatprep.subr.bf16.mxu0 0
        %597 = vmatpush1.bf16.msra.mxu0 %v581
        %598 = vmatprep.subr.bf16.mxu0 0
        %599 = vmatpush1.bf16.msra.mxu0 %v580
        %600 = vmatprep.subr.bf16.mxu0 0
        %601 = vmatpush1.bf16.msra.mxu0 %v579
        %602 = vmatprep.subr.bf16.mxu0 0
        %603 = vmatpush1.bf16.msra.mxu0 %v578
        %604 = vmatprep.subr.bf16.mxu0 0
        %605 = vmatpush1.bf16.msra.mxu0 %v577
        %606 = vmatprep.subr.bf16.mxu0 0
        %607 = vmatpush1.bf16.msra.mxu0 %v576
        %608 = vmatprep.subr.bf16.mxu0 0
        %609 = vmatpush2.bf16.msra.mxu0 0
        %610 = vmatprep.subr.bf16.mxu0 0
        %611 = vmatpush2.bf16.msra.mxu0 0
        %612 = vmatprep.subr.bf16.mxu0 0
        %613 = vmatpush2.bf16.msra.mxu0 0
        %614 = vmatprep.subr.bf16.mxu0 0
        %615 = vmatpush2.bf16.msra.mxu0 0
        %616 = vmatprep.subr.bf16.mxu0 0
        %617 = vmatpush2.bf16.msra.mxu0 0
        %618 = vmatprep.subr.bf16.mxu0 0
        %619 = vmatpush2.bf16.msra.mxu0 0
        %620 = vmatprep.subr.bf16.mxu0 0
        %621 = vmatpush2.bf16.msra.mxu0 0
        %622 = vmatprep.subr.bf16.mxu0 0
        %623 = vmatpush2.bf16.msra.mxu0 0
        %624 = vmatprep.mubr.bf16.mxu0 0
        %625 = vmatmul.mubr.bf16.gmra.mxu0 %v543
        %v626 = vpop.f32.mrf.mxu0
        %v627 = vadd.f32 0.0, %v626
        %v628 = vpop.f32.mrf.mxu0
        %v629 = vpop.f32.mrf.mxu0
        %v630 = vadd.f32 0.0, %v629
        %v631 = vpop.f32.mrf.mxu0
        %632 = vdwg.mxu0
        %v635 = vunpack.c.l.b16 %v491
        %v636 = vunpack.c.l.b16 %v492
        %v637 = vpack.c.b16 %v636, %v635
        %v655 = vunpack.c.l.b16 %v493
        %v656 = vunpack.c.l.b16 %v494
        %v657 = vunpack.c.l.b16 %v495
        %v658 = vunpack.c.l.b16 %v496
        %v659 = vunpack.c.l.b16 %v497
        %v660 = vunpack.c.l.b16 %v498
        %v661 = vunpack.c.l.b16 %v499
        %v662 = vunpack.c.l.b16 %v500
        %v663 = vunpack.c.l.b16 %v501
        %v664 = vunpack.c.l.b16 %v502
        %v665 = vunpack.c.l.b16 %v503
        %v666 = vunpack.c.l.b16 %v504
        %v667 = vunpack.c.l.b16 %v505
        %v668 = vunpack.c.l.b16 %v506
        %v669 = vunpack.c.l.b16 %v507
        %v670 = vunpack.c.l.b16 %v508
        %v671 = vpack.c.b16 %v656, %v655
        %v672 = vpack.c.b16 %v658, %v657
        %v673 = vpack.c.b16 %v660, %v659
        %v674 = vpack.c.b16 %v662, %v661
        %v675 = vpack.c.b16 %v664, %v663
        %v676 = vpack.c.b16 %v666, %v665
        %v677 = vpack.c.b16 %v668, %v667
        %v678 = vpack.c.b16 %v670, %v669
        %687 = vmatprep.subr.bf16.mxu0 0
        %688 = vmatpush1.bf16.msra.mxu0 %v678
        %689 = vmatprep.subr.bf16.mxu0 0
        %690 = vmatpush1.bf16.msra.mxu0 %v677
        %691 = vmatprep.subr.bf16.mxu0 0
        %692 = vmatpush1.bf16.msra.mxu0 %v676
        %693 = vmatprep.subr.bf16.mxu0 0
        %694 = vmatpush1.bf16.msra.mxu0 %v675
        %695 = vmatprep.subr.bf16.mxu0 0
        %696 = vmatpush1.bf16.msra.mxu0 %v674
        %697 = vmatprep.subr.bf16.mxu0 0
        %698 = vmatpush1.bf16.msra.mxu0 %v673
        %699 = vmatprep.subr.bf16.mxu0 0
        %700 = vmatpush1.bf16.msra.mxu0 %v672
        %701 = vmatprep.subr.bf16.mxu0 0
        %702 = vmatpush1.bf16.msra.mxu0 %v671
        %703 = vmatprep.subr.bf16.mxu0 0
        %704 = vmatpush2.bf16.msra.mxu0 0
        %705 = vmatprep.subr.bf16.mxu0 0
        %706 = vmatpush2.bf16.msra.mxu0 0
        %707 = vmatprep.subr.bf16.mxu0 0
        %708 = vmatpush2.bf16.msra.mxu0 0
        %709 = vmatprep.subr.bf16.mxu0 0
        %710 = vmatpush2.bf16.msra.mxu0 0
        %711 = vmatprep.subr.bf16.mxu0 0
        %712 = vmatpush2.bf16.msra.mxu0 0
        %713 = vmatprep.subr.bf16.mxu0 0
        %714 = vmatpush2.bf16.msra.mxu0 0
        %715 = vmatprep.subr.bf16.mxu0 0
        %716 = vmatpush2.bf16.msra.mxu0 0
        %717 = vmatprep.subr.bf16.mxu0 0
        %718 = vmatpush2.bf16.msra.mxu0 0
        %719 = vmatprep.mubr.bf16.mxu0 0
        %720 = vmatmul.mubr.bf16.gmra.mxu0 %v637
        %v721 = vpop.f32.mrf.mxu0
        %v722 = vadd.f32 %v627, %v721
        %v723 = vpop.f32.mrf.mxu0
        %v724 = vpop.f32.mrf.mxu0
        %v725 = vadd.f32 %v630, %v724
        %v726 = vpop.f32.mrf.mxu0
        %727 = vdwg.mxu0
        %v729 = vlaneseq
        %v730 = vshrl.u32 %v729, 7
        %v731 = vsub.s32 0, %v730
        %v732 = vrot.slane %v541, %v731
        %v734 = vadd.f32 %v722, %v732
        %v735 = vadd.f32 %v725, %v732
        %v736 = vmax.f32 %v734, 0.0
        %v737 = vmax.f32 %v735, 0.0
        %v738 = vpack.c.bf16 %v737, %v736
        %v740 = vlaneseq
        %v741 = vshrl.u32 %v740, 7
        %v742 = vsub.s32 0, %v741
        %v743 = vrot.slane %v542, %v742
        %v761 = vunpack.c.l.b16 %v525
        %v762 = vunpack.c.l.b16 %v526
        %v763 = vunpack.c.l.b16 %v527
        %v764 = vunpack.c.l.b16 %v528
        %v765 = vunpack.c.l.b16 %v529
        %v766 = vunpack.c.l.b16 %v530
        %v767 = vunpack.c.l.b16 %v531
        %v768 = vunpack.c.l.b16 %v532
        %v769 = vunpack.c.l.b16 %v533
        %v770 = vunpack.c.l.b16 %v534
        %v771 = vunpack.c.l.b16 %v535
        %v772 = vunpack.c.l.b16 %v536
        %v773 = vunpack.c.l.b16 %v537
        %v774 = vunpack.c.l.b16 %v538
        %v775 = vunpack.c.l.b16 %v539
        %v776 = vunpack.c.l.b16 %v540
        %v777 = vpack.c.b16 %v762, %v761
        %v778 = vpack.c.b16 %v764, %v763
        %v779 = vpack.c.b16 %v766, %v765
        %v780 = vpack.c.b16 %v768, %v767
        %v781 = vpack.c.b16 %v770, %v769
        %v782 = vpack.c.b16 %v772, %v771
        %v783 = vpack.c.b16 %v774, %v773
        %v784 = vpack.c.b16 %v776, %v775
        %793 = vmatprep.subr.bf16.mxu0 0
        %794 = vmatpush1.bf16.msra.mxu0 %v784
        %795 = vmatprep.subr.bf16.mxu0 0
        %796 = vmatpush1.bf16.msra.mxu0 %v783
        %797 = vmatprep.subr.bf16.mxu0 0
        %798 = vmatpush1.bf16.msra.mxu0 %v782
        %799 = vmatprep.subr.bf16.mxu0 0
        %800 = vmatpush1.bf16.msra.mxu0 %v781
        %801 = vmatprep.subr.bf16.mxu0 0
        %802 = vmatpush1.bf16.msra.mxu0 %v780
        %803 = vmatprep.subr.bf16.mxu0 0
        %804 = vmatpush1.bf16.msra.mxu0 %v779
        %805 = vmatprep.subr.bf16.mxu0 0
        %806 = vmatpush1.bf16.msra.mxu0 %v778
        %807 = vmatprep.subr.bf16.mxu0 0
        %808 = vmatpush1.bf16.msra.mxu0 %v777
        %809 = vmatprep.subr.bf16.mxu0 0
        %810 = vmatpush2.bf16.msra.mxu0 0
        %811 = vmatprep.subr.bf16.mxu0 0
        %812 = vmatpush2.bf16.msra.mxu0 0
        %813 = vmatprep.subr.bf16.mxu0 0
        %814 = vmatpush2.bf16.msra.mxu0 0
        %815 = vmatprep.subr.bf16.mxu0 0
        %816 = vmatpush2.bf16.msra.mxu0 0
        %817 = vmatprep.subr.bf16.mxu0 0
        %818 = vmatpush2.bf16.msra.mxu0 0
        %819 = vmatprep.subr.bf16.mxu0 0
        %820 = vmatpush2.bf16.msra.mxu0 0
        %821 = vmatprep.subr.bf16.mxu0 0
        %822 = vmatpush2.bf16.msra.mxu0 0
        %823 = vmatprep.subr.bf16.mxu0 0
        %824 = vmatpush2.bf16.msra.mxu0 0
        %825 = vmatprep.mubr.bf16.mxu0 0
        %826 = vmatmul.mubr.bf16.gmra.mxu0 %v738
        %v827 = vpop.f32.mrf.mxu0
        %v828 = vadd.f32 %v743, %v827
        %v829 = vpop.f32.mrf.mxu0
        %v830 = vpop.f32.mrf.mxu0
        %v831 = vadd.f32 %v743, %v830
        %v832 = vpop.f32.mrf.mxu0
        %833 = vdwg.mxu0
        %v834 = vmax.f32 %v828, 0.0
        %v835 = vmax.f32 %v831, 0.0
        %v836 = vpack.c.bf16 %v835, %v834
        %v838 = vunpack.c.l.b16 %v836
        %v839 = vunpack.c.h.b16 %v836
        %v840 = vpack.c.b16 %v838, %v838
        %v841 = vpack.c.b16 %v839, %v839
        %844 = vst [vmem:[%s421] sm:$0xf] %v840
        %845 = vst [vmem:[%s421 + $0x4] sm:$0xf] %v841
        %s846 = sand.u32 %s205, 1
        %s847 = sand.u32 %s205, 1
        %s848 = smul.addr %s847, 8
        %s849 = scalar_lea.vmem [#allocation4], %s848
        // Predicated region
        $region135: #{forward.27} parent=125 // pred_check
          %p850 = pneg %p215
        $region136: #{forward.27} parent=125 // pred_check_branch
          %852 = sbr.rel (%p850) target = $region138
        $region137: #{forward.27} parent=125 // pred_region
          %s853 = smul.addr %s19, 4
          %s854 = scalar_lea.vmem %s8, %s853
          // Predicated region
          $region139: #{forward.27} parent=137 // pred_check
            _
          $region140: #{forward.27} parent=137 // pred_check_branch
            %856 = sbr.rel (0) target = $region142
          $region141: #{forward.27} parent=137 // pred_region
            // Predicated region
            $region143: #{forward.27} parent=141 // pred_check
              _
            $region144: #{forward.27} parent=141 // pred_check_branch
              %858 = sbr.rel target = $region146
            $region145: #{forward.27} parent=141 // pred_region
              // Predicated region
              $region158: #{forward.27} parent=145 // pred_check
                _
              $region159: #{forward.27} parent=145 // pred_check_branch
                %876 = sbr.rel (0) target = $region161
              $region160: #{forward.27} parent=145 // pred_region
                loop: start=0, step=1, limit=1
                $region162: #{forward.27} parent=160 // loop_pre_header
                  _
                $region163: #{forward.27} parent=160 // loop_header
                  %s878 = sphi 0, %s882
                  %p879 = scmp.ge.s32.totalorder %s878, 1
                  %s883 = sphi %s849, %s849
                  %s884 = sphi %s854, %s854
                $region164: #{forward.27} parent=160 // loop_header_branch
                  %881 = sbr.rel (%p879) target = $region168
                $region165: #{forward.27} parent=160 // loop_body
                  _
                $region166: #{forward.27} parent=160 // loop_footer
                  %s882 = sadd.s32 1, %s878
                $region167: #{forward.27} parent=160 // loop_footer_branch
                  %877 = sbr.rel target = $region163
                $region168: #{forward.27} parent=160 // loop_exit
                  _
                %s886 = ssub.s32 16, 1
                loop: start=0, step=1, limit=1
                $region169: #{forward.27} parent=160 // loop_pre_header
                  _
                $region170: #{forward.27} parent=160 // loop_header
                  %s888 = sphi 0, %s892
                  %p889 = scmp.ge.s32.totalorder %s888, 1
                  %s893 = sphi %s849, %s849
                  %s894 = sphi %s854, %s854
                $region171: #{forward.27} parent=160 // loop_header_branch
                  %891 = sbr.rel (%p889) target = $region175
                $region172: #{forward.27} parent=160 // loop_body
                  %v895 = vld [vmem:[%s893] sm:%s886]
                  %896 = vst [vmem:[%s894] sm:%s886] %v895
                  %v897 = vld [vmem:[%s893 + $0x4] sm:%s886]
                  %898 = vst [vmem:[%s894 + $0x8] sm:%s886] %v897
                $region173: #{forward.27} parent=160 // loop_footer
                  %s892 = sadd.s32 1, %s888
                $region174: #{forward.27} parent=160 // loop_footer_branch
                  %887 = sbr.rel target = $region170
                $region175: #{forward.27} parent=160 // loop_exit
                  _
              $region161: #{forward.27} parent=145 // pred_fallthru
                _
            $region146: #{forward.27} parent=141 // pred_fallthru
              _
            // Predicated region
            $region147: #{forward.27} parent=141 // pred_check
              _
            $region148: #{forward.27} parent=141 // pred_check_branch
              %860 = sbr.rel (0) target = $region150
            $region149: #{forward.27} parent=141 // pred_region
              %s862 = ssub.s32 16, 1
              loop: start=0, step=1, limit=1
              $region151: #{forward.27} parent=149 // loop_pre_header
                _
              $region152: #{forward.27} parent=149 // loop_header
                %s864 = sphi 0, %s868
                %p865 = scmp.ge.s32.totalorder %s864, 1
                %s869 = sphi %s849, %s849
                %s870 = sphi %s854, %s854
              $region153: #{forward.27} parent=149 // loop_header_branch
                %867 = sbr.rel (%p865) target = $region157
              $region154: #{forward.27} parent=149 // loop_body
                %v871 = vld [vmem:[%s869] sm:%s862]
                %872 = vst [vmem:[%s870] sm:%s862] %v871
                %v873 = vld [vmem:[%s869 + $0x4] sm:%s862]
                %874 = vst [vmem:[%s870 + $0x8] sm:%s862] %v873
              $region155: #{forward.27} parent=149 // loop_footer
                %s868 = sadd.s32 1, %s864
              $region156: #{forward.27} parent=149 // loop_footer_branch
                %863 = sbr.rel target = $region152
              $region157: #{forward.27} parent=149 // loop_exit
                _
            $region150: #{forward.27} parent=141 // pred_fallthru
              _
          $region142: #{forward.27} parent=137 // pred_fallthru
            _
          %899 = vnop
        $region138: #{forward.27} parent=125 // pred_fallthru
          _
      $region126: #{forward.27} parent=5 // pred_fallthru
        _
      %p900 = scmp.le.s32.totalorder 2, %s14
      // Predicated region
      $region176: #{forward.27} parent=5 // pred_check
        %p901 = pneg %p900
      $region177: #{forward.27} parent=5 // pred_check_branch
        %903 = sbr.rel (%p901) target = $region179
      $region178: #{forward.27} parent=5 // pred_region
        %s904 = ssub.s32 %s14, 2
        // Predicated region
        $region180: #{forward.27} parent=178 // pred_check
          %p905 = pneg %p221
        $region181: #{forward.27} parent=178 // pred_check_branch
          %907 = sbr.rel (%p905) target = $region183
        $region182: #{forward.27} parent=178 // pred_region
          %s908 = sand.u32 %s206, 1
          %s909 = sand.u32 %s206, 1
          %s910 = smul.addr %s909, 8
          %s911 = scalar_lea.vmem [#allocation4], %s910
        $region183: #{forward.27} parent=178 // pred_fallthru
          _
      $region179: #{forward.27} parent=5 // pred_fallthru
        _
    $region6: #{forward.27} parent=1 // loop_footer
      %s18 = sadd.s32 1, %s14
    $region7: #{forward.27} parent=1 // loop_footer_branch
      %13 = sbr.rel target = $region3
    $region8: #{forward.27} parent=1 // loop_exit
      _

// kernel: forward.25
$region0: #{forward.25}
  #allocation0 [shape = 'u32[]', space=smem, size = 0x4, offset = 0x4, fixed_abs, tag = 'smem constant byte address 0x4 - core index']
  #allocation1 [shape = 'u32[144,128]{1,0:T(1,128)}', space=vmem, size = 0x12000, scoped, tag = 'internal scratch']
  %s0 = inlined_call_operand.vmem [shape: bf16[16,256], index: 0, kind: input, shape index: {}, may-alias: {0,2}]
  %s1 = inlined_call_operand.vmem [shape: bf16[16,16], index: 1, kind: input, shape index: {}]
  %s2 = inlined_call_operand.vmem [shape: bf16[16,256], index: 2, kind: input, shape index: {}, may-alias: {0,2}]
  %s3 = inlined_call_operand.vmem [shape: bf16[128,128], index: 3, kind: input, shape index: {}]
  %s4 = inlined_call_operand.vmem [shape: bf16[128,128], index: 4, kind: input, shape index: {}]
  %s5 = inlined_call_operand.vmem [shape: f32[1,128], index: 5, kind: input, shape index: {}]
  %s6 = inlined_call_operand.vmem [shape: bf16[128,128], index: 6, kind: input, shape index: {}]
  %s7 = inlined_call_operand.vmem [shape: bf16[128,128], index: 7, kind: input, shape index: {}]
  %s8 = inlined_call_operand.vmem [shape: f32[1,128], index: 8, kind: input, shape index: {}]
  %s9 = inlined_call_operand.vmem [shape: bf16[16,256], index: 9, kind: output, shape index: {}]
  %s10 = sld [smem:[#allocation0]]
  $region188: #{forward.25} parent=0
    _
  %s12 = ssub.s32 1, %s10
  %s13 = scalar_select 0, %s12, %s10
  $region1: #{forward.25} parent=0
    #allocation2 [shape = 'u8[8192]{0}', space=vmem, size = 0x2000, scoped, tag = 'input window, operand 0']
    #allocation3 [shape = 'u8[8192]{0}', space=vmem, size = 0x2000, scoped, tag = 'input window, operand 2']
    #allocation4 [shape = 'u8[8192]{0}', space=vmem, size = 0x2000, scoped, tag = 'output window, operand 0']
    loop: start=0, step=1, limit=4
    $region2: #{forward.25} parent=1 // loop_pre_header
      _
    $region3: #{forward.25} parent=1 // loop_header
      %s15 = sphi 0, %s19
      %p16 = scmp.ge.s32.totalorder %s15, 4
      %s25 = sphi 0, %s27
      %s28 = sphi 0, %s25
      %s29 = sphi 0, %s28
      %s45 = sphi 0, %s29
      %s49 = sphi 0, %s49
      %s51 = sphi 0, %s49
      %s52 = sphi 0, %s51
      %s66 = sphi 0, %s52
      %s72 = sphi 0, %s74
      %s75 = sphi 0, %s72
      %s76 = sphi 0, %s75
      %s92 = sphi 0, %s76
      %s96 = sphi 0, %s96
      %s98 = sphi 0, %s96
      %s99 = sphi 0, %s98
      %s113 = sphi 0, %s99
      %s117 = sphi 0, %s117
      %s119 = sphi 0, %s117
      %s120 = sphi 0, %s119
      %s134 = sphi 0, %s120
      %s138 = sphi 0, %s138
      %s140 = sphi 0, %s138
      %s141 = sphi 0, %s140
      %s155 = sphi 0, %s141
      %s159 = sphi 0, %s159
      %s161 = sphi 0, %s159
      %s162 = sphi 0, %s161
      %s176 = sphi 0, %s162
      %s180 = sphi 0, %s180
      %s182 = sphi 0, %s180
      %s183 = sphi 0, %s182
      %s197 = sphi 0, %s183
      %s201 = sphi 0, %s201
      %s203 = sphi 0, %s201
      %s204 = sphi 0, %s203
      %s218 = sphi 0, %s204
      %s224 = sphi 0, %s226
      %s227 = sphi 0, %s224
      %s228 = sphi 0, %s227
      %s244 = sphi 0, %s228
    $region4: #{forward.25} parent=1 // loop_header_branch
      %18 = sbr.rel (%p16) target = $region8
    $region5: #{forward.25} parent=1 // loop_body
      %s20 = ssub.s32 %s15, 1
      %s21 = ssub.s32 %s15, 2
      %s22 = sadd.s32 %s15, 1
      %s23 = ssub.s32 %s15, %s22
      %p24 = scmp.eq.s32.totalorder %s23, 0
      %s26 = sadd.s32 %s25, 1
      %s27 = scalar_select %p24, %s25, %s26
      %p30 = pneg %p24
      %p31 = scmp.eq.s32.totalorder %s15, 1
      %p32 = por %p30, %p31
      %p33 = scmp.ne.s32.totalorder %s25, %s28
      %p34 = scmp.eq.s32.totalorder %s15, 0
      %p35 = por %p33, %p34
      %p36 = scmp.ne.s32.totalorder %s25, %s28
      %p37 = scmp.eq.s32.totalorder %s20, 1
      %p38 = por %p36, %p37
      %p39 = scmp.ne.s32.totalorder %s28, %s29
      %p40 = scmp.eq.s32.totalorder %s20, 0
      %p41 = por %p39, %p40
      %p42 = scmp.ne.s32.totalorder %s28, %s29
      %p43 = scmp.eq.s32.totalorder %s21, 1
      %p44 = por %p42, %p43
      %p46 = scmp.ne.s32.totalorder %s29, %s45
      %p47 = scmp.eq.s32.totalorder %s21, 0
      %p48 = por %p46, %p47
      %s50 = sadd.s32 %s49, 1
      %p53 = scmp.eq.s32.totalorder %s15, 1
      %p54 = scmp.ne.s32.totalorder %s49, %s51
      %p55 = scmp.eq.s32.totalorder %s15, 0
      %p56 = por %p54, %p55
      %p57 = scmp.ne.s32.totalorder %s49, %s51
      %p58 = scmp.eq.s32.totalorder %s20, 1
      %p59 = por %p57, %p58
      %p60 = scmp.ne.s32.totalorder %s51, %s52
      %p61 = scmp.eq.s32.totalorder %s20, 0
      %p62 = por %p60, %p61
      %p63 = scmp.ne.s32.totalorder %s51, %s52
      %p64 = scmp.eq.s32.totalorder %s21, 1
      %p65 = por %p63, %p64
      %p67 = scmp.ne.s32.totalorder %s52, %s66
      %p68 = scmp.eq.s32.totalorder %s21, 0
      %p69 = por %p67, %p68
      %s70 = ssub.s32 %s15, %s22
      %p71 = scmp.eq.s32.totalorder %s70, 0
      %s73 = sadd.s32 %s72, 1
      %s74 = scalar_select %p71, %s72, %s73
      %p77 = pneg %p71
      %p78 = scmp.eq.s32.totalorder %s15, 1
      %p79 = por %p77, %p78
      %p80 = scmp.ne.s32.totalorder %s72, %s75
      %p81 = scmp.eq.s32.totalorder %s15, 0
      %p82 = por %p80, %p81
      %p83 = scmp.ne.s32.totalorder %s72, %s75
      %p84 = scmp.eq.s32.totalorder %s20, 1
      %p85 = por %p83, %p84
      %p86 = scmp.ne.s32.totalorder %s75, %s76
      %p87 = scmp.eq.s32.totalorder %s20, 0
      %p88 = por %p86, %p87
      %p89 = scmp.ne.s32.totalorder %s75, %s76
      %p90 = scmp.eq.s32.totalorder %s21, 1
      %p91 = por %p89, %p90
      %p93 = scmp.ne.s32.totalorder %s76, %s92
      %p94 = scmp.eq.s32.totalorder %s21, 0
      %p95 = por %p93, %p94
      %s97 = sadd.s32 %s96, 1
      %p100 = scmp.eq.s32.totalorder %s15, 1
      %p101 = scmp.ne.s32.totalorder %s96, %s98
      %p102 = scmp.eq.s32.totalorder %s15, 0
      %p103 = por %p101, %p102
      %p104 = scmp.ne.s32.totalorder %s96, %s98
      %p105 = scmp.eq.s32.totalorder %s20, 1
      %p106 = por %p104, %p105
      %p107 = scmp.ne.s32.totalorder %s98, %s99
      %p108 = scmp.eq.s32.totalorder %s20, 0
      %p109 = por %p107, %p108
      %p110 = scmp.ne.s32.totalorder %s98, %s99
      %p111 = scmp.eq.s32.totalorder %s21, 1
      %p112 = por %p110, %p111
      %p114 = scmp.ne.s32.totalorder %s99, %s113
      %p115 = scmp.eq.s32.totalorder %s21, 0
      %p116 = por %p114, %p115
      %s118 = sadd.s32 %s117, 1
      %p121 = scmp.eq.s32.totalorder %s15, 1
      %p122 = scmp.ne.s32.totalorder %s117, %s119
      %p123 = scmp.eq.s32.totalorder %s15, 0
      %p124 = por %p122, %p123
      %p125 = scmp.ne.s32.totalorder %s117, %s119
      %p126 = scmp.eq.s32.totalorder %s20, 1
      %p127 = por %p125, %p126
      %p128 = scmp.ne.s32.totalorder %s119, %s120
      %p129 = scmp.eq.s32.totalorder %s20, 0
      %p130 = por %p128, %p129
      %p131 = scmp.ne.s32.totalorder %s119, %s120
      %p132 = scmp.eq.s32.totalorder %s21, 1
      %p133 = por %p131, %p132
      %p135 = scmp.ne.s32.totalorder %s120, %s134
      %p136 = scmp.eq.s32.totalorder %s21, 0
      %p137 = por %p135, %p136
      %s139 = sadd.s32 %s138, 1
      %p142 = scmp.eq.s32.totalorder %s15, 1
      %p143 = scmp.ne.s32.totalorder %s138, %s140
      %p144 = scmp.eq.s32.totalorder %s15, 0
      %p145 = por %p143, %p144
      %p146 = scmp.ne.s32.totalorder %s138, %s140
      %p147 = scmp.eq.s32.totalorder %s20, 1
      %p148 = por %p146, %p147
      %p149 = scmp.ne.s32.totalorder %s140, %s141
      %p150 = scmp.eq.s32.totalorder %s20, 0
      %p151 = por %p149, %p150
      %p152 = scmp.ne.s32.totalorder %s140, %s141
      %p153 = scmp.eq.s32.totalorder %s21, 1
      %p154 = por %p152, %p153
      %p156 = scmp.ne.s32.totalorder %s141, %s155
      %p157 = scmp.eq.s32.totalorder %s21, 0
      %p158 = por %p156, %p157
      %s160 = sadd.s32 %s159, 1
      %p163 = scmp.eq.s32.totalorder %s15, 1
      %p164 = scmp.ne.s32.totalorder %s159, %s161
      %p165 = scmp.eq.s32.totalorder %s15, 0
      %p166 = por %p164, %p165
      %p167 = scmp.ne.s32.totalorder %s159, %s161
      %p168 = scmp.eq.s32.totalorder %s20, 1
      %p169 = por %p167, %p168
      %p170 = scmp.ne.s32.totalorder %s161, %s162
      %p171 = scmp.eq.s32.totalorder %s20, 0
      %p172 = por %p170, %p171
      %p173 = scmp.ne.s32.totalorder %s161, %s162
      %p174 = scmp.eq.s32.totalorder %s21, 1
      %p175 = por %p173, %p174
      %p177 = scmp.ne.s32.totalorder %s162, %s176
      %p178 = scmp.eq.s32.totalorder %s21, 0
      %p179 = por %p177, %p178
      %s181 = sadd.s32 %s180, 1
      %p184 = scmp.eq.s32.totalorder %s15, 1
      %p185 = scmp.ne.s32.totalorder %s180, %s182
      %p186 = scmp.eq.s32.totalorder %s15, 0
      %p187 = por %p185, %p186
      %p188 = scmp.ne.s32.totalorder %s180, %s182
      %p189 = scmp.eq.s32.totalorder %s20, 1
      %p190 = por %p188, %p189
      %p191 = scmp.ne.s32.totalorder %s182, %s183
      %p192 = scmp.eq.s32.totalorder %s20, 0
      %p193 = por %p191, %p192
      %p194 = scmp.ne.s32.totalorder %s182, %s183
      %p195 = scmp.eq.s32.totalorder %s21, 1
      %p196 = por %p194, %p195
      %p198 = scmp.ne.s32.totalorder %s183, %s197
      %p199 = scmp.eq.s32.totalorder %s21, 0
      %p200 = por %p198, %p199
      %s202 = sadd.s32 %s201, 1
      %p205 = scmp.eq.s32.totalorder %s15, 1
      %p206 = scmp.ne.s32.totalorder %s201, %s203
      %p207 = scmp.eq.s32.totalorder %s15, 0
      %p208 = por %p206, %p207
      %p209 = scmp.ne.s32.totalorder %s201, %s203
      %p210 = scmp.eq.s32.totalorder %s20, 1
      %p211 = por %p209, %p210
      %p212 = scmp.ne.s32.totalorder %s203, %s204
      %p213 = scmp.eq.s32.totalorder %s20, 0
      %p214 = por %p212, %p213
      %p215 = scmp.ne.s32.totalorder %s203, %s204
      %p216 = scmp.eq.s32.totalorder %s21, 1
      %p217 = por %p215, %p216
      %p219 = scmp.ne.s32.totalorder %s204, %s218
      %p220 = scmp.eq.s32.totalorder %s21, 0
      %p221 = por %p219, %p220
      %s222 = ssub.s32 %s15, %s22
      %p223 = scmp.eq.s32.totalorder %s222, 0
      %s225 = sadd.s32 %s224, 1
      %s226 = scalar_select %p223, %s224, %s225
      %p229 = pneg %p223
      %p230 = scmp.eq.s32.totalorder %s15, 1
      %p231 = por %p229, %p230
      %p232 = scmp.ne.s32.totalorder %s224, %s227
      %p233 = scmp.eq.s32.totalorder %s15, 0
      %p234 = por %p232, %p233
      %p235 = scmp.ne.s32.totalorder %s224, %s227
      %p236 = scmp.eq.s32.totalorder %s20, 1
      %p237 = por %p235, %p236
      %p238 = scmp.ne.s32.totalorder %s227, %s228
      %p239 = scmp.eq.s32.totalorder %s20, 0
      %p240 = por %p238, %p239
      %p241 = scmp.ne.s32.totalorder %s227, %s228
      %p242 = scmp.eq.s32.totalorder %s21, 1
      %p243 = por %p241, %p242
      %p245 = scmp.ne.s32.totalorder %s228, %s244
      %p246 = scmp.eq.s32.totalorder %s21, 0
      %p247 = por %p245, %p246
      %p248 = scmp.le.s32.totalorder 1, %s15
      %p249 = scmp.lt.s32.totalorder %s15, 3
      %p250 = pnand %p248, %p249
      %p251 = pneg %p250
      // Predicated region
      $region9: #{forward.25} parent=5 // pred_check
        _
      $region10: #{forward.25} parent=5 // pred_check_branch
        %253 = sbr.rel (%p250) target = $region12
      $region11: #{forward.25} parent=5 // pred_region
        %s254 = ssub.s32 %s15, 1
        // Predicated region
        $region13: #{forward.25} parent=11 // pred_check
          %p255 = pneg %p62
        $region14: #{forward.25} parent=11 // pred_check_branch
          %257 = sbr.rel (%p255) target = $region16
        $region15: #{forward.25} parent=11 // pred_region
          _
        $region16: #{forward.25} parent=11 // pred_fallthru
          _
        // Predicated region
        $region17: #{forward.25} parent=11 // pred_check
          %p258 = pneg %p109
        $region18: #{forward.25} parent=11 // pred_check_branch
          %260 = sbr.rel (%p258) target = $region20
        $region19: #{forward.25} parent=11 // pred_region
          _
        $region20: #{forward.25} parent=11 // pred_fallthru
          _
        // Predicated region
        $region21: #{forward.25} parent=11 // pred_check
          %p261 = pneg %p130
        $region22: #{forward.25} parent=11 // pred_check_branch
          %263 = sbr.rel (%p261) target = $region24
        $region23: #{forward.25} parent=11 // pred_region
          _
        $region24: #{forward.25} parent=11 // pred_fallthru
          _
        // Predicated region
        $region25: #{forward.25} parent=11 // pred_check
          %p264 = pneg %p151
        $region26: #{forward.25} parent=11 // pred_check_branch
          %266 = sbr.rel (%p264) target = $region28
        $region27: #{forward.25} parent=11 // pred_region
          _
        $region28: #{forward.25} parent=11 // pred_fallthru
          _
        // Predicated region
        $region29: #{forward.25} parent=11 // pred_check
          %p267 = pneg %p172
        $region30: #{forward.25} parent=11 // pred_check_branch
          %269 = sbr.rel (%p267) target = $region32
        $region31: #{forward.25} parent=11 // pred_region
          _
        $region32: #{forward.25} parent=11 // pred_fallthru
          _
        // Predicated region
        $region33: #{forward.25} parent=11 // pred_check
          %p270 = pneg %p193
        $region34: #{forward.25} parent=11 // pred_check_branch
          %272 = sbr.rel (%p270) target = $region36
        $region35: #{forward.25} parent=11 // pred_region
          _
        $region36: #{forward.25} parent=11 // pred_fallthru
          _
        // Predicated region
        $region37: #{forward.25} parent=11 // pred_check
          %p273 = pneg %p214
        $region38: #{forward.25} parent=11 // pred_check_branch
          %275 = sbr.rel (%p273) target = $region40
        $region39: #{forward.25} parent=11 // pred_region
          _
        $region40: #{forward.25} parent=11 // pred_fallthru
          _
      $region12: #{forward.25} parent=5 // pred_fallthru
        _
      %p276 = scmp.lt.s32.totalorder %s15, 2
      // Predicated region
      $region41: #{forward.25} parent=5 // pred_check
        %p277 = pneg %p276
      $region42: #{forward.25} parent=5 // pred_check_branch
        %279 = sbr.rel (%p277) target = $region44
      $region43: #{forward.25} parent=5 // pred_region
        // Predicated region
        $region45: #{forward.25} parent=43 // pred_check
          %p280 = pneg %p35
        $region46: #{forward.25} parent=43 // pred_check_branch
          %282 = sbr.rel (%p280) target = $region48
        $region47: #{forward.25} parent=43 // pred_region
          %s283 = sand.u32 %s25, 1
          %s284 = sand.u32 %s25, 1
          %s285 = smul.addr %s284, 8
          %s286 = scalar_lea.vmem [#allocation2], %s285
          %s287 = smul.addr %s15, 4
          %s288 = scalar_lea.vmem %s0, %s287
          // Predicated region
          $region49: #{forward.25} parent=47 // pred_check
            _
          $region50: #{forward.25} parent=47 // pred_check_branch
            %290 = sbr.rel (0) target = $region52
          $region51: #{forward.25} parent=47 // pred_region
            // Predicated region
            $region53: #{forward.25} parent=51 // pred_check
              _
            $region54: #{forward.25} parent=51 // pred_check_branch
              %292 = sbr.rel target = $region56
            $region55: #{forward.25} parent=51 // pred_region
              // Predicated region
              $region68: #{forward.25} parent=55 // pred_check
                _
              $region69: #{forward.25} parent=55 // pred_check_branch
                %310 = sbr.rel (0) target = $region71
              $region70: #{forward.25} parent=55 // pred_region
                loop: start=0, step=1, limit=1
                $region72: #{forward.25} parent=70 // loop_pre_header
                  _
                $region73: #{forward.25} parent=70 // loop_header
                  %s312 = sphi 0, %s316
                  %p313 = scmp.ge.s32.totalorder %s312, 1
                  %s317 = sphi %s288, %s288
                  %s318 = sphi %s286, %s286
                $region74: #{forward.25} parent=70 // loop_header_branch
                  %315 = sbr.rel (%p313) target = $region78
                $region75: #{forward.25} parent=70 // loop_body
                  _
                $region76: #{forward.25} parent=70 // loop_footer
                  %s316 = sadd.s32 1, %s312
                $region77: #{forward.25} parent=70 // loop_footer_branch
                  %311 = sbr.rel target = $region73
                $region78: #{forward.25} parent=70 // loop_exit
                  _
                %s320 = ssub.s32 16, 1
                loop: start=0, step=1, limit=1
                $region79: #{forward.25} parent=70 // loop_pre_header
                  _
                $region80: #{forward.25} parent=70 // loop_header
                  %s322 = sphi 0, %s326
                  %p323 = scmp.ge.s32.totalorder %s322, 1
                  %s327 = sphi %s288, %s288
                  %s328 = sphi %s286, %s286
                $region81: #{forward.25} parent=70 // loop_header_branch
                  %325 = sbr.rel (%p323) target = $region85
                $region82: #{forward.25} parent=70 // loop_body
                  %v329 = vld [vmem:[%s327] sm:%s320]
                  %330 = vst [vmem:[%s328] sm:%s320] %v329
                  %v331 = vld [vmem:[%s327 + $0x8] sm:%s320]
                  %332 = vst [vmem:[%s328 + $0x4] sm:%s320] %v331
                $region83: #{forward.25} parent=70 // loop_footer
                  %s326 = sadd.s32 1, %s322
                $region84: #{forward.25} parent=70 // loop_footer_branch
                  %321 = sbr.rel target = $region80
                $region85: #{forward.25} parent=70 // loop_exit
                  _
              $region71: #{forward.25} parent=55 // pred_fallthru
                _
            $region56: #{forward.25} parent=51 // pred_fallthru
              _
            // Predicated region
            $region57: #{forward.25} parent=51 // pred_check
              _
            $region58: #{forward.25} parent=51 // pred_check_branch
              %294 = sbr.rel (0) target = $region60
            $region59: #{forward.25} parent=51 // pred_region
              %s296 = ssub.s32 16, 1
              loop: start=0, step=1, limit=1
              $region61: #{forward.25} parent=59 // loop_pre_header
                _
              $region62: #{forward.25} parent=59 // loop_header
                %s298 = sphi 0, %s302
                %p299 = scmp.ge.s32.totalorder %s298, 1
                %s303 = sphi %s288, %s288
                %s304 = sphi %s286, %s286
              $region63: #{forward.25} parent=59 // loop_header_branch
                %301 = sbr.rel (%p299) target = $region67
              $region64: #{forward.25} parent=59 // loop_body
                %v305 = vld [vmem:[%s303] sm:%s296]
                %306 = vst [vmem:[%s304] sm:%s296] %v305
                %v307 = vld [vmem:[%s303 + $0x8] sm:%s296]
                %308 = vst [vmem:[%s304 + $0x4] sm:%s296] %v307
              $region65: #{forward.25} parent=59 // loop_footer
                %s302 = sadd.s32 1, %s298
              $region66: #{forward.25} parent=59 // loop_footer_branch
                %297 = sbr.rel target = $region62
              $region67: #{forward.25} parent=59 // loop_exit
                _
            $region60: #{forward.25} parent=51 // pred_fallthru
              _
          $region52: #{forward.25} parent=47 // pred_fallthru
            _
          %333 = vnop
        $region48: #{forward.25} parent=43 // pred_fallthru
          _
        // Predicated region
        $region86: #{forward.25} parent=43 // pred_check
          %p334 = pneg %p82
        $region87: #{forward.25} parent=43 // pred_check_branch
          %336 = sbr.rel (%p334) target = $region89
        $region88: #{forward.25} parent=43 // pred_region
          %s337 = sand.u32 %s72, 1
          %s338 = sand.u32 %s72, 1
          %s339 = smul.addr %s338, 8
          %s340 = scalar_lea.vmem [#allocation3], %s339
          %s341 = smul.addr %s15, 4
          %s342 = scalar_lea.vmem %s2, %s341
          // Predicated region
          $region90: #{forward.25} parent=88 // pred_check
            _
          $region91: #{forward.25} parent=88 // pred_check_branch
            %344 = sbr.rel (0) target = $region93
          $region92: #{forward.25} parent=88 // pred_region
            // Predicated region
            $region94: #{forward.25} parent=92 // pred_check
              _
            $region95: #{forward.25} parent=92 // pred_check_branch
              %346 = sbr.rel target = $region97
            $region96: #{forward.25} parent=92 // pred_region
              // Predicated region
              $region109: #{forward.25} parent=96 // pred_check
                _
              $region110: #{forward.25} parent=96 // pred_check_branch
                %364 = sbr.rel (0) target = $region112
              $region111: #{forward.25} parent=96 // pred_region
                loop: start=0, step=1, limit=1
                $region113: #{forward.25} parent=111 // loop_pre_header
                  _
                $region114: #{forward.25} parent=111 // loop_header
                  %s366 = sphi 0, %s370
                  %p367 = scmp.ge.s32.totalorder %s366, 1
                  %s371 = sphi %s342, %s342
                  %s372 = sphi %s340, %s340
                $region115: #{forward.25} parent=111 // loop_header_branch
                  %369 = sbr.rel (%p367) target = $region119
                $region116: #{forward.25} parent=111 // loop_body
                  _
                $region117: #{forward.25} parent=111 // loop_footer
                  %s370 = sadd.s32 1, %s366
                $region118: #{forward.25} parent=111 // loop_footer_branch
                  %365 = sbr.rel target = $region114
                $region119: #{forward.25} parent=111 // loop_exit
                  _
                %s374 = ssub.s32 16, 1
                loop: start=0, step=1, limit=1
                $region120: #{forward.25} parent=111 // loop_pre_header
                  _
                $region121: #{forward.25} parent=111 // loop_header
                  %s376 = sphi 0, %s380
                  %p377 = scmp.ge.s32.totalorder %s376, 1
                  %s381 = sphi %s342, %s342
                  %s382 = sphi %s340, %s340
                $region122: #{forward.25} parent=111 // loop_header_branch
                  %379 = sbr.rel (%p377) target = $region126
                $region123: #{forward.25} parent=111 // loop_body
                  %v383 = vld [vmem:[%s381] sm:%s374]
                  %384 = vst [vmem:[%s382] sm:%s374] %v383
                  %v385 = vld [vmem:[%s381 + $0x8] sm:%s374]
                  %386 = vst [vmem:[%s382 + $0x4] sm:%s374] %v385
                $region124: #{forward.25} parent=111 // loop_footer
                  %s380 = sadd.s32 1, %s376
                $region125: #{forward.25} parent=111 // loop_footer_branch
                  %375 = sbr.rel target = $region121
                $region126: #{forward.25} parent=111 // loop_exit
                  _
              $region112: #{forward.25} parent=96 // pred_fallthru
                _
            $region97: #{forward.25} parent=92 // pred_fallthru
              _
            // Predicated region
            $region98: #{forward.25} parent=92 // pred_check
              _
            $region99: #{forward.25} parent=92 // pred_check_branch
              %348 = sbr.rel (0) target = $region101
            $region100: #{forward.25} parent=92 // pred_region
              %s350 = ssub.s32 16, 1
              loop: start=0, step=1, limit=1
              $region102: #{forward.25} parent=100 // loop_pre_header
                _
              $region103: #{forward.25} parent=100 // loop_header
                %s352 = sphi 0, %s356
                %p353 = scmp.ge.s32.totalorder %s352, 1
                %s357 = sphi %s342, %s342
                %s358 = sphi %s340, %s340
              $region104: #{forward.25} parent=100 // loop_header_branch
                %355 = sbr.rel (%p353) target = $region108
              $region105: #{forward.25} parent=100 // loop_body
                %v359 = vld [vmem:[%s357] sm:%s350]
                %360 = vst [vmem:[%s358] sm:%s350] %v359
                %v361 = vld [vmem:[%s357 + $0x8] sm:%s350]
                %362 = vst [vmem:[%s358 + $0x4] sm:%s350] %v361
              $region106: #{forward.25} parent=100 // loop_footer
                %s356 = sadd.s32 1, %s352
              $region107: #{forward.25} parent=100 // loop_footer_branch
                %351 = sbr.rel target = $region103
              $region108: #{forward.25} parent=100 // loop_exit
                _
            $region101: #{forward.25} parent=92 // pred_fallthru
              _
          $region93: #{forward.25} parent=88 // pred_fallthru
            _
          %387 = vnop
        $region89: #{forward.25} parent=43 // pred_fallthru
          _
      $region44: #{forward.25} parent=5 // pred_fallthru
        _
      %p388 = scmp.le.s32.totalorder 1, %s15
      %p389 = scmp.lt.s32.totalorder %s15, 3
      %p390 = pnand %p388, %p389
      %p391 = pneg %p390
      // Predicated region
      $region127: #{forward.25} parent=5 // pred_check
        _
      $region128: #{forward.25} parent=5 // pred_check_branch
        %393 = sbr.rel (%p390) target = $region130
      $region129: #{forward.25} parent=5 // pred_region
        %s394 = ssub.s32 %s15, 1
        %s395 = sand.u32 %s28, 1
        %s396 = sand.u32 %s28, 1
        %s397 = smul.addr %s396, 8
        %s398 = scalar_lea.vmem [#allocation2], %s397
        // Predicated region
        $region131: #{forward.25} parent=129 // pred_check
          %p399 = pneg %p41
        $region132: #{forward.25} parent=129 // pred_check_branch
          %401 = sbr.rel (%p399) target = $region134
        $region133: #{forward.25} parent=129 // pred_region
          _
        $region134: #{forward.25} parent=129 // pred_fallthru
          _
        %s402 = sand.u32 %s75, 1
        %s403 = sand.u32 %s75, 1
        %s404 = smul.addr %s403, 8
        %s405 = scalar_lea.vmem [#allocation3], %s404
        // Predicated region
        $region135: #{forward.25} parent=129 // pred_check
          %p406 = pneg %p88
        $region136: #{forward.25} parent=129 // pred_check_branch
          %408 = sbr.rel (%p406) target = $region138
        $region137: #{forward.25} parent=129 // pred_region
          _
        $region138: #{forward.25} parent=129 // pred_fallthru
          _
        %s409 = sand.u32 %s28, 1
        %s410 = sand.u32 %s28, 1
        %s411 = smul.addr %s410, 8
        %s412 = scalar_lea.vmem [#allocation2], %s411
        %p413 = pneg %p41
        %p414 = pneg %p38
        %p415 = pneg %p62
        %p416 = pneg %p59
        %s417 = sand.u32 %s75, 1
        %s418 = sand.u32 %s75, 1
        %s419 = smul.addr %s418, 8
        %s420 = scalar_lea.vmem [#allocation3], %s419
        %p421 = pneg %p88
        %p422 = pneg %p85
        %p423 = pneg %p109
        %p424 = pneg %p106
        %p425 = pneg %p130
        %p426 = pneg %p127
        %p427 = pneg %p151
        %p428 = pneg %p148
        %p429 = pneg %p172
        %p430 = pneg %p169
        %p431 = pneg %p193
        %p432 = pneg %p190
        %p433 = pneg %p214
        %p434 = pneg %p211
        %p435 = pneg %p240
        %p436 = pneg %p237
        %s437 = sand.u32 %s227, 1
        %s438 = sand.u32 %s227, 1
        %s439 = smul.addr %s438, 8
        %s440 = scalar_lea.vmem [#allocation4], %s439
        %v442 = vld [vmem:[%s1] sm:$0xf]
        %v443 = vld [vmem:[%s1 + $0x4] sm:$0xf]
        %v444 = vld [vmem:[%s398] sm:$0xf]
        %v445 = vld [vmem:[%s398 + $0x4] sm:$0xf]
        %v446 = vld [vmem:[%s3] sm:$0xf]
        %v447 = vld [vmem:[%s3 + $0x4] sm:$0xf]
        %v448 = vld [vmem:[%s3 + $0x8] sm:$0xf]
        %v449 = vld [vmem:[%s3 + $0xc] sm:$0xf]
        %v450 = vld [vmem:[%s3 + $0x10] sm:$0xf]
        %v451 = vld [vmem:[%s3 + $0x14] sm:$0xf]
        %v452 = vld [vmem:[%s3 + $0x18] sm:$0xf]
        %v453 = vld [vmem:[%s3 + $0x1c] sm:$0xf]
        %v454 = vld [vmem:[%s3 + $0x20] sm:$0xf]
        %v455 = vld [vmem:[%s3 + $0x24] sm:$0xf]
        %v456 = vld [vmem:[%s3 + $0x28] sm:$0xf]
        %v457 = vld [vmem:[%s3 + $0x2c] sm:$0xf]
        %v458 = vld [vmem:[%s3 + $0x30] sm:$0xf]
        %v459 = vld [vmem:[%s3 + $0x34] sm:$0xf]
        %v460 = vld [vmem:[%s3 + $0x38] sm:$0xf]
        %v461 = vld [vmem:[%s3 + $0x3c] sm:$0xf]
        %v462 = vld [vmem:[%s4] sm:$0xf]
        %v463 = vld [vmem:[%s4 + $0x4] sm:$0xf]
        %v464 = vld [vmem:[%s4 + $0x8] sm:$0xf]
        %v465 = vld [vmem:[%s4 + $0xc] sm:$0xf]
        %v466 = vld [vmem:[%s4 + $0x10] sm:$0xf]
        %v467 = vld [vmem:[%s4 + $0x14] sm:$0xf]
        %v468 = vld [vmem:[%s4 + $0x18] sm:$0xf]
        %v469 = vld [vmem:[%s4 + $0x1c] sm:$0xf]
        %v470 = vld [vmem:[%s4 + $0x20] sm:$0xf]
        %v471 = vld [vmem:[%s4 + $0x24] sm:$0xf]
        %v472 = vld [vmem:[%s4 + $0x28] sm:$0xf]
        %v473 = vld [vmem:[%s4 + $0x2c] sm:$0xf]
        %v474 = vld [vmem:[%s4 + $0x30] sm:$0xf]
        %v475 = vld [vmem:[%s4 + $0x34] sm:$0xf]
        %v476 = vld [vmem:[%s4 + $0x38] sm:$0xf]
        %v477 = vld [vmem:[%s4 + $0x3c] sm:$0xf]
        %v478 = vld [vmem:[%s5] sm:$0x1]
        %v481 = vunpack.c.l.b16 %v442
        %v482 = vunpack.c.l.b16 %v443
        %v483 = vpack.c.b16 %v482, %v481
        %v486 = vunpack.c.l.b16 %v444
        %v487 = vunpack.c.l.b16 %v445
        %v488 = vpack.c.b16 %v487, %v486
        %vm490 = vcmask 130048
        %v492 = vsel %vm490, %v483, 0
        %494 = vmatprep.subr.bf16.mxu0 0
        %495 = vmatpush1.bf16.msra.mxu0 0
        %496 = vmatprep.subr.bf16.mxu0 0
        %497 = vmatpush1.bf16.msra.mxu0 0
        %498 = vmatprep.subr.bf16.mxu0 0
        %499 = vmatpush1.bf16.msra.mxu0 0
        %500 = vmatprep.subr.bf16.mxu0 0
        %501 = vmatpush1.bf16.msra.mxu0 0
        %502 = vmatprep.subr.bf16.mxu0 0
        %503 = vmatpush1.bf16.msra.mxu0 0
        %504 = vmatprep.subr.bf16.mxu0 0
        %505 = vmatpush1.bf16.msra.mxu0 0
        %506 = vmatprep.subr.bf16.mxu0 0
        %507 = vmatpush1.bf16.msra.mxu0 0
        %508 = vmatprep.subr.bf16.mxu0 0
        %509 = vmatpush1.bf16.msra.mxu0 %v488
        %510 = vmatprep.subr.bf16.mxu0 0
        %511 = vmatpush2.bf16.msra.mxu0 0
        %512 = vmatprep.subr.bf16.mxu0 0
        %513 = vmatpush2.bf16.msra.mxu0 0
        %514 = vmatprep.subr.bf16.mxu0 0
        %515 = vmatpush2.bf16.msra.mxu0 0
        %516 = vmatprep.subr.bf16.mxu0 0
        %517 = vmatpush2.bf16.msra.mxu0 0
        %518 = vmatprep.subr.bf16.mxu0 0
        %519 = vmatpush2.bf16.msra.mxu0 0
        %520 = vmatprep.subr.bf16.mxu0 0
        %521 = vmatpush2.bf16.msra.mxu0 0
        %522 = vmatprep.subr.bf16.mxu0 0
        %523 = vmatpush2.bf16.msra.mxu0 0
        %524 = vmatprep.subr.bf16.mxu0 0
        %525 = vmatpush2.bf16.msra.mxu0 0
        %526 = vmatprep.mubr.bf16.mxu0 0
        %527 = vmatmul.mubr.bf16.gmra.mxu0 %v492
        %v528 = vpop.f32.mrf.mxu0
        %v529 = vadd.f32 0.0, %v528
        %v530 = vpop.f32.mrf.mxu0
        %v531 = vpop.f32.mrf.mxu0
        %v532 = vadd.f32 0.0, %v531
        %v533 = vpop.f32.mrf.mxu0
        %534 = vdwg.mxu0
        %v535 = vpack.c.bf16 %v532, %v529
        %v552 = vunpack.c.l.b16 %v462
        %v553 = vunpack.c.l.b16 %v463
        %v554 = vunpack.c.l.b16 %v464
        %v555 = vunpack.c.l.b16 %v465
        %v556 = vunpack.c.l.b16 %v466
        %v557 = vunpack.c.l.b16 %v467
        %v558 = vunpack.c.l.b16 %v468
        %v559 = vunpack.c.l.b16 %v469
        %v560 = vunpack.c.l.b16 %v470
        %v561 = vunpack.c.l.b16 %v471
        %v562 = vunpack.c.l.b16 %v472
        %v563 = vunpack.c.l.b16 %v473
        %v564 = vunpack.c.l.b16 %v474
        %v565 = vunpack.c.l.b16 %v475
        %v566 = vunpack.c.l.b16 %v476
        %v567 = vunpack.c.l.b16 %v477
        %v568 = vpack.c.b16 %v553, %v552
        %v569 = vpack.c.b16 %v555, %v554
        %v570 = vpack.c.b16 %v557, %v556
        %v571 = vpack.c.b16 %v559, %v558
        %v572 = vpack.c.b16 %v561, %v560
        %v573 = vpack.c.b16 %v563, %v562
        %v574 = vpack.c.b16 %v565, %v564
        %v575 = vpack.c.b16 %v567, %v566
        %584 = vmatprep.subr.bf16.mxu0 0
        %585 = vmatpush1.bf16.msra.mxu0 %v575
        %586 = vmatprep.subr.bf16.mxu0 0
        %587 = vmatpush1.bf16.msra.mxu0 %v574
        %588 = vmatprep.subr.bf16.mxu0 0
        %589 = vmatpush1.bf16.msra.mxu0 %v573
        %590 = vmatprep.subr.bf16.mxu0 0
        %591 = vmatpush1.bf16.msra.mxu0 %v572
        %592 = vmatprep.subr.bf16.mxu0 0
        %593 = vmatpush1.bf16.msra.mxu0 %v571
        %594 = vmatprep.subr.bf16.mxu0 0
        %595 = vmatpush1.bf16.msra.mxu0 %v570
        %596 = vmatprep.subr.bf16.mxu0 0
        %597 = vmatpush1.bf16.msra.mxu0 %v569
        %598 = vmatprep.subr.bf16.mxu0 0
        %599 = vmatpush1.bf16.msra.mxu0 %v568
        %600 = vmatprep.subr.bf16.mxu0 0
        %601 = vmatpush2.bf16.msra.mxu0 0
        %602 = vmatprep.subr.bf16.mxu0 0
        %603 = vmatpush2.bf16.msra.mxu0 0
        %604 = vmatprep.subr.bf16.mxu0 0
        %605 = vmatpush2.bf16.msra.mxu0 0
        %606 = vmatprep.subr.bf16.mxu0 0
        %607 = vmatpush2.bf16.msra.mxu0 0
        %608 = vmatprep.subr.bf16.mxu0 0
        %609 = vmatpush2.bf16.msra.mxu0 0
        %610 = vmatprep.subr.bf16.mxu0 0
        %611 = vmatpush2.bf16.msra.mxu0 0
        %612 = vmatprep.subr.bf16.mxu0 0
        %613 = vmatpush2.bf16.msra.mxu0 0
        %614 = vmatprep.subr.bf16.mxu0 0
        %615 = vmatpush2.bf16.msra.mxu0 0
        %616 = vmatprep.mubr.bf16.mxu0 0
        %617 = vmatmul.mubr.bf16.gmra.mxu0 %v535
        %v618 = vpop.f32.mrf.mxu0
        %v619 = vadd.f32 0.0, %v618
        %v620 = vpop.f32.mrf.mxu0
        %v621 = vpop.f32.mrf.mxu0
        %v622 = vadd.f32 0.0, %v621
        %v623 = vpop.f32.mrf.mxu0
        %624 = vdwg.mxu0
        %v641 = vunpack.c.l.b16 %v446
        %v642 = vunpack.c.l.b16 %v447
        %v643 = vunpack.c.l.b16 %v448
        %v644 = vunpack.c.l.b16 %v449
        %v645 = vunpack.c.l.b16 %v450
        %v646 = vunpack.c.l.b16 %v451
        %v647 = vunpack.c.l.b16 %v452
        %v648 = vunpack.c.l.b16 %v453
        %v649 = vunpack.c.l.b16 %v454
        %v650 = vunpack.c.l.b16 %v455
        %v651 = vunpack.c.l.b16 %v456
        %v652 = vunpack.c.l.b16 %v457
        %v653 = vunpack.c.l.b16 %v458
        %v654 = vunpack.c.l.b16 %v459
        %v655 = vunpack.c.l.b16 %v460
        %v656 = vunpack.c.l.b16 %v461
        %v657 = vpack.c.b16 %v642, %v641
        %v658 = vpack.c.b16 %v644, %v643
        %v659 = vpack.c.b16 %v646, %v645
        %v660 = vpack.c.b16 %v648, %v647
        %v661 = vpack.c.b16 %v650, %v649
        %v662 = vpack.c.b16 %v652, %v651
        %v663 = vpack.c.b16 %v654, %v653
        %v664 = vpack.c.b16 %v656, %v655
        %673 = vmatprep.subr.bf16.mxu0 0
        %674 = vmatpush1.bf16.msra.mxu0 %v664
        %675 = vmatprep.subr.bf16.mxu0 0
        %676 = vmatpush1.bf16.msra.mxu0 %v663
        %677 = vmatprep.subr.bf16.mxu0 0
        %678 = vmatpush1.bf16.msra.mxu0 %v662
        %679 = vmatprep.subr.bf16.mxu0 0
        %680 = vmatpush1.bf16.msra.mxu0 %v661
        %681 = vmatprep.subr.bf16.mxu0 0
        %682 = vmatpush1.bf16.msra.mxu0 %v660
        %683 = vmatprep.subr.bf16.mxu0 0
        %684 = vmatpush1.bf16.msra.mxu0 %v659
        %685 = vmatprep.subr.bf16.mxu0 0
        %686 = vmatpush1.bf16.msra.mxu0 %v658
        %687 = vmatprep.subr.bf16.mxu0 0
        %688 = vmatpush1.bf16.msra.mxu0 %v657
        %689 = vmatprep.subr.bf16.mxu0 0
        %690 = vmatpush2.bf16.msra.mxu0 0
        %691 = vmatprep.subr.bf16.mxu0 0
        %692 = vmatpush2.bf16.msra.mxu0 0
        %693 = vmatprep.subr.bf16.mxu0 0
        %694 = vmatpush2.bf16.msra.mxu0 0
        %695 = vmatprep.subr.bf16.mxu0 0
        %696 = vmatpush2.bf16.msra.mxu0 0
        %697 = vmatprep.subr.bf16.mxu0 0
        %698 = vmatpush2.bf16.msra.mxu0 0
        %699 = vmatprep.subr.bf16.mxu0 0
        %700 = vmatpush2.bf16.msra.mxu0 0
        %701 = vmatprep.subr.bf16.mxu0 0
        %702 = vmatpush2.bf16.msra.mxu0 0
        %703 = vmatprep.subr.bf16.mxu0 0
        %704 = vmatpush2.bf16.msra.mxu0 0
        %705 = vmatprep.mubr.bf16.mxu0 0
        %706 = vmatmul.mubr.bf16.gmra.mxu0 %v488
        %v707 = vpop.f32.mrf.mxu0
        %v708 = vadd.f32 %v619, %v707
        %v709 = vpop.f32.mrf.mxu0
        %v710 = vpop.f32.mrf.mxu0
        %v711 = vadd.f32 %v622, %v710
        %v712 = vpop.f32.mrf.mxu0
        %713 = vdwg.mxu0
        %v715 = vlaneseq
        %v716 = vshrl.u32 %v715, 7
        %v717 = vsub.s32 0, %v716
        %v718 = vrot.slane %v478, %v717
        %v720 = vadd.f32 %v708, %v718
        %v721 = vadd.f32 %v711, %v718
        %v722 = vmax.f32 %v720, 0.0
        %v723 = vmax.f32 %v721, 0.0
        %v724 = vld [vmem:[%s405] sm:$0xf]
        %v725 = vld [vmem:[%s405 + $0x4] sm:$0xf]
        %v726 = vunpack.c.l.bf16 %v724
        %v727 = vunpack.c.l.bf16 %v725
        %v728 = vmul.f32 %v722, 0.5
        %v729 = vmul.f32 %v723, 0.5
        %v730 = vmul.f32 %v726, 0.5
        %v731 = vmul.f32 %v727, 0.5
        %v732 = vadd.f32 %v728, %v730
        %v733 = vadd.f32 %v729, %v731
        %v734 = vpack.c.bf16 %v733, %v732
        %v735 = vld [vmem:[%s6] sm:$0xf]
        %v736 = vld [vmem:[%s6 + $0x4] sm:$0xf]
        %v737 = vld [vmem:[%s6 + $0x8] sm:$0xf]
        %v738 = vld [vmem:[%s6 + $0xc] sm:$0xf]
        %v739 = vld [vmem:[%s6 + $0x10] sm:$0xf]
        %v740 = vld [vmem:[%s6 + $0x14] sm:$0xf]
        %v741 = vld [vmem:[%s6 + $0x18] sm:$0xf]
        %v742 = vld [vmem:[%s6 + $0x1c] sm:$0xf]
        %v743 = vld [vmem:[%s6 + $0x20] sm:$0xf]
        %v744 = vld [vmem:[%s6 + $0x24] sm:$0xf]
        %v745 = vld [vmem:[%s6 + $0x28] sm:$0xf]
        %v746 = vld [vmem:[%s6 + $0x2c] sm:$0xf]
        %v747 = vld [vmem:[%s6 + $0x30] sm:$0xf]
        %v748 = vld [vmem:[%s6 + $0x34] sm:$0xf]
        %v749 = vld [vmem:[%s6 + $0x38] sm:$0xf]
        %v750 = vld [vmem:[%s6 + $0x3c] sm:$0xf]
        %v751 = vld [vmem:[%s7] sm:$0xf]
        %v752 = vld [vmem:[%s7 + $0x4] sm:$0xf]
        %v753 = vld [vmem:[%s7 + $0x8] sm:$0xf]
        %v754 = vld [vmem:[%s7 + $0xc] sm:$0xf]
        %v755 = vld [vmem:[%s7 + $0x10] sm:$0xf]
        %v756 = vld [vmem:[%s7 + $0x14] sm:$0xf]
        %v757 = vld [vmem:[%s7 + $0x18] sm:$0xf]
        %v758 = vld [vmem:[%s7 + $0x1c] sm:$0xf]
        %v759 = vld [vmem:[%s7 + $0x20] sm:$0xf]
        %v760 = vld [vmem:[%s7 + $0x24] sm:$0xf]
        %v761 = vld [vmem:[%s7 + $0x28] sm:$0xf]
        %v762 = vld [vmem:[%s7 + $0x2c] sm:$0xf]
        %v763 = vld [vmem:[%s7 + $0x30] sm:$0xf]
        %v764 = vld [vmem:[%s7 + $0x34] sm:$0xf]
        %v765 = vld [vmem:[%s7 + $0x38] sm:$0xf]
        %v766 = vld [vmem:[%s7 + $0x3c] sm:$0xf]
        %v767 = vld [vmem:[%s8] sm:$0x1]
        %768 = vmatprep.subr.bf16.mxu0 0
        %769 = vmatpush1.bf16.msra.mxu0 0
        %770 = vmatprep.subr.bf16.mxu0 0
        %771 = vmatpush1.bf16.msra.mxu0 0
        %772 = vmatprep.subr.bf16.mxu0 0
        %773 = vmatpush1.bf16.msra.mxu0 0
        %774 = vmatprep.subr.bf16.mxu0 0
        %775 = vmatpush1.bf16.msra.mxu0 0
        %776 = vmatprep.subr.bf16.mxu0 0
        %777 = vmatpush1.bf16.msra.mxu0 0
        %778 = vmatprep.subr.bf16.mxu0 0
        %779 = vmatpush1.bf16.msra.mxu0 0
        %780 = vmatprep.subr.bf16.mxu0 0
        %781 = vmatpush1.bf16.msra.mxu0 0
        %782 = vmatprep.subr.bf16.mxu0 0
        %783 = vmatpush1.bf16.msra.mxu0 %v734
        %784 = vmatprep.subr.bf16.mxu0 0
        %785 = vmatpush2.bf16.msra.mxu0 0
        %786 = vmatprep.subr.bf16.mxu0 0
        %787 = vmatpush2.bf16.msra.mxu0 0
        %788 = vmatprep.subr.bf16.mxu0 0
        %789 = vmatpush2.bf16.msra.mxu0 0
        %790 = vmatprep.subr.bf16.mxu0 0
        %791 = vmatpush2.bf16.msra.mxu0 0
        %792 = vmatprep.subr.bf16.mxu0 0
        %793 = vmatpush2.bf16.msra.mxu0 0
        %794 = vmatprep.subr.bf16.mxu0 0
        %795 = vmatpush2.bf16.msra.mxu0 0
        %796 = vmatprep.subr.bf16.mxu0 0
        %797 = vmatpush2.bf16.msra.mxu0 0
        %798 = vmatprep.subr.bf16.mxu0 0
        %799 = vmatpush2.bf16.msra.mxu0 0
        %800 = vmatprep.mubr.bf16.mxu0 0
        %801 = vmatmul.mubr.bf16.gmra.mxu0 %v492
        %v802 = vpop.f32.mrf.mxu0
        %v803 = vadd.f32 0.0, %v802
        %v804 = vpop.f32.mrf.mxu0
        %v805 = vpop.f32.mrf.mxu0
        %v806 = vadd.f32 0.0, %v805
        %v807 = vpop.f32.mrf.mxu0
        %808 = vdwg.mxu0
        %v809 = vpack.c.bf16 %v806, %v803
        %v826 = vunpack.c.l.b16 %v751
        %v827 = vunpack.c.l.b16 %v752
        %v828 = vunpack.c.l.b16 %v753
        %v829 = vunpack.c.l.b16 %v754
        %v830 = vunpack.c.l.b16 %v755
        %v831 = vunpack.c.l.b16 %v756
        %v832 = vunpack.c.l.b16 %v757
        %v833 = vunpack.c.l.b16 %v758
        %v834 = vunpack.c.l.b16 %v759
        %v835 = vunpack.c.l.b16 %v760
        %v836 = vunpack.c.l.b16 %v761
        %v837 = vunpack.c.l.b16 %v762
        %v838 = vunpack.c.l.b16 %v763
        %v839 = vunpack.c.l.b16 %v764
        %v840 = vunpack.c.l.b16 %v765
        %v841 = vunpack.c.l.b16 %v766
        %v842 = vpack.c.b16 %v827, %v826
        %v843 = vpack.c.b16 %v829, %v828
        %v844 = vpack.c.b16 %v831, %v830
        %v845 = vpack.c.b16 %v833, %v832
        %v846 = vpack.c.b16 %v835, %v834
        %v847 = vpack.c.b16 %v837, %v836
        %v848 = vpack.c.b16 %v839, %v838
        %v849 = vpack.c.b16 %v841, %v840
        %858 = vmatprep.subr.bf16.mxu0 0
        %859 = vmatpush1.bf16.msra.mxu0 %v849
        %860 = vmatprep.subr.bf16.mxu0 0
        %861 = vmatpush1.bf16.msra.mxu0 %v848
        %862 = vmatprep.subr.bf16.mxu0 0
        %863 = vmatpush1.bf16.msra.mxu0 %v847
        %864 = vmatprep.subr.bf16.mxu0 0
        %865 = vmatpush1.bf16.msra.mxu0 %v846
        %866 = vmatprep.subr.bf16.mxu0 0
        %867 = vmatpush1.bf16.msra.mxu0 %v845
        %868 = vmatprep.subr.bf16.mxu0 0
        %869 = vmatpush1.bf16.msra.mxu0 %v844
        %870 = vmatprep.subr.bf16.mxu0 0
        %871 = vmatpush1.bf16.msra.mxu0 %v843
        %872 = vmatprep.subr.bf16.mxu0 0
        %873 = vmatpush1.bf16.msra.mxu0 %v842
        %874 = vmatprep.subr.bf16.mxu0 0
        %875 = vmatpush2.bf16.msra.mxu0 0
        %876 = vmatprep.subr.bf16.mxu0 0
        %877 = vmatpush2.bf16.msra.mxu0 0
        %878 = vmatprep.subr.bf16.mxu0 0
        %879 = vmatpush2.bf16.msra.mxu0 0
        %880 = vmatprep.subr.bf16.mxu0 0
        %881 = vmatpush2.bf16.msra.mxu0 0
        %882 = vmatprep.subr.bf16.mxu0 0
        %883 = vmatpush2.bf16.msra.mxu0 0
        %884 = vmatprep.subr.bf16.mxu0 0
        %885 = vmatpush2.bf16.msra.mxu0 0
        %886 = vmatprep.subr.bf16.mxu0 0
        %887 = vmatpush2.bf16.msra.mxu0 0
        %888 = vmatprep.subr.bf16.mxu0 0
        %889 = vmatpush2.bf16.msra.mxu0 0
        %890 = vmatprep.mubr.bf16.mxu0 0
        %891 = vmatmul.mubr.bf16.gmra.mxu0 %v809
        %v892 = vpop.f32.mrf.mxu0
        %v893 = vadd.f32 0.0, %v892
        %v894 = vpop.f32.mrf.mxu0
        %v895 = vpop.f32.mrf.mxu0
        %v896 = vadd.f32 0.0, %v895
        %v897 = vpop.f32.mrf.mxu0
        %898 = vdwg.mxu0
        %v915 = vunpack.c.l.b16 %v735
        %v916 = vunpack.c.l.b16 %v736
        %v917 = vunpack.c.l.b16 %v737
        %v918 = vunpack.c.l.b16 %v738
        %v919 = vunpack.c.l.b16 %v739
        %v920 = vunpack.c.l.b16 %v740
        %v921 = vunpack.c.l.b16 %v741
        %v922 = vunpack.c.l.b16 %v742
        %v923 = vunpack.c.l.b16 %v743
        %v924 = vunpack.c.l.b16 %v744
        %v925 = vunpack.c.l.b16 %v745
        %v926 = vunpack.c.l.b16 %v746
        %v927 = vunpack.c.l.b16 %v747
        %v928 = vunpack.c.l.b16 %v748
        %v929 = vunpack.c.l.b16 %v749
        %v930 = vunpack.c.l.b16 %v750
        %v931 = vpack.c.b16 %v916, %v915
        %v932 = vpack.c.b16 %v918, %v917
        %v933 = vpack.c.b16 %v920, %v919
        %v934 = vpack.c.b16 %v922, %v921
        %v935 = vpack.c.b16 %v924, %v923
        %v936 = vpack.c.b16 %v926, %v925
        %v937 = vpack.c.b16 %v928, %v927
        %v938 = vpack.c.b16 %v930, %v929
        %947 = vmatprep.subr.bf16.mxu0 0
        %948 = vmatpush1.bf16.msra.mxu0 %v938
        %949 = vmatprep.subr.bf16.mxu0 0
        %950 = vmatpush1.bf16.msra.mxu0 %v937
        %951 = vmatprep.subr.bf16.mxu0 0
        %952 = vmatpush1.bf16.msra.mxu0 %v936
        %953 = vmatprep.subr.bf16.mxu0 0
        %954 = vmatpush1.bf16.msra.mxu0 %v935
        %955 = vmatprep.subr.bf16.mxu0 0
        %956 = vmatpush1.bf16.msra.mxu0 %v934
        %957 = vmatprep.subr.bf16.mxu0 0
        %958 = vmatpush1.bf16.msra.mxu0 %v933
        %959 = vmatprep.subr.bf16.mxu0 0
        %960 = vmatpush1.bf16.msra.mxu0 %v932
        %961 = vmatprep.subr.bf16.mxu0 0
        %962 = vmatpush1.bf16.msra.mxu0 %v931
        %963 = vmatprep.subr.bf16.mxu0 0
        %964 = vmatpush2.bf16.msra.mxu0 0
        %965 = vmatprep.subr.bf16.mxu0 0
        %966 = vmatpush2.bf16.msra.mxu0 0
        %967 = vmatprep.subr.bf16.mxu0 0
        %968 = vmatpush2.bf16.msra.mxu0 0
        %969 = vmatprep.subr.bf16.mxu0 0
        %970 = vmatpush2.bf16.msra.mxu0 0
        %971 = vmatprep.subr.bf16.mxu0 0
        %972 = vmatpush2.bf16.msra.mxu0 0
        %973 = vmatprep.subr.bf16.mxu0 0
        %974 = vmatpush2.bf16.msra.mxu0 0
        %975 = vmatprep.subr.bf16.mxu0 0
        %976 = vmatpush2.bf16.msra.mxu0 0
        %977 = vmatprep.subr.bf16.mxu0 0
        %978 = vmatpush2.bf16.msra.mxu0 0
        %979 = vmatprep.mubr.bf16.mxu0 0
        %980 = vmatmul.mubr.bf16.gmra.mxu0 %v734
        %v981 = vpop.f32.mrf.mxu0
        %v982 = vadd.f32 %v893, %v981
        %v983 = vpop.f32.mrf.mxu0
        %v984 = vpop.f32.mrf.mxu0
        %v985 = vadd.f32 %v896, %v984
        %v986 = vpop.f32.mrf.mxu0
        %987 = vdwg.mxu0
        %v989 = vlaneseq
        %v990 = vshrl.u32 %v989, 7
        %v991 = vsub.s32 0, %v990
        %v992 = vrot.slane %v767, %v991
        %v994 = vadd.f32 %v982, %v992
        %v995 = vadd.f32 %v985, %v992
        %v996 = vmax.f32 %v994, 0.0
        %v997 = vmax.f32 %v995, 0.0
        %v998 = vmul.f32 %v996, 0.5
        %v999 = vmul.f32 %v997, 0.5
        %v1000 = vadd.f32 %v998, %v730
        %v1001 = vadd.f32 %v999, %v731
        %v1002 = vpack.c.bf16 %v1001, %v1000
        %v1004 = vunpack.c.l.b16 %v1002
        %v1005 = vunpack.c.h.b16 %v1002
        %v1006 = vpack.c.b16 %v1004, %v1004
        %v1007 = vpack.c.b16 %v1005, %v1005
        %1010 = vst [vmem:[%s440] sm:$0xf] %v1006
        %1011 = vst [vmem:[%s440 + $0x4] sm:$0xf] %v1007
        %s1012 = sand.u32 %s227, 1
        %s1013 = sand.u32 %s227, 1
        %s1014 = smul.addr %s1013, 8
        %s1015 = scalar_lea.vmem [#allocation4], %s1014
        // Predicated region
        $region139: #{forward.25} parent=129 // pred_check
          %p1016 = pneg %p237
        $region140: #{forward.25} parent=129 // pred_check_branch
          %1018 = sbr.rel (%p1016) target = $region142
        $region141: #{forward.25} parent=129 // pred_region
          %s1019 = smul.addr %s20, 4
          %s1020 = scalar_lea.vmem %s9, %s1019
          // Predicated region
          $region143: #{forward.25} parent=141 // pred_check
            _
          $region144: #{forward.25} parent=141 // pred_check_branch
            %1022 = sbr.rel (0) target = $region146
          $region145: #{forward.25} parent=141 // pred_region
            // Predicated region
            $region147: #{forward.25} parent=145 // pred_check
              _
            $region148: #{forward.25} parent=145 // pred_check_branch
              %1024 = sbr.rel target = $region150
            $region149: #{forward.25} parent=145 // pred_region
              // Predicated region
              $region162: #{forward.25} parent=149 // pred_check
                _
              $region163: #{forward.25} parent=149 // pred_check_branch
                %1042 = sbr.rel (0) target = $region165
              $region164: #{forward.25} parent=149 // pred_region
                loop: start=0, step=1, limit=1
                $region166: #{forward.25} parent=164 // loop_pre_header
                  _
                $region167: #{forward.25} parent=164 // loop_header
                  %s1044 = sphi 0, %s1048
                  %p1045 = scmp.ge.s32.totalorder %s1044, 1
                  %s1049 = sphi %s1015, %s1015
                  %s1050 = sphi %s1020, %s1020
                $region168: #{forward.25} parent=164 // loop_header_branch
                  %1047 = sbr.rel (%p1045) target = $region172
                $region169: #{forward.25} parent=164 // loop_body
                  _
                $region170: #{forward.25} parent=164 // loop_footer
                  %s1048 = sadd.s32 1, %s1044
                $region171: #{forward.25} parent=164 // loop_footer_branch
                  %1043 = sbr.rel target = $region167
                $region172: #{forward.25} parent=164 // loop_exit
                  _
                %s1052 = ssub.s32 16, 1
                loop: start=0, step=1, limit=1
                $region173: #{forward.25} parent=164 // loop_pre_header
                  _
                $region174: #{forward.25} parent=164 // loop_header
                  %s1054 = sphi 0, %s1058
                  %p1055 = scmp.ge.s32.totalorder %s1054, 1
                  %s1059 = sphi %s1015, %s1015
                  %s1060 = sphi %s1020, %s1020
                $region175: #{forward.25} parent=164 // loop_header_branch
                  %1057 = sbr.rel (%p1055) target = $region179
                $region176: #{forward.25} parent=164 // loop_body
                  %v1061 = vld [vmem:[%s1059] sm:%s1052]
                  %1062 = vst [vmem:[%s1060] sm:%s1052] %v1061
                  %v1063 = vld [vmem:[%s1059 + $0x4] sm:%s1052]
                  %1064 = vst [vmem:[%s1060 + $0x8] sm:%s1052] %v1063
                $region177: #{forward.25} parent=164 // loop_footer
                  %s1058 = sadd.s32 1, %s1054
                $region178: #{forward.25} parent=164 // loop_footer_branch
                  %1053 = sbr.rel target = $region174
                $region179: #{forward.25} parent=164 // loop_exit
                  _
              $region165: #{forward.25} parent=149 // pred_fallthru
                _
            $region150: #{forward.25} parent=145 // pred_fallthru
              _
            // Predicated region
            $region151: #{forward.25} parent=145 // pred_check
              _
            $region152: #{forward.25} parent=145 // pred_check_branch
              %1026 = sbr.rel (0) target = $region154
            $region153: #{forward.25} parent=145 // pred_region
              %s1028 = ssub.s32 16, 1
              loop: start=0, step=1, limit=1
              $region155: #{forward.25} parent=153 // loop_pre_header
                _
              $region156: #{forward.25} parent=153 // loop_header
                %s1030 = sphi 0, %s1034
                %p1031 = scmp.ge.s32.totalorder %s1030, 1
                %s1035 = sphi %s1015, %s1015
                %s1036 = sphi %s1020, %s1020
              $region157: #{forward.25} parent=153 // loop_header_branch
                %1033 = sbr.rel (%p1031) target = $region161
              $region158: #{forward.25} parent=153 // loop_body
                %v1037 = vld [vmem:[%s1035] sm:%s1028]
                %1038 = vst [vmem:[%s1036] sm:%s1028] %v1037
                %v1039 = vld [vmem:[%s1035 + $0x4] sm:%s1028]
                %1040 = vst [vmem:[%s1036 + $0x8] sm:%s1028] %v1039
              $region159: #{forward.25} parent=153 // loop_footer
                %s1034 = sadd.s32 1, %s1030
              $region160: #{forward.25} parent=153 // loop_footer_branch
                %1029 = sbr.rel target = $region156
              $region161: #{forward.25} parent=153 // loop_exit
                _
            $region154: #{forward.25} parent=145 // pred_fallthru
              _
          $region146: #{forward.25} parent=141 // pred_fallthru
            _
          %1065 = vnop
        $region142: #{forward.25} parent=129 // pred_fallthru
          _
      $region130: #{forward.25} parent=5 // pred_fallthru
        _
      %p1066 = scmp.le.s32.totalorder 2, %s15
      // Predicated region
      $region180: #{forward.25} parent=5 // pred_check
        %p1067 = pneg %p1066
      $region181: #{forward.25} parent=5 // pred_check_branch
        %1069 = sbr.rel (%p1067) target = $region183
      $region182: #{forward.25} parent=5 // pred_region
        %s1070 = ssub.s32 %s15, 2
        // Predicated region
        $region184: #{forward.25} parent=182 // pred_check
          %p1071 = pneg %p243
        $region185: #{forward.25} parent=182 // pred_check_branch
          %1073 = sbr.rel (%p1071) target = $region187
        $region186: #{forward.25} parent=182 // pred_region
          %s1074 = sand.u32 %s228, 1
          %s1075 = sand.u32 %s228, 1
          %s1076 = smul.addr %s1075, 8
          %s1077 = scalar_lea.vmem [#allocation4], %s1076
        $region187: #{forward.25} parent=182 // pred_fallthru
          _
      $region183: #{forward.25} parent=5 // pred_fallthru
        _
    $region6: #{forward.25} parent=1 // loop_footer
      %s19 = sadd.s32 1, %s15
    $region7: #{forward.25} parent=1 // loop_footer_branch
      %14 = sbr.rel target = $region3
    $region8: #{forward.25} parent=1 // loop_exit
      _

// kernel: forward.29
$region0: #{forward.29}
  #allocation0 [shape = 'u32[]', space=smem, size = 0x4, offset = 0x4, fixed_abs, tag = 'smem constant byte address 0x4 - core index']
  #allocation1 [shape = 'u32[144,128]{1,0:T(1,128)}', space=vmem, size = 0x12000, scoped, tag = 'internal scratch']
  %s0 = inlined_call_operand.vmem [shape: bf16[16,256], index: 0, kind: input, shape index: {}]
  %s1 = inlined_call_operand.vmem [shape: bf16[128,128], index: 1, kind: input, shape index: {}]
  %s2 = inlined_call_operand.vmem [shape: f32[1,128], index: 2, kind: input, shape index: {}]
  %s3 = inlined_call_operand.vmem [shape: bf16[16,256], index: 3, kind: output, shape index: {}]
  %s4 = sld [smem:[#allocation0]]
  $region123: #{forward.29} parent=0
    _
  %s6 = ssub.s32 1, %s4
  %s7 = scalar_select 0, %s6, %s4
  $region1: #{forward.29} parent=0
    #allocation2 [shape = 'u8[8192]{0}', space=vmem, size = 0x2000, scoped, tag = 'input window, operand 0']
    #allocation3 [shape = 'u8[8192]{0}', space=vmem, size = 0x2000, scoped, tag = 'output window, operand 0']
    loop: start=0, step=1, limit=4
    $region2: #{forward.29} parent=1 // loop_pre_header
      _
    $region3: #{forward.29} parent=1 // loop_header
      %s9 = sphi 0, %s13
      %p10 = scmp.ge.s32.totalorder %s9, 4
      %s19 = sphi 0, %s21
      %s22 = sphi 0, %s19
      %s23 = sphi 0, %s22
      %s39 = sphi 0, %s23
      %s43 = sphi 0, %s43
      %s45 = sphi 0, %s43
      %s46 = sphi 0, %s45
      %s60 = sphi 0, %s46
      %s64 = sphi 0, %s64
      %s66 = sphi 0, %s64
      %s67 = sphi 0, %s66
      %s81 = sphi 0, %s67
      %s87 = sphi 0, %s89
      %s90 = sphi 0, %s87
      %s91 = sphi 0, %s90
      %s107 = sphi 0, %s91
    $region4: #{forward.29} parent=1 // loop_header_branch
      %12 = sbr.rel (%p10) target = $region8
    $region5: #{forward.29} parent=1 // loop_body
      %s14 = ssub.s32 %s9, 1
      %s15 = ssub.s32 %s9, 2
      %s16 = sadd.s32 %s9, 1
      %s17 = ssub.s32 %s9, %s16
      %p18 = scmp.eq.s32.totalorder %s17, 0
      %s20 = sadd.s32 %s19, 1
      %s21 = scalar_select %p18, %s19, %s20
      %p24 = pneg %p18
      %p25 = scmp.eq.s32.totalorder %s9, 1
      %p26 = por %p24, %p25
      %p27 = scmp.ne.s32.totalorder %s19, %s22
      %p28 = scmp.eq.s32.totalorder %s9, 0
      %p29 = por %p27, %p28
      %p30 = scmp.ne.s32.totalorder %s19, %s22
      %p31 = scmp.eq.s32.totalorder %s14, 1
      %p32 = por %p30, %p31
      %p33 = scmp.ne.s32.totalorder %s22, %s23
      %p34 = scmp.eq.s32.totalorder %s14, 0
      %p35 = por %p33, %p34
      %p36 = scmp.ne.s32.totalorder %s22, %s23
      %p37 = scmp.eq.s32.totalorder %s15, 1
      %p38 = por %p36, %p37
      %p40 = scmp.ne.s32.totalorder %s23, %s39
      %p41 = scmp.eq.s32.totalorder %s15, 0
      %p42 = por %p40, %p41
      %s44 = sadd.s32 %s43, 1
      %p47 = scmp.eq.s32.totalorder %s9, 1
      %p48 = scmp.ne.s32.totalorder %s43, %s45
      %p49 = scmp.eq.s32.totalorder %s9, 0
      %p50 = por %p48, %p49
      %p51 = scmp.ne.s32.totalorder %s43, %s45
      %p52 = scmp.eq.s32.totalorder %s14, 1
      %p53 = por %p51, %p52
      %p54 = scmp.ne.s32.totalorder %s45, %s46
      %p55 = scmp.eq.s32.totalorder %s14, 0
      %p56 = por %p54, %p55
      %p57 = scmp.ne.s32.totalorder %s45, %s46
      %p58 = scmp.eq.s32.totalorder %s15, 1
      %p59 = por %p57, %p58
      %p61 = scmp.ne.s32.totalorder %s46, %s60
      %p62 = scmp.eq.s32.totalorder %s15, 0
      %p63 = por %p61, %p62
      %s65 = sadd.s32 %s64, 1
      %p68 = scmp.eq.s32.totalorder %s9, 1
      %p69 = scmp.ne.s32.totalorder %s64, %s66
      %p70 = scmp.eq.s32.totalorder %s9, 0
      %p71 = por %p69, %p70
      %p72 = scmp.ne.s32.totalorder %s64, %s66
      %p73 = scmp.eq.s32.totalorder %s14, 1
      %p74 = por %p72, %p73
      %p75 = scmp.ne.s32.totalorder %s66, %s67
      %p76 = scmp.eq.s32.totalorder %s14, 0
      %p77 = por %p75, %p76
      %p78 = scmp.ne.s32.totalorder %s66, %s67
      %p79 = scmp.eq.s32.totalorder %s15, 1
      %p80 = por %p78, %p79
      %p82 = scmp.ne.s32.totalorder %s67, %s81
      %p83 = scmp.eq.s32.totalorder %s15, 0
      %p84 = por %p82, %p83
      %s85 = ssub.s32 %s9, %s16
      %p86 = scmp.eq.s32.totalorder %s85, 0
      %s88 = sadd.s32 %s87, 1
      %s89 = scalar_select %p86, %s87, %s88
      %p92 = pneg %p86
      %p93 = scmp.eq.s32.totalorder %s9, 1
      %p94 = por %p92, %p93
      %p95 = scmp.ne.s32.totalorder %s87, %s90
      %p96 = scmp.eq.s32.totalorder %s9, 0
      %p97 = por %p95, %p96
      %p98 = scmp.ne.s32.totalorder %s87, %s90
      %p99 = scmp.eq.s32.totalorder %s14, 1
      %p100 = por %p98, %p99
      %p101 = scmp.ne.s32.totalorder %s90, %s91
      %p102 = scmp.eq.s32.totalorder %s14, 0
      %p103 = por %p101, %p102
      %p104 = scmp.ne.s32.totalorder %s90, %s91
      %p105 = scmp.eq.s32.totalorder %s15, 1
      %p106 = por %p104, %p105
      %p108 = scmp.ne.s32.totalorder %s91, %s107
      %p109 = scmp.eq.s32.totalorder %s15, 0
      %p110 = por %p108, %p109
      %p111 = scmp.le.s32.totalorder 1, %s9
      %p112 = scmp.lt.s32.totalorder %s9, 3
      %p113 = pnand %p111, %p112
      %p114 = pneg %p113
      // Predicated region
      $region9: #{forward.29} parent=5 // pred_check
        _
      $region10: #{forward.29} parent=5 // pred_check_branch
        %116 = sbr.rel (%p113) target = $region12
      $region11: #{forward.29} parent=5 // pred_region
        %s117 = ssub.s32 %s9, 1
        // Predicated region
        $region13: #{forward.29} parent=11 // pred_check
          %p118 = pneg %p56
        $region14: #{forward.29} parent=11 // pred_check_branch
          %120 = sbr.rel (%p118) target = $region16
        $region15: #{forward.29} parent=11 // pred_region
          _
        $region16: #{forward.29} parent=11 // pred_fallthru
          _
        // Predicated region
        $region17: #{forward.29} parent=11 // pred_check
          %p121 = pneg %p77
        $region18: #{forward.29} parent=11 // pred_check_branch
          %123 = sbr.rel (%p121) target = $region20
        $region19: #{forward.29} parent=11 // pred_region
          _
        $region20: #{forward.29} parent=11 // pred_fallthru
          _
      $region12: #{forward.29} parent=5 // pred_fallthru
        _
      %p124 = scmp.lt.s32.totalorder %s9, 2
      // Predicated region
      $region21: #{forward.29} parent=5 // pred_check
        %p125 = pneg %p124
      $region22: #{forward.29} parent=5 // pred_check_branch
        %127 = sbr.rel (%p125) target = $region24
      $region23: #{forward.29} parent=5 // pred_region
        // Predicated region
        $region25: #{forward.29} parent=23 // pred_check
          %p128 = pneg %p29
        $region26: #{forward.29} parent=23 // pred_check_branch
          %130 = sbr.rel (%p128) target = $region28
        $region27: #{forward.29} parent=23 // pred_region
          %s131 = sand.u32 %s19, 1
          %s132 = sand.u32 %s19, 1
          %s133 = smul.addr %s132, 8
          %s134 = scalar_lea.vmem [#allocation2], %s133
          %s135 = smul.addr %s9, 4
          %s136 = scalar_lea.vmem %s0, %s135
          // Predicated region
          $region29: #{forward.29} parent=27 // pred_check
            _
          $region30: #{forward.29} parent=27 // pred_check_branch
            %138 = sbr.rel (0) target = $region32
          $region31: #{forward.29} parent=27 // pred_region
            // Predicated region
            $region33: #{forward.29} parent=31 // pred_check
              _
            $region34: #{forward.29} parent=31 // pred_check_branch
              %140 = sbr.rel target = $region36
            $region35: #{forward.29} parent=31 // pred_region
              // Predicated region
              $region48: #{forward.29} parent=35 // pred_check
                _
              $region49: #{forward.29} parent=35 // pred_check_branch
                %158 = sbr.rel (0) target = $region51
              $region50: #{forward.29} parent=35 // pred_region
                loop: start=0, step=1, limit=1
                $region52: #{forward.29} parent=50 // loop_pre_header
                  _
                $region53: #{forward.29} parent=50 // loop_header
                  %s160 = sphi 0, %s164
                  %p161 = scmp.ge.s32.totalorder %s160, 1
                  %s165 = sphi %s136, %s136
                  %s166 = sphi %s134, %s134
                $region54: #{forward.29} parent=50 // loop_header_branch
                  %163 = sbr.rel (%p161) target = $region58
                $region55: #{forward.29} parent=50 // loop_body
                  _
                $region56: #{forward.29} parent=50 // loop_footer
                  %s164 = sadd.s32 1, %s160
                $region57: #{forward.29} parent=50 // loop_footer_branch
                  %159 = sbr.rel target = $region53
                $region58: #{forward.29} parent=50 // loop_exit
                  _
                %s168 = ssub.s32 16, 1
                loop: start=0, step=1, limit=1
                $region59: #{forward.29} parent=50 // loop_pre_header
                  _
                $region60: #{forward.29} parent=50 // loop_header
                  %s170 = sphi 0, %s174
                  %p171 = scmp.ge.s32.totalorder %s170, 1
                  %s175 = sphi %s136, %s136
                  %s176 = sphi %s134, %s134
                $region61: #{forward.29} parent=50 // loop_header_branch
                  %173 = sbr.rel (%p171) target = $region65
                $region62: #{forward.29} parent=50 // loop_body
                  %v177 = vld [vmem:[%s175] sm:%s168]
                  %178 = vst [vmem:[%s176] sm:%s168] %v177
                  %v179 = vld [vmem:[%s175 + $0x8] sm:%s168]
                  %180 = vst [vmem:[%s176 + $0x4] sm:%s168] %v179
                $region63: #{forward.29} parent=50 // loop_footer
                  %s174 = sadd.s32 1, %s170
                $region64: #{forward.29} parent=50 // loop_footer_branch
                  %169 = sbr.rel target = $region60
                $region65: #{forward.29} parent=50 // loop_exit
                  _
              $region51: #{forward.29} parent=35 // pred_fallthru
                _
            $region36: #{forward.29} parent=31 // pred_fallthru
              _
            // Predicated region
            $region37: #{forward.29} parent=31 // pred_check
              _
            $region38: #{forward.29} parent=31 // pred_check_branch
              %142 = sbr.rel (0) target = $region40
            $region39: #{forward.29} parent=31 // pred_region
              %s144 = ssub.s32 16, 1
              loop: start=0, step=1, limit=1
              $region41: #{forward.29} parent=39 // loop_pre_header
                _
              $region42: #{forward.29} parent=39 // loop_header
                %s146 = sphi 0, %s150
                %p147 = scmp.ge.s32.totalorder %s146, 1
                %s151 = sphi %s136, %s136
                %s152 = sphi %s134, %s134
              $region43: #{forward.29} parent=39 // loop_header_branch
                %149 = sbr.rel (%p147) target = $region47
              $region44: #{forward.29} parent=39 // loop_body
                %v153 = vld [vmem:[%s151] sm:%s144]
                %154 = vst [vmem:[%s152] sm:%s144] %v153
                %v155 = vld [vmem:[%s151 + $0x8] sm:%s144]
                %156 = vst [vmem:[%s152 + $0x4] sm:%s144] %v155
              $region45: #{forward.29} parent=39 // loop_footer
                %s150 = sadd.s32 1, %s146
              $region46: #{forward.29} parent=39 // loop_footer_branch
                %145 = sbr.rel target = $region42
              $region47: #{forward.29} parent=39 // loop_exit
                _
            $region40: #{forward.29} parent=31 // pred_fallthru
              _
          $region32: #{forward.29} parent=27 // pred_fallthru
            _
          %181 = vnop
        $region28: #{forward.29} parent=23 // pred_fallthru
          _
      $region24: #{forward.29} parent=5 // pred_fallthru
        _
      %p182 = scmp.le.s32.totalorder 1, %s9
      %p183 = scmp.lt.s32.totalorder %s9, 3
      %p184 = pnand %p182, %p183
      %p185 = pneg %p184
      // Predicated region
      $region66: #{forward.29} parent=5 // pred_check
        _
      $region67: #{forward.29} parent=5 // pred_check_branch
        %187 = sbr.rel (%p184) target = $region69
      $region68: #{forward.29} parent=5 // pred_region
        %s188 = ssub.s32 %s9, 1
        %s189 = sand.u32 %s22, 1
        %s190 = sand.u32 %s22, 1
        %s191 = smul.addr %s190, 8
        %s192 = scalar_lea.vmem [#allocation2], %s191
        // Predicated region
        $region70: #{forward.29} parent=68 // pred_check
          %p193 = pneg %p35
        $region71: #{forward.29} parent=68 // pred_check_branch
          %195 = sbr.rel (%p193) target = $region73
        $region72: #{forward.29} parent=68 // pred_region
          _
        $region73: #{forward.29} parent=68 // pred_fallthru
          _
        %s196 = sand.u32 %s22, 1
        %s197 = sand.u32 %s22, 1
        %s198 = smul.addr %s197, 8
        %s199 = scalar_lea.vmem [#allocation2], %s198
        %p200 = pneg %p35
        %p201 = pneg %p32
        %p202 = pneg %p56
        %p203 = pneg %p53
        %p204 = pneg %p77
        %p205 = pneg %p74
        %p206 = pneg %p103
        %p207 = pneg %p100
        %s208 = sand.u32 %s90, 1
        %s209 = sand.u32 %s90, 1
        %s210 = smul.addr %s209, 8
        %s211 = scalar_lea.vmem [#allocation3], %s210
        %v213 = vld [vmem:[%s192] sm:$0xf]
        %v214 = vld [vmem:[%s192 + $0x4] sm:$0xf]
        %v215 = vld [vmem:[%s1] sm:$0xf]
        %v216 = vld [vmem:[%s1 + $0x4] sm:$0xf]
        %v217 = vld [vmem:[%s1 + $0x8] sm:$0xf]
        %v218 = vld [vmem:[%s1 + $0xc] sm:$0xf]
        %v219 = vld [vmem:[%s1 + $0x10] sm:$0xf]
        %v220 = vld [vmem:[%s1 + $0x14] sm:$0xf]
        %v221 = vld [vmem:[%s1 + $0x18] sm:$0xf]
        %v222 = vld [vmem:[%s1 + $0x1c] sm:$0xf]
        %v223 = vld [vmem:[%s1 + $0x20] sm:$0xf]
        %v224 = vld [vmem:[%s1 + $0x24] sm:$0xf]
        %v225 = vld [vmem:[%s1 + $0x28] sm:$0xf]
        %v226 = vld [vmem:[%s1 + $0x2c] sm:$0xf]
        %v227 = vld [vmem:[%s1 + $0x30] sm:$0xf]
        %v228 = vld [vmem:[%s1 + $0x34] sm:$0xf]
        %v229 = vld [vmem:[%s1 + $0x38] sm:$0xf]
        %v230 = vld [vmem:[%s1 + $0x3c] sm:$0xf]
        %v231 = vld [vmem:[%s2] sm:$0x1]
        %v233 = vlaneseq
        %v234 = vshrl.u32 %v233, 7
        %v235 = vsub.s32 0, %v234
        %v236 = vrot.slane %v231, %v235
        %v240 = vunpack.c.l.b16 %v213
        %v241 = vunpack.c.l.b16 %v214
        %v242 = vpack.c.b16 %v241, %v240
        %v260 = vunpack.c.l.b16 %v215
        %v261 = vunpack.c.l.b16 %v216
        %v262 = vunpack.c.l.b16 %v217
        %v263 = vunpack.c.l.b16 %v218
        %v264 = vunpack.c.l.b16 %v219
        %v265 = vunpack.c.l.b16 %v220
        %v266 = vunpack.c.l.b16 %v221
        %v267 = vunpack.c.l.b16 %v222
        %v268 = vunpack.c.l.b16 %v223
        %v269 = vunpack.c.l.b16 %v224
        %v270 = vunpack.c.l.b16 %v225
        %v271 = vunpack.c.l.b16 %v226
        %v272 = vunpack.c.l.b16 %v227
        %v273 = vunpack.c.l.b16 %v228
        %v274 = vunpack.c.l.b16 %v229
        %v275 = vunpack.c.l.b16 %v230
        %v276 = vpack.c.b16 %v261, %v260
        %v277 = vpack.c.b16 %v263, %v262
        %v278 = vpack.c.b16 %v265, %v264
        %v279 = vpack.c.b16 %v267, %v266
        %v280 = vpack.c.b16 %v269, %v268
        %v281 = vpack.c.b16 %v271, %v270
        %v282 = vpack.c.b16 %v273, %v272
        %v283 = vpack.c.b16 %v275, %v274
        %292 = vmatprep.subr.bf16.mxu0 0
        %293 = vmatpush1.bf16.msra.mxu0 %v283
        %294 = vmatprep.subr.bf16.mxu0 0
        %295 = vmatpush1.bf16.msra.mxu0 %v282
        %296 = vmatprep.subr.bf16.mxu0 0
        %297 = vmatpush1.bf16.msra.mxu0 %v281
        %298 = vmatprep.subr.bf16.mxu0 0
        %299 = vmatpush1.bf16.msra.mxu0 %v280
        %300 = vmatprep.subr.bf16.mxu0 0
        %301 = vmatpush1.bf16.msra.mxu0 %v279
        %302 = vmatprep.subr.bf16.mxu0 0
        %303 = vmatpush1.bf16.msra.mxu0 %v278
        %304 = vmatprep.subr.bf16.mxu0 0
        %305 = vmatpush1.bf16.msra.mxu0 %v277
        %306 = vmatprep.subr.bf16.mxu0 0
        %307 = vmatpush1.bf16.msra.mxu0 %v276
        %308 = vmatprep.subr.bf16.mxu0 0
        %309 = vmatpush2.bf16.msra.mxu0 0
        %310 = vmatprep.subr.bf16.mxu0 0
        %311 = vmatpush2.bf16.msra.mxu0 0
        %312 = vmatprep.subr.bf16.mxu0 0
        %313 = vmatpush2.bf16.msra.mxu0 0
        %314 = vmatprep.subr.bf16.mxu0 0
        %315 = vmatpush2.bf16.msra.mxu0 0
        %316 = vmatprep.subr.bf16.mxu0 0
        %317 = vmatpush2.bf16.msra.mxu0 0
        %318 = vmatprep.subr.bf16.mxu0 0
        %319 = vmatpush2.bf16.msra.mxu0 0
        %320 = vmatprep.subr.bf16.mxu0 0
        %321 = vmatpush2.bf16.msra.mxu0 0
        %322 = vmatprep.subr.bf16.mxu0 0
        %323 = vmatpush2.bf16.msra.mxu0 0
        %324 = vmatprep.mubr.bf16.mxu0 0
        %325 = vmatmul.mubr.bf16.gmra.mxu0 %v242
        %v326 = vpop.f32.mrf.mxu0
        %v327 = vadd.f32 %v236, %v326
        %v328 = vpop.f32.mrf.mxu0
        %v329 = vpop.f32.mrf.mxu0
        %v330 = vadd.f32 %v236, %v329
        %v331 = vpop.f32.mrf.mxu0
        %332 = vdwg.mxu0
        %v333 = vpack.c.bf16 %v330, %v327
        %v335 = vunpack.c.l.b16 %v333
        %v336 = vunpack.c.h.b16 %v333
        %v337 = vpack.c.b16 %v335, %v335
        %v338 = vpack.c.b16 %v336, %v336
        %341 = vst [vmem:[%s211] sm:$0xf] %v337
        %342 = vst [vmem:[%s211 + $0x4] sm:$0xf] %v338
        %s343 = sand.u32 %s90, 1
        %s344 = sand.u32 %s90, 1
        %s345 = smul.addr %s344, 8
        %s346 = scalar_lea.vmem [#allocation3], %s345
        // Predicated region
        $region74: #{forward.29} parent=68 // pred_check
          %p347 = pneg %p100
        $region75: #{forward.29} parent=68 // pred_check_branch
          %349 = sbr.rel (%p347) target = $region77
        $region76: #{forward.29} parent=68 // pred_region
          %s350 = smul.addr %s14, 4
          %s351 = scalar_lea.vmem %s3, %s350
          // Predicated region
          $region78: #{forward.29} parent=76 // pred_check
            _
          $region79: #{forward.29} parent=76 // pred_check_branch
            %353 = sbr.rel (0) target = $region81
          $region80: #{forward.29} parent=76 // pred_region
            // Predicated region
            $region82: #{forward.29} parent=80 // pred_check
              _
            $region83: #{forward.29} parent=80 // pred_check_branch
              %355 = sbr.rel target = $region85
            $region84: #{forward.29} parent=80 // pred_region
              // Predicated region
              $region97: #{forward.29} parent=84 // pred_check
                _
              $region98: #{forward.29} parent=84 // pred_check_branch
                %373 = sbr.rel (0) target = $region100
              $region99: #{forward.29} parent=84 // pred_region
                loop: start=0, step=1, limit=1
                $region101: #{forward.29} parent=99 // loop_pre_header
                  _
                $region102: #{forward.29} parent=99 // loop_header
                  %s375 = sphi 0, %s379
                  %p376 = scmp.ge.s32.totalorder %s375, 1
                  %s380 = sphi %s346, %s346
                  %s381 = sphi %s351, %s351
                $region103: #{forward.29} parent=99 // loop_header_branch
                  %378 = sbr.rel (%p376) target = $region107
                $region104: #{forward.29} parent=99 // loop_body
                  _
                $region105: #{forward.29} parent=99 // loop_footer
                  %s379 = sadd.s32 1, %s375
                $region106: #{forward.29} parent=99 // loop_footer_branch
                  %374 = sbr.rel target = $region102
                $region107: #{forward.29} parent=99 // loop_exit
                  _
                %s383 = ssub.s32 16, 1
                loop: start=0, step=1, limit=1
                $region108: #{forward.29} parent=99 // loop_pre_header
                  _
                $region109: #{forward.29} parent=99 // loop_header
                  %s385 = sphi 0, %s389
                  %p386 = scmp.ge.s32.totalorder %s385, 1
                  %s390 = sphi %s346, %s346
                  %s391 = sphi %s351, %s351
                $region110: #{forward.29} parent=99 // loop_header_branch
                  %388 = sbr.rel (%p386) target = $region114
                $region111: #{forward.29} parent=99 // loop_body
                  %v392 = vld [vmem:[%s390] sm:%s383]
                  %393 = vst [vmem:[%s391] sm:%s383] %v392
                  %v394 = vld [vmem:[%s390 + $0x4] sm:%s383]
                  %395 = vst [vmem:[%s391 + $0x8] sm:%s383] %v394
                $region112: #{forward.29} parent=99 // loop_footer
                  %s389 = sadd.s32 1, %s385
                $region113: #{forward.29} parent=99 // loop_footer_branch
                  %384 = sbr.rel target = $region109
                $region114: #{forward.29} parent=99 // loop_exit
                  _
              $region100: #{forward.29} parent=84 // pred_fallthru
                _
            $region85: #{forward.29} parent=80 // pred_fallthru
              _
            // Predicated region
            $region86: #{forward.29} parent=80 // pred_check
              _
            $region87: #{forward.29} parent=80 // pred_check_branch
              %357 = sbr.rel (0) target = $region89
            $region88: #{forward.29} parent=80 // pred_region
              %s359 = ssub.s32 16, 1
              loop: start=0, step=1, limit=1
              $region90: #{forward.29} parent=88 // loop_pre_header
                _
              $region91: #{forward.29} parent=88 // loop_header
                %s361 = sphi 0, %s365
                %p362 = scmp.ge.s32.totalorder %s361, 1
                %s366 = sphi %s346, %s346
                %s367 = sphi %s351, %s351
              $region92: #{forward.29} parent=88 // loop_header_branch
                %364 = sbr.rel (%p362) target = $region96
              $region93: #{forward.29} parent=88 // loop_body
                %v368 = vld [vmem:[%s366] sm:%s359]
                %369 = vst [vmem:[%s367] sm:%s359] %v368
                %v370 = vld [vmem:[%s366 + $0x4] sm:%s359]
                %371 = vst [vmem:[%s367 + $0x8] sm:%s359] %v370
              $region94: #{forward.29} parent=88 // loop_footer
                %s365 = sadd.s32 1, %s361
              $region95: #{forward.29} parent=88 // loop_footer_branch
                %360 = sbr.rel target = $region91
              $region96: #{forward.29} parent=88 // loop_exit
                _
            $region89: #{forward.29} parent=80 // pred_fallthru
              _
          $region81: #{forward.29} parent=76 // pred_fallthru
            _
          %396 = vnop
        $region77: #{forward.29} parent=68 // pred_fallthru
          _
      $region69: #{forward.29} parent=5 // pred_fallthru
        _
      %p397 = scmp.le.s32.totalorder 2, %s9
      // Predicated region
      $region115: #{forward.29} parent=5 // pred_check
        %p398 = pneg %p397
      $region116: #{forward.29} parent=5 // pred_check_branch
        %400 = sbr.rel (%p398) target = $region118
      $region117: #{forward.29} parent=5 // pred_region
        %s401 = ssub.s32 %s9, 2
        // Predicated region
        $region119: #{forward.29} parent=117 // pred_check
          %p402 = pneg %p106
        $region120: #{forward.29} parent=117 // pred_check_branch
          %404 = sbr.rel (%p402) target = $region122
        $region121: #{forward.29} parent=117 // pred_region
          %s405 = sand.u32 %s91, 1
          %s406 = sand.u32 %s91, 1
          %s407 = smul.addr %s406, 8
          %s408 = scalar_lea.vmem [#allocation3], %s407
        $region122: #{forward.29} parent=117 // pred_fallthru
          _
      $region118: #{forward.29} parent=5 // pred_fallthru
        _
    $region6: #{forward.29} parent=1 // loop_footer
      %s13 = sadd.s32 1, %s9
    $region7: #{forward.29} parent=1 // loop_footer_branch
      %8 = sbr.rel target = $region3
    $region8: #{forward.29} parent=1 // loop_exit
      _

// kernel: forward.30
$region0: #{forward.30}
  #allocation0 [shape = 'u32[]', space=smem, size = 0x4, offset = 0x4, fixed_abs, tag = 'smem constant byte address 0x4 - core index']
  #allocation1 [shape = 'u32[144,128]{1,0:T(1,128)}', space=vmem, size = 0x12000, scoped, tag = 'internal scratch']
  %s0 = inlined_call_operand.vmem [shape: bf16[32,256], index: 0, kind: input, shape index: {}]
  %s1 = inlined_call_operand.vmem [shape: bf16[128,128], index: 1, kind: input, shape index: {}]
  %s2 = inlined_call_operand.vmem [shape: f32[1,128], index: 2, kind: input, shape index: {}]
  %s3 = inlined_call_operand.vmem [shape: bf16[32,256], index: 3, kind: output, shape index: {}]
  %s4 = sld [smem:[#allocation0]]
  $region123: #{forward.30} parent=0
    _
  %s6 = ssub.s32 1, %s4
  %s7 = scalar_select 0, %s6, %s4
  $region1: #{forward.30} parent=0
    #allocation2 [shape = 'u8[16384]{0}', space=vmem, size = 0x4000, scoped, tag = 'input window, operand 0']
    #allocation3 [shape = 'u8[16384]{0}', space=vmem, size = 0x4000, scoped, tag = 'output window, operand 0']
    loop: start=0, step=1, limit=4
    $region2: #{forward.30} parent=1 // loop_pre_header
      _
    $region3: #{forward.30} parent=1 // loop_header
      %s9 = sphi 0, %s13
      %p10 = scmp.ge.s32.totalorder %s9, 4
      %s19 = sphi 0, %s21
      %s22 = sphi 0, %s19
      %s23 = sphi 0, %s22
      %s39 = sphi 0, %s23
      %s43 = sphi 0, %s43
      %s45 = sphi 0, %s43
      %s46 = sphi 0, %s45
      %s60 = sphi 0, %s46
      %s64 = sphi 0, %s64
      %s66 = sphi 0, %s64
      %s67 = sphi 0, %s66
      %s81 = sphi 0, %s67
      %s87 = sphi 0, %s89
      %s90 = sphi 0, %s87
      %s91 = sphi 0, %s90
      %s107 = sphi 0, %s91
    $region4: #{forward.30} parent=1 // loop_header_branch
      %12 = sbr.rel (%p10) target = $region8
    $region5: #{forward.30} parent=1 // loop_body
      %s14 = ssub.s32 %s9, 1
      %s15 = ssub.s32 %s9, 2
      %s16 = sadd.s32 %s9, 1
      %s17 = ssub.s32 %s9, %s16
      %p18 = scmp.eq.s32.totalorder %s17, 0
      %s20 = sadd.s32 %s19, 1
      %s21 = scalar_select %p18, %s19, %s20
      %p24 = pneg %p18
      %p25 = scmp.eq.s32.totalorder %s9, 1
      %p26 = por %p24, %p25
      %p27 = scmp.ne.s32.totalorder %s19, %s22
      %p28 = scmp.eq.s32.totalorder %s9, 0
      %p29 = por %p27, %p28
      %p30 = scmp.ne.s32.totalorder %s19, %s22
      %p31 = scmp.eq.s32.totalorder %s14, 1
      %p32 = por %p30, %p31
      %p33 = scmp.ne.s32.totalorder %s22, %s23
      %p34 = scmp.eq.s32.totalorder %s14, 0
      %p35 = por %p33, %p34
      %p36 = scmp.ne.s32.totalorder %s22, %s23
      %p37 = scmp.eq.s32.totalorder %s15, 1
      %p38 = por %p36, %p37
      %p40 = scmp.ne.s32.totalorder %s23, %s39
      %p41 = scmp.eq.s32.totalorder %s15, 0
      %p42 = por %p40, %p41
      %s44 = sadd.s32 %s43, 1
      %p47 = scmp.eq.s32.totalorder %s9, 1
      %p48 = scmp.ne.s32.totalorder %s43, %s45
      %p49 = scmp.eq.s32.totalorder %s9, 0
      %p50 = por %p48, %p49
      %p51 = scmp.ne.s32.totalorder %s43, %s45
      %p52 = scmp.eq.s32.totalorder %s14, 1
      %p53 = por %p51, %p52
      %p54 = scmp.ne.s32.totalorder %s45, %s46
      %p55 = scmp.eq.s32.totalorder %s14, 0
      %p56 = por %p54, %p55
      %p57 = scmp.ne.s32.totalorder %s45, %s46
      %p58 = scmp.eq.s32.totalorder %s15, 1
      %p59 = por %p57, %p58
      %p61 = scmp.ne.s32.totalorder %s46, %s60
      %p62 = scmp.eq.s32.totalorder %s15, 0
      %p63 = por %p61, %p62
      %s65 = sadd.s32 %s64, 1
      %p68 = scmp.eq.s32.totalorder %s9, 1
      %p69 = scmp.ne.s32.totalorder %s64, %s66
      %p70 = scmp.eq.s32.totalorder %s9, 0
      %p71 = por %p69, %p70
      %p72 = scmp.ne.s32.totalorder %s64, %s66
      %p73 = scmp.eq.s32.totalorder %s14, 1
      %p74 = por %p72, %p73
      %p75 = scmp.ne.s32.totalorder %s66, %s67
      %p76 = scmp.eq.s32.totalorder %s14, 0
      %p77 = por %p75, %p76
      %p78 = scmp.ne.s32.totalorder %s66, %s67
      %p79 = scmp.eq.s32.totalorder %s15, 1
      %p80 = por %p78, %p79
      %p82 = scmp.ne.s32.totalorder %s67, %s81
      %p83 = scmp.eq.s32.totalorder %s15, 0
      %p84 = por %p82, %p83
      %s85 = ssub.s32 %s9, %s16
      %p86 = scmp.eq.s32.totalorder %s85, 0
      %s88 = sadd.s32 %s87, 1
      %s89 = scalar_select %p86, %s87, %s88
      %p92 = pneg %p86
      %p93 = scmp.eq.s32.totalorder %s9, 1
      %p94 = por %p92, %p93
      %p95 = scmp.ne.s32.totalorder %s87, %s90
      %p96 = scmp.eq.s32.totalorder %s9, 0
      %p97 = por %p95, %p96
      %p98 = scmp.ne.s32.totalorder %s87, %s90
      %p99 = scmp.eq.s32.totalorder %s14, 1
      %p100 = por %p98, %p99
      %p101 = scmp.ne.s32.totalorder %s90, %s91
      %p102 = scmp.eq.s32.totalorder %s14, 0
      %p103 = por %p101, %p102
      %p104 = scmp.ne.s32.totalorder %s90, %s91
      %p105 = scmp.eq.s32.totalorder %s15, 1
      %p106 = por %p104, %p105
      %p108 = scmp.ne.s32.totalorder %s91, %s107
      %p109 = scmp.eq.s32.totalorder %s15, 0
      %p110 = por %p108, %p109
      %p111 = scmp.le.s32.totalorder 1, %s9
      %p112 = scmp.lt.s32.totalorder %s9, 3
      %p113 = pnand %p111, %p112
      %p114 = pneg %p113
      // Predicated region
      $region9: #{forward.30} parent=5 // pred_check
        _
      $region10: #{forward.30} parent=5 // pred_check_branch
        %116 = sbr.rel (%p113) target = $region12
      $region11: #{forward.30} parent=5 // pred_region
        %s117 = ssub.s32 %s9, 1
        // Predicated region
        $region13: #{forward.30} parent=11 // pred_check
          %p118 = pneg %p56
        $region14: #{forward.30} parent=11 // pred_check_branch
          %120 = sbr.rel (%p118) target = $region16
        $region15: #{forward.30} parent=11 // pred_region
          _
        $region16: #{forward.30} parent=11 // pred_fallthru
          _
        // Predicated region
        $region17: #{forward.30} parent=11 // pred_check
          %p121 = pneg %p77
        $region18: #{forward.30} parent=11 // pred_check_branch
          %123 = sbr.rel (%p121) target = $region20
        $region19: #{forward.30} parent=11 // pred_region
          _
        $region20: #{forward.30} parent=11 // pred_fallthru
          _
      $region12: #{forward.30} parent=5 // pred_fallthru
        _
      %p124 = scmp.lt.s32.totalorder %s9, 2
      // Predicated region
      $region21: #{forward.30} parent=5 // pred_check
        %p125 = pneg %p124
      $region22: #{forward.30} parent=5 // pred_check_branch
        %127 = sbr.rel (%p125) target = $region24
      $region23: #{forward.30} parent=5 // pred_region
        // Predicated region
        $region25: #{forward.30} parent=23 // pred_check
          %p128 = pneg %p29
        $region26: #{forward.30} parent=23 // pred_check_branch
          %130 = sbr.rel (%p128) target = $region28
        $region27: #{forward.30} parent=23 // pred_region
          %s131 = sand.u32 %s19, 1
          %s132 = sand.u32 %s19, 1
          %s133 = smul.addr %s132, 16
          %s134 = scalar_lea.vmem [#allocation2], %s133
          %s135 = smul.addr %s9, 4
          %s136 = scalar_lea.vmem %s0, %s135
          // Predicated region
          $region29: #{forward.30} parent=27 // pred_check
            _
          $region30: #{forward.30} parent=27 // pred_check_branch
            %138 = sbr.rel (0) target = $region32
          $region31: #{forward.30} parent=27 // pred_region
            // Predicated region
            $region33: #{forward.30} parent=31 // pred_check
              _
            $region34: #{forward.30} parent=31 // pred_check_branch
              %140 = sbr.rel target = $region36
            $region35: #{forward.30} parent=31 // pred_region
              // Predicated region
              $region48: #{forward.30} parent=35 // pred_check
                _
              $region49: #{forward.30} parent=35 // pred_check_branch
                %162 = sbr.rel (0) target = $region51
              $region50: #{forward.30} parent=35 // pred_region
                loop: start=0, step=1, limit=1
                $region52: #{forward.30} parent=50 // loop_pre_header
                  _
                $region53: #{forward.30} parent=50 // loop_header
                  %s164 = sphi 0, %s168
                  %p165 = scmp.ge.s32.totalorder %s164, 1
                  %s169 = sphi %s136, %s136
                  %s170 = sphi %s134, %s134
                $region54: #{forward.30} parent=50 // loop_header_branch
                  %167 = sbr.rel (%p165) target = $region58
                $region55: #{forward.30} parent=50 // loop_body
                  _
                $region56: #{forward.30} parent=50 // loop_footer
                  %s168 = sadd.s32 1, %s164
                $region57: #{forward.30} parent=50 // loop_footer_branch
                  %163 = sbr.rel target = $region53
                $region58: #{forward.30} parent=50 // loop_exit
                  _
                %s172 = ssub.s32 16, 1
                loop: start=0, step=1, limit=1
                $region59: #{forward.30} parent=50 // loop_pre_header
                  _
                $region60: #{forward.30} parent=50 // loop_header
                  %s174 = sphi 0, %s178
                  %p175 = scmp.ge.s32.totalorder %s174, 1
                  %s179 = sphi %s136, %s136
                  %s180 = sphi %s134, %s134
                $region61: #{forward.30} parent=50 // loop_header_branch
                  %177 = sbr.rel (%p175) target = $region65
                $region62: #{forward.30} parent=50 // loop_body
                  %v181 = vld [vmem:[%s179] sm:%s172]
                  %182 = vst [vmem:[%s180] sm:%s172] %v181
                  %v183 = vld [vmem:[%s179 + $0x8] sm:%s172]
                  %184 = vst [vmem:[%s180 + $0x4] sm:%s172] %v183
                  %v185 = vld [vmem:[%s179 + $0x10] sm:%s172]
                  %186 = vst [vmem:[%s180 + $0x8] sm:%s172] %v185
                  %v187 = vld [vmem:[%s179 + $0x18] sm:%s172]
                  %188 = vst [vmem:[%s180 + $0xc] sm:%s172] %v187
                $region63: #{forward.30} parent=50 // loop_footer
                  %s178 = sadd.s32 1, %s174
                $region64: #{forward.30} parent=50 // loop_footer_branch
                  %173 = sbr.rel target = $region60
                $region65: #{forward.30} parent=50 // loop_exit
                  _
              $region51: #{forward.30} parent=35 // pred_fallthru
                _
            $region36: #{forward.30} parent=31 // pred_fallthru
              _
            // Predicated region
            $region37: #{forward.30} parent=31 // pred_check
              _
            $region38: #{forward.30} parent=31 // pred_check_branch
              %142 = sbr.rel (0) target = $region40
            $region39: #{forward.30} parent=31 // pred_region
              %s144 = ssub.s32 16, 1
              loop: start=0, step=1, limit=1
              $region41: #{forward.30} parent=39 // loop_pre_header
                _
              $region42: #{forward.30} parent=39 // loop_header
                %s146 = sphi 0, %s150
                %p147 = scmp.ge.s32.totalorder %s146, 1
                %s151 = sphi %s136, %s136
                %s152 = sphi %s134, %s134
              $region43: #{forward.30} parent=39 // loop_header_branch
                %149 = sbr.rel (%p147) target = $region47
              $region44: #{forward.30} parent=39 // loop_body
                %v153 = vld [vmem:[%s151] sm:%s144]
                %154 = vst [vmem:[%s152] sm:%s144] %v153
                %v155 = vld [vmem:[%s151 + $0x8] sm:%s144]
                %156 = vst [vmem:[%s152 + $0x4] sm:%s144] %v155
                %v157 = vld [vmem:[%s151 + $0x10] sm:%s144]
                %158 = vst [vmem:[%s152 + $0x8] sm:%s144] %v157
                %v159 = vld [vmem:[%s151 + $0x18] sm:%s144]
                %160 = vst [vmem:[%s152 + $0xc] sm:%s144] %v159
              $region45: #{forward.30} parent=39 // loop_footer
                %s150 = sadd.s32 1, %s146
              $region46: #{forward.30} parent=39 // loop_footer_branch
                %145 = sbr.rel target = $region42
              $region47: #{forward.30} parent=39 // loop_exit
                _
            $region40: #{forward.30} parent=31 // pred_fallthru
              _
          $region32: #{forward.30} parent=27 // pred_fallthru
            _
          %189 = vnop
        $region28: #{forward.30} parent=23 // pred_fallthru
          _
      $region24: #{forward.30} parent=5 // pred_fallthru
        _
      %p190 = scmp.le.s32.totalorder 1, %s9
      %p191 = scmp.lt.s32.totalorder %s9, 3
      %p192 = pnand %p190, %p191
      %p193 = pneg %p192
      // Predicated region
      $region66: #{forward.30} parent=5 // pred_check
        _
      $region67: #{forward.30} parent=5 // pred_check_branch
        %195 = sbr.rel (%p192) target = $region69
      $region68: #{forward.30} parent=5 // pred_region
        %s196 = ssub.s32 %s9, 1
        %s197 = sand.u32 %s22, 1
        %s198 = sand.u32 %s22, 1
        %s199 = smul.addr %s198, 16
        %s200 = scalar_lea.vmem [#allocation2], %s199
        // Predicated region
        $region70: #{forward.30} parent=68 // pred_check
          %p201 = pneg %p35
        $region71: #{forward.30} parent=68 // pred_check_branch
          %203 = sbr.rel (%p201) target = $region73
        $region72: #{forward.30} parent=68 // pred_region
          _
        $region73: #{forward.30} parent=68 // pred_fallthru
          _
        %s204 = sand.u32 %s22, 1
        %s205 = sand.u32 %s22, 1
        %s206 = smul.addr %s205, 16
        %s207 = scalar_lea.vmem [#allocation2], %s206
        %p208 = pneg %p35
        %p209 = pneg %p32
        %p210 = pneg %p56
        %p211 = pneg %p53
        %p212 = pneg %p77
        %p213 = pneg %p74
        %p214 = pneg %p103
        %p215 = pneg %p100
        %s216 = sand.u32 %s90, 1
        %s217 = sand.u32 %s90, 1
        %s218 = smul.addr %s217, 16
        %s219 = scalar_lea.vmem [#allocation3], %s218
        %v221 = vld [vmem:[%s200] sm:$0xf]
        %v222 = vld [vmem:[%s200 + $0x4] sm:$0xf]
        %v223 = vld [vmem:[%s200 + $0x8] sm:$0xf]
        %v224 = vld [vmem:[%s200 + $0xc] sm:$0xf]
        %v225 = vld [vmem:[%s1] sm:$0xf]
        %v226 = vld [vmem:[%s1 + $0x4] sm:$0xf]
        %v227 = vld [vmem:[%s1 + $0x8] sm:$0xf]
        %v228 = vld [vmem:[%s1 + $0xc] sm:$0xf]
        %v229 = vld [vmem:[%s1 + $0x10] sm:$0xf]
        %v230 = vld [vmem:[%s1 + $0x14] sm:$0xf]
        %v231 = vld [vmem:[%s1 + $0x18] sm:$0xf]
        %v232 = vld [vmem:[%s1 + $0x1c] sm:$0xf]
        %v233 = vld [vmem:[%s1 + $0x20] sm:$0xf]
        %v234 = vld [vmem:[%s1 + $0x24] sm:$0xf]
        %v235 = vld [vmem:[%s1 + $0x28] sm:$0xf]
        %v236 = vld [vmem:[%s1 + $0x2c] sm:$0xf]
        %v237 = vld [vmem:[%s1 + $0x30] sm:$0xf]
        %v238 = vld [vmem:[%s1 + $0x34] sm:$0xf]
        %v239 = vld [vmem:[%s1 + $0x38] sm:$0xf]
        %v240 = vld [vmem:[%s1 + $0x3c] sm:$0xf]
        %v241 = vld [vmem:[%s2] sm:$0x1]
        %v243 = vlaneseq
        %v244 = vshrl.u32 %v243, 7
        %v245 = vsub.s32 0, %v244
        %v246 = vrot.slane %v241, %v245
        %v252 = vunpack.c.l.b16 %v221
        %v253 = vunpack.c.l.b16 %v222
        %v254 = vunpack.c.l.b16 %v223
        %v255 = vunpack.c.l.b16 %v224
        %v256 = vpack.c.b16 %v253, %v252
        %v257 = vpack.c.b16 %v255, %v254
        %v276 = vunpack.c.l.b16 %v225
        %v277 = vunpack.c.l.b16 %v226
        %v278 = vunpack.c.l.b16 %v227
        %v279 = vunpack.c.l.b16 %v228
        %v280 = vunpack.c.l.b16 %v229
        %v281 = vunpack.c.l.b16 %v230
        %v282 = vunpack.c.l.b16 %v231
        %v283 = vunpack.c.l.b16 %v232
        %v284 = vunpack.c.l.b16 %v233
        %v285 = vunpack.c.l.b16 %v234
        %v286 = vunpack.c.l.b16 %v235
        %v287 = vunpack.c.l.b16 %v236
        %v288 = vunpack.c.l.b16 %v237
        %v289 = vunpack.c.l.b16 %v238
        %v290 = vunpack.c.l.b16 %v239
        %v291 = vunpack.c.l.b16 %v240
        %v292 = vpack.c.b16 %v277, %v276
        %v293 = vpack.c.b16 %v279, %v278
        %v294 = vpack.c.b16 %v281, %v280
        %v295 = vpack.c.b16 %v283, %v282
        %v296 = vpack.c.b16 %v285, %v284
        %v297 = vpack.c.b16 %v287, %v286
        %v298 = vpack.c.b16 %v289, %v288
        %v299 = vpack.c.b16 %v291, %v290
        %308 = vmatprep.subr.bf16.mxu0 0
        %309 = vmatpush1.bf16.msra.mxu0 %v299
        %310 = vmatprep.subr.bf16.mxu0 0
        %311 = vmatpush1.bf16.msra.mxu0 %v298
        %312 = vmatprep.subr.bf16.mxu0 0
        %313 = vmatpush1.bf16.msra.mxu0 %v297
        %314 = vmatprep.subr.bf16.mxu0 0
        %315 = vmatpush1.bf16.msra.mxu0 %v296
        %316 = vmatprep.subr.bf16.mxu0 0
        %317 = vmatpush1.bf16.msra.mxu0 %v295
        %318 = vmatprep.subr.bf16.mxu0 0
        %319 = vmatpush1.bf16.msra.mxu0 %v294
        %320 = vmatprep.subr.bf16.mxu0 0
        %321 = vmatpush1.bf16.msra.mxu0 %v293
        %322 = vmatprep.subr.bf16.mxu0 0
        %323 = vmatpush1.bf16.msra.mxu0 %v292
        %324 = vmatprep.subr.bf16.mxu0 0
        %325 = vmatpush2.bf16.msra.mxu0 0
        %326 = vmatprep.subr.bf16.mxu0 0
        %327 = vmatpush2.bf16.msra.mxu0 0
        %328 = vmatprep.subr.bf16.mxu0 0
        %329 = vmatpush2.bf16.msra.mxu0 0
        %330 = vmatprep.subr.bf16.mxu0 0
        %331 = vmatpush2.bf16.msra.mxu0 0
        %332 = vmatprep.subr.bf16.mxu0 0
        %333 = vmatpush2.bf16.msra.mxu0 0
        %334 = vmatprep.subr.bf16.mxu0 0
        %335 = vmatpush2.bf16.msra.mxu0 0
        %336 = vmatprep.subr.bf16.mxu0 0
        %337 = vmatpush2.bf16.msra.mxu0 0
        %338 = vmatprep.subr.bf16.mxu0 0
        %339 = vmatpush2.bf16.msra.mxu0 0
        %340 = vmatprep.mubr.bf16.mxu0 0
        %341 = vmatmul.mubr.bf16.gmra.mxu0 %v256
        %v342 = vpop.f32.mrf.mxu0
        %v343 = vadd.f32 %v246, %v342
        %v344 = vpop.f32.mrf.mxu0
        %v345 = vpop.f32.mrf.mxu0
        %v346 = vadd.f32 %v246, %v345
        %v347 = vpop.f32.mrf.mxu0
        %348 = vmatprep.mubr.bf16.mxu0 0
        %349 = vmatmul.mubr.bf16.gmra.mxu0 %v257
        %v350 = vpop.f32.mrf.mxu0
        %v351 = vadd.f32 %v246, %v350
        %v352 = vpop.f32.mrf.mxu0
        %v353 = vpop.f32.mrf.mxu0
        %v354 = vadd.f32 %v246, %v353
        %v355 = vpop.f32.mrf.mxu0
        %356 = vdwg.mxu0
        %v357 = vpack.c.bf16 %v346, %v343
        %v358 = vpack.c.bf16 %v354, %v351
        %v361 = vunpack.c.l.b16 %v357
        %v362 = vunpack.c.h.b16 %v357
        %v363 = vunpack.c.l.b16 %v358
        %v364 = vunpack.c.h.b16 %v358
        %v365 = vpack.c.b16 %v361, %v361
        %v366 = vpack.c.b16 %v362, %v362
        %v367 = vpack.c.b16 %v363, %v363
        %v368 = vpack.c.b16 %v364, %v364
        %373 = vst [vmem:[%s219] sm:$0xf] %v365
        %374 = vst [vmem:[%s219 + $0x4] sm:$0xf] %v366
        %375 = vst [vmem:[%s219 + $0x8] sm:$0xf] %v367
        %376 = vst [vmem:[%s219 + $0xc] sm:$0xf] %v368
        %s377 = sand.u32 %s90, 1
        %s378 = sand.u32 %s90, 1
        %s379 = smul.addr %s378, 16
        %s380 = scalar_lea.vmem [#allocation3], %s379
        // Predicated region
        $region74: #{forward.30} parent=68 // pred_check
          %p381 = pneg %p100
        $region75: #{forward.30} parent=68 // pred_check_branch
          %383 = sbr.rel (%p381) target = $region77
        $region76: #{forward.30} parent=68 // pred_region
          %s384 = smul.addr %s14, 4
          %s385 = scalar_lea.vmem %s3, %s384
          // Predicated region
          $region78: #{forward.30} parent=76 // pred_check
            _
          $region79: #{forward.30} parent=76 // pred_check_branch
            %387 = sbr.rel (0) target = $region81
          $region80: #{forward.30} parent=76 // pred_region
            // Predicated region
            $region82: #{forward.30} parent=80 // pred_check
              _
            $region83: #{forward.30} parent=80 // pred_check_branch
              %389 = sbr.rel target = $region85
            $region84: #{forward.30} parent=80 // pred_region
              // Predicated region
              $region97: #{forward.30} parent=84 // pred_check
                _
              $region98: #{forward.30} parent=84 // pred_check_branch
                %411 = sbr.rel (0) target = $region100
              $region99: #{forward.30} parent=84 // pred_region
                loop: start=0, step=1, limit=1
                $region101: #{forward.30} parent=99 // loop_pre_header
                  _
                $region102: #{forward.30} parent=99 // loop_header
                  %s413 = sphi 0, %s417
                  %p414 = scmp.ge.s32.totalorder %s413, 1
                  %s418 = sphi %s380, %s380
                  %s419 = sphi %s385, %s385
                $region103: #{forward.30} parent=99 // loop_header_branch
                  %416 = sbr.rel (%p414) target = $region107
                $region104: #{forward.30} parent=99 // loop_body
                  _
                $region105: #{forward.30} parent=99 // loop_footer
                  %s417 = sadd.s32 1, %s413
                $region106: #{forward.30} parent=99 // loop_footer_branch
                  %412 = sbr.rel target = $region102
                $region107: #{forward.30} parent=99 // loop_exit
                  _
                %s421 = ssub.s32 16, 1
                loop: start=0, step=1, limit=1
                $region108: #{forward.30} parent=99 // loop_pre_header
                  _
                $region109: #{forward.30} parent=99 // loop_header
                  %s423 = sphi 0, %s427
                  %p424 = scmp.ge.s32.totalorder %s423, 1
                  %s428 = sphi %s380, %s380
                  %s429 = sphi %s385, %s385
                $region110: #{forward.30} parent=99 // loop_header_branch
                  %426 = sbr.rel (%p424) target = $region114
                $region111: #{forward.30} parent=99 // loop_body
                  %v430 = vld [vmem:[%s428] sm:%s421]
                  %431 = vst [vmem:[%s429] sm:%s421] %v430
                  %v432 = vld [vmem:[%s428 + $0x4] sm:%s421]
                  %433 = vst [vmem:[%s429 + $0x8] sm:%s421] %v432
                  %v434 = vld [vmem:[%s428 + $0x8] sm:%s421]
                  %435 = vst [vmem:[%s429 + $0x10] sm:%s421] %v434
                  %v436 = vld [vmem:[%s428 + $0xc] sm:%s421]
                  %437 = vst [vmem:[%s429 + $0x18] sm:%s421] %v436
                $region112: #{forward.30} parent=99 // loop_footer
                  %s427 = sadd.s32 1, %s423
                $region113: #{forward.30} parent=99 // loop_footer_branch
                  %422 = sbr.rel target = $region109
                $region114: #{forward.30} parent=99 // loop_exit
                  _
              $region100: #{forward.30} parent=84 // pred_fallthru
                _
            $region85: #{forward.30} parent=80 // pred_fallthru
              _
            // Predicated region
            $region86: #{forward.30} parent=80 // pred_check
              _
            $region87: #{forward.30} parent=80 // pred_check_branch
              %391 = sbr.rel (0) target = $region89
            $region88: #{forward.30} parent=80 // pred_region
              %s393 = ssub.s32 16, 1
              loop: start=0, step=1, limit=1
              $region90: #{forward.30} parent=88 // loop_pre_header
                _
              $region91: #{forward.30} parent=88 // loop_header
                %s395 = sphi 0, %s399
                %p396 = scmp.ge.s32.totalorder %s395, 1
                %s400 = sphi %s380, %s380
                %s401 = sphi %s385, %s385
              $region92: #{forward.30} parent=88 // loop_header_branch
                %398 = sbr.rel (%p396) target = $region96
              $region93: #{forward.30} parent=88 // loop_body
                %v402 = vld [vmem:[%s400] sm:%s393]
                %403 = vst [vmem:[%s401] sm:%s393] %v402
                %v404 = vld [vmem:[%s400 + $0x4] sm:%s393]
                %405 = vst [vmem:[%s401 + $0x8] sm:%s393] %v404
                %v406 = vld [vmem:[%s400 + $0x8] sm:%s393]
                %407 = vst [vmem:[%s401 + $0x10] sm:%s393] %v406
                %v408 = vld [vmem:[%s400 + $0xc] sm:%s393]
                %409 = vst [vmem:[%s401 + $0x18] sm:%s393] %v408
              $region94: #{forward.30} parent=88 // loop_footer
                %s399 = sadd.s32 1, %s395
              $region95: #{forward.30} parent=88 // loop_footer_branch
                %394 = sbr.rel target = $region91
              $region96: #{forward.30} parent=88 // loop_exit
                _
            $region89: #{forward.30} parent=80 // pred_fallthru
              _
          $region81: #{forward.30} parent=76 // pred_fallthru
            _
          %438 = vnop
        $region77: #{forward.30} parent=68 // pred_fallthru
          _
      $region69: #{forward.30} parent=5 // pred_fallthru
        _
      %p439 = scmp.le.s32.totalorder 2, %s9
      // Predicated region
      $region115: #{forward.30} parent=5 // pred_check
        %p440 = pneg %p439
      $region116: #{forward.30} parent=5 // pred_check_branch
        %442 = sbr.rel (%p440) target = $region118
      $region117: #{forward.30} parent=5 // pred_region
        %s443 = ssub.s32 %s9, 2
        // Predicated region
        $region119: #{forward.30} parent=117 // pred_check
          %p444 = pneg %p106
        $region120: #{forward.30} parent=117 // pred_check_branch
          %446 = sbr.rel (%p444) target = $region122
        $region121: #{forward.30} parent=117 // pred_region
          %s447 = sand.u32 %s91, 1
          %s448 = sand.u32 %s91, 1
          %s449 = smul.addr %s448, 16
          %s450 = scalar_lea.vmem [#allocation3], %s449
        $region122: #{forward.30} parent=117 // pred_fallthru
          _
      $region118: #{forward.30} parent=5 // pred_fallthru
        _
    $region6: #{forward.30} parent=1 // loop_footer
      %s13 = sadd.s32 1, %s9
    $region7: #{forward.30} parent=1 // loop_footer_branch
      %8 = sbr.rel target = $region3
    $region8: #{forward.30} parent=1 // loop_exit
      _

// kernel: forward.45
$region0: #{forward.45}
  #allocation0 [shape = 'u32[]', space=smem, size = 0x4, offset = 0x4, fixed_abs, tag = 'smem constant byte address 0x4 - core index']
  #allocation1 [shape = 'u32[144,128]{1,0:T(1,128)}', space=vmem, size = 0x12000, scoped, tag = 'internal scratch']
  %s0 = inlined_call_operand.vmem [shape: bf16[32,256], index: 0, kind: input, shape index: {}]
  %s1 = inlined_call_operand.vmem [shape: bf16[16,256], index: 1, kind: input, shape index: {}]
  %s2 = inlined_call_operand.vmem [shape: bf16[128,128], index: 2, kind: input, shape index: {}]
  %s3 = inlined_call_operand.vmem [shape: bf16[128,128], index: 3, kind: input, shape index: {}]
  %s4 = inlined_call_operand.vmem [shape: f32[1,128], index: 4, kind: input, shape index: {}]
  %s5 = inlined_call_operand.hbm [shape: f32[2,128], index: 5, kind: output, shape index: {}]
  %s6 = sld [smem:[#allocation0]]
  $region30: #{forward.45} parent=0
    _
  %s8 = ssub.s32 1, %s6
  %s9 = scalar_select 0, %s8, %s6
  $region1: #{forward.45} parent=0
    #allocation2 [shape = 'u8[1024]{0}', space=vmem, size = 0x400, scoped, tag = 'output window, operand 0, single buffered']
    #allocation3 [shape = 's32[1]{0}', space=sflag, size = 0x4, scoped, tag = 'scoped memory for forward.45']
    %10 = vsyncpa [#allocation3], 0
    // Predicated region
    $region2: #{forward.45} parent=1 // pred_check
      _
    $region3: #{forward.45} parent=1 // pred_check_branch
      %12 = sbr.rel (0) target = $region5
    $region4: #{forward.45} parent=1 // pred_region
      _
    $region5: #{forward.45} parent=1 // pred_fallthru
      _
    // Predicated region
    $region6: #{forward.45} parent=1 // pred_check
      _
    $region7: #{forward.45} parent=1 // pred_check_branch
      %14 = sbr.rel (0) target = $region9
    $region8: #{forward.45} parent=1 // pred_region
      _
    $region9: #{forward.45} parent=1 // pred_fallthru
      _
    // Predicated region
    $region10: #{forward.45} parent=1 // pred_check
      _
    $region11: #{forward.45} parent=1 // pred_check_branch
      %16 = sbr.rel (0) target = $region13
    $region12: #{forward.45} parent=1 // pred_region
      _
    $region13: #{forward.45} parent=1 // pred_fallthru
      _
    // Predicated region
    $region14: #{forward.45} parent=1 // pred_check
      _
    $region15: #{forward.45} parent=1 // pred_check_branch
      %18 = sbr.rel (0) target = $region17
    $region16: #{forward.45} parent=1 // pred_region
      _
    $region17: #{forward.45} parent=1 // pred_fallthru
      _
    // Predicated region
    $region18: #{forward.45} parent=1 // pred_check
      _
    $region19: #{forward.45} parent=1 // pred_check_branch
      %20 = sbr.rel (0) target = $region21
    $region20: #{forward.45} parent=1 // pred_region
      _
    $region21: #{forward.45} parent=1 // pred_fallthru
      _
    %v22 = vld [vmem:[%s0] sm:$0xff]
    %v23 = vld [vmem:[%s0 + $0x8] sm:$0xff]
    %v24 = vld [vmem:[%s0 + $0x10] sm:$0xff]
    %v25 = vld [vmem:[%s0 + $0x18] sm:$0xff]
    %v26 = vunpack.c.l.bf16 %v22
    %v27 = vunpack.c.h.bf16 %v22
    %v28 = vunpack.c.l.bf16 %v23
    %v29 = vunpack.c.h.bf16 %v23
    %v30 = vunpack.c.l.bf16 %v24
    %v31 = vunpack.c.h.bf16 %v24
    %v32 = vunpack.c.l.bf16 %v25
    %v33 = vunpack.c.h.bf16 %v25
    %v34 = vld [vmem:[%s1] sm:$0xff]
    %v35 = vld [vmem:[%s1 + $0x8] sm:$0xff]
    %v36 = vunpack.c.l.bf16 %v34
    %v37 = vunpack.c.h.bf16 %v34
    %v38 = vunpack.c.l.bf16 %v35
    %v39 = vunpack.c.h.bf16 %v35
    %v40 = vlaneseq
    %v41 = vshrl.u32 %v40, 7
    %v42 = vadd.s32 %v41, 8
    %v43 = vadd.s32 %v41, 16
    %v44 = vadd.s32 %v41, 24
    %vm45 = vcmp.lt.s32.totalorder %v41, 24
    %vm46 = vcmp.lt.s32.totalorder %v42, 24
    %vm47 = vcmp.lt.s32.totalorder %v43, 24
    %vm48 = vcmp.lt.s32.totalorder %v44, 24
    %v49 = vsel %vm45, %v26, 0.0
    %v50 = vsel %vm45, %v27, 0.0
    %v51 = vsel %vm46, %v28, 0.0
    %v52 = vsel %vm46, %v29, 0.0
    %v53 = vsel %vm47, %v30, 0.0
    %v54 = vsel %vm47, %v31, 0.0
    %v55 = vsel %vm48, %v32, 0.0
    %v56 = vsel %vm48, %v33, 0.0
    %v57 = vadd.f32 %v49, %v51
    %v58 = vadd.f32 %v57, %v53
    %v59 = vadd.f32 %v58, %v55
    %v60 = vrot.slane %v59, 4
    %v61 = vadd.f32 %v59, %v60
    %v62 = vrot.slane %v61, 2
    %v63 = vadd.f32 %v61, %v62
    %v64 = vrot.slane %v63, 1
    %v65 = vadd.f32 %v63, %v64
    %v66 = vadd.f32 %v50, %v52
    %v67 = vadd.f32 %v66, %v54
    %v68 = vadd.f32 %v67, %v56
    %v69 = vrot.slane %v68, 4
    %v70 = vadd.f32 %v68, %v69
    %v71 = vrot.slane %v70, 2
    %v72 = vadd.f32 %v70, %v71
    %v73 = vrot.slane %v72, 1
    %v74 = vadd.f32 %v72, %v73
    %v75 = vmul.f32 %v65, 0.041666668
    %v76 = vmul.f32 %v74, 0.041666668
    %vm77 = vcmp.lt.s32.totalorder %v41, 16
    %vm78 = vcmp.lt.s32.totalorder %v42, 16
    %v79 = vsel %vm77, %v36, 0.0
    %v80 = vsel %vm77, %v37, 0.0
    %v81 = vsel %vm78, %v38, 0.0
    %v82 = vsel %vm78, %v39, 0.0
    %v83 = vadd.f32 %v79, %v81
    %v84 = vrot.slane %v83, 4
    %v85 = vadd.f32 %v83, %v84
    %v86 = vrot.slane %v85, 2
    %v87 = vadd.f32 %v85, %v86
    %v88 = vrot.slane %v87, 1
    %v89 = vadd.f32 %v87, %v88
    %v90 = vadd.f32 %v80, %v82
    %v91 = vrot.slane %v90, 4
    %v92 = vadd.f32 %v90, %v91
    %v93 = vrot.slane %v92, 2
    %v94 = vadd.f32 %v92, %v93
    %v95 = vrot.slane %v94, 1
    %v96 = vadd.f32 %v94, %v95
    %v97 = vmul.f32 %v89, 0.0625
    %v98 = vmul.f32 %v96, 0.0625
    %v99 = vpack.c.bf16 %v75, %v75
    %v100 = vpack.c.bf16 %v97, %v97
    %v101 = vld [vmem:[%s2] sm:$0xf]
    %v102 = vld [vmem:[%s2 + $0x4] sm:$0xf]
    %v103 = vld [vmem:[%s2 + $0x8] sm:$0xf]
    %v104 = vld [vmem:[%s2 + $0xc] sm:$0xf]
    %v105 = vld [vmem:[%s2 + $0x10] sm:$0xf]
    %v106 = vld [vmem:[%s2 + $0x14] sm:$0xf]
    %v107 = vld [vmem:[%s2 + $0x18] sm:$0xf]
    %v108 = vld [vmem:[%s2 + $0x1c] sm:$0xf]
    %v109 = vld [vmem:[%s2 + $0x20] sm:$0xf]
    %v110 = vld [vmem:[%s2 + $0x24] sm:$0xf]
    %v111 = vld [vmem:[%s2 + $0x28] sm:$0xf]
    %v112 = vld [vmem:[%s2 + $0x2c] sm:$0xf]
    %v113 = vld [vmem:[%s2 + $0x30] sm:$0xf]
    %v114 = vld [vmem:[%s2 + $0x34] sm:$0xf]
    %v115 = vld [vmem:[%s2 + $0x38] sm:$0xf]
    %v116 = vld [vmem:[%s2 + $0x3c] sm:$0xf]
    %v117 = vld [vmem:[%s3] sm:$0xf]
    %v118 = vld [vmem:[%s3 + $0x4] sm:$0xf]
    %v119 = vld [vmem:[%s3 + $0x8] sm:$0xf]
    %v120 = vld [vmem:[%s3 + $0xc] sm:$0xf]
    %v121 = vld [vmem:[%s3 + $0x10] sm:$0xf]
    %v122 = vld [vmem:[%s3 + $0x14] sm:$0xf]
    %v123 = vld [vmem:[%s3 + $0x18] sm:$0xf]
    %v124 = vld [vmem:[%s3 + $0x1c] sm:$0xf]
    %v125 = vld [vmem:[%s3 + $0x20] sm:$0xf]
    %v126 = vld [vmem:[%s3 + $0x24] sm:$0xf]
    %v127 = vld [vmem:[%s3 + $0x28] sm:$0xf]
    %v128 = vld [vmem:[%s3 + $0x2c] sm:$0xf]
    %v129 = vld [vmem:[%s3 + $0x30] sm:$0xf]
    %v130 = vld [vmem:[%s3 + $0x34] sm:$0xf]
    %v131 = vld [vmem:[%s3 + $0x38] sm:$0xf]
    %v132 = vld [vmem:[%s3 + $0x3c] sm:$0xf]
    %v149 = vunpack.c.l.b16 %v117
    %v150 = vunpack.c.l.b16 %v118
    %v151 = vunpack.c.l.b16 %v119
    %v152 = vunpack.c.l.b16 %v120
    %v153 = vunpack.c.l.b16 %v121
    %v154 = vunpack.c.l.b16 %v122
    %v155 = vunpack.c.l.b16 %v123
    %v156 = vunpack.c.l.b16 %v124
    %v157 = vunpack.c.l.b16 %v125
    %v158 = vunpack.c.l.b16 %v126
    %v159 = vunpack.c.l.b16 %v127
    %v160 = vunpack.c.l.b16 %v128
    %v161 = vunpack.c.l.b16 %v129
    %v162 = vunpack.c.l.b16 %v130
    %v163 = vunpack.c.l.b16 %v131
    %v164 = vunpack.c.l.b16 %v132
    %v165 = vpack.c.b16 %v150, %v149
    %v166 = vpack.c.b16 %v152, %v151
    %v167 = vpack.c.b16 %v154, %v153
    %v168 = vpack.c.b16 %v156, %v155
    %v169 = vpack.c.b16 %v158, %v157
    %v170 = vpack.c.b16 %v160, %v159
    %v171 = vpack.c.b16 %v162, %v161
    %v172 = vpack.c.b16 %v164, %v163
    %181 = vmatprep.subr.bf16.mxu0 0
    %182 = vmatpush1.bf16.msra.mxu0 %v172
    %183 = vmatprep.subr.bf16.mxu0 0
    %184 = vmatpush1.bf16.msra.mxu0 %v171
    %185 = vmatprep.subr.bf16.mxu0 0
    %186 = vmatpush1.bf16.msra.mxu0 %v170
    %187 = vmatprep.subr.bf16.mxu0 0
    %188 = vmatpush1.bf16.msra.mxu0 %v169
    %189 = vmatprep.subr.bf16.mxu0 0
    %190 = vmatpush1.bf16.msra.mxu0 %v168
    %191 = vmatprep.subr.bf16.mxu0 0
    %192 = vmatpush1.bf16.msra.mxu0 %v167
    %193 = vmatprep.subr.bf16.mxu0 0
    %194 = vmatpush1.bf16.msra.mxu0 %v166
    %195 = vmatprep.subr.bf16.mxu0 0
    %196 = vmatpush1.bf16.msra.mxu0 %v165
    %197 = vmatprep.subr.bf16.mxu0 0
    %198 = vmatpush2.bf16.msra.mxu0 0
    %199 = vmatprep.subr.bf16.mxu0 0
    %200 = vmatpush2.bf16.msra.mxu0 0
    %201 = vmatprep.subr.bf16.mxu0 0
    %202 = vmatpush2.bf16.msra.mxu0 0
    %203 = vmatprep.subr.bf16.mxu0 0
    %204 = vmatpush2.bf16.msra.mxu0 0
    %205 = vmatprep.subr.bf16.mxu0 0
    %206 = vmatpush2.bf16.msra.mxu0 0
    %207 = vmatprep.subr.bf16.mxu0 0
    %208 = vmatpush2.bf16.msra.mxu0 0
    %209 = vmatprep.subr.bf16.mxu0 0
    %210 = vmatpush2.bf16.msra.mxu0 0
    %211 = vmatprep.subr.bf16.mxu0 0
    %212 = vmatpush2.bf16.msra.mxu0 0
    %213 = vmatprep.mubr.bf16.mxu0 0
    %214 = vmatmul.mubr.bf16.gmra.mxu0 %v100
    %v215 = vpop.f32.mrf.mxu0
    %v216 = vadd.f32 0.0, %v215
    %v217 = vpop.f32.mrf.mxu0
    %v218 = vpop.f32.mrf.mxu0
    %v219 = vpop.f32.mrf.mxu0
    %220 = vdwg.mxu0
    %v237 = vunpack.c.l.b16 %v101
    %v238 = vunpack.c.l.b16 %v102
    %v239 = vunpack.c.l.b16 %v103
    %v240 = vunpack.c.l.b16 %v104
    %v241 = vunpack.c.l.b16 %v105
    %v242 = vunpack.c.l.b16 %v106
    %v243 = vunpack.c.l.b16 %v107
    %v244 = vunpack.c.l.b16 %v108
    %v245 = vunpack.c.l.b16 %v109
    %v246 = vunpack.c.l.b16 %v110
    %v247 = vunpack.c.l.b16 %v111
    %v248 = vunpack.c.l.b16 %v112
    %v249 = vunpack.c.l.b16 %v113
    %v250 = vunpack.c.l.b16 %v114
    %v251 = vunpack.c.l.b16 %v115
    %v252 = vunpack.c.l.b16 %v116
    %v253 = vpack.c.b16 %v238, %v237
    %v254 = vpack.c.b16 %v240, %v239
    %v255 = vpack.c.b16 %v242, %v241
    %v256 = vpack.c.b16 %v244, %v243
    %v257 = vpack.c.b16 %v246, %v245
    %v258 = vpack.c.b16 %v248, %v247
    %v259 = vpack.c.b16 %v250, %v249
    %v260 = vpack.c.b16 %v252, %v251
    %269 = vmatprep.subr.bf16.mxu0 0
    %270 = vmatpush1.bf16.msra.mxu0 %v260
    %271 = vmatprep.subr.bf16.mxu0 0
    %272 = vmatpush1.bf16.msra.mxu0 %v259
    %273 = vmatprep.subr.bf16.mxu0 0
    %274 = vmatpush1.bf16.msra.mxu0 %v258
    %275 = vmatprep.subr.bf16.mxu0 0
    %276 = vmatpush1.bf16.msra.mxu0 %v257
    %277 = vmatprep.subr.bf16.mxu0 0
    %278 = vmatpush1.bf16.msra.mxu0 %v256
    %279 = vmatprep.subr.bf16.mxu0 0
    %280 = vmatpush1.bf16.msra.mxu0 %v255
    %281 = vmatprep.subr.bf16.mxu0 0
    %282 = vmatpush1.bf16.msra.mxu0 %v254
    %283 = vmatprep.subr.bf16.mxu0 0
    %284 = vmatpush1.bf16.msra.mxu0 %v253
    %285 = vmatprep.subr.bf16.mxu0 0
    %286 = vmatpush2.bf16.msra.mxu0 0
    %287 = vmatprep.subr.bf16.mxu0 0
    %288 = vmatpush2.bf16.msra.mxu0 0
    %289 = vmatprep.subr.bf16.mxu0 0
    %290 = vmatpush2.bf16.msra.mxu0 0
    %291 = vmatprep.subr.bf16.mxu0 0
    %292 = vmatpush2.bf16.msra.mxu0 0
    %293 = vmatprep.subr.bf16.mxu0 0
    %294 = vmatpush2.bf16.msra.mxu0 0
    %295 = vmatprep.subr.bf16.mxu0 0
    %296 = vmatpush2.bf16.msra.mxu0 0
    %297 = vmatprep.subr.bf16.mxu0 0
    %298 = vmatpush2.bf16.msra.mxu0 0
    %299 = vmatprep.subr.bf16.mxu0 0
    %300 = vmatpush2.bf16.msra.mxu0 0
    %301 = vmatprep.mubr.bf16.mxu0 0
    %302 = vmatmul.mubr.bf16.gmra.mxu0 %v99
    %v303 = vpop.f32.mrf.mxu0
    %v304 = vadd.f32 %v216, %v303
    %v305 = vpop.f32.mrf.mxu0
    %v306 = vpop.f32.mrf.mxu0
    %v307 = vpop.f32.mrf.mxu0
    %308 = vdwg.mxu0
    %v309 = vld [vmem:[%s4] sm:$0x1]
    %v310 = vadd.f32 %v304, %v309
    %v311 = vpack.c.bf16 %v76, %v76
    %v312 = vpack.c.bf16 %v98, %v98
    %313 = vmatprep.subr.bf16.mxu0 0
    %314 = vmatpush1.bf16.msra.mxu0 %v172
    %315 = vmatprep.subr.bf16.mxu0 0
    %316 = vmatpush1.bf16.msra.mxu0 %v171
    %317 = vmatprep.subr.bf16.mxu0 0
    %318 = vmatpush1.bf16.msra.mxu0 %v170
    %319 = vmatprep.subr.bf16.mxu0 0
    %320 = vmatpush1.bf16.msra.mxu0 %v169
    %321 = vmatprep.subr.bf16.mxu0 0
    %322 = vmatpush1.bf16.msra.mxu0 %v168
    %323 = vmatprep.subr.bf16.mxu0 0
    %324 = vmatpush1.bf16.msra.mxu0 %v167
    %325 = vmatprep.subr.bf16.mxu0 0
    %326 = vmatpush1.bf16.msra.mxu0 %v166
    %327 = vmatprep.subr.bf16.mxu0 0
    %328 = vmatpush1.bf16.msra.mxu0 %v165
    %329 = vmatprep.subr.bf16.mxu0 0
    %330 = vmatpush2.bf16.msra.mxu0 0
    %331 = vmatprep.subr.bf16.mxu0 0
    %332 = vmatpush2.bf16.msra.mxu0 0
    %333 = vmatprep.subr.bf16.mxu0 0
    %334 = vmatpush2.bf16.msra.mxu0 0
    %335 = vmatprep.subr.bf16.mxu0 0
    %336 = vmatpush2.bf16.msra.mxu0 0
    %337 = vmatprep.subr.bf16.mxu0 0
    %338 = vmatpush2.bf16.msra.mxu0 0
    %339 = vmatprep.subr.bf16.mxu0 0
    %340 = vmatpush2.bf16.msra.mxu0 0
    %341 = vmatprep.subr.bf16.mxu0 0
    %342 = vmatpush2.bf16.msra.mxu0 0
    %343 = vmatprep.subr.bf16.mxu0 0
    %344 = vmatpush2.bf16.msra.mxu0 0
    %345 = vmatprep.mubr.bf16.mxu0 0
    %346 = vmatmul.mubr.bf16.gmra.mxu0 %v312
    %v347 = vpop.f32.mrf.mxu0
    %v348 = vadd.f32 0.0, %v347
    %v349 = vpop.f32.mrf.mxu0
    %v350 = vpop.f32.mrf.mxu0
    %v351 = vpop.f32.mrf.mxu0
    %352 = vdwg.mxu0
    %353 = vmatprep.subr.bf16.mxu0 0
    %354 = vmatpush1.bf16.msra.mxu0 %v260
    %355 = vmatprep.subr.bf16.mxu0 0
    %356 = vmatpush1.bf16.msra.mxu0 %v259
    %357 = vmatprep.subr.bf16.mxu0 0
    %358 = vmatpush1.bf16.msra.mxu0 %v258
    %359 = vmatprep.subr.bf16.mxu0 0
    %360 = vmatpush1.bf16.msra.mxu0 %v257
    %361 = vmatprep.subr.bf16.mxu0 0
    %362 = vmatpush1.bf16.msra.mxu0 %v256
    %363 = vmatprep.subr.bf16.mxu0 0
    %364 = vmatpush1.bf16.msra.mxu0 %v255
    %365 = vmatprep.subr.bf16.mxu0 0
    %366 = vmatpush1.bf16.msra.mxu0 %v254
    %367 = vmatprep.subr.bf16.mxu0 0
    %368 = vmatpush1.bf16.msra.mxu0 %v253
    %369 = vmatprep.subr.bf16.mxu0 0
    %370 = vmatpush2.bf16.msra.mxu0 0
    %371 = vmatprep.subr.bf16.mxu0 0
    %372 = vmatpush2.bf16.msra.mxu0 0
    %373 = vmatprep.subr.bf16.mxu0 0
    %374 = vmatpush2.bf16.msra.mxu0 0
    %375 = vmatprep.subr.bf16.mxu0 0
    %376 = vmatpush2.bf16.msra.mxu0 0
    %377 = vmatprep.subr.bf16.mxu0 0
    %378 = vmatpush2.bf16.msra.mxu0 0
    %379 = vmatprep.subr.bf16.mxu0 0
    %380 = vmatpush2.bf16.msra.mxu0 0
    %381 = vmatprep.subr.bf16.mxu0 0
    %382 = vmatpush2.bf16.msra.mxu0 0
    %383 = vmatprep.subr.bf16.mxu0 0
    %384 = vmatpush2.bf16.msra.mxu0 0
    %385 = vmatprep.mubr.bf16.mxu0 0
    %386 = vmatmul.mubr.bf16.gmra.mxu0 %v311
    %v387 = vpop.f32.mrf.mxu0
    %v388 = vadd.f32 %v348, %v387
    %v389 = vpop.f32.mrf.mxu0
    %v390 = vpop.f32.mrf.mxu0
    %v391 = vpop.f32.mrf.mxu0
    %392 = vdwg.mxu0
    %v393 = vadd.f32 %v388, %v309
    %v395 = vrot.slane %v393, 7
    %vm397 = vcmask 1040384
    %v398 = vsel %vm397, %v310, %v395
    %399 = vst [vmem:[#allocation2] sm:$0x3] %v398
    // Predicated region
    $region22: #{forward.45} parent=1 // pred_check
      _
    $region23: #{forward.45} parent=1 // pred_check_branch
      %401 = sbr.rel (0) target = $region25
    $region24: #{forward.45} parent=1 // pred_region
      %s403 = ssub.s32 32, 32
      %404 = vsyncadd [#allocation3], %s403
      %s406 = sshll.u32 [#allocation2], 4
      %s407 = int_to_ptr.vmem [resolvable:$true] %s406
      %409 = dma.vmem_to_hbm [thread:$0]  %s407, 32, %s5, [#allocation3]
    $region25: #{forward.45} parent=1 // pred_fallthru
      _
    // Predicated region
    $region26: #{forward.45} parent=1 // pred_check
      _
    $region27: #{forward.45} parent=1 // pred_check_branch
      %411 = sbr.rel (0) target = $region29
    $region28: #{forward.45} parent=1 // pred_region
      %412 = dma.done [#allocation3], 32
    $region29: #{forward.45} parent=1 // pred_fallthru
      _
    %413 = vsyncpa [#allocation3], 1

// kernel: forward.28
$region0: #{forward.28}
  #allocation0 [shape = 'u32[]', space=smem, size = 0x4, offset = 0x4, fixed_abs, tag = 'smem constant byte address 0x4 - core index']
  #allocation1 [shape = 'u32[144,128]{1,0:T(1,128)}', space=vmem, size = 0x12000, scoped, tag = 'internal scratch']
  %s0 = inlined_call_operand.vmem [shape: bf16[32,256], index: 0, kind: input, shape index: {}]
  %s1 = inlined_call_operand.vmem [shape: bf16[16,256], index: 1, kind: input, shape index: {}]
  %s2 = inlined_call_operand.vmem [shape: bf16[32,16], index: 2, kind: input, shape index: {}]
  %s3 = inlined_call_operand.vmem [shape: bf16[128,128], index: 3, kind: input, shape index: {}]
  %s4 = inlined_call_operand.vmem [shape: bf16[128,128], index: 4, kind: input, shape index: {}]
  %s5 = inlined_call_operand.vmem [shape: f32[1,128], index: 5, kind: input, shape index: {}]
  %s6 = inlined_call_operand.vmem [shape: bf16[128,128], index: 6, kind: input, shape index: {}]
  %s7 = inlined_call_operand.vmem [shape: f32[1,128], index: 7, kind: input, shape index: {}]
  %s8 = inlined_call_operand.vmem [shape: bf16[32,256], index: 8, kind: output, shape index: {}]
  %s9 = sld [smem:[#allocation0]]
  $region184: #{forward.28} parent=0
    _
  %s11 = ssub.s32 1, %s9
  %s12 = scalar_select 0, %s11, %s9
  $region1: #{forward.28} parent=0
    #allocation2 [shape = 'u8[16384]{0}', space=vmem, size = 0x4000, scoped, tag = 'input window, operand 0']
    #allocation3 [shape = 'u8[8192]{0}', space=vmem, size = 0x2000, scoped, tag = 'input window, operand 1']
    #allocation4 [shape = 'u8[16384]{0}', space=vmem, size = 0x4000, scoped, tag = 'output window, operand 0']
    loop: start=0, step=1, limit=4
    $region2: #{forward.28} parent=1 // loop_pre_header
      _
    $region3: #{forward.28} parent=1 // loop_header
      %s14 = sphi 0, %s18
      %p15 = scmp.ge.s32.totalorder %s14, 4
      %s24 = sphi 0, %s26
      %s27 = sphi 0, %s24
      %s28 = sphi 0, %s27
      %s44 = sphi 0, %s28
      %s50 = sphi 0, %s52
      %s53 = sphi 0, %s50
      %s54 = sphi 0, %s53
      %s70 = sphi 0, %s54
      %s74 = sphi 0, %s74
      %s76 = sphi 0, %s74
      %s77 = sphi 0, %s76
      %s91 = sphi 0, %s77
      %s95 = sphi 0, %s95
      %s97 = sphi 0, %s95
      %s98 = sphi 0, %s97
      %s112 = sphi 0, %s98
      %s116 = sphi 0, %s116
      %s118 = sphi 0, %s116
      %s119 = sphi 0, %s118
      %s133 = sphi 0, %s119
      %s137 = sphi 0, %s137
      %s139 = sphi 0, %s137
      %s140 = sphi 0, %s139
      %s154 = sphi 0, %s140
      %s158 = sphi 0, %s158
      %s160 = sphi 0, %s158
      %s161 = sphi 0, %s160
      %s175 = sphi 0, %s161
      %s179 = sphi 0, %s179
      %s181 = sphi 0, %s179
      %s182 = sphi 0, %s181
      %s196 = sphi 0, %s182
      %s202 = sphi 0, %s204
      %s205 = sphi 0, %s202
      %s206 = sphi 0, %s205
      %s222 = sphi 0, %s206
    $region4: #{forward.28} parent=1 // loop_header_branch
      %17 = sbr.rel (%p15) target = $region8
    $region5: #{forward.28} parent=1 // loop_body
      %s19 = ssub.s32 %s14, 1
      %s20 = ssub.s32 %s14, 2
      %s21 = sadd.s32 %s14, 1
      %s22 = ssub.s32 %s14, %s21
      %p23 = scmp.eq.s32.totalorder %s22, 0
      %s25 = sadd.s32 %s24, 1
      %s26 = scalar_select %p23, %s24, %s25
      %p29 = pneg %p23
      %p30 = scmp.eq.s32.totalorder %s14, 1
      %p31 = por %p29, %p30
      %p32 = scmp.ne.s32.totalorder %s24, %s27
      %p33 = scmp.eq.s32.totalorder %s14, 0
      %p34 = por %p32, %p33
      %p35 = scmp.ne.s32.totalorder %s24, %s27
      %p36 = scmp.eq.s32.totalorder %s19, 1
      %p37 = por %p35, %p36
      %p38 = scmp.ne.s32.totalorder %s27, %s28
      %p39 = scmp.eq.s32.totalorder %s19, 0
      %p40 = por %p38, %p39
      %p41 = scmp.ne.s32.totalorder %s27, %s28
      %p42 = scmp.eq.s32.totalorder %s20, 1
      %p43 = por %p41, %p42
      %p45 = scmp.ne.s32.totalorder %s28, %s44
      %p46 = scmp.eq.s32.totalorder %s20, 0
      %p47 = por %p45, %p46
      %s48 = ssub.s32 %s14, %s21
      %p49 = scmp.eq.s32.totalorder %s48, 0
      %s51 = sadd.s32 %s50, 1
      %s52 = scalar_select %p49, %s50, %s51
      %p55 = pneg %p49
      %p56 = scmp.eq.s32.totalorder %s14, 1
      %p57 = por %p55, %p56
      %p58 = scmp.ne.s32.totalorder %s50, %s53
      %p59 = scmp.eq.s32.totalorder %s14, 0
      %p60 = por %p58, %p59
      %p61 = scmp.ne.s32.totalorder %s50, %s53
      %p62 = scmp.eq.s32.totalorder %s19, 1
      %p63 = por %p61, %p62
      %p64 = scmp.ne.s32.totalorder %s53, %s54
      %p65 = scmp.eq.s32.totalorder %s19, 0
      %p66 = por %p64, %p65
      %p67 = scmp.ne.s32.totalorder %s53, %s54
      %p68 = scmp.eq.s32.totalorder %s20, 1
      %p69 = por %p67, %p68
      %p71 = scmp.ne.s32.totalorder %s54, %s70
      %p72 = scmp.eq.s32.totalorder %s20, 0
      %p73 = por %p71, %p72
      %s75 = sadd.s32 %s74, 1
      %p78 = scmp.eq.s32.totalorder %s14, 1
      %p79 = scmp.ne.s32.totalorder %s74, %s76
      %p80 = scmp.eq.s32.totalorder %s14, 0
      %p81 = por %p79, %p80
      %p82 = scmp.ne.s32.totalorder %s74, %s76
      %p83 = scmp.eq.s32.totalorder %s19, 1
      %p84 = por %p82, %p83
      %p85 = scmp.ne.s32.totalorder %s76, %s77
      %p86 = scmp.eq.s32.totalorder %s19, 0
      %p87 = por %p85, %p86
      %p88 = scmp.ne.s32.totalorder %s76, %s77
      %p89 = scmp.eq.s32.totalorder %s20, 1
      %p90 = por %p88, %p89
      %p92 = scmp.ne.s32.totalorder %s77, %s91
      %p93 = scmp.eq.s32.totalorder %s20, 0
      %p94 = por %p92, %p93
      %s96 = sadd.s32 %s95, 1
      %p99 = scmp.eq.s32.totalorder %s14, 1
      %p100 = scmp.ne.s32.totalorder %s95, %s97
      %p101 = scmp.eq.s32.totalorder %s14, 0
      %p102 = por %p100, %p101
      %p103 = scmp.ne.s32.totalorder %s95, %s97
      %p104 = scmp.eq.s32.totalorder %s19, 1
      %p105 = por %p103, %p104
      %p106 = scmp.ne.s32.totalorder %s97, %s98
      %p107 = scmp.eq.s32.totalorder %s19, 0
      %p108 = por %p106, %p107
      %p109 = scmp.ne.s32.totalorder %s97, %s98
      %p110 = scmp.eq.s32.totalorder %s20, 1
      %p111 = por %p109, %p110
      %p113 = scmp.ne.s32.totalorder %s98, %s112
      %p114 = scmp.eq.s32.totalorder %s20, 0
      %p115 = por %p113, %p114
      %s117 = sadd.s32 %s116, 1
      %p120 = scmp.eq.s32.totalorder %s14, 1
      %p121 = scmp.ne.s32.totalorder %s116, %s118
      %p122 = scmp.eq.s32.totalorder %s14, 0
      %p123 = por %p121, %p122
      %p124 = scmp.ne.s32.totalorder %s116, %s118
      %p125 = scmp.eq.s32.totalorder %s19, 1
      %p126 = por %p124, %p125
      %p127 = scmp.ne.s32.totalorder %s118, %s119
      %p128 = scmp.eq.s32.totalorder %s19, 0
      %p129 = por %p127, %p128
      %p130 = scmp.ne.s32.totalorder %s118, %s119
      %p131 = scmp.eq.s32.totalorder %s20, 1
      %p132 = por %p130, %p131
      %p134 = scmp.ne.s32.totalorder %s119, %s133
      %p135 = scmp.eq.s32.totalorder %s20, 0
      %p136 = por %p134, %p135
      %s138 = sadd.s32 %s137, 1
      %p141 = scmp.eq.s32.totalorder %s14, 1
      %p142 = scmp.ne.s32.totalorder %s137, %s139
      %p143 = scmp.eq.s32.totalorder %s14, 0
      %p144 = por %p142, %p143
      %p145 = scmp.ne.s32.totalorder %s137, %s139
      %p146 = scmp.eq.s32.totalorder %s19, 1
      %p147 = por %p145, %p146
      %p148 = scmp.ne.s32.totalorder %s139, %s140
      %p149 = scmp.eq.s32.totalorder %s19, 0
      %p150 = por %p148, %p149
      %p151 = scmp.ne.s32.totalorder %s139, %s140
      %p152 = scmp.eq.s32.totalorder %s20, 1
      %p153 = por %p151, %p152
      %p155 = scmp.ne.s32.totalorder %s140, %s154
      %p156 = scmp.eq.s32.totalorder %s20, 0
      %p157 = por %p155, %p156
      %s159 = sadd.s32 %s158, 1
      %p162 = scmp.eq.s32.totalorder %s14, 1
      %p163 = scmp.ne.s32.totalorder %s158, %s160
      %p164 = scmp.eq.s32.totalorder %s14, 0
      %p165 = por %p163, %p164
      %p166 = scmp.ne.s32.totalorder %s158, %s160
      %p167 = scmp.eq.s32.totalorder %s19, 1
      %p168 = por %p166, %p167
      %p169 = scmp.ne.s32.totalorder %s160, %s161
      %p170 = scmp.eq.s32.totalorder %s19, 0
      %p171 = por %p169, %p170
      %p172 = scmp.ne.s32.totalorder %s160, %s161
      %p173 = scmp.eq.s32.totalorder %s20, 1
      %p174 = por %p172, %p173
      %p176 = scmp.ne.s32.totalorder %s161, %s175
      %p177 = scmp.eq.s32.totalorder %s20, 0
      %p178 = por %p176, %p177
      %s180 = sadd.s32 %s179, 1
      %p183 = scmp.eq.s32.totalorder %s14, 1
      %p184 = scmp.ne.s32.totalorder %s179, %s181
      %p185 = scmp.eq.s32.totalorder %s14, 0
      %p186 = por %p184, %p185
      %p187 = scmp.ne.s32.totalorder %s179, %s181
      %p188 = scmp.eq.s32.totalorder %s19, 1
      %p189 = por %p187, %p188
      %p190 = scmp.ne.s32.totalorder %s181, %s182
      %p191 = scmp.eq.s32.totalorder %s19, 0
      %p192 = por %p190, %p191
      %p193 = scmp.ne.s32.totalorder %s181, %s182
      %p194 = scmp.eq.s32.totalorder %s20, 1
      %p195 = por %p193, %p194
      %p197 = scmp.ne.s32.totalorder %s182, %s196
      %p198 = scmp.eq.s32.totalorder %s20, 0
      %p199 = por %p197, %p198
      %s200 = ssub.s32 %s14, %s21
      %p201 = scmp.eq.s32.totalorder %s200, 0
      %s203 = sadd.s32 %s202, 1
      %s204 = scalar_select %p201, %s202, %s203
      %p207 = pneg %p201
      %p208 = scmp.eq.s32.totalorder %s14, 1
      %p209 = por %p207, %p208
      %p210 = scmp.ne.s32.totalorder %s202, %s205
      %p211 = scmp.eq.s32.totalorder %s14, 0
      %p212 = por %p210, %p211
      %p213 = scmp.ne.s32.totalorder %s202, %s205
      %p214 = scmp.eq.s32.totalorder %s19, 1
      %p215 = por %p213, %p214
      %p216 = scmp.ne.s32.totalorder %s205, %s206
      %p217 = scmp.eq.s32.totalorder %s19, 0
      %p218 = por %p216, %p217
      %p219 = scmp.ne.s32.totalorder %s205, %s206
      %p220 = scmp.eq.s32.totalorder %s20, 1
      %p221 = por %p219, %p220
      %p223 = scmp.ne.s32.totalorder %s206, %s222
      %p224 = scmp.eq.s32.totalorder %s20, 0
      %p225 = por %p223, %p224
      %p226 = scmp.le.s32.totalorder 1, %s14
      %p227 = scmp.lt.s32.totalorder %s14, 3
      %p228 = pnand %p226, %p227
      %p229 = pneg %p228
      // Predicated region
      $region9: #{forward.28} parent=5 // pred_check
        _
      $region10: #{forward.28} parent=5 // pred_check_branch
        %231 = sbr.rel (%p228) target = $region12
      $region11: #{forward.28} parent=5 // pred_region
        %s232 = ssub.s32 %s14, 1
        // Predicated region
        $region13: #{forward.28} parent=11 // pred_check
          %p233 = pneg %p87
        $region14: #{forward.28} parent=11 // pred_check_branch
          %235 = sbr.rel (%p233) target = $region16
        $region15: #{forward.28} parent=11 // pred_region
          _
        $region16: #{forward.28} parent=11 // pred_fallthru
          _
        // Predicated region
        $region17: #{forward.28} parent=11 // pred_check
          %p236 = pneg %p108
        $region18: #{forward.28} parent=11 // pred_check_branch
          %238 = sbr.rel (%p236) target = $region20
        $region19: #{forward.28} parent=11 // pred_region
          _
        $region20: #{forward.28} parent=11 // pred_fallthru
          _
        // Predicated region
        $region21: #{forward.28} parent=11 // pred_check
          %p239 = pneg %p129
        $region22: #{forward.28} parent=11 // pred_check_branch
          %241 = sbr.rel (%p239) target = $region24
        $region23: #{forward.28} parent=11 // pred_region
          _
        $region24: #{forward.28} parent=11 // pred_fallthru
          _
        // Predicated region
        $region25: #{forward.28} parent=11 // pred_check
          %p242 = pneg %p150
        $region26: #{forward.28} parent=11 // pred_check_branch
          %244 = sbr.rel (%p242) target = $region28
        $region27: #{forward.28} parent=11 // pred_region
          _
        $region28: #{forward.28} parent=11 // pred_fallthru
          _
        // Predicated region
        $region29: #{forward.28} parent=11 // pred_check
          %p245 = pneg %p171
        $region30: #{forward.28} parent=11 // pred_check_branch
          %247 = sbr.rel (%p245) target = $region32
        $region31: #{forward.28} parent=11 // pred_region
          _
        $region32: #{forward.28} parent=11 // pred_fallthru
          _
        // Predicated region
        $region33: #{forward.28} parent=11 // pred_check
          %p248 = pneg %p192
        $region34: #{forward.28} parent=11 // pred_check_branch
          %250 = sbr.rel (%p248) target = $region36
        $region35: #{forward.28} parent=11 // pred_region
          _
        $region36: #{forward.28} parent=11 // pred_fallthru
          _
      $region12: #{forward.28} parent=5 // pred_fallthru
        _
      %p251 = scmp.lt.s32.totalorder %s14, 2
      // Predicated region
      $region37: #{forward.28} parent=5 // pred_check
        %p252 = pneg %p251
      $region38: #{forward.28} parent=5 // pred_check_branch
        %254 = sbr.rel (%p252) target = $region40
      $region39: #{forward.28} parent=5 // pred_region
        // Predicated region
        $region41: #{forward.28} parent=39 // pred_check
          %p255 = pneg %p34
        $region42: #{forward.28} parent=39 // pred_check_branch
          %257 = sbr.rel (%p255) target = $region44
        $region43: #{forward.28} parent=39 // pred_region
          %s258 = sand.u32 %s24, 1
          %s259 = sand.u32 %s24, 1
          %s260 = smul.addr %s259, 16
          %s261 = scalar_lea.vmem [#allocation2], %s260
          %s262 = smul.addr %s14, 4
          %s263 = scalar_lea.vmem %s0, %s262
          // Predicated region
          $region45: #{forward.28} parent=43 // pred_check
            _
          $region46: #{forward.28} parent=43 // pred_check_branch
            %265 = sbr.rel (0) target = $region48
          $region47: #{forward.28} parent=43 // pred_region
            // Predicated region
            $region49: #{forward.28} parent=47 // pred_check
              _
            $region50: #{forward.28} parent=47 // pred_check_branch
              %267 = sbr.rel target = $region52
            $region51: #{forward.28} parent=47 // pred_region
              // Predicated region
              $region64: #{forward.28} parent=51 // pred_check
                _
              $region65: #{forward.28} parent=51 // pred_check_branch
                %289 = sbr.rel (0) target = $region67
              $region66: #{forward.28} parent=51 // pred_region
                loop: start=0, step=1, limit=1
                $region68: #{forward.28} parent=66 // loop_pre_header
                  _
                $region69: #{forward.28} parent=66 // loop_header
                  %s291 = sphi 0, %s295
                  %p292 = scmp.ge.s32.totalorder %s291, 1
                  %s296 = sphi %s263, %s263
                  %s297 = sphi %s261, %s261
                $region70: #{forward.28} parent=66 // loop_header_branch
                  %294 = sbr.rel (%p292) target = $region74
                $region71: #{forward.28} parent=66 // loop_body
                  _
                $region72: #{forward.28} parent=66 // loop_footer
                  %s295 = sadd.s32 1, %s291
                $region73: #{forward.28} parent=66 // loop_footer_branch
                  %290 = sbr.rel target = $region69
                $region74: #{forward.28} parent=66 // loop_exit
                  _
                %s299 = ssub.s32 16, 1
                loop: start=0, step=1, limit=1
                $region75: #{forward.28} parent=66 // loop_pre_header
                  _
                $region76: #{forward.28} parent=66 // loop_header
                  %s301 = sphi 0, %s305
                  %p302 = scmp.ge.s32.totalorder %s301, 1
                  %s306 = sphi %s263, %s263
                  %s307 = sphi %s261, %s261
                $region77: #{forward.28} parent=66 // loop_header_branch
                  %304 = sbr.rel (%p302) target = $region81
                $region78: #{forward.28} parent=66 // loop_body
                  %v308 = vld [vmem:[%s306] sm:%s299]
                  %309 = vst [vmem:[%s307] sm:%s299] %v308
                  %v310 = vld [vmem:[%s306 + $0x8] sm:%s299]
                  %311 = vst [vmem:[%s307 + $0x4] sm:%s299] %v310
                  %v312 = vld [vmem:[%s306 + $0x10] sm:%s299]
                  %313 = vst [vmem:[%s307 + $0x8] sm:%s299] %v312
                  %v314 = vld [vmem:[%s306 + $0x18] sm:%s299]
                  %315 = vst [vmem:[%s307 + $0xc] sm:%s299] %v314
                $region79: #{forward.28} parent=66 // loop_footer
                  %s305 = sadd.s32 1, %s301
                $region80: #{forward.28} parent=66 // loop_footer_branch
                  %300 = sbr.rel target = $region76
                $region81: #{forward.28} parent=66 // loop_exit
                  _
              $region67: #{forward.28} parent=51 // pred_fallthru
                _
            $region52: #{forward.28} parent=47 // pred_fallthru
              _
            // Predicated region
            $region53: #{forward.28} parent=47 // pred_check
              _
            $region54: #{forward.28} parent=47 // pred_check_branch
              %269 = sbr.rel (0) target = $region56
            $region55: #{forward.28} parent=47 // pred_region
              %s271 = ssub.s32 16, 1
              loop: start=0, step=1, limit=1
              $region57: #{forward.28} parent=55 // loop_pre_header
                _
              $region58: #{forward.28} parent=55 // loop_header
                %s273 = sphi 0, %s277
                %p274 = scmp.ge.s32.totalorder %s273, 1
                %s278 = sphi %s263, %s263
                %s279 = sphi %s261, %s261
              $region59: #{forward.28} parent=55 // loop_header_branch
                %276 = sbr.rel (%p274) target = $region63
              $region60: #{forward.28} parent=55 // loop_body
                %v280 = vld [vmem:[%s278] sm:%s271]
                %281 = vst [vmem:[%s279] sm:%s271] %v280
                %v282 = vld [vmem:[%s278 + $0x8] sm:%s271]
                %283 = vst [vmem:[%s279 + $0x4] sm:%s271] %v282
                %v284 = vld [vmem:[%s278 + $0x10] sm:%s271]
                %285 = vst [vmem:[%s279 + $0x8] sm:%s271] %v284
                %v286 = vld [vmem:[%s278 + $0x18] sm:%s271]
                %287 = vst [vmem:[%s279 + $0xc] sm:%s271] %v286
              $region61: #{forward.28} parent=55 // loop_footer
                %s277 = sadd.s32 1, %s273
              $region62: #{forward.28} parent=55 // loop_footer_branch
                %272 = sbr.rel target = $region58
              $region63: #{forward.28} parent=55 // loop_exit
                _
            $region56: #{forward.28} parent=47 // pred_fallthru
              _
          $region48: #{forward.28} parent=43 // pred_fallthru
            _
          %316 = vnop
        $region44: #{forward.28} parent=39 // pred_fallthru
          _
        // Predicated region
        $region82: #{forward.28} parent=39 // pred_check
          %p317 = pneg %p60
        $region83: #{forward.28} parent=39 // pred_check_branch
          %319 = sbr.rel (%p317) target = $region85
        $region84: #{forward.28} parent=39 // pred_region
          %s320 = sand.u32 %s50, 1
          %s321 = sand.u32 %s50, 1
          %s322 = smul.addr %s321, 8
          %s323 = scalar_lea.vmem [#allocation3], %s322
          %s324 = smul.addr %s14, 4
          %s325 = scalar_lea.vmem %s1, %s324
          // Predicated region
          $region86: #{forward.28} parent=84 // pred_check
            _
          $region87: #{forward.28} parent=84 // pred_check_branch
            %327 = sbr.rel (0) target = $region89
          $region88: #{forward.28} parent=84 // pred_region
            // Predicated region
            $region90: #{forward.28} parent=88 // pred_check
              _
            $region91: #{forward.28} parent=88 // pred_check_branch
              %329 = sbr.rel target = $region93
            $region92: #{forward.28} parent=88 // pred_region
              // Predicated region
              $region105: #{forward.28} parent=92 // pred_check
                _
              $region106: #{forward.28} parent=92 // pred_check_branch
                %347 = sbr.rel (0) target = $region108
              $region107: #{forward.28} parent=92 // pred_region
                loop: start=0, step=1, limit=1
                $region109: #{forward.28} parent=107 // loop_pre_header
                  _
                $region110: #{forward.28} parent=107 // loop_header
                  %s349 = sphi 0, %s353
                  %p350 = scmp.ge.s32.totalorder %s349, 1
                  %s354 = sphi %s325, %s325
                  %s355 = sphi %s323, %s323
                $region111: #{forward.28} parent=107 // loop_header_branch
                  %352 = sbr.rel (%p350) target = $region115
                $region112: #{forward.28} parent=107 // loop_body
                  _
                $region113: #{forward.28} parent=107 // loop_footer
                  %s353 = sadd.s32 1, %s349
                $region114: #{forward.28} parent=107 // loop_footer_branch
                  %348 = sbr.rel target = $region110
                $region115: #{forward.28} parent=107 // loop_exit
                  _
                %s357 = ssub.s32 16, 1
                loop: start=0, step=1, limit=1
                $region116: #{forward.28} parent=107 // loop_pre_header
                  _
                $region117: #{forward.28} parent=107 // loop_header
                  %s359 = sphi 0, %s363
                  %p360 = scmp.ge.s32.totalorder %s359, 1
                  %s364 = sphi %s325, %s325
                  %s365 = sphi %s323, %s323
                $region118: #{forward.28} parent=107 // loop_header_branch
                  %362 = sbr.rel (%p360) target = $region122
                $region119: #{forward.28} parent=107 // loop_body
                  %v366 = vld [vmem:[%s364] sm:%s357]
                  %367 = vst [vmem:[%s365] sm:%s357] %v366
                  %v368 = vld [vmem:[%s364 + $0x8] sm:%s357]
                  %369 = vst [vmem:[%s365 + $0x4] sm:%s357] %v368
                $region120: #{forward.28} parent=107 // loop_footer
                  %s363 = sadd.s32 1, %s359
                $region121: #{forward.28} parent=107 // loop_footer_branch
                  %358 = sbr.rel target = $region117
                $region122: #{forward.28} parent=107 // loop_exit
                  _
              $region108: #{forward.28} parent=92 // pred_fallthru
                _
            $region93: #{forward.28} parent=88 // pred_fallthru
              _
            // Predicated region
            $region94: #{forward.28} parent=88 // pred_check
              _
            $region95: #{forward.28} parent=88 // pred_check_branch
              %331 = sbr.rel (0) target = $region97
            $region96: #{forward.28} parent=88 // pred_region
              %s333 = ssub.s32 16, 1
              loop: start=0, step=1, limit=1
              $region98: #{forward.28} parent=96 // loop_pre_header
                _
              $region99: #{forward.28} parent=96 // loop_header
                %s335 = sphi 0, %s339
                %p336 = scmp.ge.s32.totalorder %s335, 1
                %s340 = sphi %s325, %s325
                %s341 = sphi %s323, %s323
              $region100: #{forward.28} parent=96 // loop_header_branch
                %338 = sbr.rel (%p336) target = $region104
              $region101: #{forward.28} parent=96 // loop_body
                %v342 = vld [vmem:[%s340] sm:%s333]
                %343 = vst [vmem:[%s341] sm:%s333] %v342
                %v344 = vld [vmem:[%s340 + $0x8] sm:%s333]
                %345 = vst [vmem:[%s341 + $0x4] sm:%s333] %v344
              $region102: #{forward.28} parent=96 // loop_footer
                %s339 = sadd.s32 1, %s335
              $region103: #{forward.28} parent=96 // loop_footer_branch
                %334 = sbr.rel target = $region99
              $region104: #{forward.28} parent=96 // loop_exit
                _
            $region97: #{forward.28} parent=88 // pred_fallthru
              _
          $region89: #{forward.28} parent=84 // pred_fallthru
            _
          %370 = vnop
        $region85: #{forward.28} parent=39 // pred_fallthru
          _
      $region40: #{forward.28} parent=5 // pred_fallthru
        _
      %p371 = scmp.le.s32.totalorder 1, %s14
      %p372 = scmp.lt.s32.totalorder %s14, 3
      %p373 = pnand %p371, %p372
      %p374 = pneg %p373
      // Predicated region
      $region123: #{forward.28} parent=5 // pred_check
        _
      $region124: #{forward.28} parent=5 // pred_check_branch
        %376 = sbr.rel (%p373) target = $region126
      $region125: #{forward.28} parent=5 // pred_region
        %s377 = ssub.s32 %s14, 1
        %s378 = sand.u32 %s27, 1
        %s379 = sand.u32 %s27, 1
        %s380 = smul.addr %s379, 16
        %s381 = scalar_lea.vmem [#allocation2], %s380
        // Predicated region
        $region127: #{forward.28} parent=125 // pred_check
          %p382 = pneg %p40
        $region128: #{forward.28} parent=125 // pred_check_branch
          %384 = sbr.rel (%p382) target = $region130
        $region129: #{forward.28} parent=125 // pred_region
          _
        $region130: #{forward.28} parent=125 // pred_fallthru
          _
        %s385 = sand.u32 %s53, 1
        %s386 = sand.u32 %s53, 1
        %s387 = smul.addr %s386, 8
        %s388 = scalar_lea.vmem [#allocation3], %s387
        // Predicated region
        $region131: #{forward.28} parent=125 // pred_check
          %p389 = pneg %p66
        $region132: #{forward.28} parent=125 // pred_check_branch
          %391 = sbr.rel (%p389) target = $region134
        $region133: #{forward.28} parent=125 // pred_region
          _
        $region134: #{forward.28} parent=125 // pred_fallthru
          _
        %s392 = sand.u32 %s27, 1
        %s393 = sand.u32 %s27, 1
        %s394 = smul.addr %s393, 16
        %s395 = scalar_lea.vmem [#allocation2], %s394
        %p396 = pneg %p40
        %p397 = pneg %p37
        %s398 = sand.u32 %s53, 1
        %s399 = sand.u32 %s53, 1
        %s400 = smul.addr %s399, 8
        %s401 = scalar_lea.vmem [#allocation3], %s400
        %p402 = pneg %p66
        %p403 = pneg %p63
        %p404 = pneg %p87
        %p405 = pneg %p84
        %p406 = pneg %p108
        %p407 = pneg %p105
        %p408 = pneg %p129
        %p409 = pneg %p126
        %p410 = pneg %p150
        %p411 = pneg %p147
        %p412 = pneg %p171
        %p413 = pneg %p168
        %p414 = pneg %p192
        %p415 = pneg %p189
        %p416 = pneg %p218
        %p417 = pneg %p215
        %s418 = sand.u32 %s205, 1
        %s419 = sand.u32 %s205, 1
        %s420 = smul.addr %s419, 16
        %s421 = scalar_lea.vmem [#allocation4], %s420
        %v423 = vld [vmem:[%s2] sm:$0xf]
        %v424 = vld [vmem:[%s2 + $0x4] sm:$0xf]
        %v425 = vld [vmem:[%s2 + $0x8] sm:$0xf]
        %v426 = vld [vmem:[%s2 + $0xc] sm:$0xf]
        %v427 = vld [vmem:[%s388] sm:$0xf]
        %v428 = vld [vmem:[%s388 + $0x4] sm:$0xf]
        %v433 = vunpack.c.l.b16 %v423
        %v434 = vunpack.c.l.b16 %v424
        %v435 = vunpack.c.l.b16 %v425
        %v436 = vunpack.c.l.b16 %v426
        %v437 = vpack.c.b16 %v434, %v433
        %v438 = vpack.c.b16 %v436, %v435
        %v441 = vunpack.c.l.b16 %v427
        %v442 = vunpack.c.l.b16 %v428
        %v443 = vpack.c.b16 %v442, %v441
        %vm445 = vcmask 130048
        %v447 = vsel %vm445, %v437, 0
        %v450 = vsel %vm445, %v438, 0
        %452 = vmatprep.subr.bf16.mxu0 0
        %453 = vmatpush1.bf16.msra.mxu0 0
        %454 = vmatprep.subr.bf16.mxu0 0
        %455 = vmatpush1.bf16.msra.mxu0 0
        %456 = vmatprep.subr.bf16.mxu0 0
        %457 = vmatpush1.bf16.msra.mxu0 0
        %458 = vmatprep.subr.bf16.mxu0 0
        %459 = vmatpush1.bf16.msra.mxu0 0
        %460 = vmatprep.subr.bf16.mxu0 0
        %461 = vmatpush1.bf16.msra.mxu0 0
        %462 = vmatprep.subr.bf16.mxu0 0
        %463 = vmatpush1.bf16.msra.mxu0 0
        %464 = vmatprep.subr.bf16.mxu0 0
        %465 = vmatpush1.bf16.msra.mxu0 0
        %466 = vmatprep.subr.bf16.mxu0 0
        %467 = vmatpush1.bf16.msra.mxu0 %v443
        %468 = vmatprep.subr.bf16.mxu0 0
        %469 = vmatpush2.bf16.msra.mxu0 0
        %470 = vmatprep.subr.bf16.mxu0 0
        %471 = vmatpush2.bf16.msra.mxu0 0
        %472 = vmatprep.subr.bf16.mxu0 0
        %473 = vmatpush2.bf16.msra.mxu0 0
        %474 = vmatprep.subr.bf16.mxu0 0
        %475 = vmatpush2.bf16.msra.mxu0 0
        %476 = vmatprep.subr.bf16.mxu0 0
        %477 = vmatpush2.bf16.msra.mxu0 0
        %478 = vmatprep.subr.bf16.mxu0 0
        %479 = vmatpush2.bf16.msra.mxu0 0
        %480 = vmatprep.subr.bf16.mxu0 0
        %481 = vmatpush2.bf16.msra.mxu0 0
        %482 = vmatprep.subr.bf16.mxu0 0
        %483 = vmatpush2.bf16.msra.mxu0 0
        %484 = vmatprep.mubr.bf16.mxu0 0
        %485 = vmatmul.mubr.bf16.gmra.mxu0 %v447
        %v486 = vpop.f32.mrf.mxu0
        %v487 = vadd.f32 0.0, %v486
        %v488 = vpop.f32.mrf.mxu0
        %v489 = vpop.f32.mrf.mxu0
        %v490 = vadd.f32 0.0, %v489
        %v491 = vpop.f32.mrf.mxu0
        %492 = vmatprep.mubr.bf16.mxu0 0
        %493 = vmatmul.mubr.bf16.gmra.mxu0 %v450
        %v494 = vpop.f32.mrf.mxu0
        %v495 = vadd.f32 0.0, %v494
        %v496 = vpop.f32.mrf.mxu0
        %v497 = vpop.f32.mrf.mxu0
        %v498 = vadd.f32 0.0, %v497
        %v499 = vpop.f32.mrf.mxu0
        %500 = vdwg.mxu0
        %v501 = vld [vmem:[%s381] sm:$0xf]
        %v502 = vld [vmem:[%s381 + $0x4] sm:$0xf]
        %v503 = vld [vmem:[%s381 + $0x8] sm:$0xf]
        %v504 = vld [vmem:[%s381 + $0xc] sm:$0xf]
        %v505 = vld [vmem:[%s3] sm:$0xf]
        %v506 = vld [vmem:[%s3 + $0x4] sm:$0xf]
        %v507 = vld [vmem:[%s3 + $0x8] sm:$0xf]
        %v508 = vld [vmem:[%s3 + $0xc] sm:$0xf]
        %v509 = vld [vmem:[%s3 + $0x10] sm:$0xf]
        %v510 = vld [vmem:[%s3 + $0x14] sm:$0xf]
        %v511 = vld [vmem:[%s3 + $0x18] sm:$0xf]
        %v512 = vld [vmem:[%s3 + $0x1c] sm:$0xf]
        %v513 = vld [vmem:[%s3 + $0x20] sm:$0xf]
        %v514 = vld [vmem:[%s3 + $0x24] sm:$0xf]
        %v515 = vld [vmem:[%s3 + $0x28] sm:$0xf]
        %v516 = vld [vmem:[%s3 + $0x2c] sm:$0xf]
        %v517 = vld [vmem:[%s3 + $0x30] sm:$0xf]
        %v518 = vld [vmem:[%s3 + $0x34] sm:$0xf]
        %v519 = vld [vmem:[%s3 + $0x38] sm:$0xf]
        %v520 = vld [vmem:[%s3 + $0x3c] sm:$0xf]
        %v521 = vld [vmem:[%s4] sm:$0xf]
        %v522 = vld [vmem:[%s4 + $0x4] sm:$0xf]
        %v523 = vld [vmem:[%s4 + $0x8] sm:$0xf]
        %v524 = vld [vmem:[%s4 + $0xc] sm:$0xf]
        %v525 = vld [vmem:[%s4 + $0x10] sm:$0xf]
        %v526 = vld [vmem:[%s4 + $0x14] sm:$0xf]
        %v527 = vld [vmem:[%s4 + $0x18] sm:$0xf]
        %v528 = vld [vmem:[%s4 + $0x1c] sm:$0xf]
        %v529 = vld [vmem:[%s4 + $0x20] sm:$0xf]
        %v530 = vld [vmem:[%s4 + $0x24] sm:$0xf]
        %v531 = vld [vmem:[%s4 + $0x28] sm:$0xf]
        %v532 = vld [vmem:[%s4 + $0x2c] sm:$0xf]
        %v533 = vld [vmem:[%s4 + $0x30] sm:$0xf]
        %v534 = vld [vmem:[%s4 + $0x34] sm:$0xf]
        %v535 = vld [vmem:[%s4 + $0x38] sm:$0xf]
        %v536 = vld [vmem:[%s4 + $0x3c] sm:$0xf]
        %v537 = vld [vmem:[%s6] sm:$0xf]
        %v538 = vld [vmem:[%s6 + $0x4] sm:$0xf]
        %v539 = vld [vmem:[%s6 + $0x8] sm:$0xf]
        %v540 = vld [vmem:[%s6 + $0xc] sm:$0xf]
        %v541 = vld [vmem:[%s6 + $0x10] sm:$0xf]
        %v542 = vld [vmem:[%s6 + $0x14] sm:$0xf]
        %v543 = vld [vmem:[%s6 + $0x18] sm:$0xf]
        %v544 = vld [vmem:[%s6 + $0x1c] sm:$0xf]
        %v545 = vld [vmem:[%s6 + $0x20] sm:$0xf]
        %v546 = vld [vmem:[%s6 + $0x24] sm:$0xf]
        %v547 = vld [vmem:[%s6 + $0x28] sm:$0xf]
        %v548 = vld [vmem:[%s6 + $0x2c] sm:$0xf]
        %v549 = vld [vmem:[%s6 + $0x30] sm:$0xf]
        %v550 = vld [vmem:[%s6 + $0x34] sm:$0xf]
        %v551 = vld [vmem:[%s6 + $0x38] sm:$0xf]
        %v552 = vld [vmem:[%s6 + $0x3c] sm:$0xf]
        %v553 = vld [vmem:[%s5] sm:$0x1]
        %v554 = vld [vmem:[%s7] sm:$0x1]
        %v555 = vpack.c.bf16 %v490, %v487
        %v556 = vpack.c.bf16 %v498, %v495
        %v573 = vunpack.c.l.b16 %v521
        %v574 = vunpack.c.l.b16 %v522
        %v575 = vunpack.c.l.b16 %v523
        %v576 = vunpack.c.l.b16 %v524
        %v577 = vunpack.c.l.b16 %v525
        %v578 = vunpack.c.l.b16 %v526
        %v579 = vunpack.c.l.b16 %v527
        %v580 = vunpack.c.l.b16 %v528
        %v581 = vunpack.c.l.b16 %v529
        %v582 = vunpack.c.l.b16 %v530
        %v583 = vunpack.c.l.b16 %v531
        %v584 = vunpack.c.l.b16 %v532
        %v585 = vunpack.c.l.b16 %v533
        %v586 = vunpack.c.l.b16 %v534
        %v587 = vunpack.c.l.b16 %v535
        %v588 = vunpack.c.l.b16 %v536
        %v589 = vpack.c.b16 %v574, %v573
        %v590 = vpack.c.b16 %v576, %v575
        %v591 = vpack.c.b16 %v578, %v577
        %v592 = vpack.c.b16 %v580, %v579
        %v593 = vpack.c.b16 %v582, %v581
        %v594 = vpack.c.b16 %v584, %v583
        %v595 = vpack.c.b16 %v586, %v585
        %v596 = vpack.c.b16 %v588, %v587
        %605 = vmatprep.subr.bf16.mxu0 0
        %606 = vmatpush1.bf16.msra.mxu0 %v596
        %607 = vmatprep.subr.bf16.mxu0 0
        %608 = vmatpush1.bf16.msra.mxu0 %v595
        %609 = vmatprep.subr.bf16.mxu0 0
        %610 = vmatpush1.bf16.msra.mxu0 %v594
        %611 = vmatprep.subr.bf16.mxu0 0
        %612 = vmatpush1.bf16.msra.mxu0 %v593
        %613 = vmatprep.subr.bf16.mxu0 0
        %614 = vmatpush1.bf16.msra.mxu0 %v592
        %615 = vmatprep.subr.bf16.mxu0 0
        %616 = vmatpush1.bf16.msra.mxu0 %v591
        %617 = vmatprep.subr.bf16.mxu0 0
        %618 = vmatpush1.bf16.msra.mxu0 %v590
        %619 = vmatprep.subr.bf16.mxu0 0
        %620 = vmatpush1.bf16.msra.mxu0 %v589
        %621 = vmatprep.subr.bf16.mxu0 0
        %622 = vmatpush2.bf16.msra.mxu0 0
        %623 = vmatprep.subr.bf16.mxu0 0
        %624 = vmatpush2.bf16.msra.mxu0 0
        %625 = vmatprep.subr.bf16.mxu0 0
        %626 = vmatpush2.bf16.msra.mxu0 0
        %627 = vmatprep.subr.bf16.mxu0 0
        %628 = vmatpush2.bf16.msra.mxu0 0
        %629 = vmatprep.subr.bf16.mxu0 0
        %630 = vmatpush2.bf16.msra.mxu0 0
        %631 = vmatprep.subr.bf16.mxu0 0
        %632 = vmatpush2.bf16.msra.mxu0 0
        %633 = vmatprep.subr.bf16.mxu0 0
        %634 = vmatpush2.bf16.msra.mxu0 0
        %635 = vmatprep.subr.bf16.mxu0 0
        %636 = vmatpush2.bf16.msra.mxu0 0
        %637 = vmatprep.mubr.bf16.mxu0 0
        %638 = vmatmul.mubr.bf16.gmra.mxu0 %v555
        %v639 = vpop.f32.mrf.mxu0
        %v640 = vadd.f32 0.0, %v639
        %v641 = vpop.f32.mrf.mxu0
        %v642 = vpop.f32.mrf.mxu0
        %v643 = vadd.f32 0.0, %v642
        %v644 = vpop.f32.mrf.mxu0
        %645 = vmatprep.mubr.bf16.mxu0 0
        %646 = vmatmul.mubr.bf16.gmra.mxu0 %v556
        %v647 = vpop.f32.mrf.mxu0
        %v648 = vadd.f32 0.0, %v647
        %v649 = vpop.f32.mrf.mxu0
        %v650 = vpop.f32.mrf.mxu0
        %v651 = vadd.f32 0.0, %v650
        %v652 = vpop.f32.mrf.mxu0
        %653 = vdwg.mxu0
        %v658 = vunpack.c.l.b16 %v501
        %v659 = vunpack.c.l.b16 %v502
        %v660 = vunpack.c.l.b16 %v503
        %v661 = vunpack.c.l.b16 %v504
        %v662 = vpack.c.b16 %v659, %v658
        %v663 = vpack.c.b16 %v661, %v660
        %v682 = vunpack.c.l.b16 %v505
        %v683 = vunpack.c.l.b16 %v506
        %v684 = vunpack.c.l.b16 %v507
        %v685 = vunpack.c.l.b16 %v508
        %v686 = vunpack.c.l.b16 %v509
        %v687 = vunpack.c.l.b16 %v510
        %v688 = vunpack.c.l.b16 %v511
        %v689 = vunpack.c.l.b16 %v512
        %v690 = vunpack.c.l.b16 %v513
        %v691 = vunpack.c.l.b16 %v514
        %v692 = vunpack.c.l.b16 %v515
        %v693 = vunpack.c.l.b16 %v516
        %v694 = vunpack.c.l.b16 %v517
        %v695 = vunpack.c.l.b16 %v518
        %v696 = vunpack.c.l.b16 %v519
        %v697 = vunpack.c.l.b16 %v520
        %v698 = vpack.c.b16 %v683, %v682
        %v699 = vpack.c.b16 %v685, %v684
        %v700 = vpack.c.b16 %v687, %v686
        %v701 = vpack.c.b16 %v689, %v688
        %v702 = vpack.c.b16 %v691, %v690
        %v703 = vpack.c.b16 %v693, %v692
        %v704 = vpack.c.b16 %v695, %v694
        %v705 = vpack.c.b16 %v697, %v696
        %714 = vmatprep.subr.bf16.mxu0 0
        %715 = vmatpush1.bf16.msra.mxu0 %v705
        %716 = vmatprep.subr.bf16.mxu0 0
        %717 = vmatpush1.bf16.msra.mxu0 %v704
        %718 = vmatprep.subr.bf16.mxu0 0
        %719 = vmatpush1.bf16.msra.mxu0 %v703
        %720 = vmatprep.subr.bf16.mxu0 0
        %721 = vmatpush1.bf16.msra.mxu0 %v702
        %722 = vmatprep.subr.bf16.mxu0 0
        %723 = vmatpush1.bf16.msra.mxu0 %v701
        %724 = vmatprep.subr.bf16.mxu0 0
        %725 = vmatpush1.bf16.msra.mxu0 %v700
        %726 = vmatprep.subr.bf16.mxu0 0
        %727 = vmatpush1.bf16.msra.mxu0 %v699
        %728 = vmatprep.subr.bf16.mxu0 0
        %729 = vmatpush1.bf16.msra.mxu0 %v698
        %730 = vmatprep.subr.bf16.mxu0 0
        %731 = vmatpush2.bf16.msra.mxu0 0
        %732 = vmatprep.subr.bf16.mxu0 0
        %733 = vmatpush2.bf16.msra.mxu0 0
        %734 = vmatprep.subr.bf16.mxu0 0
        %735 = vmatpush2.bf16.msra.mxu0 0
        %736 = vmatprep.subr.bf16.mxu0 0
        %737 = vmatpush2.bf16.msra.mxu0 0
        %738 = vmatprep.subr.bf16.mxu0 0
        %739 = vmatpush2.bf16.msra.mxu0 0
        %740 = vmatprep.subr.bf16.mxu0 0
        %741 = vmatpush2.bf16.msra.mxu0 0
        %742 = vmatprep.subr.bf16.mxu0 0
        %743 = vmatpush2.bf16.msra.mxu0 0
        %744 = vmatprep.subr.bf16.mxu0 0
        %745 = vmatpush2.bf16.msra.mxu0 0
        %746 = vmatprep.mubr.bf16.mxu0 0
        %747 = vmatmul.mubr.bf16.gmra.mxu0 %v662
        %v748 = vpop.f32.mrf.mxu0
        %v749 = vadd.f32 %v640, %v748
        %v750 = vpop.f32.mrf.mxu0
        %v751 = vpop.f32.mrf.mxu0
        %v752 = vadd.f32 %v643, %v751
        %v753 = vpop.f32.mrf.mxu0
        %754 = vmatprep.mubr.bf16.mxu0 0
        %755 = vmatmul.mubr.bf16.gmra.mxu0 %v663
        %v756 = vpop.f32.mrf.mxu0
        %v757 = vadd.f32 %v648, %v756
        %v758 = vpop.f32.mrf.mxu0
        %v759 = vpop.f32.mrf.mxu0
        %v760 = vadd.f32 %v651, %v759
        %v761 = vpop.f32.mrf.mxu0
        %762 = vdwg.mxu0
        %v764 = vlaneseq
        %v765 = vshrl.u32 %v764, 7
        %v766 = vsub.s32 0, %v765
        %v767 = vrot.slane %v553, %v766
        %v769 = vadd.f32 %v749, %v767
        %v770 = vadd.f32 %v752, %v767
        %v771 = vadd.f32 %v757, %v767
        %v772 = vadd.f32 %v760, %v767
        %v773 = vmax.f32 %v769, 0.0
        %v774 = vmax.f32 %v770, 0.0
        %v775 = vmax.f32 %v771, 0.0
        %v776 = vmax.f32 %v772, 0.0
        %v777 = vpack.c.bf16 %v774, %v773
        %v778 = vpack.c.bf16 %v776, %v775
        %v780 = vlaneseq
        %v781 = vshrl.u32 %v780, 7
        %v782 = vsub.s32 0, %v781
        %v783 = vrot.slane %v554, %v782
        %v801 = vunpack.c.l.b16 %v537
        %v802 = vunpack.c.l.b16 %v538
        %v803 = vunpack.c.l.b16 %v539
        %v804 = vunpack.c.l.b16 %v540
        %v805 = vunpack.c.l.b16 %v541
        %v806 = vunpack.c.l.b16 %v542
        %v807 = vunpack.c.l.b16 %v543
        %v808 = vunpack.c.l.b16 %v544
        %v809 = vunpack.c.l.b16 %v545
        %v810 = vunpack.c.l.b16 %v546
        %v811 = vunpack.c.l.b16 %v547
        %v812 = vunpack.c.l.b16 %v548
        %v813 = vunpack.c.l.b16 %v549
        %v814 = vunpack.c.l.b16 %v550
        %v815 = vunpack.c.l.b16 %v551
        %v816 = vunpack.c.l.b16 %v552
        %v817 = vpack.c.b16 %v802, %v801
        %v818 = vpack.c.b16 %v804, %v803
        %v819 = vpack.c.b16 %v806, %v805
        %v820 = vpack.c.b16 %v808, %v807
        %v821 = vpack.c.b16 %v810, %v809
        %v822 = vpack.c.b16 %v812, %v811
        %v823 = vpack.c.b16 %v814, %v813
        %v824 = vpack.c.b16 %v816, %v815
        %833 = vmatprep.subr.bf16.mxu0 0
        %834 = vmatpush1.bf16.msra.mxu0 %v824
        %835 = vmatprep.subr.bf16.mxu0 0
        %836 = vmatpush1.bf16.msra.mxu0 %v823
        %837 = vmatprep.subr.bf16.mxu0 0
        %838 = vmatpush1.bf16.msra.mxu0 %v822
        %839 = vmatprep.subr.bf16.mxu0 0
        %840 = vmatpush1.bf16.msra.mxu0 %v821
        %841 = vmatprep.subr.bf16.mxu0 0
        %842 = vmatpush1.bf16.msra.mxu0 %v820
        %843 = vmatprep.subr.bf16.mxu0 0
        %844 = vmatpush1.bf16.msra.mxu0 %v819
        %845 = vmatprep.subr.bf16.mxu0 0
        %846 = vmatpush1.bf16.msra.mxu0 %v818
        %847 = vmatprep.subr.bf16.mxu0 0
        %848 = vmatpush1.bf16.msra.mxu0 %v817
        %849 = vmatprep.subr.bf16.mxu0 0
        %850 = vmatpush2.bf16.msra.mxu0 0
        %851 = vmatprep.subr.bf16.mxu0 0
        %852 = vmatpush2.bf16.msra.mxu0 0
        %853 = vmatprep.subr.bf16.mxu0 0
        %854 = vmatpush2.bf16.msra.mxu0 0
        %855 = vmatprep.subr.bf16.mxu0 0
        %856 = vmatpush2.bf16.msra.mxu0 0
        %857 = vmatprep.subr.bf16.mxu0 0
        %858 = vmatpush2.bf16.msra.mxu0 0
        %859 = vmatprep.subr.bf16.mxu0 0
        %860 = vmatpush2.bf16.msra.mxu0 0
        %861 = vmatprep.subr.bf16.mxu0 0
        %862 = vmatpush2.bf16.msra.mxu0 0
        %863 = vmatprep.subr.bf16.mxu0 0
        %864 = vmatpush2.bf16.msra.mxu0 0
        %865 = vmatprep.mubr.bf16.mxu0 0
        %866 = vmatmul.mubr.bf16.gmra.mxu0 %v777
        %v867 = vpop.f32.mrf.mxu0
        %v868 = vadd.f32 %v783, %v867
        %v869 = vpop.f32.mrf.mxu0
        %v870 = vpop.f32.mrf.mxu0
        %v871 = vadd.f32 %v783, %v870
        %v872 = vpop.f32.mrf.mxu0
        %873 = vmatprep.mubr.bf16.mxu0 0
        %874 = vmatmul.mubr.bf16.gmra.mxu0 %v778
        %v875 = vpop.f32.mrf.mxu0
        %v876 = vadd.f32 %v783, %v875
        %v877 = vpop.f32.mrf.mxu0
        %v878 = vpop.f32.mrf.mxu0
        %v879 = vadd.f32 %v783, %v878
        %v880 = vpop.f32.mrf.mxu0
        %881 = vdwg.mxu0
        %v882 = vmax.f32 %v868, 0.0
        %v883 = vmax.f32 %v871, 0.0
        %v884 = vmax.f32 %v876, 0.0
        %v885 = vmax.f32 %v879, 0.0
        %v886 = vpack.c.bf16 %v883, %v882
        %v887 = vpack.c.bf16 %v885, %v884
        %v890 = vunpack.c.l.b16 %v886
        %v891 = vunpack.c.h.b16 %v886
        %v892 = vunpack.c.l.b16 %v887
        %v893 = vunpack.c.h.b16 %v887
        %v894 = vpack.c.b16 %v890, %v890
        %v895 = vpack.c.b16 %v891, %v891
        %v896 = vpack.c.b16 %v892, %v892
        %v897 = vpack.c.b16 %v893, %v893
        %902 = vst [vmem:[%s421] sm:$0xf] %v894
        %903 = vst [vmem:[%s421 + $0x4] sm:$0xf] %v895
        %904 = vst [vmem:[%s421 + $0x8] sm:$0xf] %v896
        %905 = vst [vmem:[%s421 + $0xc] sm:$0xf] %v897
        %s906 = sand.u32 %s205, 1
        %s907 = sand.u32 %s205, 1
        %s908 = smul.addr %s907, 16
        %s909 = scalar_lea.vmem [#allocation4], %s908
        // Predicated region
        $region135: #{forward.28} parent=125 // pred_check
          %p910 = pneg %p215
        $region136: #{forward.28} parent=125 // pred_check_branch
          %912 = sbr.rel (%p910) target = $region138
        $region137: #{forward.28} parent=125 // pred_region
          %s913 = smul.addr %s19, 4
          %s914 = scalar_lea.vmem %s8, %s913
          // Predicated region
          $region139: #{forward.28} parent=137 // pred_check
            _
          $region140: #{forward.28} parent=137 // pred_check_branch
            %916 = sbr.rel (0) target = $region142
          $region141: #{forward.28} parent=137 // pred_region
            // Predicated region
            $region143: #{forward.28} parent=141 // pred_check
              _
            $region144: #{forward.28} parent=141 // pred_check_branch
              %918 = sbr.rel target = $region146
            $region145: #{forward.28} parent=141 // pred_region
              // Predicated region
              $region158: #{forward.28} parent=145 // pred_check
                _
              $region159: #{forward.28} parent=145 // pred_check_branch
                %940 = sbr.rel (0) target = $region161
              $region160: #{forward.28} parent=145 // pred_region
                loop: start=0, step=1, limit=1
                $region162: #{forward.28} parent=160 // loop_pre_header
                  _
                $region163: #{forward.28} parent=160 // loop_header
                  %s942 = sphi 0, %s946
                  %p943 = scmp.ge.s32.totalorder %s942, 1
                  %s947 = sphi %s909, %s909
                  %s948 = sphi %s914, %s914
                $region164: #{forward.28} parent=160 // loop_header_branch
                  %945 = sbr.rel (%p943) target = $region168
                $region165: #{forward.28} parent=160 // loop_body
                  _
                $region166: #{forward.28} parent=160 // loop_footer
                  %s946 = sadd.s32 1, %s942
                $region167: #{forward.28} parent=160 // loop_footer_branch
                  %941 = sbr.rel target = $region163
                $region168: #{forward.28} parent=160 // loop_exit
                  _
                %s950 = ssub.s32 16, 1
                loop: start=0, step=1, limit=1
                $region169: #{forward.28} parent=160 // loop_pre_header
                  _
                $region170: #{forward.28} parent=160 // loop_header
                  %s952 = sphi 0, %s956
                  %p953 = scmp.ge.s32.totalorder %s952, 1
                  %s957 = sphi %s909, %s909
                  %s958 = sphi %s914, %s914
                $region171: #{forward.28} parent=160 // loop_header_branch
                  %955 = sbr.rel (%p953) target = $region175
                $region172: #{forward.28} parent=160 // loop_body
                  %v959 = vld [vmem:[%s957] sm:%s950]
                  %960 = vst [vmem:[%s958] sm:%s950] %v959
                  %v961 = vld [vmem:[%s957 + $0x4] sm:%s950]
                  %962 = vst [vmem:[%s958 + $0x8] sm:%s950] %v961
                  %v963 = vld [vmem:[%s957 + $0x8] sm:%s950]
                  %964 = vst [vmem:[%s958 + $0x10] sm:%s950] %v963
                  %v965 = vld [vmem:[%s957 + $0xc] sm:%s950]
                  %966 = vst [vmem:[%s958 + $0x18] sm:%s950] %v965
                $region173: #{forward.28} parent=160 // loop_footer
                  %s956 = sadd.s32 1, %s952
                $region174: #{forward.28} parent=160 // loop_footer_branch
                  %951 = sbr.rel target = $region170
                $region175: #{forward.28} parent=160 // loop_exit
                  _
              $region161: #{forward.28} parent=145 // pred_fallthru
                _
            $region146: #{forward.28} parent=141 // pred_fallthru
              _
            // Predicated region
            $region147: #{forward.28} parent=141 // pred_check
              _
            $region148: #{forward.28} parent=141 // pred_check_branch
              %920 = sbr.rel (0) target = $region150
            $region149: #{forward.28} parent=141 // pred_region
              %s922 = ssub.s32 16, 1
              loop: start=0, step=1, limit=1
              $region151: #{forward.28} parent=149 // loop_pre_header
                _
              $region152: #{forward.28} parent=149 // loop_header
                %s924 = sphi 0, %s928
                %p925 = scmp.ge.s32.totalorder %s924, 1
                %s929 = sphi %s909, %s909
                %s930 = sphi %s914, %s914
              $region153: #{forward.28} parent=149 // loop_header_branch
                %927 = sbr.rel (%p925) target = $region157
              $region154: #{forward.28} parent=149 // loop_body
                %v931 = vld [vmem:[%s929] sm:%s922]
                %932 = vst [vmem:[%s930] sm:%s922] %v931
                %v933 = vld [vmem:[%s929 + $0x4] sm:%s922]
                %934 = vst [vmem:[%s930 + $0x8] sm:%s922] %v933
                %v935 = vld [vmem:[%s929 + $0x8] sm:%s922]
                %936 = vst [vmem:[%s930 + $0x10] sm:%s922] %v935
                %v937 = vld [vmem:[%s929 + $0xc] sm:%s922]
                %938 = vst [vmem:[%s930 + $0x18] sm:%s922] %v937
              $region155: #{forward.28} parent=149 // loop_footer
                %s928 = sadd.s32 1, %s924
              $region156: #{forward.28} parent=149 // loop_footer_branch
                %923 = sbr.rel target = $region152
              $region157: #{forward.28} parent=149 // loop_exit
                _
            $region150: #{forward.28} parent=141 // pred_fallthru
              _
          $region142: #{forward.28} parent=137 // pred_fallthru
            _
          %967 = vnop
        $region138: #{forward.28} parent=125 // pred_fallthru
          _
      $region126: #{forward.28} parent=5 // pred_fallthru
        _
      %p968 = scmp.le.s32.totalorder 2, %s14
      // Predicated region
      $region176: #{forward.28} parent=5 // pred_check
        %p969 = pneg %p968
      $region177: #{forward.28} parent=5 // pred_check_branch
        %971 = sbr.rel (%p969) target = $region179
      $region178: #{forward.28} parent=5 // pred_region
        %s972 = ssub.s32 %s14, 2
        // Predicated region
        $region180: #{forward.28} parent=178 // pred_check
          %p973 = pneg %p221
        $region181: #{forward.28} parent=178 // pred_check_branch
          %975 = sbr.rel (%p973) target = $region183
        $region182: #{forward.28} parent=178 // pred_region
          %s976 = sand.u32 %s206, 1
          %s977 = sand.u32 %s206, 1
          %s978 = smul.addr %s977, 16
          %s979 = scalar_lea.vmem [#allocation4], %s978
        $region183: #{forward.28} parent=178 // pred_fallthru
          _
      $region179: #{forward.28} parent=5 // pred_fallthru
        _
    $region6: #{forward.28} parent=1 // loop_footer
      %s18 = sadd.s32 1, %s14
    $region7: #{forward.28} parent=1 // loop_footer_branch
      %13 = sbr.rel target = $region3
    $region8: #{forward.28} parent=1 // loop_exit
      _

</llo_original>
